<compile_context>
chip_gen: v7x
topology: tpu7x:2x2x1
jax: 0.10.0
libtpu: 0.0.40
codegen_flags: <defaults>
</compile_context>

<pallas_src>
import functools
import math

import jax
import jax.numpy as jnp
from jax import lax
from jax.experimental import pallas as pl
from jax.experimental.pallas import tpu as pltpu

LN_EPS = 1e-5   # custom LayerNorm eps
GN_EPS = 1e-5   # nn.GroupNorm default eps
_SQRT_HALF = 0.7071067811865476

# Column layout of the packed per-channel (C, _CV_N) f32 vector bundle.
(_CV_LN_W, _CV_LN_B, _CV_BK, _CV_BV, _CV_BO,
 _CV_GN_W, _CV_GN_B, _CV_B_MLP2, _CV_BQ) = range(9)
_CV_N = 9


def _erf(x):
    # Abramowitz & Stegun 7.1.26 polynomial, |abs err| < 1.5e-7 (fp32-accurate);
    # matches torch.erf without relying on a lax.erf lowering.
    a1, a2, a3, a4, a5 = 0.254829592, -0.284496736, 1.421413741, -1.453152027, 1.061405429
    p = 0.3275911
    s = jnp.where(x >= 0.0, 1.0, -1.0)
    ax = jnp.abs(x)
    t = 1.0 / (1.0 + p * ax)
    poly = ((((a5 * t + a4) * t + a3) * t + a2) * t + a1) * t
    return s * (1.0 - poly * jnp.exp(-ax * ax))


def _gelu(x):
    # exact (erf-based) GELU, matching torch.nn.GELU() default (approximate='none').
    return 0.5 * x * (1.0 + _erf(x * _SQRT_HALF))


# ---------------- single fused per-batch kernel ----------------
def _convformer_kernel(
        x_ref, m_ref,
        cv_ref, w1_ref, wdw_ref, w2_ref, b2_ref,
        wq1_ref, wq2_ref, wkv_ref, wo_ref,
        gnA_ref, wm1_ref, bm1_ref, wm2_ref,
        o_ref, *, num_heads, cnn_in, softmax_bf16):
    f32, bf16 = jnp.float32, jnp.bfloat16
    x = x_ref[0].astype(f32)                         # (C, T) block input
    m = m_ref[0].astype(f32)                         # (1, T) out_mask
    C, T = x.shape

    # ---- packed per-channel vectors (one VMEM slab, sliced by lane) ----
    cv = cv_ref[...]                                 # (C, 9) f32
    ln_w = cv[:, _CV_LN_W:_CV_LN_W + 1]
    ln_b = cv[:, _CV_LN_B:_CV_LN_B + 1]
    bk = cv[:, _CV_BK:_CV_BK + 1]
    bv = cv[:, _CV_BV:_CV_BV + 1]
    bo = cv[:, _CV_BO:_CV_BO + 1]
    gn_w = cv[:, _CV_GN_W:_CV_GN_W + 1]
    gn_b = cv[:, _CV_GN_B:_CV_GN_B + 1]
    b_mlp2 = cv[:, _CV_B_MLP2:_CV_B_MLP2 + 1]
    bq_fused = cv[:, _CV_BQ:_CV_BQ + 1]              # (wq @ b_qc + bq) * 1/sqrt(hd)

    # ---- hoisted edge masks for k=3 shifts (built ONCE, reused 4x) ----
    t_idx = lax.broadcasted_iota(jnp.int32, (1, T), 1)
    keep_next = t_idx < (T - 1)      # valid when reading a[:, t+1]
    keep_prev = t_idx >= 1           # valid when reading a[:, t-1]

    def shift_next(a, fill):         # out[:, t] = a[:, t+1], `fill` at t = T-1
        return jnp.where(keep_next, pltpu.roll(a, T - 1, axis=1), fill)

    def shift_prev(a, fill):         # out[:, t] = a[:, t-1], `fill` at t = 0
        return jnp.where(keep_prev, pltpu.roll(a, 1, axis=1), fill)

    # ---- LayerNorm over the channel dim ----
    mu = jnp.mean(x, axis=0, keepdims=True)
    xc = x - mu
    var = jnp.mean(xc * xc, axis=0, keepdims=True)
    ln = xc * lax.rsqrt(var + LN_EPS) * ln_w + ln_b                        # (C, T) f32

    # ---- LFE: conv branch (1x1 conv no-bias -> mask -> depthwise k=3 -> mask -> GELU) ----
    q1 = jnp.dot(w1_ref[...], ln[:cnn_in, :].astype(bf16),
                 preferred_element_type=f32) * m                          # (cnn_dim, T)
    wdw = wdw_ref[...]                                                     # (cnn_dim, 3) f32
    q1 = (wdw[:, 0:1] * shift_prev(q1, 0.0)
          + wdw[:, 1:2] * q1
          + wdw[:, 2:3] * shift_next(q1, 0.0))
    q1 = _gelu(q1 * m)

    # ---- LFE: pool branch (maxpool k=3, implicit -inf pad -> mask -> 1x1 conv -> mask -> GELU) ----
    x2 = ln[cnn_in:, :]
    neg = -jnp.inf
    p2 = jnp.maximum(jnp.maximum(shift_prev(x2, neg), x2), shift_next(x2, neg)) * m
    q2 = (jnp.dot(w2_ref[...], p2.astype(bf16), preferred_element_type=f32)
          + b2_ref[...]) * m
    q2 = _gelu(q2)

    # ---- MultiheadAttention (CAL): query = LFE output, key/value = ln_x ----
    # qcontent_proj and the 1/sqrt(hd) scale are pre-fused into wq1/wq2/bq_fused.
    ln16 = ln.astype(bf16)
    qp = (jnp.dot(wq1_ref[...], q1.astype(bf16), preferred_element_type=f32)
          + jnp.dot(wq2_ref[...], q2.astype(bf16), preferred_element_type=f32)
          + bq_fused)                                                      # (C, T), pre-scaled
    kvp = jnp.dot(wkv_ref[...], ln16, preferred_element_type=f32)          # (2C, T) stacked K|V
    kp = kvp[:C, :] + bk
    vp = kvp[C:, :] + bv

    hd = C // num_heads
    qh = qp.reshape(num_heads, hd, T).astype(bf16)
    kh = kp.reshape(num_heads, hd, T).astype(bf16)
    vh = vp.reshape(num_heads, hd, T).astype(bf16)

    # TODO(synk): for very long T (~1k+) switch to a query/KV-tiled online-softmax (flash)
    #             loop so the (H, T, T) score tile stays bounded vs. v7x's 64 MiB VMEM.
    scores = jnp.einsum('hdq,hdk->hqk', qh, kh,
                        preferred_element_type=f32)                        # (H, T, T), scale folded
    smax = jnp.max(scores, axis=-1, keepdims=True)
    d = scores - smax
    e = jnp.exp(d.astype(bf16)) if softmax_bf16 else jnp.exp(d)            # bf16 EUP on v6e/v7x
    l_row = jnp.sum(e, axis=-1, dtype=f32)                                 # (H, T) f32 denominator
    ao = jnp.einsum('hdk,hqk->hdq', vh, e.astype(bf16),
                    preferred_element_type=f32)                            # (H, hd, T)
    ao = ao * pl.reciprocal(l_row, approx=True)[:, None, :]                # normalize AFTER AV
    z = jnp.dot(wo_ref[...], ao.reshape(C, T).astype(bf16),
                preferred_element_type=f32) + bo
    out1 = (x + z) * m            # == x*out_mask + Z*Q_mask  (drop_path == Identity)

    # ---- GroupNorm(16) (two-pass, centered stats) + MLP (1x1 convs) + residual ----
    A = gnA_ref[...]              # (G, C) 0/1 group-assignment, f32 (norm stats stay f32)
    G = A.shape[0]
    inv_n = 1.0 / ((C // G) * T)
    gmean = jnp.sum(jnp.dot(A, out1, preferred_element_type=f32),
                    axis=1, keepdims=True) * inv_n                         # (G, 1)
    mean_c = lax.dot_general(A, gmean, (((0,), (0,)), ((), ())),
                             preferred_element_type=f32)                   # (C, 1)
    cxo = out1 - mean_c
    gvar = jnp.sum(jnp.dot(A, cxo * cxo, preferred_element_type=f32),
                   axis=1, keepdims=True) * inv_n                          # (G, 1)
    var_c = lax.dot_general(A, gvar, (((0,), (0,)), ((), ())),
                            preferred_element_type=f32)                    # (C, 1)
    gn = cxo * lax.rsqrt(var_c + GN_EPS) * gn_w + gn_b
    h = _gelu(jnp.dot(wm1_ref[...], gn.astype(bf16), preferred_element_type=f32)
              + bm1_ref[...])
    mo = jnp.dot(wm2_ref[...], h.astype(bf16), preferred_element_type=f32) + b_mlp2
    o_ref[0] = (out1 + mo * m).astype(o_ref.dtype)   # out + mlp(gn(out)) * out_mask


# ---------------- host-side parameter preparation ----------------
def prepare_params(raw, *, num_heads):
    """Pre-fuse qcontent_proj + softmax scale into wq, stack K|V, pack (C,1) vectors,
    cast matmul weights to bf16."""
    f32, bf16 = jnp.float32, jnp.bfloat16
    C = raw["wq"].shape[0]
    hd = C // num_heads
    scale = 1.0 / math.sqrt(hd)
    cnn_dim = raw["w_proj1"].shape[0]

    wq = raw["wq"].astype(f32)
    w_qc = raw["w_qc"].astype(f32)
    wq1 = scale * (wq @ w_qc[:, :cnn_dim])                         # (C, cnn_dim)
    wq2 = scale * (wq @ w_qc[:, cnn_dim:])                         # (C, pool_dim)
    bq_fused = scale * (wq @ raw["b_qc"].astype(f32) + raw["bq"].astype(f32))   # (C, 1)

    cvecs = jnp.concatenate(
        [raw["ln_w"], raw["ln_b"], raw["bk"], raw["bv"], raw["bo"],
         raw["gn_w"], raw["gn_b"], raw["b_mlp2"], bq_fused], axis=1).astype(f32)  # (C, 9)

    return dict(
        cvecs=cvecs,
        w_proj1=raw["w_proj1"].astype(bf16),
        w_dw=raw["w_dw"].astype(f32),
        w_proj2=raw["w_proj2"].astype(bf16),
        b_proj2=raw["b_proj2"].astype(f32),
        wq1=wq1.astype(bf16),
        wq2=wq2.astype(bf16),
        wkv=jnp.concatenate([raw["wk"], raw["wv"]], axis=0).astype(bf16),   # (2C, C)
        wo=raw["wo"].astype(bf16),
        gn_A=raw["gn_A"].astype(f32),
        w_mlp1=raw["w_mlp1"].astype(bf16),
        b_mlp1=raw["b_mlp1"].astype(f32),
        w_mlp2=raw["w_mlp2"].astype(bf16),
    )


_WEIGHT_ORDER = ("cvecs", "w_proj1", "w_dw", "w_proj2", "b_proj2",
                 "wq1", "wq2", "wkv", "wo", "gn_A", "w_mlp1", "b_mlp1", "w_mlp2")


def _softmax_bf16_ok():
    # bf16 EUP/VPU exists on v6e / v7x; keep f32 on v5e and older.
    try:
        kind = jax.devices()[0].device_kind.lower()
    except Exception:
        return False
    return not any(tag in kind for tag in ("v2", "v3", "v4", "v5"))


def _pick_vmem_limit(C, T, H, hidden, cnn_dim, pool_dim, weights, io_itemsize):
    wbytes = sum(int(w.size) * w.dtype.itemsize for w in weights)
    io = (2 * (C * T + T) + 2 * C * T) * io_itemsize          # double-buffered in/out blocks
    attn = 3 * H * T * T * 4                                  # scores + e + headroom (f32 bound)
    rows = max(2 * C, hidden, cnn_dim + pool_dim)
    slabs = 28 * rows * T * 4 + 10 * rows * T * 2             # f32 + bf16 working slabs (generous)
    need = wbytes + io + attn + slabs + (4 << 20)
    try:
        cap = pltpu.get_tpu_info().vmem_capacity_bytes
    except Exception:
        cap = 64 << 20                                        # conservative (v7x per-TC)
    return int(max(32 << 20, min(need, int(cap * 0.85))))


# ---------------- wrapper ----------------
def convformer_block_forward(x, mask, params, *, num_heads):
    # stride == 1: downsample is Identity; nearest-interp of the mask is identity.
    B, C, T = x.shape
    mask_f = mask.astype(x.dtype)                     # out_mask, (B, 1, T)
    cnn_in = params["w_proj1"].shape[1]
    cnn_dim = params["w_proj1"].shape[0]
    pool_dim = params["w_proj2"].shape[0]
    hidden = params["w_mlp1"].shape[0]
    weights = [params[n] for n in _WEIGHT_ORDER]

    vmem_limit = _pick_vmem_limit(C, T, num_heads, hidden, cnn_dim, pool_dim,
                                  weights, jnp.dtype(x.dtype).itemsize)

    out = pl.pallas_call(
        functools.partial(_convformer_kernel, num_heads=num_heads, cnn_in=cnn_in,
                          softmax_bf16=_softmax_bf16_ok()),
        out_shape=jax.ShapeDtypeStruct((B, C, T), x.dtype),
        grid=(B,),
        in_specs=[pl.BlockSpec((1, C, T), lambda b: (b, 0, 0)),
                  pl.BlockSpec((1, 1, T), lambda b: (b, 0, 0))]
                 + [pl.BlockSpec(memory_space=pltpu.MemorySpace.VMEM) for _ in weights],
        out_specs=pl.BlockSpec((1, C, T), lambda b: (b, 0, 0)),
        compiler_params=pltpu.CompilerParams(
            dimension_semantics=("parallel",),
            vmem_limit_bytes=vmem_limit),
    )(x, mask_f, *weights)
    return out, mask  # (out, out_mask.bool()) -- mask unchanged at stride 1


if __name__ == "__main__":
    B, T = 2, 128            # T multiple of 128 -> lane-dense tiles, unmasked stores
    n_embd = 64              # divisible by num_heads and by 16 (GroupNorm groups)
    n_hidden = 128
    num_heads = 8
    n_groups = 16
    cnn_in = int(0.5 * n_embd)            # LFE_lambda = 0.5
    pool_in = n_embd - cnn_in
    cnn_dim, pool_dim = 2 * cnn_in, 2 * pool_in

    key = jax.random.PRNGKey(0)
    ks = jax.random.split(key, 16)
    rnd = lambda k, shape, s=0.1: (s * jax.random.normal(k, shape)).astype(jnp.float32)

    x = jax.random.normal(ks[0], (B, n_embd, T), dtype=jnp.float32)
    mask = jnp.ones((B, 1, T), dtype=jnp.bool_).at[1, 0, 96:].set(False)

    cpg = n_embd // n_groups
    gn_A = (jnp.arange(n_embd)[None, :] // cpg
            == jnp.arange(n_groups)[:, None]).astype(jnp.float32)

    raw_params = dict(
        ln_w=jnp.ones((n_embd, 1), jnp.float32),          # LayerNorm affine (default init)
        ln_b=jnp.zeros((n_embd, 1), jnp.float32),
        w_proj1=rnd(ks[1], (cnn_dim, cnn_in)),            # MaskedConv1D 1x1, bias=False
        w_dw=rnd(ks[2], (cnn_dim, 3), 0.3),               # depthwise k=3, bias=False
        w_proj2=rnd(ks[3], (pool_dim, pool_in)),          # MaskedConv1D 1x1
        b_proj2=jnp.zeros((pool_dim, 1), jnp.float32),    # MaskedConv1D zero-inits bias
        w_qc=rnd(ks[4], (n_embd, 2 * n_embd)),            # qcontent_proj Linear
        b_qc=rnd(ks[5], (n_embd, 1)),
        wq=rnd(ks[6], (n_embd, n_embd)),                  # MHA in_proj (q/k/v chunks)
        wk=rnd(ks[7], (n_embd, n_embd)),
        wv=rnd(ks[8], (n_embd, n_embd)),
        bq=jnp.zeros((n_embd, 1), jnp.float32),
        bk=jnp.zeros((n_embd, 1), jnp.float32),
        bv=jnp.zeros((n_embd, 1), jnp.float32),
        wo=rnd(ks[9], (n_embd, n_embd)),                  # MHA out_proj
        bo=jnp.zeros((n_embd, 1), jnp.float32),
        gn_A=gn_A,                                        # GroupNorm group-assignment matrix
        gn_w=jnp.ones((n_embd, 1), jnp.float32),
        gn_b=jnp.zeros((n_embd, 1), jnp.float32),
        w_mlp1=rnd(ks[10], (n_hidden, n_embd)),           # mlp Conv1d(C, hidden, 1)
        b_mlp1=rnd(ks[11], (n_hidden, 1), 0.05),
        w_mlp2=rnd(ks[12], (n_embd, n_hidden)),           # mlp Conv1d(hidden, C, 1)
        b_mlp2=rnd(ks[13], (n_embd, 1), 0.05),
    )
    params = prepare_params(raw_params, num_heads=num_heads)

    out, out_mask = convformer_block_forward(x, mask, params, num_heads=num_heads)
    jax.block_until_ready(out)
    assert out.shape == (B, n_embd, T)
    assert out_mask.shape == (B, 1, T) and out_mask.dtype == jnp.bool_
    assert bool(jnp.all(jnp.isfinite(out)))
    print("KERNEL_OK")
</pallas_src>

<mosaic_0001>
module attributes {stable_mosaic.version = 11 : i64} {
  func.func @_convformer_kernel(%arg0: i32, %arg1: memref<1x64x128xf32, #tpu.memory_space<vmem>>, %arg2: memref<1x1x128xf32, #tpu.memory_space<vmem>>, %arg3: memref<64x9xf32, #tpu.memory_space<vmem>>, %arg4: memref<64x32xbf16, #tpu.memory_space<vmem>>, %arg5: memref<64x3xf32, #tpu.memory_space<vmem>>, %arg6: memref<64x32xbf16, #tpu.memory_space<vmem>>, %arg7: memref<64x1xf32, #tpu.memory_space<vmem>>, %arg8: memref<64x64xbf16, #tpu.memory_space<vmem>>, %arg9: memref<64x64xbf16, #tpu.memory_space<vmem>>, %arg10: memref<128x64xbf16, #tpu.memory_space<vmem>>, %arg11: memref<64x64xbf16, #tpu.memory_space<vmem>>, %arg12: memref<16x64xf32, #tpu.memory_space<vmem>>, %arg13: memref<128x64xbf16, #tpu.memory_space<vmem>>, %arg14: memref<128x1xf32, #tpu.memory_space<vmem>>, %arg15: memref<64x128xbf16, #tpu.memory_space<vmem>>, %arg16: memref<1x64x128xf32, #tpu.memory_space<vmem>>) attributes {dimension_semantics = [#tpu.dimension_semantics<parallel>], iteration_bounds = array<i64: 2>, scalar_prefetch = 0 : i64, scratch_operands = 0 : i64, tpu.core_type = #tpu.core_type<tc>, window_params = [{transform_indices = @transform_0, window_bounds = array<i64: 1, 64, 128>}, {transform_indices = @transform_1, window_bounds = array<i64: 1, 1, 128>}, {pipeline_mode = #tpu.pipeline_mode<synchronous>, transform_indices = @transform_2, window_bounds = array<i64: 64, 9>}, {pipeline_mode = #tpu.pipeline_mode<synchronous>, transform_indices = @transform_3, window_bounds = array<i64: 64, 32>}, {pipeline_mode = #tpu.pipeline_mode<synchronous>, transform_indices = @transform_4, window_bounds = array<i64: 64, 3>}, {pipeline_mode = #tpu.pipeline_mode<synchronous>, transform_indices = @transform_5, window_bounds = array<i64: 64, 32>}, {pipeline_mode = #tpu.pipeline_mode<synchronous>, transform_indices = @transform_6, window_bounds = array<i64: 64, 1>}, {pipeline_mode = #tpu.pipeline_mode<synchronous>, transform_indices = @transform_7, window_bounds = array<i64: 64, 64>}, {pipeline_mode = #tpu.pipeline_mode<synchronous>, transform_indices = @transform_8, window_bounds = array<i64: 64, 64>}, {pipeline_mode = #tpu.pipeline_mode<synchronous>, transform_indices = @transform_9, window_bounds = array<i64: 128, 64>}, {pipeline_mode = #tpu.pipeline_mode<synchronous>, transform_indices = @transform_10, window_bounds = array<i64: 64, 64>}, {pipeline_mode = #tpu.pipeline_mode<synchronous>, transform_indices = @transform_11, window_bounds = array<i64: 16, 64>}, {pipeline_mode = #tpu.pipeline_mode<synchronous>, transform_indices = @transform_12, window_bounds = array<i64: 128, 64>}, {pipeline_mode = #tpu.pipeline_mode<synchronous>, transform_indices = @transform_13, window_bounds = array<i64: 128, 1>}, {pipeline_mode = #tpu.pipeline_mode<synchronous>, transform_indices = @transform_14, window_bounds = array<i64: 64, 128>}, {transform_indices = @transform_15, window_bounds = array<i64: 1, 64, 128>}]} {
    %c0 = arith.constant 0 : index
    %c0_0 = arith.constant 0 : index
    %c0_1 = arith.constant 0 : index
    %0 = vector.load %arg1[%c0, %c0_0, %c0_1] : memref<1x64x128xf32, #tpu.memory_space<vmem>>, vector<1x64x128xf32>
    %1 = vector.shape_cast %0 : vector<1x64x128xf32> to vector<64x128xf32>
    %c0_2 = arith.constant 0 : index
    %c0_3 = arith.constant 0 : index
    %c0_4 = arith.constant 0 : index
    %2 = vector.load %arg2[%c0_2, %c0_3, %c0_4] : memref<1x1x128xf32, #tpu.memory_space<vmem>>, vector<1x1x128xf32>
    %3 = vector.shape_cast %2 : vector<1x1x128xf32> to vector<1x128xf32>
    %c0_5 = arith.constant 0 : index
    %c0_6 = arith.constant 0 : index
    %4 = vector.load %arg3[%c0_5, %c0_6] : memref<64x9xf32, #tpu.memory_space<vmem>>, vector<64x9xf32>
    %5 = vector.extract_strided_slice %4 {offsets = [0, 0], sizes = [64, 1], strides = [1, 1]} : vector<64x9xf32> to vector<64x1xf32>
    %6 = vector.extract_strided_slice %4 {offsets = [0, 1], sizes = [64, 1], strides = [1, 1]} : vector<64x9xf32> to vector<64x1xf32>
    %7 = vector.extract_strided_slice %4 {offsets = [0, 2], sizes = [64, 1], strides = [1, 1]} : vector<64x9xf32> to vector<64x1xf32>
    %8 = vector.extract_strided_slice %4 {offsets = [0, 3], sizes = [64, 1], strides = [1, 1]} : vector<64x9xf32> to vector<64x1xf32>
    %9 = vector.extract_strided_slice %4 {offsets = [0, 4], sizes = [64, 1], strides = [1, 1]} : vector<64x9xf32> to vector<64x1xf32>
    %10 = vector.extract_strided_slice %4 {offsets = [0, 5], sizes = [64, 1], strides = [1, 1]} : vector<64x9xf32> to vector<64x1xf32>
    %11 = vector.extract_strided_slice %4 {offsets = [0, 6], sizes = [64, 1], strides = [1, 1]} : vector<64x9xf32> to vector<64x1xf32>
    %12 = vector.extract_strided_slice %4 {offsets = [0, 7], sizes = [64, 1], strides = [1, 1]} : vector<64x9xf32> to vector<64x1xf32>
    %13 = vector.extract_strided_slice %4 {offsets = [0, 8], sizes = [64, 1], strides = [1, 1]} : vector<64x9xf32> to vector<64x1xf32>
    %14 = tpu.iota {dimensions = array<i32: 1>} : vector<1x128xi32>
    %c127_i32 = arith.constant 127 : i32
    %15 = vector.broadcast %c127_i32 : i32 to vector<1x128xi32>
    %16 = arith.cmpi slt, %14, %15 : vector<1x128xi32>
    %c1_i32 = arith.constant 1 : i32
    %17 = vector.broadcast %c1_i32 : i32 to vector<1x128xi32>
    %18 = arith.cmpi sge, %14, %17 : vector<1x128xi32>
    %cst = arith.constant dense<0.000000e+00> : vector<128xf32>
    %19 = vector.multi_reduction <add>, %1, %cst [0] : vector<64x128xf32> to vector<128xf32>
    %20 = vector.shape_cast %19 : vector<128xf32> to vector<1x128xf32>
    %cst_7 = arith.constant 6.400000e+01 : f32
    %21 = vector.broadcast %cst_7 : f32 to vector<1x128xf32>
    %22 = arith.divf %20, %21 : vector<1x128xf32>
    %23 = vector.broadcast %22 : vector<1x128xf32> to vector<64x128xf32>
    %24 = arith.subf %1, %23 : vector<64x128xf32>
    %25 = arith.mulf %24, %24 : vector<64x128xf32>
    %cst_8 = arith.constant dense<0.000000e+00> : vector<128xf32>
    %26 = vector.multi_reduction <add>, %25, %cst_8 [0] : vector<64x128xf32> to vector<128xf32>
    %27 = vector.shape_cast %26 : vector<128xf32> to vector<1x128xf32>
    %cst_9 = arith.constant 6.400000e+01 : f32
    %28 = vector.broadcast %cst_9 : f32 to vector<1x128xf32>
    %29 = arith.divf %27, %28 : vector<1x128xf32>
    %cst_10 = arith.constant 9.99999974E-6 : f32
    %30 = vector.broadcast %cst_10 : f32 to vector<1x128xf32>
    %31 = arith.addf %29, %30 : vector<1x128xf32>
    %32 = math.rsqrt %31 : vector<1x128xf32>
    %33 = vector.broadcast %32 : vector<1x128xf32> to vector<64x128xf32>
    %34 = arith.mulf %24, %33 : vector<64x128xf32>
    %35 = vector.broadcast %5 : vector<64x1xf32> to vector<64x128xf32>
    %36 = arith.mulf %34, %35 : vector<64x128xf32>
    %37 = vector.broadcast %6 : vector<64x1xf32> to vector<64x128xf32>
    %38 = arith.addf %36, %37 : vector<64x128xf32>
    %c0_11 = arith.constant 0 : index
    %c0_12 = arith.constant 0 : index
    %39 = vector.load %arg4[%c0_11, %c0_12] : memref<64x32xbf16, #tpu.memory_space<vmem>>, vector<64x32xbf16>
    %40 = vector.extract_strided_slice %38 {offsets = [0, 0], sizes = [32, 128], strides = [1, 1]} : vector<64x128xf32> to vector<32x128xf32>
    %41 = arith.truncf %40 : vector<32x128xf32> to vector<32x128xbf16>
    %cst_13 = arith.constant dense<0.000000e+00> : vector<64x128xf32>
    %42 = tpu.matmul %39, %41, %cst_13 {dimension_numbers = #tpu.dot_dimension_numbers<[1], [0], [0], [1], [0, 0, 1, 1], [], []>} : vector<64x32xbf16>, vector<32x128xbf16>, vector<64x128xf32> -> vector<64x128xf32>
    %43 = vector.broadcast %3 : vector<1x128xf32> to vector<64x128xf32>
    %44 = arith.mulf %42, %43 : vector<64x128xf32>
    %c0_14 = arith.constant 0 : index
    %c0_15 = arith.constant 0 : index
    %45 = vector.load %arg5[%c0_14, %c0_15] : memref<64x3xf32, #tpu.memory_space<vmem>>, vector<64x3xf32>
    %46 = vector.extract_strided_slice %45 {offsets = [0, 0], sizes = [64, 1], strides = [1, 1]} : vector<64x3xf32> to vector<64x1xf32>
    %c1_i32_16 = arith.constant 1 : i32
    %47 = tpu.dynamic_rotate %44 by %c1_i32_16 dim 1 : vector<64x128xf32>, i32 -> vector<64x128xf32>
    %cst_17 = arith.constant 0.000000e+00 : f32
    %48 = vector.shape_cast %18 : vector<1x128xi1> to vector<1x128xi1>
    %49 = vector.broadcast %48 : vector<1x128xi1> to vector<64x128xi1>
    %50 = vector.broadcast %cst_17 : f32 to vector<64x128xf32>
    %51 = arith.select %49, %47, %50 : vector<64x128xi1>, vector<64x128xf32>
    %52 = vector.broadcast %46 : vector<64x1xf32> to vector<64x128xf32>
    %53 = arith.mulf %52, %51 : vector<64x128xf32>
    %54 = vector.extract_strided_slice %45 {offsets = [0, 1], sizes = [64, 1], strides = [1, 1]} : vector<64x3xf32> to vector<64x1xf32>
    %55 = vector.broadcast %54 : vector<64x1xf32> to vector<64x128xf32>
    %56 = arith.mulf %55, %44 : vector<64x128xf32>
    %57 = arith.addf %53, %56 : vector<64x128xf32>
    %58 = vector.extract_strided_slice %45 {offsets = [0, 2], sizes = [64, 1], strides = [1, 1]} : vector<64x3xf32> to vector<64x1xf32>
    %c127_i32_18 = arith.constant 127 : i32
    %59 = tpu.dynamic_rotate %44 by %c127_i32_18 dim 1 : vector<64x128xf32>, i32 -> vector<64x128xf32>
    %cst_19 = arith.constant 0.000000e+00 : f32
    %60 = vector.shape_cast %16 : vector<1x128xi1> to vector<1x128xi1>
    %61 = vector.broadcast %60 : vector<1x128xi1> to vector<64x128xi1>
    %62 = vector.broadcast %cst_19 : f32 to vector<64x128xf32>
    %63 = arith.select %61, %59, %62 : vector<64x128xi1>, vector<64x128xf32>
    %64 = vector.broadcast %58 : vector<64x1xf32> to vector<64x128xf32>
    %65 = arith.mulf %64, %63 : vector<64x128xf32>
    %66 = arith.addf %57, %65 : vector<64x128xf32>
    %67 = vector.broadcast %3 : vector<1x128xf32> to vector<64x128xf32>
    %68 = arith.mulf %66, %67 : vector<64x128xf32>
    %cst_20 = arith.constant 5.000000e-01 : f32
    %69 = vector.broadcast %cst_20 : f32 to vector<64x128xf32>
    %70 = arith.mulf %69, %68 : vector<64x128xf32>
    %cst_21 = arith.constant 0.707106769 : f32
    %71 = vector.broadcast %cst_21 : f32 to vector<64x128xf32>
    %72 = arith.mulf %68, %71 : vector<64x128xf32>
    %cst_22 = arith.constant 0.000000e+00 : f32
    %73 = vector.broadcast %cst_22 : f32 to vector<64x128xf32>
    %74 = arith.cmpf oge, %72, %73 : vector<64x128xf32>
    %cst_23 = arith.constant 1.000000e+00 : f32
    %cst_24 = arith.constant -1.000000e+00 : f32
    %75 = vector.broadcast %cst_23 : f32 to vector<64x128xf32>
    %76 = vector.broadcast %cst_24 : f32 to vector<64x128xf32>
    %77 = arith.select %74, %75, %76 : vector<64x128xi1>, vector<64x128xf32>
    %78 = math.absf %72 : vector<64x128xf32>
    %cst_25 = arith.constant 0.327591091 : f32
    %79 = vector.broadcast %cst_25 : f32 to vector<64x128xf32>
    %80 = arith.mulf %79, %78 : vector<64x128xf32>
    %cst_26 = arith.constant 1.000000e+00 : f32
    %81 = vector.broadcast %cst_26 : f32 to vector<64x128xf32>
    %82 = arith.addf %81, %80 : vector<64x128xf32>
    %cst_27 = arith.constant 1.000000e+00 : f32
    %83 = vector.broadcast %cst_27 : f32 to vector<64x128xf32>
    %84 = arith.divf %83, %82 : vector<64x128xf32>
    %cst_28 = arith.constant 1.06140542 : f32
    %85 = vector.broadcast %cst_28 : f32 to vector<64x128xf32>
    %86 = arith.mulf %85, %84 : vector<64x128xf32>
    %cst_29 = arith.constant -1.45315206 : f32
    %87 = vector.broadcast %cst_29 : f32 to vector<64x128xf32>
    %88 = arith.addf %86, %87 : vector<64x128xf32>
    %89 = arith.mulf %88, %84 : vector<64x128xf32>
    %cst_30 = arith.constant 1.42141378 : f32
    %90 = vector.broadcast %cst_30 : f32 to vector<64x128xf32>
    %91 = arith.addf %89, %90 : vector<64x128xf32>
    %92 = arith.mulf %91, %84 : vector<64x128xf32>
    %cst_31 = arith.constant -0.284496725 : f32
    %93 = vector.broadcast %cst_31 : f32 to vector<64x128xf32>
    %94 = arith.addf %92, %93 : vector<64x128xf32>
    %95 = arith.mulf %94, %84 : vector<64x128xf32>
    %cst_32 = arith.constant 0.254829586 : f32
    %96 = vector.broadcast %cst_32 : f32 to vector<64x128xf32>
    %97 = arith.addf %95, %96 : vector<64x128xf32>
    %98 = arith.mulf %97, %84 : vector<64x128xf32>
    %cst_33 = arith.constant 0.000000e+00 : f32
    %99 = vector.broadcast %cst_33 : f32 to vector<64x128xf32>
    %100 = arith.subf %99, %78 : vector<64x128xf32>
    %101 = arith.mulf %100, %78 : vector<64x128xf32>
    %102 = math.exp %101 : vector<64x128xf32>
    %103 = arith.mulf %98, %102 : vector<64x128xf32>
    %cst_34 = arith.constant 1.000000e+00 : f32
    %104 = vector.broadcast %cst_34 : f32 to vector<64x128xf32>
    %105 = arith.subf %104, %103 : vector<64x128xf32>
    %106 = arith.mulf %77, %105 : vector<64x128xf32>
    %cst_35 = arith.constant 1.000000e+00 : f32
    %107 = vector.broadcast %cst_35 : f32 to vector<64x128xf32>
    %108 = arith.addf %107, %106 : vector<64x128xf32>
    %109 = arith.mulf %70, %108 : vector<64x128xf32>
    %110 = vector.extract_strided_slice %38 {offsets = [32, 0], sizes = [32, 128], strides = [1, 1]} : vector<64x128xf32> to vector<32x128xf32>
    %c1_i32_36 = arith.constant 1 : i32
    %111 = tpu.dynamic_rotate %110 by %c1_i32_36 dim 1 : vector<32x128xf32>, i32 -> vector<32x128xf32>
    %cst_37 = arith.constant 0xFF800000 : f32
    %112 = vector.shape_cast %18 : vector<1x128xi1> to vector<1x128xi1>
    %113 = vector.broadcast %112 : vector<1x128xi1> to vector<32x128xi1>
    %114 = vector.broadcast %cst_37 : f32 to vector<32x128xf32>
    %115 = arith.select %113, %111, %114 : vector<32x128xi1>, vector<32x128xf32>
    %116 = arith.maximumf %115, %110 : vector<32x128xf32>
    %c127_i32_38 = arith.constant 127 : i32
    %117 = tpu.dynamic_rotate %110 by %c127_i32_38 dim 1 : vector<32x128xf32>, i32 -> vector<32x128xf32>
    %cst_39 = arith.constant 0xFF800000 : f32
    %118 = vector.shape_cast %16 : vector<1x128xi1> to vector<1x128xi1>
    %119 = vector.broadcast %118 : vector<1x128xi1> to vector<32x128xi1>
    %120 = vector.broadcast %cst_39 : f32 to vector<32x128xf32>
    %121 = arith.select %119, %117, %120 : vector<32x128xi1>, vector<32x128xf32>
    %122 = arith.maximumf %116, %121 : vector<32x128xf32>
    %123 = vector.broadcast %3 : vector<1x128xf32> to vector<32x128xf32>
    %124 = arith.mulf %122, %123 : vector<32x128xf32>
    %c0_40 = arith.constant 0 : index
    %c0_41 = arith.constant 0 : index
    %125 = vector.load %arg6[%c0_40, %c0_41] : memref<64x32xbf16, #tpu.memory_space<vmem>>, vector<64x32xbf16>
    %126 = arith.truncf %124 : vector<32x128xf32> to vector<32x128xbf16>
    %cst_42 = arith.constant dense<0.000000e+00> : vector<64x128xf32>
    %127 = tpu.matmul %125, %126, %cst_42 {dimension_numbers = #tpu.dot_dimension_numbers<[1], [0], [0], [1], [0, 0, 1, 1], [], []>} : vector<64x32xbf16>, vector<32x128xbf16>, vector<64x128xf32> -> vector<64x128xf32>
    %c0_43 = arith.constant 0 : index
    %c0_44 = arith.constant 0 : index
    %128 = vector.load %arg7[%c0_43, %c0_44] : memref<64x1xf32, #tpu.memory_space<vmem>>, vector<64x1xf32>
    %129 = vector.broadcast %128 : vector<64x1xf32> to vector<64x128xf32>
    %130 = arith.addf %127, %129 : vector<64x128xf32>
    %131 = vector.broadcast %3 : vector<1x128xf32> to vector<64x128xf32>
    %132 = arith.mulf %130, %131 : vector<64x128xf32>
    %cst_45 = arith.constant 5.000000e-01 : f32
    %133 = vector.broadcast %cst_45 : f32 to vector<64x128xf32>
    %134 = arith.mulf %133, %132 : vector<64x128xf32>
    %cst_46 = arith.constant 0.707106769 : f32
    %135 = vector.broadcast %cst_46 : f32 to vector<64x128xf32>
    %136 = arith.mulf %132, %135 : vector<64x128xf32>
    %cst_47 = arith.constant 0.000000e+00 : f32
    %137 = vector.broadcast %cst_47 : f32 to vector<64x128xf32>
    %138 = arith.cmpf oge, %136, %137 : vector<64x128xf32>
    %cst_48 = arith.constant 1.000000e+00 : f32
    %cst_49 = arith.constant -1.000000e+00 : f32
    %139 = vector.broadcast %cst_48 : f32 to vector<64x128xf32>
    %140 = vector.broadcast %cst_49 : f32 to vector<64x128xf32>
    %141 = arith.select %138, %139, %140 : vector<64x128xi1>, vector<64x128xf32>
    %142 = math.absf %136 : vector<64x128xf32>
    %cst_50 = arith.constant 0.327591091 : f32
    %143 = vector.broadcast %cst_50 : f32 to vector<64x128xf32>
    %144 = arith.mulf %143, %142 : vector<64x128xf32>
    %cst_51 = arith.constant 1.000000e+00 : f32
    %145 = vector.broadcast %cst_51 : f32 to vector<64x128xf32>
    %146 = arith.addf %145, %144 : vector<64x128xf32>
    %cst_52 = arith.constant 1.000000e+00 : f32
    %147 = vector.broadcast %cst_52 : f32 to vector<64x128xf32>
    %148 = arith.divf %147, %146 : vector<64x128xf32>
    %cst_53 = arith.constant 1.06140542 : f32
    %149 = vector.broadcast %cst_53 : f32 to vector<64x128xf32>
    %150 = arith.mulf %149, %148 : vector<64x128xf32>
    %cst_54 = arith.constant -1.45315206 : f32
    %151 = vector.broadcast %cst_54 : f32 to vector<64x128xf32>
    %152 = arith.addf %150, %151 : vector<64x128xf32>
    %153 = arith.mulf %152, %148 : vector<64x128xf32>
    %cst_55 = arith.constant 1.42141378 : f32
    %154 = vector.broadcast %cst_55 : f32 to vector<64x128xf32>
    %155 = arith.addf %153, %154 : vector<64x128xf32>
    %156 = arith.mulf %155, %148 : vector<64x128xf32>
    %cst_56 = arith.constant -0.284496725 : f32
    %157 = vector.broadcast %cst_56 : f32 to vector<64x128xf32>
    %158 = arith.addf %156, %157 : vector<64x128xf32>
    %159 = arith.mulf %158, %148 : vector<64x128xf32>
    %cst_57 = arith.constant 0.254829586 : f32
    %160 = vector.broadcast %cst_57 : f32 to vector<64x128xf32>
    %161 = arith.addf %159, %160 : vector<64x128xf32>
    %162 = arith.mulf %161, %148 : vector<64x128xf32>
    %cst_58 = arith.constant 0.000000e+00 : f32
    %163 = vector.broadcast %cst_58 : f32 to vector<64x128xf32>
    %164 = arith.subf %163, %142 : vector<64x128xf32>
    %165 = arith.mulf %164, %142 : vector<64x128xf32>
    %166 = math.exp %165 : vector<64x128xf32>
    %167 = arith.mulf %162, %166 : vector<64x128xf32>
    %cst_59 = arith.constant 1.000000e+00 : f32
    %168 = vector.broadcast %cst_59 : f32 to vector<64x128xf32>
    %169 = arith.subf %168, %167 : vector<64x128xf32>
    %170 = arith.mulf %141, %169 : vector<64x128xf32>
    %cst_60 = arith.constant 1.000000e+00 : f32
    %171 = vector.broadcast %cst_60 : f32 to vector<64x128xf32>
    %172 = arith.addf %171, %170 : vector<64x128xf32>
    %173 = arith.mulf %134, %172 : vector<64x128xf32>
    %174 = arith.truncf %38 : vector<64x128xf32> to vector<64x128xbf16>
    %c0_61 = arith.constant 0 : index
    %c0_62 = arith.constant 0 : index
    %175 = vector.load %arg8[%c0_61, %c0_62] : memref<64x64xbf16, #tpu.memory_space<vmem>>, vector<64x64xbf16>
    %176 = arith.truncf %109 : vector<64x128xf32> to vector<64x128xbf16>
    %cst_63 = arith.constant dense<0.000000e+00> : vector<64x128xf32>
    %177 = tpu.matmul %175, %176, %cst_63 {dimension_numbers = #tpu.dot_dimension_numbers<[1], [0], [0], [1], [0, 0, 1, 1], [], []>} : vector<64x64xbf16>, vector<64x128xbf16>, vector<64x128xf32> -> vector<64x128xf32>
    %c0_64 = arith.constant 0 : index
    %c0_65 = arith.constant 0 : index
    %178 = vector.load %arg9[%c0_64, %c0_65] : memref<64x64xbf16, #tpu.memory_space<vmem>>, vector<64x64xbf16>
    %179 = arith.truncf %173 : vector<64x128xf32> to vector<64x128xbf16>
    %cst_66 = arith.constant dense<0.000000e+00> : vector<64x128xf32>
    %180 = tpu.matmul %178, %179, %cst_66 {dimension_numbers = #tpu.dot_dimension_numbers<[1], [0], [0], [1], [0, 0, 1, 1], [], []>} : vector<64x64xbf16>, vector<64x128xbf16>, vector<64x128xf32> -> vector<64x128xf32>
    %181 = arith.addf %177, %180 : vector<64x128xf32>
    %182 = vector.broadcast %13 : vector<64x1xf32> to vector<64x128xf32>
    %183 = arith.addf %181, %182 : vector<64x128xf32>
    %c0_67 = arith.constant 0 : index
    %c0_68 = arith.constant 0 : index
    %184 = vector.load %arg10[%c0_67, %c0_68] : memref<128x64xbf16, #tpu.memory_space<vmem>>, vector<128x64xbf16>
    %cst_69 = arith.constant dense<0.000000e+00> : vector<128x128xf32>
    %185 = tpu.matmul %184, %174, %cst_69 {dimension_numbers = #tpu.dot_dimension_numbers<[1], [0], [0], [1], [0, 0, 1, 1], [], []>} : vector<128x64xbf16>, vector<64x128xbf16>, vector<128x128xf32> -> vector<128x128xf32>
    %186 = vector.extract_strided_slice %185 {offsets = [0, 0], sizes = [64, 128], strides = [1, 1]} : vector<128x128xf32> to vector<64x128xf32>
    %187 = vector.broadcast %7 : vector<64x1xf32> to vector<64x128xf32>
    %188 = arith.addf %186, %187 : vector<64x128xf32>
    %189 = vector.extract_strided_slice %185 {offsets = [64, 0], sizes = [64, 128], strides = [1, 1]} : vector<128x128xf32> to vector<64x128xf32>
    %190 = vector.broadcast %8 : vector<64x1xf32> to vector<64x128xf32>
    %191 = arith.addf %189, %190 : vector<64x128xf32>
    %192 = vector.shape_cast %183 : vector<64x128xf32> to vector<8x8x128xf32>
    %193 = arith.truncf %192 : vector<8x8x128xf32> to vector<8x8x128xbf16>
    %194 = vector.shape_cast %188 : vector<64x128xf32> to vector<8x8x128xf32>
    %195 = arith.truncf %194 : vector<8x8x128xf32> to vector<8x8x128xbf16>
    %196 = vector.shape_cast %191 : vector<64x128xf32> to vector<8x8x128xf32>
    %197 = arith.truncf %196 : vector<8x8x128xf32> to vector<8x8x128xbf16>
    "tpu.trace_start"() <{level = 10 : i32, message = "hdq,hdk->hqk"}> : () -> ()
    %cst_70 = arith.constant dense<0.000000e+00> : vector<8x128x128xf32>
    %198 = tpu.matmul %193, %195, %cst_70 {dimension_numbers = #tpu.dot_dimension_numbers<[1], [1], [2], [2], [0, 0, 0, 2, 1, 2], [0], [0]>} : vector<8x8x128xbf16>, vector<8x8x128xbf16>, vector<8x128x128xf32> -> vector<8x128x128xf32>
    "tpu.trace_stop"() : () -> ()
    %cst_71 = arith.constant dense<0xFF800000> : vector<8x128xf32>
    %199 = vector.multi_reduction <maximumf>, %198, %cst_71 [2] : vector<8x128x128xf32> to vector<8x128xf32>
    %200 = vector.shape_cast %199 : vector<8x128xf32> to vector<8x128x1xf32>
    %201 = vector.broadcast %200 : vector<8x128x1xf32> to vector<8x128x128xf32>
    %202 = arith.subf %198, %201 : vector<8x128x128xf32>
    %203 = arith.truncf %202 : vector<8x128x128xf32> to vector<8x128x128xbf16>
    %204 = math.exp %203 : vector<8x128x128xbf16>
    %205 = arith.extf %204 : vector<8x128x128xbf16> to vector<8x128x128xf32>
    %cst_72 = arith.constant dense<0.000000e+00> : vector<8x128xf32>
    %206 = vector.multi_reduction <add>, %205, %cst_72 [2] : vector<8x128x128xf32> to vector<8x128xf32>
    "tpu.trace_start"() <{level = 10 : i32, message = "hdk,hqk->hdq"}> : () -> ()
    %cst_73 = arith.constant dense<0.000000e+00> : vector<8x8x128xf32>
    %207 = tpu.matmul %197, %204, %cst_73 {dimension_numbers = #tpu.dot_dimension_numbers<[2], [2], [1], [1], [0, 0, 0, 1, 1, 1], [0], [0]>} : vector<8x8x128xbf16>, vector<8x128x128xbf16>, vector<8x8x128xf32> -> vector<8x8x128xf32>
    "tpu.trace_stop"() : () -> ()
    %208 = tpu.reciprocal %206 {approx = true} : vector<8x128xf32> -> vector<8x128xf32>
    %209 = vector.shape_cast %208 : vector<8x128xf32> to vector<8x1x128xf32>
    %210 = vector.broadcast %209 : vector<8x1x128xf32> to vector<8x8x128xf32>
    %211 = arith.mulf %207, %210 : vector<8x8x128xf32>
    %c0_74 = arith.constant 0 : index
    %c0_75 = arith.constant 0 : index
    %212 = vector.load %arg11[%c0_74, %c0_75] : memref<64x64xbf16, #tpu.memory_space<vmem>>, vector<64x64xbf16>
    %213 = vector.shape_cast %211 : vector<8x8x128xf32> to vector<64x128xf32>
    %214 = arith.truncf %213 : vector<64x128xf32> to vector<64x128xbf16>
    %cst_76 = arith.constant dense<0.000000e+00> : vector<64x128xf32>
    %215 = tpu.matmul %212, %214, %cst_76 {dimension_numbers = #tpu.dot_dimension_numbers<[1], [0], [0], [1], [0, 0, 1, 1], [], []>} : vector<64x64xbf16>, vector<64x128xbf16>, vector<64x128xf32> -> vector<64x128xf32>
    %216 = vector.broadcast %9 : vector<64x1xf32> to vector<64x128xf32>
    %217 = arith.addf %215, %216 : vector<64x128xf32>
    %218 = arith.addf %1, %217 : vector<64x128xf32>
    %219 = vector.broadcast %3 : vector<1x128xf32> to vector<64x128xf32>
    %220 = arith.mulf %218, %219 : vector<64x128xf32>
    %c0_77 = arith.constant 0 : index
    %c0_78 = arith.constant 0 : index
    %221 = vector.load %arg12[%c0_77, %c0_78] : memref<16x64xf32, #tpu.memory_space<vmem>>, vector<16x64xf32>
    %cst_79 = arith.constant dense<0.000000e+00> : vector<16x128xf32>
    %222 = tpu.matmul %221, %220, %cst_79 {dimension_numbers = #tpu.dot_dimension_numbers<[1], [0], [0], [1], [0, 0, 1, 1], [], []>} : vector<16x64xf32>, vector<64x128xf32>, vector<16x128xf32> -> vector<16x128xf32>
    %cst_80 = arith.constant dense<0.000000e+00> : vector<16xf32>
    %223 = vector.multi_reduction <add>, %222, %cst_80 [1] : vector<16x128xf32> to vector<16xf32>
    %224 = vector.shape_cast %223 : vector<16xf32> to vector<16x1xf32>
    %cst_81 = arith.constant 0.001953125 : f32
    %225 = vector.broadcast %cst_81 : f32 to vector<16x1xf32>
    %226 = arith.mulf %224, %225 : vector<16x1xf32>
    %cst_82 = arith.constant dense<0.000000e+00> : vector<64x1xf32>
    %227 = tpu.matmul %221, %226, %cst_82 {dimension_numbers = #tpu.dot_dimension_numbers<[0], [0], [1], [1], [0, 1, 1, 1], [], []>} : vector<16x64xf32>, vector<16x1xf32>, vector<64x1xf32> -> vector<64x1xf32>
    %228 = vector.broadcast %227 : vector<64x1xf32> to vector<64x128xf32>
    %229 = arith.subf %220, %228 : vector<64x128xf32>
    %230 = arith.mulf %229, %229 : vector<64x128xf32>
    %cst_83 = arith.constant dense<0.000000e+00> : vector<16x128xf32>
    %231 = tpu.matmul %221, %230, %cst_83 {dimension_numbers = #tpu.dot_dimension_numbers<[1], [0], [0], [1], [0, 0, 1, 1], [], []>} : vector<16x64xf32>, vector<64x128xf32>, vector<16x128xf32> -> vector<16x128xf32>
    %cst_84 = arith.constant dense<0.000000e+00> : vector<16xf32>
    %232 = vector.multi_reduction <add>, %231, %cst_84 [1] : vector<16x128xf32> to vector<16xf32>
    %233 = vector.shape_cast %232 : vector<16xf32> to vector<16x1xf32>
    %cst_85 = arith.constant 0.001953125 : f32
    %234 = vector.broadcast %cst_85 : f32 to vector<16x1xf32>
    %235 = arith.mulf %233, %234 : vector<16x1xf32>
    %cst_86 = arith.constant dense<0.000000e+00> : vector<64x1xf32>
    %236 = tpu.matmul %221, %235, %cst_86 {dimension_numbers = #tpu.dot_dimension_numbers<[0], [0], [1], [1], [0, 1, 1, 1], [], []>} : vector<16x64xf32>, vector<16x1xf32>, vector<64x1xf32> -> vector<64x1xf32>
    %cst_87 = arith.constant 9.99999974E-6 : f32
    %237 = vector.broadcast %cst_87 : f32 to vector<64x1xf32>
    %238 = arith.addf %236, %237 : vector<64x1xf32>
    %239 = math.rsqrt %238 : vector<64x1xf32>
    %240 = vector.broadcast %239 : vector<64x1xf32> to vector<64x128xf32>
    %241 = arith.mulf %229, %240 : vector<64x128xf32>
    %242 = vector.broadcast %10 : vector<64x1xf32> to vector<64x128xf32>
    %243 = arith.mulf %241, %242 : vector<64x128xf32>
    %244 = vector.broadcast %11 : vector<64x1xf32> to vector<64x128xf32>
    %245 = arith.addf %243, %244 : vector<64x128xf32>
    %c0_88 = arith.constant 0 : index
    %c0_89 = arith.constant 0 : index
    %246 = vector.load %arg13[%c0_88, %c0_89] : memref<128x64xbf16, #tpu.memory_space<vmem>>, vector<128x64xbf16>
    %247 = arith.truncf %245 : vector<64x128xf32> to vector<64x128xbf16>
    %cst_90 = arith.constant dense<0.000000e+00> : vector<128x128xf32>
    %248 = tpu.matmul %246, %247, %cst_90 {dimension_numbers = #tpu.dot_dimension_numbers<[1], [0], [0], [1], [0, 0, 1, 1], [], []>} : vector<128x64xbf16>, vector<64x128xbf16>, vector<128x128xf32> -> vector<128x128xf32>
    %c0_91 = arith.constant 0 : index
    %c0_92 = arith.constant 0 : index
    %249 = vector.load %arg14[%c0_91, %c0_92] : memref<128x1xf32, #tpu.memory_space<vmem>>, vector<128x1xf32>
    %250 = vector.broadcast %249 : vector<128x1xf32> to vector<128x128xf32>
    %251 = arith.addf %248, %250 : vector<128x128xf32>
    %cst_93 = arith.constant 5.000000e-01 : f32
    %252 = vector.broadcast %cst_93 : f32 to vector<128x128xf32>
    %253 = arith.mulf %252, %251 : vector<128x128xf32>
    %cst_94 = arith.constant 0.707106769 : f32
    %254 = vector.broadcast %cst_94 : f32 to vector<128x128xf32>
    %255 = arith.mulf %251, %254 : vector<128x128xf32>
    %cst_95 = arith.constant 0.000000e+00 : f32
    %256 = vector.broadcast %cst_95 : f32 to vector<128x128xf32>
    %257 = arith.cmpf oge, %255, %256 : vector<128x128xf32>
    %cst_96 = arith.constant 1.000000e+00 : f32
    %cst_97 = arith.constant -1.000000e+00 : f32
    %258 = vector.broadcast %cst_96 : f32 to vector<128x128xf32>
    %259 = vector.broadcast %cst_97 : f32 to vector<128x128xf32>
    %260 = arith.select %257, %258, %259 : vector<128x128xi1>, vector<128x128xf32>
    %261 = math.absf %255 : vector<128x128xf32>
    %cst_98 = arith.constant 0.327591091 : f32
    %262 = vector.broadcast %cst_98 : f32 to vector<128x128xf32>
    %263 = arith.mulf %262, %261 : vector<128x128xf32>
    %cst_99 = arith.constant 1.000000e+00 : f32
    %264 = vector.broadcast %cst_99 : f32 to vector<128x128xf32>
    %265 = arith.addf %264, %263 : vector<128x128xf32>
    %cst_100 = arith.constant 1.000000e+00 : f32
    %266 = vector.broadcast %cst_100 : f32 to vector<128x128xf32>
    %267 = arith.divf %266, %265 : vector<128x128xf32>
    %cst_101 = arith.constant 1.06140542 : f32
    %268 = vector.broadcast %cst_101 : f32 to vector<128x128xf32>
    %269 = arith.mulf %268, %267 : vector<128x128xf32>
    %cst_102 = arith.constant -1.45315206 : f32
    %270 = vector.broadcast %cst_102 : f32 to vector<128x128xf32>
    %271 = arith.addf %269, %270 : vector<128x128xf32>
    %272 = arith.mulf %271, %267 : vector<128x128xf32>
    %cst_103 = arith.constant 1.42141378 : f32
    %273 = vector.broadcast %cst_103 : f32 to vector<128x128xf32>
    %274 = arith.addf %272, %273 : vector<128x128xf32>
    %275 = arith.mulf %274, %267 : vector<128x128xf32>
    %cst_104 = arith.constant -0.284496725 : f32
    %276 = vector.broadcast %cst_104 : f32 to vector<128x128xf32>
    %277 = arith.addf %275, %276 : vector<128x128xf32>
    %278 = arith.mulf %277, %267 : vector<128x128xf32>
    %cst_105 = arith.constant 0.254829586 : f32
    %279 = vector.broadcast %cst_105 : f32 to vector<128x128xf32>
    %280 = arith.addf %278, %279 : vector<128x128xf32>
    %281 = arith.mulf %280, %267 : vector<128x128xf32>
    %cst_106 = arith.constant 0.000000e+00 : f32
    %282 = vector.broadcast %cst_106 : f32 to vector<128x128xf32>
    %283 = arith.subf %282, %261 : vector<128x128xf32>
    %284 = arith.mulf %283, %261 : vector<128x128xf32>
    %285 = math.exp %284 : vector<128x128xf32>
    %286 = arith.mulf %281, %285 : vector<128x128xf32>
    %cst_107 = arith.constant 1.000000e+00 : f32
    %287 = vector.broadcast %cst_107 : f32 to vector<128x128xf32>
    %288 = arith.subf %287, %286 : vector<128x128xf32>
    %289 = arith.mulf %260, %288 : vector<128x128xf32>
    %cst_108 = arith.constant 1.000000e+00 : f32
    %290 = vector.broadcast %cst_108 : f32 to vector<128x128xf32>
    %291 = arith.addf %290, %289 : vector<128x128xf32>
    %292 = arith.mulf %253, %291 : vector<128x128xf32>
    %c0_109 = arith.constant 0 : index
    %c0_110 = arith.constant 0 : index
    %293 = vector.load %arg15[%c0_109, %c0_110] : memref<64x128xbf16, #tpu.memory_space<vmem>>, vector<64x128xbf16>
    %294 = arith.truncf %292 : vector<128x128xf32> to vector<128x128xbf16>
    %cst_111 = arith.constant dense<0.000000e+00> : vector<64x128xf32>
    %295 = tpu.matmul %293, %294, %cst_111 {dimension_numbers = #tpu.dot_dimension_numbers<[1], [0], [0], [1], [0, 0, 1, 1], [], []>} : vector<64x128xbf16>, vector<128x128xbf16>, vector<64x128xf32> -> vector<64x128xf32>
    %296 = vector.broadcast %12 : vector<64x1xf32> to vector<64x128xf32>
    %297 = arith.addf %295, %296 : vector<64x128xf32>
    %298 = vector.broadcast %3 : vector<1x128xf32> to vector<64x128xf32>
    %299 = arith.mulf %297, %298 : vector<64x128xf32>
    %300 = arith.addf %220, %299 : vector<64x128xf32>
    %c0_112 = arith.constant 0 : index
    %c0_113 = arith.constant 0 : index
    %c0_114 = arith.constant 0 : index
    %301 = vector.load %arg16[%c0_112, %c0_113, %c0_114] : memref<1x64x128xf32, #tpu.memory_space<vmem>>, vector<1x64x128xf32>
    %302 = vector.shape_cast %301 : vector<1x64x128xf32> to vector<64x128xf32>
    %303 = vector.shape_cast %300 : vector<64x128xf32> to vector<1x64x128xf32>
    tpu.vector_store %arg16[%c0_112, %c0_113, %c0_114], %303 {strides = array<i32>} : memref<1x64x128xf32, #tpu.memory_space<vmem>>, vector<1x64x128xf32>,
    return
  }
  func.func @transform_0(%arg0: i32) -> (i32, i32, i32) {
    %c0_i32 = arith.constant 0 : i32
    %c0_i32_0 = arith.constant 0 : i32
    %c0_i32_1 = arith.constant 0 : i32
    return %arg0, %c0_i32, %c0_i32_0 : i32, i32, i32
  }
  func.func @transform_1(%arg0: i32) -> (i32, i32, i32) {
    %c0_i32 = arith.constant 0 : i32
    %c0_i32_0 = arith.constant 0 : i32
    %c0_i32_1 = arith.constant 0 : i32
    return %arg0, %c0_i32, %c0_i32_0 : i32, i32, i32
  }
  func.func @transform_2(%arg0: i32) -> (i32, i32) {
    %c0_i32 = arith.constant 0 : i32
    %c0_i32_0 = arith.constant 0 : i32
    %c0_i32_1 = arith.constant 0 : i32
    return %c0_i32, %c0_i32_0 : i32, i32
  }
  func.func @transform_3(%arg0: i32) -> (i32, i32) {
    %c0_i32 = arith.constant 0 : i32
    %c0_i32_0 = arith.constant 0 : i32
    %c0_i32_1 = arith.constant 0 : i32
    return %c0_i32, %c0_i32_0 : i32, i32
  }
  func.func @transform_4(%arg0: i32) -> (i32, i32) {
    %c0_i32 = arith.constant 0 : i32
    %c0_i32_0 = arith.constant 0 : i32
    %c0_i32_1 = arith.constant 0 : i32
    return %c0_i32, %c0_i32_0 : i32, i32
  }
  func.func @transform_5(%arg0: i32) -> (i32, i32) {
    %c0_i32 = arith.constant 0 : i32
    %c0_i32_0 = arith.constant 0 : i32
    %c0_i32_1 = arith.constant 0 : i32
    return %c0_i32, %c0_i32_0 : i32, i32
  }
  func.func @transform_6(%arg0: i32) -> (i32, i32) {
    %c0_i32 = arith.constant 0 : i32
    %c0_i32_0 = arith.constant 0 : i32
    %c0_i32_1 = arith.constant 0 : i32
    return %c0_i32, %c0_i32_0 : i32, i32
  }
  func.func @transform_7(%arg0: i32) -> (i32, i32) {
    %c0_i32 = arith.constant 0 : i32
    %c0_i32_0 = arith.constant 0 : i32
    %c0_i32_1 = arith.constant 0 : i32
    return %c0_i32, %c0_i32_0 : i32, i32
  }
  func.func @transform_8(%arg0: i32) -> (i32, i32) {
    %c0_i32 = arith.constant 0 : i32
    %c0_i32_0 = arith.constant 0 : i32
    %c0_i32_1 = arith.constant 0 : i32
    return %c0_i32, %c0_i32_0 : i32, i32
  }
  func.func @transform_9(%arg0: i32) -> (i32, i32) {
    %c0_i32 = arith.constant 0 : i32
    %c0_i32_0 = arith.constant 0 : i32
    %c0_i32_1 = arith.constant 0 : i32
    return %c0_i32, %c0_i32_0 : i32, i32
  }
  func.func @transform_10(%arg0: i32) -> (i32, i32) {
    %c0_i32 = arith.constant 0 : i32
    %c0_i32_0 = arith.constant 0 : i32
    %c0_i32_1 = arith.constant 0 : i32
    return %c0_i32, %c0_i32_0 : i32, i32
  }
  func.func @transform_11(%arg0: i32) -> (i32, i32) {
    %c0_i32 = arith.constant 0 : i32
    %c0_i32_0 = arith.constant 0 : i32
    %c0_i32_1 = arith.constant 0 : i32
    return %c0_i32, %c0_i32_0 : i32, i32
  }
  func.func @transform_12(%arg0: i32) -> (i32, i32) {
    %c0_i32 = arith.constant 0 : i32
    %c0_i32_0 = arith.constant 0 : i32
    %c0_i32_1 = arith.constant 0 : i32
    return %c0_i32, %c0_i32_0 : i32, i32
  }
  func.func @transform_13(%arg0: i32) -> (i32, i32) {
    %c0_i32 = arith.constant 0 : i32
    %c0_i32_0 = arith.constant 0 : i32
    %c0_i32_1 = arith.constant 0 : i32
    return %c0_i32, %c0_i32_0 : i32, i32
  }
  func.func @transform_14(%arg0: i32) -> (i32, i32) {
    %c0_i32 = arith.constant 0 : i32
    %c0_i32_0 = arith.constant 0 : i32
    %c0_i32_1 = arith.constant 0 : i32
    return %c0_i32, %c0_i32_0 : i32, i32
  }
  func.func @transform_15(%arg0: i32) -> (i32, i32, i32) {
    %c0_i32 = arith.constant 0 : i32
    %c0_i32_0 = arith.constant 0 : i32
    %c0_i32_1 = arith.constant 0 : i32
    return %arg0, %c0_i32, %c0_i32_0 : i32, i32, i32
  }
}

</mosaic_0001>

<llo_original>
// kernel: tpu_custom_call.1
$region0: #{tpu_custom_call.1}
  #allocation0 [shape = 'u32[]', space=smem, size = 0x4, offset = 0x4, fixed_abs, tag = 'smem constant byte address 0x4 - core index']
  #allocation1 [shape = 'u32[144,128]{1,0:T(1,128)}', space=vmem, size = 0x12000, scoped, tag = 'internal scratch']
  %s0 = inlined_call_operand.vmem [shape: f32[2,64,128], index: 0, kind: input, shape index: {}]
  %s1 = inlined_call_operand.vmem [shape: f32[2,1,128], index: 1, kind: input, shape index: {}]
  %s2 = inlined_call_operand.vmem [shape: f32[64,9], index: 2, kind: input, shape index: {}]
  %s3 = inlined_call_operand.vmem [shape: bf16[64,32], index: 3, kind: input, shape index: {}]
  %s4 = inlined_call_operand.vmem [shape: f32[64,3], index: 4, kind: input, shape index: {}]
  %s5 = inlined_call_operand.vmem [shape: bf16[64,32], index: 5, kind: input, shape index: {}]
  %s6 = inlined_call_operand.vmem [shape: f32[64,1], index: 6, kind: input, shape index: {}]
  %s7 = inlined_call_operand.vmem [shape: bf16[64,64], index: 7, kind: input, shape index: {}]
  %s8 = inlined_call_operand.vmem [shape: bf16[64,64], index: 8, kind: input, shape index: {}]
  %s9 = inlined_call_operand.vmem [shape: bf16[128,64], index: 9, kind: input, shape index: {}]
  %s10 = inlined_call_operand.vmem [shape: bf16[64,64], index: 10, kind: input, shape index: {}]
  %s11 = inlined_call_operand.vmem [shape: f32[16,64], index: 11, kind: input, shape index: {}]
  %s12 = inlined_call_operand.vmem [shape: bf16[128,64], index: 12, kind: input, shape index: {}]
  %s13 = inlined_call_operand.vmem [shape: f32[128,1], index: 13, kind: input, shape index: {}]
  %s14 = inlined_call_operand.vmem [shape: bf16[64,128], index: 14, kind: input, shape index: {}]
  %s15 = inlined_call_operand.hbm [shape: f32[2,64,128], index: 15, kind: output, shape index: {}]
  %s16 = sld [smem:[#allocation0]]
  $region93: #{tpu_custom_call.1} parent=0
    _
  %s18 = ssub.s32 1, %s16
  %s19 = scalar_select 0, %s18, %s16
  $region1: #{tpu_custom_call.1} parent=0
    #allocation2 [shape = 'u8[65536]{0}', space=vmem, size = 0x10000, scoped, tag = 'output window, operand 0']
    #allocation3 [shape = 's32[2]{0}', space=sflag, size = 0x8, scoped, tag = 'scoped memory for tpu_custom_call.1']
    %20 = vsyncpa [#allocation3], 0
    %s21 = scalar_lea.sflag [#allocation3], 1
    %22 = vsyncpa %s21, 0
    loop: start=0, step=1, limit=4
    $region2: #{tpu_custom_call.1} parent=1 // loop_pre_header
      _
    $region3: #{tpu_custom_call.1} parent=1 // loop_header
      %s24 = sphi 0, %s28
      %p25 = scmp.ge.s32.totalorder %s24, 4
      %s34 = sphi 0, %s36
      %s37 = sphi 0, %s34
      %s38 = sphi 0, %s37
      %s54 = sphi 0, %s38
      %s60 = sphi 0, %s62
      %s63 = sphi 0, %s60
      %s64 = sphi 0, %s63
      %s80 = sphi 0, %s64
      %s84 = sphi 0, %s84
      %s86 = sphi 0, %s84
      %s87 = sphi 0, %s86
      %s101 = sphi 0, %s87
      %s105 = sphi 0, %s105
      %s107 = sphi 0, %s105
      %s108 = sphi 0, %s107
      %s122 = sphi 0, %s108
      %s126 = sphi 0, %s126
      %s128 = sphi 0, %s126
      %s129 = sphi 0, %s128
      %s143 = sphi 0, %s129
      %s147 = sphi 0, %s147
      %s149 = sphi 0, %s147
      %s150 = sphi 0, %s149
      %s164 = sphi 0, %s150
      %s168 = sphi 0, %s168
      %s170 = sphi 0, %s168
      %s171 = sphi 0, %s170
      %s185 = sphi 0, %s171
      %s189 = sphi 0, %s189
      %s191 = sphi 0, %s189
      %s192 = sphi 0, %s191
      %s206 = sphi 0, %s192
      %s210 = sphi 0, %s210
      %s212 = sphi 0, %s210
      %s213 = sphi 0, %s212
      %s227 = sphi 0, %s213
      %s231 = sphi 0, %s231
      %s233 = sphi 0, %s231
      %s234 = sphi 0, %s233
      %s248 = sphi 0, %s234
      %s252 = sphi 0, %s252
      %s254 = sphi 0, %s252
      %s255 = sphi 0, %s254
      %s269 = sphi 0, %s255
      %s273 = sphi 0, %s273
      %s275 = sphi 0, %s273
      %s276 = sphi 0, %s275
      %s290 = sphi 0, %s276
      %s294 = sphi 0, %s294
      %s296 = sphi 0, %s294
      %s297 = sphi 0, %s296
      %s311 = sphi 0, %s297
      %s315 = sphi 0, %s315
      %s317 = sphi 0, %s315
      %s318 = sphi 0, %s317
      %s332 = sphi 0, %s318
      %s336 = sphi 0, %s336
      %s338 = sphi 0, %s336
      %s339 = sphi 0, %s338
      %s353 = sphi 0, %s339
      %s359 = sphi 0, %s361
      %s362 = sphi 0, %s359
      %s363 = sphi 0, %s362
      %s379 = sphi 0, %s363
    $region4: #{tpu_custom_call.1} parent=1 // loop_header_branch
      %27 = sbr.rel (%p25) target = $region8
    $region5: #{tpu_custom_call.1} parent=1 // loop_body
      %s29 = ssub.s32 %s24, 1
      %s30 = ssub.s32 %s24, 2
      %s31 = sadd.s32 %s24, 1
      %s32 = ssub.s32 %s24, %s31
      %p33 = scmp.eq.s32.totalorder %s32, 0
      %s35 = sadd.s32 %s34, 1
      %s36 = scalar_select %p33, %s34, %s35
      %p39 = pneg %p33
      %p40 = scmp.eq.s32.totalorder %s24, 1
      %p41 = por %p39, %p40
      %p42 = scmp.ne.s32.totalorder %s34, %s37
      %p43 = scmp.eq.s32.totalorder %s24, 0
      %p44 = por %p42, %p43
      %p45 = scmp.ne.s32.totalorder %s34, %s37
      %p46 = scmp.eq.s32.totalorder %s29, 1
      %p47 = por %p45, %p46
      %p48 = scmp.ne.s32.totalorder %s37, %s38
      %p49 = scmp.eq.s32.totalorder %s29, 0
      %p50 = por %p48, %p49
      %p51 = scmp.ne.s32.totalorder %s37, %s38
      %p52 = scmp.eq.s32.totalorder %s30, 1
      %p53 = por %p51, %p52
      %p55 = scmp.ne.s32.totalorder %s38, %s54
      %p56 = scmp.eq.s32.totalorder %s30, 0
      %p57 = por %p55, %p56
      %s58 = ssub.s32 %s24, %s31
      %p59 = scmp.eq.s32.totalorder %s58, 0
      %s61 = sadd.s32 %s60, 1
      %s62 = scalar_select %p59, %s60, %s61
      %p65 = pneg %p59
      %p66 = scmp.eq.s32.totalorder %s24, 1
      %p67 = por %p65, %p66
      %p68 = scmp.ne.s32.totalorder %s60, %s63
      %p69 = scmp.eq.s32.totalorder %s24, 0
      %p70 = por %p68, %p69
      %p71 = scmp.ne.s32.totalorder %s60, %s63
      %p72 = scmp.eq.s32.totalorder %s29, 1
      %p73 = por %p71, %p72
      %p74 = scmp.ne.s32.totalorder %s63, %s64
      %p75 = scmp.eq.s32.totalorder %s29, 0
      %p76 = por %p74, %p75
      %p77 = scmp.ne.s32.totalorder %s63, %s64
      %p78 = scmp.eq.s32.totalorder %s30, 1
      %p79 = por %p77, %p78
      %p81 = scmp.ne.s32.totalorder %s64, %s80
      %p82 = scmp.eq.s32.totalorder %s30, 0
      %p83 = por %p81, %p82
      %s85 = sadd.s32 %s84, 1
      %p88 = scmp.eq.s32.totalorder %s24, 1
      %p89 = scmp.ne.s32.totalorder %s84, %s86
      %p90 = scmp.eq.s32.totalorder %s24, 0
      %p91 = por %p89, %p90
      %p92 = scmp.ne.s32.totalorder %s84, %s86
      %p93 = scmp.eq.s32.totalorder %s29, 1
      %p94 = por %p92, %p93
      %p95 = scmp.ne.s32.totalorder %s86, %s87
      %p96 = scmp.eq.s32.totalorder %s29, 0
      %p97 = por %p95, %p96
      %p98 = scmp.ne.s32.totalorder %s86, %s87
      %p99 = scmp.eq.s32.totalorder %s30, 1
      %p100 = por %p98, %p99
      %p102 = scmp.ne.s32.totalorder %s87, %s101
      %p103 = scmp.eq.s32.totalorder %s30, 0
      %p104 = por %p102, %p103
      %s106 = sadd.s32 %s105, 1
      %p109 = scmp.eq.s32.totalorder %s24, 1
      %p110 = scmp.ne.s32.totalorder %s105, %s107
      %p111 = scmp.eq.s32.totalorder %s24, 0
      %p112 = por %p110, %p111
      %p113 = scmp.ne.s32.totalorder %s105, %s107
      %p114 = scmp.eq.s32.totalorder %s29, 1
      %p115 = por %p113, %p114
      %p116 = scmp.ne.s32.totalorder %s107, %s108
      %p117 = scmp.eq.s32.totalorder %s29, 0
      %p118 = por %p116, %p117
      %p119 = scmp.ne.s32.totalorder %s107, %s108
      %p120 = scmp.eq.s32.totalorder %s30, 1
      %p121 = por %p119, %p120
      %p123 = scmp.ne.s32.totalorder %s108, %s122
      %p124 = scmp.eq.s32.totalorder %s30, 0
      %p125 = por %p123, %p124
      %s127 = sadd.s32 %s126, 1
      %p130 = scmp.eq.s32.totalorder %s24, 1
      %p131 = scmp.ne.s32.totalorder %s126, %s128
      %p132 = scmp.eq.s32.totalorder %s24, 0
      %p133 = por %p131, %p132
      %p134 = scmp.ne.s32.totalorder %s126, %s128
      %p135 = scmp.eq.s32.totalorder %s29, 1
      %p136 = por %p134, %p135
      %p137 = scmp.ne.s32.totalorder %s128, %s129
      %p138 = scmp.eq.s32.totalorder %s29, 0
      %p139 = por %p137, %p138
      %p140 = scmp.ne.s32.totalorder %s128, %s129
      %p141 = scmp.eq.s32.totalorder %s30, 1
      %p142 = por %p140, %p141
      %p144 = scmp.ne.s32.totalorder %s129, %s143
      %p145 = scmp.eq.s32.totalorder %s30, 0
      %p146 = por %p144, %p145
      %s148 = sadd.s32 %s147, 1
      %p151 = scmp.eq.s32.totalorder %s24, 1
      %p152 = scmp.ne.s32.totalorder %s147, %s149
      %p153 = scmp.eq.s32.totalorder %s24, 0
      %p154 = por %p152, %p153
      %p155 = scmp.ne.s32.totalorder %s147, %s149
      %p156 = scmp.eq.s32.totalorder %s29, 1
      %p157 = por %p155, %p156
      %p158 = scmp.ne.s32.totalorder %s149, %s150
      %p159 = scmp.eq.s32.totalorder %s29, 0
      %p160 = por %p158, %p159
      %p161 = scmp.ne.s32.totalorder %s149, %s150
      %p162 = scmp.eq.s32.totalorder %s30, 1
      %p163 = por %p161, %p162
      %p165 = scmp.ne.s32.totalorder %s150, %s164
      %p166 = scmp.eq.s32.totalorder %s30, 0
      %p167 = por %p165, %p166
      %s169 = sadd.s32 %s168, 1
      %p172 = scmp.eq.s32.totalorder %s24, 1
      %p173 = scmp.ne.s32.totalorder %s168, %s170
      %p174 = scmp.eq.s32.totalorder %s24, 0
      %p175 = por %p173, %p174
      %p176 = scmp.ne.s32.totalorder %s168, %s170
      %p177 = scmp.eq.s32.totalorder %s29, 1
      %p178 = por %p176, %p177
      %p179 = scmp.ne.s32.totalorder %s170, %s171
      %p180 = scmp.eq.s32.totalorder %s29, 0
      %p181 = por %p179, %p180
      %p182 = scmp.ne.s32.totalorder %s170, %s171
      %p183 = scmp.eq.s32.totalorder %s30, 1
      %p184 = por %p182, %p183
      %p186 = scmp.ne.s32.totalorder %s171, %s185
      %p187 = scmp.eq.s32.totalorder %s30, 0
      %p188 = por %p186, %p187
      %s190 = sadd.s32 %s189, 1
      %p193 = scmp.eq.s32.totalorder %s24, 1
      %p194 = scmp.ne.s32.totalorder %s189, %s191
      %p195 = scmp.eq.s32.totalorder %s24, 0
      %p196 = por %p194, %p195
      %p197 = scmp.ne.s32.totalorder %s189, %s191
      %p198 = scmp.eq.s32.totalorder %s29, 1
      %p199 = por %p197, %p198
      %p200 = scmp.ne.s32.totalorder %s191, %s192
      %p201 = scmp.eq.s32.totalorder %s29, 0
      %p202 = por %p200, %p201
      %p203 = scmp.ne.s32.totalorder %s191, %s192
      %p204 = scmp.eq.s32.totalorder %s30, 1
      %p205 = por %p203, %p204
      %p207 = scmp.ne.s32.totalorder %s192, %s206
      %p208 = scmp.eq.s32.totalorder %s30, 0
      %p209 = por %p207, %p208
      %s211 = sadd.s32 %s210, 1
      %p214 = scmp.eq.s32.totalorder %s24, 1
      %p215 = scmp.ne.s32.totalorder %s210, %s212
      %p216 = scmp.eq.s32.totalorder %s24, 0
      %p217 = por %p215, %p216
      %p218 = scmp.ne.s32.totalorder %s210, %s212
      %p219 = scmp.eq.s32.totalorder %s29, 1
      %p220 = por %p218, %p219
      %p221 = scmp.ne.s32.totalorder %s212, %s213
      %p222 = scmp.eq.s32.totalorder %s29, 0
      %p223 = por %p221, %p222
      %p224 = scmp.ne.s32.totalorder %s212, %s213
      %p225 = scmp.eq.s32.totalorder %s30, 1
      %p226 = por %p224, %p225
      %p228 = scmp.ne.s32.totalorder %s213, %s227
      %p229 = scmp.eq.s32.totalorder %s30, 0
      %p230 = por %p228, %p229
      %s232 = sadd.s32 %s231, 1
      %p235 = scmp.eq.s32.totalorder %s24, 1
      %p236 = scmp.ne.s32.totalorder %s231, %s233
      %p237 = scmp.eq.s32.totalorder %s24, 0
      %p238 = por %p236, %p237
      %p239 = scmp.ne.s32.totalorder %s231, %s233
      %p240 = scmp.eq.s32.totalorder %s29, 1
      %p241 = por %p239, %p240
      %p242 = scmp.ne.s32.totalorder %s233, %s234
      %p243 = scmp.eq.s32.totalorder %s29, 0
      %p244 = por %p242, %p243
      %p245 = scmp.ne.s32.totalorder %s233, %s234
      %p246 = scmp.eq.s32.totalorder %s30, 1
      %p247 = por %p245, %p246
      %p249 = scmp.ne.s32.totalorder %s234, %s248
      %p250 = scmp.eq.s32.totalorder %s30, 0
      %p251 = por %p249, %p250
      %s253 = sadd.s32 %s252, 1
      %p256 = scmp.eq.s32.totalorder %s24, 1
      %p257 = scmp.ne.s32.totalorder %s252, %s254
      %p258 = scmp.eq.s32.totalorder %s24, 0
      %p259 = por %p257, %p258
      %p260 = scmp.ne.s32.totalorder %s252, %s254
      %p261 = scmp.eq.s32.totalorder %s29, 1
      %p262 = por %p260, %p261
      %p263 = scmp.ne.s32.totalorder %s254, %s255
      %p264 = scmp.eq.s32.totalorder %s29, 0
      %p265 = por %p263, %p264
      %p266 = scmp.ne.s32.totalorder %s254, %s255
      %p267 = scmp.eq.s32.totalorder %s30, 1
      %p268 = por %p266, %p267
      %p270 = scmp.ne.s32.totalorder %s255, %s269
      %p271 = scmp.eq.s32.totalorder %s30, 0
      %p272 = por %p270, %p271
      %s274 = sadd.s32 %s273, 1
      %p277 = scmp.eq.s32.totalorder %s24, 1
      %p278 = scmp.ne.s32.totalorder %s273, %s275
      %p279 = scmp.eq.s32.totalorder %s24, 0
      %p280 = por %p278, %p279
      %p281 = scmp.ne.s32.totalorder %s273, %s275
      %p282 = scmp.eq.s32.totalorder %s29, 1
      %p283 = por %p281, %p282
      %p284 = scmp.ne.s32.totalorder %s275, %s276
      %p285 = scmp.eq.s32.totalorder %s29, 0
      %p286 = por %p284, %p285
      %p287 = scmp.ne.s32.totalorder %s275, %s276
      %p288 = scmp.eq.s32.totalorder %s30, 1
      %p289 = por %p287, %p288
      %p291 = scmp.ne.s32.totalorder %s276, %s290
      %p292 = scmp.eq.s32.totalorder %s30, 0
      %p293 = por %p291, %p292
      %s295 = sadd.s32 %s294, 1
      %p298 = scmp.eq.s32.totalorder %s24, 1
      %p299 = scmp.ne.s32.totalorder %s294, %s296
      %p300 = scmp.eq.s32.totalorder %s24, 0
      %p301 = por %p299, %p300
      %p302 = scmp.ne.s32.totalorder %s294, %s296
      %p303 = scmp.eq.s32.totalorder %s29, 1
      %p304 = por %p302, %p303
      %p305 = scmp.ne.s32.totalorder %s296, %s297
      %p306 = scmp.eq.s32.totalorder %s29, 0
      %p307 = por %p305, %p306
      %p308 = scmp.ne.s32.totalorder %s296, %s297
      %p309 = scmp.eq.s32.totalorder %s30, 1
      %p310 = por %p308, %p309
      %p312 = scmp.ne.s32.totalorder %s297, %s311
      %p313 = scmp.eq.s32.totalorder %s30, 0
      %p314 = por %p312, %p313
      %s316 = sadd.s32 %s315, 1
      %p319 = scmp.eq.s32.totalorder %s24, 1
      %p320 = scmp.ne.s32.totalorder %s315, %s317
      %p321 = scmp.eq.s32.totalorder %s24, 0
      %p322 = por %p320, %p321
      %p323 = scmp.ne.s32.totalorder %s315, %s317
      %p324 = scmp.eq.s32.totalorder %s29, 1
      %p325 = por %p323, %p324
      %p326 = scmp.ne.s32.totalorder %s317, %s318
      %p327 = scmp.eq.s32.totalorder %s29, 0
      %p328 = por %p326, %p327
      %p329 = scmp.ne.s32.totalorder %s317, %s318
      %p330 = scmp.eq.s32.totalorder %s30, 1
      %p331 = por %p329, %p330
      %p333 = scmp.ne.s32.totalorder %s318, %s332
      %p334 = scmp.eq.s32.totalorder %s30, 0
      %p335 = por %p333, %p334
      %s337 = sadd.s32 %s336, 1
      %p340 = scmp.eq.s32.totalorder %s24, 1
      %p341 = scmp.ne.s32.totalorder %s336, %s338
      %p342 = scmp.eq.s32.totalorder %s24, 0
      %p343 = por %p341, %p342
      %p344 = scmp.ne.s32.totalorder %s336, %s338
      %p345 = scmp.eq.s32.totalorder %s29, 1
      %p346 = por %p344, %p345
      %p347 = scmp.ne.s32.totalorder %s338, %s339
      %p348 = scmp.eq.s32.totalorder %s29, 0
      %p349 = por %p347, %p348
      %p350 = scmp.ne.s32.totalorder %s338, %s339
      %p351 = scmp.eq.s32.totalorder %s30, 1
      %p352 = por %p350, %p351
      %p354 = scmp.ne.s32.totalorder %s339, %s353
      %p355 = scmp.eq.s32.totalorder %s30, 0
      %p356 = por %p354, %p355
      %s357 = ssub.s32 %s24, %s31
      %p358 = scmp.eq.s32.totalorder %s357, 0
      %s360 = sadd.s32 %s359, 1
      %s361 = scalar_select %p358, %s359, %s360
      %p364 = pneg %p358
      %p365 = scmp.eq.s32.totalorder %s24, 1
      %p366 = por %p364, %p365
      %p367 = scmp.ne.s32.totalorder %s359, %s362
      %p368 = scmp.eq.s32.totalorder %s24, 0
      %p369 = por %p367, %p368
      %p370 = scmp.ne.s32.totalorder %s359, %s362
      %p371 = scmp.eq.s32.totalorder %s29, 1
      %p372 = por %p370, %p371
      %p373 = scmp.ne.s32.totalorder %s362, %s363
      %p374 = scmp.eq.s32.totalorder %s29, 0
      %p375 = por %p373, %p374
      %p376 = scmp.ne.s32.totalorder %s362, %s363
      %p377 = scmp.eq.s32.totalorder %s30, 1
      %p378 = por %p376, %p377
      %p380 = scmp.ne.s32.totalorder %s363, %s379
      %p381 = scmp.eq.s32.totalorder %s30, 0
      %p382 = por %p380, %p381
      %p383 = scmp.le.s32.totalorder 1, %s24
      %p384 = scmp.lt.s32.totalorder %s24, 3
      %p385 = pnand %p383, %p384
      %p386 = pneg %p385
      // Predicated region
      $region9: #{tpu_custom_call.1} parent=5 // pred_check
        _
      $region10: #{tpu_custom_call.1} parent=5 // pred_check_branch
        %388 = sbr.rel (%p385) target = $region12
      $region11: #{tpu_custom_call.1} parent=5 // pred_region
        %s389 = ssub.s32 %s24, 1
        // Predicated region
        $region13: #{tpu_custom_call.1} parent=11 // pred_check
          %p390 = pneg %p97
        $region14: #{tpu_custom_call.1} parent=11 // pred_check_branch
          %392 = sbr.rel (%p390) target = $region16
        $region15: #{tpu_custom_call.1} parent=11 // pred_region
          _
        $region16: #{tpu_custom_call.1} parent=11 // pred_fallthru
          _
        // Predicated region
        $region17: #{tpu_custom_call.1} parent=11 // pred_check
          %p393 = pneg %p118
        $region18: #{tpu_custom_call.1} parent=11 // pred_check_branch
          %395 = sbr.rel (%p393) target = $region20
        $region19: #{tpu_custom_call.1} parent=11 // pred_region
          _
        $region20: #{tpu_custom_call.1} parent=11 // pred_fallthru
          _
        // Predicated region
        $region21: #{tpu_custom_call.1} parent=11 // pred_check
          %p396 = pneg %p139
        $region22: #{tpu_custom_call.1} parent=11 // pred_check_branch
          %398 = sbr.rel (%p396) target = $region24
        $region23: #{tpu_custom_call.1} parent=11 // pred_region
          _
        $region24: #{tpu_custom_call.1} parent=11 // pred_fallthru
          _
        // Predicated region
        $region25: #{tpu_custom_call.1} parent=11 // pred_check
          %p399 = pneg %p160
        $region26: #{tpu_custom_call.1} parent=11 // pred_check_branch
          %401 = sbr.rel (%p399) target = $region28
        $region27: #{tpu_custom_call.1} parent=11 // pred_region
          _
        $region28: #{tpu_custom_call.1} parent=11 // pred_fallthru
          _
        // Predicated region
        $region29: #{tpu_custom_call.1} parent=11 // pred_check
          %p402 = pneg %p181
        $region30: #{tpu_custom_call.1} parent=11 // pred_check_branch
          %404 = sbr.rel (%p402) target = $region32
        $region31: #{tpu_custom_call.1} parent=11 // pred_region
          _
        $region32: #{tpu_custom_call.1} parent=11 // pred_fallthru
          _
        // Predicated region
        $region33: #{tpu_custom_call.1} parent=11 // pred_check
          %p405 = pneg %p202
        $region34: #{tpu_custom_call.1} parent=11 // pred_check_branch
          %407 = sbr.rel (%p405) target = $region36
        $region35: #{tpu_custom_call.1} parent=11 // pred_region
          _
        $region36: #{tpu_custom_call.1} parent=11 // pred_fallthru
          _
        // Predicated region
        $region37: #{tpu_custom_call.1} parent=11 // pred_check
          %p408 = pneg %p223
        $region38: #{tpu_custom_call.1} parent=11 // pred_check_branch
          %410 = sbr.rel (%p408) target = $region40
        $region39: #{tpu_custom_call.1} parent=11 // pred_region
          _
        $region40: #{tpu_custom_call.1} parent=11 // pred_fallthru
          _
        // Predicated region
        $region41: #{tpu_custom_call.1} parent=11 // pred_check
          %p411 = pneg %p244
        $region42: #{tpu_custom_call.1} parent=11 // pred_check_branch
          %413 = sbr.rel (%p411) target = $region44
        $region43: #{tpu_custom_call.1} parent=11 // pred_region
          _
        $region44: #{tpu_custom_call.1} parent=11 // pred_fallthru
          _
        // Predicated region
        $region45: #{tpu_custom_call.1} parent=11 // pred_check
          %p414 = pneg %p265
        $region46: #{tpu_custom_call.1} parent=11 // pred_check_branch
          %416 = sbr.rel (%p414) target = $region48
        $region47: #{tpu_custom_call.1} parent=11 // pred_region
          _
        $region48: #{tpu_custom_call.1} parent=11 // pred_fallthru
          _
        // Predicated region
        $region49: #{tpu_custom_call.1} parent=11 // pred_check
          %p417 = pneg %p286
        $region50: #{tpu_custom_call.1} parent=11 // pred_check_branch
          %419 = sbr.rel (%p417) target = $region52
        $region51: #{tpu_custom_call.1} parent=11 // pred_region
          _
        $region52: #{tpu_custom_call.1} parent=11 // pred_fallthru
          _
        // Predicated region
        $region53: #{tpu_custom_call.1} parent=11 // pred_check
          %p420 = pneg %p307
        $region54: #{tpu_custom_call.1} parent=11 // pred_check_branch
          %422 = sbr.rel (%p420) target = $region56
        $region55: #{tpu_custom_call.1} parent=11 // pred_region
          _
        $region56: #{tpu_custom_call.1} parent=11 // pred_fallthru
          _
        // Predicated region
        $region57: #{tpu_custom_call.1} parent=11 // pred_check
          %p423 = pneg %p328
        $region58: #{tpu_custom_call.1} parent=11 // pred_check_branch
          %425 = sbr.rel (%p423) target = $region60
        $region59: #{tpu_custom_call.1} parent=11 // pred_region
          _
        $region60: #{tpu_custom_call.1} parent=11 // pred_fallthru
          _
        // Predicated region
        $region61: #{tpu_custom_call.1} parent=11 // pred_check
          %p426 = pneg %p349
        $region62: #{tpu_custom_call.1} parent=11 // pred_check_branch
          %428 = sbr.rel (%p426) target = $region64
        $region63: #{tpu_custom_call.1} parent=11 // pred_region
          _
        $region64: #{tpu_custom_call.1} parent=11 // pred_fallthru
          _
      $region12: #{tpu_custom_call.1} parent=5 // pred_fallthru
        _
      %p429 = scmp.lt.s32.totalorder %s24, 2
      // Predicated region
      $region65: #{tpu_custom_call.1} parent=5 // pred_check
        %p430 = pneg %p429
      $region66: #{tpu_custom_call.1} parent=5 // pred_check_branch
        %432 = sbr.rel (%p430) target = $region68
      $region67: #{tpu_custom_call.1} parent=5 // pred_region
        // Predicated region
        $region69: #{tpu_custom_call.1} parent=67 // pred_check
          %p433 = pneg %p44
        $region70: #{tpu_custom_call.1} parent=67 // pred_check_branch
          %435 = sbr.rel (%p433) target = $region72
        $region71: #{tpu_custom_call.1} parent=67 // pred_region
          %p436 = scmp.lt.s32.totalorder %s24, 1
          %s437 = scalar_select %p436, %s24, 1
          %s438 = smul.addr %s437, 8
          %s439 = smul.addr %s438, 8
          %s440 = scalar_lea.vmem %s0, %s439
        $region72: #{tpu_custom_call.1} parent=67 // pred_fallthru
          _
        // Predicated region
        $region73: #{tpu_custom_call.1} parent=67 // pred_check
          %p441 = pneg %p70
        $region74: #{tpu_custom_call.1} parent=67 // pred_check_branch
          %443 = sbr.rel (%p441) target = $region76
        $region75: #{tpu_custom_call.1} parent=67 // pred_region
          %p444 = scmp.lt.s32.totalorder %s24, 1
          %s445 = scalar_select %p444, %s24, 1
          %s446 = scalar_lea.vmem %s1, %s445
        $region76: #{tpu_custom_call.1} parent=67 // pred_fallthru
          _
      $region68: #{tpu_custom_call.1} parent=5 // pred_fallthru
        _
      %p447 = scmp.le.s32.totalorder 1, %s24
      %p448 = scmp.lt.s32.totalorder %s24, 3
      %p449 = pnand %p447, %p448
      %p450 = pneg %p449
      // Predicated region
      $region77: #{tpu_custom_call.1} parent=5 // pred_check
        _
      $region78: #{tpu_custom_call.1} parent=5 // pred_check_branch
        %452 = sbr.rel (%p449) target = $region80
      $region79: #{tpu_custom_call.1} parent=5 // pred_region
        %s453 = ssub.s32 %s24, 1
        %p454 = scmp.lt.s32.totalorder %s29, 1
        %s455 = scalar_select %p454, %s29, 1
        %s456 = smul.addr %s455, 8
        %s457 = smul.addr %s456, 8
        %s458 = scalar_lea.vmem %s0, %s457
        %p459 = pneg %p50
        %p460 = pneg %p47
        %p461 = scmp.lt.s32.totalorder %s29, 1
        %s462 = scalar_select %p461, %s29, 1
        %s463 = scalar_lea.vmem %s1, %s462
        %p464 = pneg %p76
        %p465 = pneg %p73
        %p466 = pneg %p97
        %p467 = pneg %p94
        %p468 = pneg %p118
        %p469 = pneg %p115
        %p470 = pneg %p139
        %p471 = pneg %p136
        %p472 = pneg %p160
        %p473 = pneg %p157
        %p474 = pneg %p181
        %p475 = pneg %p178
        %p476 = pneg %p202
        %p477 = pneg %p199
        %p478 = pneg %p223
        %p479 = pneg %p220
        %p480 = pneg %p244
        %p481 = pneg %p241
        %p482 = pneg %p265
        %p483 = pneg %p262
        %p484 = pneg %p286
        %p485 = pneg %p283
        %p486 = pneg %p307
        %p487 = pneg %p304
        %p488 = pneg %p328
        %p489 = pneg %p325
        %p490 = pneg %p349
        %p491 = pneg %p346
        %p492 = pneg %p375
        %p493 = pneg %p372
        %s494 = sand.u32 %s362, 1
        %s495 = scalar_lea.sflag [#allocation3], %s494
        %s496 = sand.u32 %s362, 1
        %s497 = smul.addr %s496, 64
        %s498 = scalar_lea.vmem [#allocation2], %s497
        %p499 = scmp.lt.s32.totalorder %s29, 1
        %s500 = scalar_select %p499, %s29, 1
        %s501 = smul.addr %s500, 8
        %s502 = smul.addr %s501, 8
        %s503 = scalar_lea.vmem %s0, %s502
        %p504 = scmp.lt.s32.totalorder %s29, 1
        %s505 = scalar_select %p504, %s29, 1
        %s506 = scalar_lea.vmem %s1, %s505
        %v508 = vld [vmem:[%s503] sm:$0xff]
        %v509 = vld [vmem:[%s503 + $0x8] sm:$0xff]
        %v510 = vld [vmem:[%s503 + $0x10] sm:$0xff]
        %v511 = vld [vmem:[%s503 + $0x18] sm:$0xff]
        %v512 = vld [vmem:[%s503 + $0x20] sm:$0xff]
        %v513 = vld [vmem:[%s503 + $0x28] sm:$0xff]
        %v514 = vld [vmem:[%s503 + $0x30] sm:$0xff]
        %v515 = vld [vmem:[%s503 + $0x38] sm:$0xff]
        %v516 = vld [vmem:[%s506] sm:$0x1]
        %v517 = vld [vmem:[%s2] sm:$0xff]
        %v518 = vld [vmem:[%s2 + $0x8] sm:$0xff]
        %v519 = vld [vmem:[%s2 + $0x10] sm:$0xff]
        %v520 = vld [vmem:[%s2 + $0x18] sm:$0xff]
        %v521 = vld [vmem:[%s2 + $0x20] sm:$0xff]
        %v522 = vld [vmem:[%s2 + $0x28] sm:$0xff]
        %v523 = vld [vmem:[%s2 + $0x30] sm:$0xff]
        %v524 = vld [vmem:[%s2 + $0x38] sm:$0xff]
        %v525 = vlaneseq
        %v526 = vand.u32 %v525, 127
        %vm527 = vcmp.lt.s32.totalorder %v526, 127
        %vm528 = vcmp.ge.s32.totalorder %v526, 1
        %v529 = vadd.f32 %v508, %v509
        %v530 = vadd.f32 %v529, %v510
        %v531 = vadd.f32 %v530, %v511
        %v532 = vadd.f32 %v531, %v512
        %v533 = vadd.f32 %v532, %v513
        %v534 = vadd.f32 %v533, %v514
        %v535 = vadd.f32 %v534, %v515
        %v536 = vrot.slane %v535, 4
        %v537 = vadd.f32 %v535, %v536
        %v538 = vrot.slane %v537, 2
        %v539 = vadd.f32 %v537, %v538
        %v540 = vrot.slane %v539, 1
        %v541 = vadd.f32 %v539, %v540
        %v542 = vrcp.pop 64.0
        %v543 = vmul.f32 %v541, %v542
        %v544 = vsub.f32 %v508, %v543
        %v545 = vsub.f32 %v509, %v543
        %v546 = vsub.f32 %v510, %v543
        %v547 = vsub.f32 %v511, %v543
        %v548 = vsub.f32 %v512, %v543
        %v549 = vsub.f32 %v513, %v543
        %v550 = vsub.f32 %v514, %v543
        %v551 = vsub.f32 %v515, %v543
        %v552 = vmul.f32 %v544, %v544
        %v553 = vmul.f32 %v545, %v545
        %v554 = vmul.f32 %v546, %v546
        %v555 = vmul.f32 %v547, %v547
        %v556 = vmul.f32 %v548, %v548
        %v557 = vmul.f32 %v549, %v549
        %v558 = vmul.f32 %v550, %v550
        %v559 = vmul.f32 %v551, %v551
        %v560 = vadd.f32 %v552, %v553
        %v561 = vadd.f32 %v560, %v554
        %v562 = vadd.f32 %v561, %v555
        %v563 = vadd.f32 %v562, %v556
        %v564 = vadd.f32 %v563, %v557
        %v565 = vadd.f32 %v564, %v558
        %v566 = vadd.f32 %v565, %v559
        %v567 = vrot.slane %v566, 4
        %v568 = vadd.f32 %v566, %v567
        %v569 = vrot.slane %v568, 2
        %v570 = vadd.f32 %v568, %v569
        %v571 = vrot.slane %v570, 1
        %v572 = vadd.f32 %v570, %v571
        %v573 = vmul.f32 %v572, %v542
        %v574 = vadd.f32 %v573, 1e-05
        %v575 = vrsqrt.pop %v574
        %v576 = vmul.f32 %v544, %v575
        %v577 = vmul.f32 %v545, %v575
        %v578 = vmul.f32 %v546, %v575
        %v579 = vmul.f32 %v547, %v575
        %v580 = vmul.f32 %v548, %v575
        %v581 = vmul.f32 %v549, %v575
        %v582 = vmul.f32 %v550, %v575
        %v583 = vmul.f32 %v551, %v575
        %585 = vset.pattern.permute.xlu0 0
        %586 = vperm.xlu0 %585, %v517
        %v587 = vpop.permute.xlu0 %586
        %590 = vset.pattern.permute.xlu0 0
        %591 = vperm.xlu0 %590, %v518
        %v592 = vpop.permute.xlu0 %591
        %595 = vset.pattern.permute.xlu0 0
        %596 = vperm.xlu0 %595, %v519
        %v597 = vpop.permute.xlu0 %596
        %600 = vset.pattern.permute.xlu0 0
        %601 = vperm.xlu0 %600, %v520
        %v602 = vpop.permute.xlu0 %601
        %605 = vset.pattern.permute.xlu0 0
        %606 = vperm.xlu0 %605, %v521
        %v607 = vpop.permute.xlu0 %606
        %610 = vset.pattern.permute.xlu0 0
        %611 = vperm.xlu0 %610, %v522
        %v612 = vpop.permute.xlu0 %611
        %615 = vset.pattern.permute.xlu0 0
        %616 = vperm.xlu0 %615, %v523
        %v617 = vpop.permute.xlu0 %616
        %620 = vset.pattern.permute.xlu0 0
        %621 = vperm.xlu0 %620, %v524
        %v622 = vpop.permute.xlu0 %621
        %v624 = vmul.f32 %v576, %v587
        %v625 = vmul.f32 %v577, %v592
        %v626 = vmul.f32 %v578, %v597
        %v627 = vmul.f32 %v579, %v602
        %v628 = vmul.f32 %v580, %v607
        %v629 = vmul.f32 %v581, %v612
        %v630 = vmul.f32 %v582, %v617
        %v631 = vmul.f32 %v583, %v622
        %632 = vset.pattern.permute.xlu0 1
        %633 = vperm.xlu0 %632, %v517
        %v634 = vpop.permute.xlu0 %633
        %636 = vset.pattern.permute.xlu0 1
        %637 = vperm.xlu0 %636, %v518
        %v638 = vpop.permute.xlu0 %637
        %640 = vset.pattern.permute.xlu0 1
        %641 = vperm.xlu0 %640, %v519
        %v642 = vpop.permute.xlu0 %641
        %644 = vset.pattern.permute.xlu0 1
        %645 = vperm.xlu0 %644, %v520
        %v646 = vpop.permute.xlu0 %645
        %648 = vset.pattern.permute.xlu0 1
        %649 = vperm.xlu0 %648, %v521
        %v650 = vpop.permute.xlu0 %649
        %652 = vset.pattern.permute.xlu0 1
        %653 = vperm.xlu0 %652, %v522
        %v654 = vpop.permute.xlu0 %653
        %656 = vset.pattern.permute.xlu0 1
        %657 = vperm.xlu0 %656, %v523
        %v658 = vpop.permute.xlu0 %657
        %660 = vset.pattern.permute.xlu0 1
        %661 = vperm.xlu0 %660, %v524
        %v662 = vpop.permute.xlu0 %661
        %v664 = vadd.f32 %v624, %v634
        %v665 = vadd.f32 %v625, %v638
        %v666 = vadd.f32 %v626, %v642
        %v667 = vadd.f32 %v627, %v646
        %v668 = vadd.f32 %v628, %v650
        %v669 = vadd.f32 %v629, %v654
        %v670 = vadd.f32 %v630, %v658
        %v671 = vadd.f32 %v631, %v662
        %v672 = vld [vmem:[%s3] sm:$0xf]
        %v673 = vld [vmem:[%s3 + $0x4] sm:$0xf]
        %v674 = vld [vmem:[%s3 + $0x8] sm:$0xf]
        %v675 = vld [vmem:[%s3 + $0xc] sm:$0xf]
        %v676 = vld [vmem:[%s3 + $0x10] sm:$0xf]
        %v677 = vld [vmem:[%s3 + $0x14] sm:$0xf]
        %v678 = vld [vmem:[%s3 + $0x18] sm:$0xf]
        %v679 = vld [vmem:[%s3 + $0x1c] sm:$0xf]
        %v680 = vpack.c.bf16 %v665, %v664
        %v681 = vpack.c.bf16 %v667, %v666
        %v690 = vunpack.c.l.b16 %v672
        %v691 = vunpack.c.l.b16 %v673
        %v692 = vunpack.c.l.b16 %v674
        %v693 = vunpack.c.l.b16 %v675
        %v694 = vunpack.c.l.b16 %v676
        %v695 = vunpack.c.l.b16 %v677
        %v696 = vunpack.c.l.b16 %v678
        %v697 = vunpack.c.l.b16 %v679
        %v698 = vpack.c.b16 %v691, %v690
        %v699 = vpack.c.b16 %v693, %v692
        %v700 = vpack.c.b16 %v695, %v694
        %v701 = vpack.c.b16 %v697, %v696
        %vm702 = vcmask 261120
        %v704 = vsel %vm702, %v698, 0
        %v707 = vsel %vm702, %v699, 0
        %v710 = vsel %vm702, %v700, 0
        %v713 = vsel %vm702, %v701, 0
        %715 = vmatprep.subr.bf16.mxu0 0
        %716 = vmatpush1.bf16.msra.mxu0 %v680
        %717 = vmatprep.subr.bf16.mxu0 0
        %718 = vmatpush1.bf16.msra.mxu0 %v681
        %719 = vmatprep.subr.bf16.mxu0 0
        %720 = vmatpush1.bf16.msra.mxu0 0
        %721 = vmatprep.subr.bf16.mxu0 0
        %722 = vmatpush1.bf16.msra.mxu0 0
        %723 = vmatprep.subr.bf16.mxu0 0
        %724 = vmatpush1.bf16.msra.mxu0 0
        %725 = vmatprep.subr.bf16.mxu0 0
        %726 = vmatpush1.bf16.msra.mxu0 0
        %727 = vmatprep.subr.bf16.mxu0 0
        %728 = vmatpush1.bf16.msra.mxu0 0
        %729 = vmatprep.subr.bf16.mxu0 0
        %730 = vmatpush1.bf16.msra.mxu0 0
        %731 = vmatprep.subr.bf16.mxu0 0
        %732 = vmatpush1.bf16.msra.mxu0 0
        %733 = vmatprep.subr.bf16.mxu0 0
        %734 = vmatpush1.bf16.msra.mxu0 0
        %735 = vmatprep.subr.bf16.mxu0 0
        %736 = vmatpush1.bf16.msra.mxu0 0
        %737 = vmatprep.subr.bf16.mxu0 0
        %738 = vmatpush1.bf16.msra.mxu0 0
        %739 = vmatprep.subr.bf16.mxu0 0
        %740 = vmatpush1.bf16.msra.mxu0 0
        %741 = vmatprep.subr.bf16.mxu0 0
        %742 = vmatpush1.bf16.msra.mxu0 0
        %743 = vmatprep.subr.bf16.mxu0 0
        %744 = vmatpush1.bf16.msra.mxu0 0
        %745 = vmatprep.subr.bf16.mxu0 0
        %746 = vmatpush1.bf16.msra.mxu0 0
        %747 = vmatprep.mubr.bf16.mxu0 0
        %748 = vmatmul.mubr.bf16.gmra.mrb[0].mxu0 %v704
        %v749 = vpop.f32.mrb[0].mxu0
        %v750 = vadd.f32 0.0, %v749
        %v751 = vpop.f32.mrb[0].mxu0
        %v752 = vpop.f32.mrb[0].mxu0
        %v753 = vadd.f32 0.0, %v752
        %v754 = vpop.f32.mrb[0].mxu0
        %755 = vmatprep.mubr.bf16.mxu0 0
        %756 = vmatmul.mubr.bf16.gmra.mrb[0].mxu0 %v707
        %v757 = vpop.f32.mrb[0].mxu0
        %v758 = vadd.f32 0.0, %v757
        %v759 = vpop.f32.mrb[0].mxu0
        %v760 = vpop.f32.mrb[0].mxu0
        %v761 = vadd.f32 0.0, %v760
        %v762 = vpop.f32.mrb[0].mxu0
        %763 = vmatprep.mubr.bf16.mxu0 0
        %764 = vmatmul.mubr.bf16.gmra.mrb[0].mxu0 %v710
        %v765 = vpop.f32.mrb[0].mxu0
        %v766 = vadd.f32 0.0, %v765
        %v767 = vpop.f32.mrb[0].mxu0
        %v768 = vpop.f32.mrb[0].mxu0
        %v769 = vadd.f32 0.0, %v768
        %v770 = vpop.f32.mrb[0].mxu0
        %771 = vmatprep.mubr.bf16.mxu0 0
        %772 = vmatmul.mubr.bf16.gmra.mrb[0].mxu0 %v713
        %v773 = vpop.f32.mrb[0].mxu0
        %v774 = vadd.f32 0.0, %v773
        %v775 = vpop.f32.mrb[0].mxu0
        %v776 = vpop.f32.mrb[0].mxu0
        %v777 = vadd.f32 0.0, %v776
        %v778 = vpop.f32.mrb[0].mxu0
        %779 = vdwg.mxu0
        %v781 = vlaneseq
        %v782 = vshrl.u32 %v781, 7
        %v783 = vsub.s32 0, %v782
        %v784 = vrot.slane %v516, %v783
        %v786 = vmul.f32 %v750, %v784
        %v787 = vmul.f32 %v753, %v784
        %v788 = vmul.f32 %v758, %v784
        %v789 = vmul.f32 %v761, %v784
        %v790 = vmul.f32 %v766, %v784
        %v791 = vmul.f32 %v769, %v784
        %v792 = vmul.f32 %v774, %v784
        %v793 = vmul.f32 %v777, %v784
        %v794 = vld [vmem:[%s4] sm:$0xff]
        %v795 = vld [vmem:[%s4 + $0x8] sm:$0xff]
        %v796 = vld [vmem:[%s4 + $0x10] sm:$0xff]
        %v797 = vld [vmem:[%s4 + $0x18] sm:$0xff]
        %v798 = vld [vmem:[%s4 + $0x20] sm:$0xff]
        %v799 = vld [vmem:[%s4 + $0x28] sm:$0xff]
        %v800 = vld [vmem:[%s4 + $0x30] sm:$0xff]
        %v801 = vld [vmem:[%s4 + $0x38] sm:$0xff]
        %802 = vrot.lane.b32.xlu0 %v786, 1
        %v803 = vpop.permute.xlu0 %802
        %804 = vrot.lane.b32.xlu0 %v787, 1
        %v805 = vpop.permute.xlu0 %804
        %806 = vrot.lane.b32.xlu0 %v788, 1
        %v807 = vpop.permute.xlu0 %806
        %808 = vrot.lane.b32.xlu0 %v789, 1
        %v809 = vpop.permute.xlu0 %808
        %810 = vrot.lane.b32.xlu0 %v790, 1
        %v811 = vpop.permute.xlu0 %810
        %812 = vrot.lane.b32.xlu0 %v791, 1
        %v813 = vpop.permute.xlu0 %812
        %814 = vrot.lane.b32.xlu0 %v792, 1
        %v815 = vpop.permute.xlu0 %814
        %816 = vrot.lane.b32.xlu0 %v793, 1
        %v817 = vpop.permute.xlu0 %816
        %v818 = vsel %vm528, 1, 0
        %vm819 = vcmp.eq.s32.totalorder %v818, 1
        %v820 = vsel %vm819, %v803, 0.0
        %v821 = vsel %vm819, %v805, 0.0
        %v822 = vsel %vm819, %v807, 0.0
        %v823 = vsel %vm819, %v809, 0.0
        %v824 = vsel %vm819, %v811, 0.0
        %v825 = vsel %vm819, %v813, 0.0
        %v826 = vsel %vm819, %v815, 0.0
        %v827 = vsel %vm819, %v817, 0.0
        %829 = vset.pattern.permute.xlu0 0
        %830 = vperm.xlu0 %829, %v794
        %v831 = vpop.permute.xlu0 %830
        %834 = vset.pattern.permute.xlu0 0
        %835 = vperm.xlu0 %834, %v795
        %v836 = vpop.permute.xlu0 %835
        %839 = vset.pattern.permute.xlu0 0
        %840 = vperm.xlu0 %839, %v796
        %v841 = vpop.permute.xlu0 %840
        %844 = vset.pattern.permute.xlu0 0
        %845 = vperm.xlu0 %844, %v797
        %v846 = vpop.permute.xlu0 %845
        %849 = vset.pattern.permute.xlu0 0
        %850 = vperm.xlu0 %849, %v798
        %v851 = vpop.permute.xlu0 %850
        %854 = vset.pattern.permute.xlu0 0
        %855 = vperm.xlu0 %854, %v799
        %v856 = vpop.permute.xlu0 %855
        %859 = vset.pattern.permute.xlu0 0
        %860 = vperm.xlu0 %859, %v800
        %v861 = vpop.permute.xlu0 %860
        %864 = vset.pattern.permute.xlu0 0
        %865 = vperm.xlu0 %864, %v801
        %v866 = vpop.permute.xlu0 %865
        %v868 = vmul.f32 %v831, %v820
        %v869 = vmul.f32 %v836, %v821
        %v870 = vmul.f32 %v841, %v822
        %v871 = vmul.f32 %v846, %v823
        %v872 = vmul.f32 %v851, %v824
        %v873 = vmul.f32 %v856, %v825
        %v874 = vmul.f32 %v861, %v826
        %v875 = vmul.f32 %v866, %v827
        %876 = vset.pattern.permute.xlu0 1
        %877 = vperm.xlu0 %876, %v794
        %v878 = vpop.permute.xlu0 %877
        %880 = vset.pattern.permute.xlu0 1
        %881 = vperm.xlu0 %880, %v795
        %v882 = vpop.permute.xlu0 %881
        %884 = vset.pattern.permute.xlu0 1
        %885 = vperm.xlu0 %884, %v796
        %v886 = vpop.permute.xlu0 %885
        %888 = vset.pattern.permute.xlu0 1
        %889 = vperm.xlu0 %888, %v797
        %v890 = vpop.permute.xlu0 %889
        %892 = vset.pattern.permute.xlu0 1
        %893 = vperm.xlu0 %892, %v798
        %v894 = vpop.permute.xlu0 %893
        %896 = vset.pattern.permute.xlu0 1
        %897 = vperm.xlu0 %896, %v799
        %v898 = vpop.permute.xlu0 %897
        %900 = vset.pattern.permute.xlu0 1
        %901 = vperm.xlu0 %900, %v800
        %v902 = vpop.permute.xlu0 %901
        %904 = vset.pattern.permute.xlu0 1
        %905 = vperm.xlu0 %904, %v801
        %v906 = vpop.permute.xlu0 %905
        %v908 = vmul.f32 %v878, %v786
        %v909 = vmul.f32 %v882, %v787
        %v910 = vmul.f32 %v886, %v788
        %v911 = vmul.f32 %v890, %v789
        %v912 = vmul.f32 %v894, %v790
        %v913 = vmul.f32 %v898, %v791
        %v914 = vmul.f32 %v902, %v792
        %v915 = vmul.f32 %v906, %v793
        %v916 = vadd.f32 %v868, %v908
        %v917 = vadd.f32 %v869, %v909
        %v918 = vadd.f32 %v870, %v910
        %v919 = vadd.f32 %v871, %v911
        %v920 = vadd.f32 %v872, %v912
        %v921 = vadd.f32 %v873, %v913
        %v922 = vadd.f32 %v874, %v914
        %v923 = vadd.f32 %v875, %v915
        %924 = vrot.lane.b32.xlu0 %v786, 127
        %v925 = vpop.permute.xlu0 %924
        %926 = vrot.lane.b32.xlu0 %v787, 127
        %v927 = vpop.permute.xlu0 %926
        %928 = vrot.lane.b32.xlu0 %v788, 127
        %v929 = vpop.permute.xlu0 %928
        %930 = vrot.lane.b32.xlu0 %v789, 127
        %v931 = vpop.permute.xlu0 %930
        %932 = vrot.lane.b32.xlu0 %v790, 127
        %v933 = vpop.permute.xlu0 %932
        %934 = vrot.lane.b32.xlu0 %v791, 127
        %v935 = vpop.permute.xlu0 %934
        %936 = vrot.lane.b32.xlu0 %v792, 127
        %v937 = vpop.permute.xlu0 %936
        %938 = vrot.lane.b32.xlu0 %v793, 127
        %v939 = vpop.permute.xlu0 %938
        %v940 = vsel %vm527, 1, 0
        %vm941 = vcmp.eq.s32.totalorder %v940, 1
        %v942 = vsel %vm941, %v925, 0.0
        %v943 = vsel %vm941, %v927, 0.0
        %v944 = vsel %vm941, %v929, 0.0
        %v945 = vsel %vm941, %v931, 0.0
        %v946 = vsel %vm941, %v933, 0.0
        %v947 = vsel %vm941, %v935, 0.0
        %v948 = vsel %vm941, %v937, 0.0
        %v949 = vsel %vm941, %v939, 0.0
        %950 = vset.pattern.permute.xlu0 2
        %951 = vperm.xlu0 %950, %v794
        %v952 = vpop.permute.xlu0 %951
        %954 = vset.pattern.permute.xlu0 2
        %955 = vperm.xlu0 %954, %v795
        %v956 = vpop.permute.xlu0 %955
        %958 = vset.pattern.permute.xlu0 2
        %959 = vperm.xlu0 %958, %v796
        %v960 = vpop.permute.xlu0 %959
        %962 = vset.pattern.permute.xlu0 2
        %963 = vperm.xlu0 %962, %v797
        %v964 = vpop.permute.xlu0 %963
        %966 = vset.pattern.permute.xlu0 2
        %967 = vperm.xlu0 %966, %v798
        %v968 = vpop.permute.xlu0 %967
        %970 = vset.pattern.permute.xlu0 2
        %971 = vperm.xlu0 %970, %v799
        %v972 = vpop.permute.xlu0 %971
        %974 = vset.pattern.permute.xlu0 2
        %975 = vperm.xlu0 %974, %v800
        %v976 = vpop.permute.xlu0 %975
        %978 = vset.pattern.permute.xlu0 2
        %979 = vperm.xlu0 %978, %v801
        %v980 = vpop.permute.xlu0 %979
        %v982 = vmul.f32 %v952, %v942
        %v983 = vmul.f32 %v956, %v943
        %v984 = vmul.f32 %v960, %v944
        %v985 = vmul.f32 %v964, %v945
        %v986 = vmul.f32 %v968, %v946
        %v987 = vmul.f32 %v972, %v947
        %v988 = vmul.f32 %v976, %v948
        %v989 = vmul.f32 %v980, %v949
        %v990 = vadd.f32 %v916, %v982
        %v991 = vadd.f32 %v917, %v983
        %v992 = vadd.f32 %v918, %v984
        %v993 = vadd.f32 %v919, %v985
        %v994 = vadd.f32 %v920, %v986
        %v995 = vadd.f32 %v921, %v987
        %v996 = vadd.f32 %v922, %v988
        %v997 = vadd.f32 %v923, %v989
        %v998 = vmul.f32 %v990, %v784
        %v999 = vmul.f32 %v991, %v784
        %v1000 = vmul.f32 %v992, %v784
        %v1001 = vmul.f32 %v993, %v784
        %v1002 = vmul.f32 %v994, %v784
        %v1003 = vmul.f32 %v995, %v784
        %v1004 = vmul.f32 %v996, %v784
        %v1005 = vmul.f32 %v997, %v784
        %v1006 = vmul.f32 %v998, 0.5
        %v1007 = vmul.f32 %v999, 0.5
        %v1008 = vmul.f32 %v1000, 0.5
        %v1009 = vmul.f32 %v1001, 0.5
        %v1010 = vmul.f32 %v1002, 0.5
        %v1011 = vmul.f32 %v1003, 0.5
        %v1012 = vmul.f32 %v1004, 0.5
        %v1013 = vmul.f32 %v1005, 0.5
        %v1014 = vmul.f32 %v998, 0.70710677
        %v1015 = vmul.f32 %v999, 0.70710677
        %v1016 = vmul.f32 %v1000, 0.70710677
        %v1017 = vmul.f32 %v1001, 0.70710677
        %v1018 = vmul.f32 %v1002, 0.70710677
        %v1019 = vmul.f32 %v1003, 0.70710677
        %v1020 = vmul.f32 %v1004, 0.70710677
        %v1021 = vmul.f32 %v1005, 0.70710677
        %vm1022 = vcmp.ge.f32.partialorder %v1014, 0.0
        %vm1023 = vcmp.ge.f32.partialorder %v1015, 0.0
        %vm1024 = vcmp.ge.f32.partialorder %v1016, 0.0
        %vm1025 = vcmp.ge.f32.partialorder %v1017, 0.0
        %vm1026 = vcmp.ge.f32.partialorder %v1018, 0.0
        %vm1027 = vcmp.ge.f32.partialorder %v1019, 0.0
        %vm1028 = vcmp.ge.f32.partialorder %v1020, 0.0
        %vm1029 = vcmp.ge.f32.partialorder %v1021, 0.0
        %v1030 = vsel %vm1022, 1.0, -1.0
        %v1031 = vsel %vm1023, 1.0, -1.0
        %v1032 = vsel %vm1024, 1.0, -1.0
        %v1033 = vsel %vm1025, 1.0, -1.0
        %v1034 = vsel %vm1026, 1.0, -1.0
        %v1035 = vsel %vm1027, 1.0, -1.0
        %v1036 = vsel %vm1028, 1.0, -1.0
        %v1037 = vsel %vm1029, 1.0, -1.0
        %v1038 = vand.u32 2147483647, %v1014
        %v1039 = vand.u32 2147483647, %v1015
        %v1040 = vand.u32 2147483647, %v1016
        %v1041 = vand.u32 2147483647, %v1017
        %v1042 = vand.u32 2147483647, %v1018
        %v1043 = vand.u32 2147483647, %v1019
        %v1044 = vand.u32 2147483647, %v1020
        %v1045 = vand.u32 2147483647, %v1021
        %v1046 = vmul.f32 %v1038, 0.3275911
        %v1047 = vmul.f32 %v1039, 0.3275911
        %v1048 = vmul.f32 %v1040, 0.3275911
        %v1049 = vmul.f32 %v1041, 0.3275911
        %v1050 = vmul.f32 %v1042, 0.3275911
        %v1051 = vmul.f32 %v1043, 0.3275911
        %v1052 = vmul.f32 %v1044, 0.3275911
        %v1053 = vmul.f32 %v1045, 0.3275911
        %v1054 = vadd.f32 %v1046, 1.0
        %v1055 = vadd.f32 %v1047, 1.0
        %v1056 = vadd.f32 %v1048, 1.0
        %v1057 = vadd.f32 %v1049, 1.0
        %v1058 = vadd.f32 %v1050, 1.0
        %v1059 = vadd.f32 %v1051, 1.0
        %v1060 = vadd.f32 %v1052, 1.0
        %v1061 = vadd.f32 %v1053, 1.0
        %v1062 = vrcp.pop %v1054
        %v1063 = vmul.f32 1.0, %v1062
        %v1064 = vrcp.pop %v1055
        %v1065 = vmul.f32 1.0, %v1064
        %v1066 = vrcp.pop %v1056
        %v1067 = vmul.f32 1.0, %v1066
        %v1068 = vrcp.pop %v1057
        %v1069 = vmul.f32 1.0, %v1068
        %v1070 = vrcp.pop %v1058
        %v1071 = vmul.f32 1.0, %v1070
        %v1072 = vrcp.pop %v1059
        %v1073 = vmul.f32 1.0, %v1072
        %v1074 = vrcp.pop %v1060
        %v1075 = vmul.f32 1.0, %v1074
        %v1076 = vrcp.pop %v1061
        %v1077 = vmul.f32 1.0, %v1076
        %v1078 = vmul.f32 %v1063, 1.0614054
        %v1079 = vmul.f32 %v1065, 1.0614054
        %v1080 = vmul.f32 %v1067, 1.0614054
        %v1081 = vmul.f32 %v1069, 1.0614054
        %v1082 = vmul.f32 %v1071, 1.0614054
        %v1083 = vmul.f32 %v1073, 1.0614054
        %v1084 = vmul.f32 %v1075, 1.0614054
        %v1085 = vmul.f32 %v1077, 1.0614054
        %v1086 = vadd.f32 %v1078, -1.4531521
        %v1087 = vadd.f32 %v1079, -1.4531521
        %v1088 = vadd.f32 %v1080, -1.4531521
        %v1089 = vadd.f32 %v1081, -1.4531521
        %v1090 = vadd.f32 %v1082, -1.4531521
        %v1091 = vadd.f32 %v1083, -1.4531521
        %v1092 = vadd.f32 %v1084, -1.4531521
        %v1093 = vadd.f32 %v1085, -1.4531521
        %v1094 = vmul.f32 %v1086, %v1063
        %v1095 = vmul.f32 %v1087, %v1065
        %v1096 = vmul.f32 %v1088, %v1067
        %v1097 = vmul.f32 %v1089, %v1069
        %v1098 = vmul.f32 %v1090, %v1071
        %v1099 = vmul.f32 %v1091, %v1073
        %v1100 = vmul.f32 %v1092, %v1075
        %v1101 = vmul.f32 %v1093, %v1077
        %v1102 = vadd.f32 %v1094, 1.4214138
        %v1103 = vadd.f32 %v1095, 1.4214138
        %v1104 = vadd.f32 %v1096, 1.4214138
        %v1105 = vadd.f32 %v1097, 1.4214138
        %v1106 = vadd.f32 %v1098, 1.4214138
        %v1107 = vadd.f32 %v1099, 1.4214138
        %v1108 = vadd.f32 %v1100, 1.4214138
        %v1109 = vadd.f32 %v1101, 1.4214138
        %v1110 = vmul.f32 %v1102, %v1063
        %v1111 = vmul.f32 %v1103, %v1065
        %v1112 = vmul.f32 %v1104, %v1067
        %v1113 = vmul.f32 %v1105, %v1069
        %v1114 = vmul.f32 %v1106, %v1071
        %v1115 = vmul.f32 %v1107, %v1073
        %v1116 = vmul.f32 %v1108, %v1075
        %v1117 = vmul.f32 %v1109, %v1077
        %v1118 = vadd.f32 %v1110, -0.28449672
        %v1119 = vadd.f32 %v1111, -0.28449672
        %v1120 = vadd.f32 %v1112, -0.28449672
        %v1121 = vadd.f32 %v1113, -0.28449672
        %v1122 = vadd.f32 %v1114, -0.28449672
        %v1123 = vadd.f32 %v1115, -0.28449672
        %v1124 = vadd.f32 %v1116, -0.28449672
        %v1125 = vadd.f32 %v1117, -0.28449672
        %v1126 = vmul.f32 %v1118, %v1063
        %v1127 = vmul.f32 %v1119, %v1065
        %v1128 = vmul.f32 %v1120, %v1067
        %v1129 = vmul.f32 %v1121, %v1069
        %v1130 = vmul.f32 %v1122, %v1071
        %v1131 = vmul.f32 %v1123, %v1073
        %v1132 = vmul.f32 %v1124, %v1075
        %v1133 = vmul.f32 %v1125, %v1077
        %v1134 = vadd.f32 %v1126, 0.2548296
        %v1135 = vadd.f32 %v1127, 0.2548296
        %v1136 = vadd.f32 %v1128, 0.2548296
        %v1137 = vadd.f32 %v1129, 0.2548296
        %v1138 = vadd.f32 %v1130, 0.2548296
        %v1139 = vadd.f32 %v1131, 0.2548296
        %v1140 = vadd.f32 %v1132, 0.2548296
        %v1141 = vadd.f32 %v1133, 0.2548296
        %v1142 = vmul.f32 %v1134, %v1063
        %v1143 = vmul.f32 %v1135, %v1065
        %v1144 = vmul.f32 %v1136, %v1067
        %v1145 = vmul.f32 %v1137, %v1069
        %v1146 = vmul.f32 %v1138, %v1071
        %v1147 = vmul.f32 %v1139, %v1073
        %v1148 = vmul.f32 %v1140, %v1075
        %v1149 = vmul.f32 %v1141, %v1077
        %v1150 = vsub.f32 0.0, %v1038
        %v1151 = vsub.f32 0.0, %v1039
        %v1152 = vsub.f32 0.0, %v1040
        %v1153 = vsub.f32 0.0, %v1041
        %v1154 = vsub.f32 0.0, %v1042
        %v1155 = vsub.f32 0.0, %v1043
        %v1156 = vsub.f32 0.0, %v1044
        %v1157 = vsub.f32 0.0, %v1045
        %v1158 = vmul.f32 %v1150, %v1038
        %v1159 = vmul.f32 %v1151, %v1039
        %v1160 = vmul.f32 %v1152, %v1040
        %v1161 = vmul.f32 %v1153, %v1041
        %v1162 = vmul.f32 %v1154, %v1042
        %v1163 = vmul.f32 %v1155, %v1043
        %v1164 = vmul.f32 %v1156, %v1044
        %v1165 = vmul.f32 %v1157, %v1045
        %v1166 = vmul.f32 %v1158, 1.442695
        %v1167 = vpow.pop %v1166
        %v1168 = vmul.f32 %v1159, 1.442695
        %v1169 = vpow.pop %v1168
        %v1170 = vmul.f32 %v1160, 1.442695
        %v1171 = vpow.pop %v1170
        %v1172 = vmul.f32 %v1161, 1.442695
        %v1173 = vpow.pop %v1172
        %v1174 = vmul.f32 %v1162, 1.442695
        %v1175 = vpow.pop %v1174
        %v1176 = vmul.f32 %v1163, 1.442695
        %v1177 = vpow.pop %v1176
        %v1178 = vmul.f32 %v1164, 1.442695
        %v1179 = vpow.pop %v1178
        %v1180 = vmul.f32 %v1165, 1.442695
        %v1181 = vpow.pop %v1180
        %v1182 = vmul.f32 %v1142, %v1167
        %v1183 = vmul.f32 %v1143, %v1169
        %v1184 = vmul.f32 %v1144, %v1171
        %v1185 = vmul.f32 %v1145, %v1173
        %v1186 = vmul.f32 %v1146, %v1175
        %v1187 = vmul.f32 %v1147, %v1177
        %v1188 = vmul.f32 %v1148, %v1179
        %v1189 = vmul.f32 %v1149, %v1181
        %v1190 = vsub.f32 1.0, %v1182
        %v1191 = vsub.f32 1.0, %v1183
        %v1192 = vsub.f32 1.0, %v1184
        %v1193 = vsub.f32 1.0, %v1185
        %v1194 = vsub.f32 1.0, %v1186
        %v1195 = vsub.f32 1.0, %v1187
        %v1196 = vsub.f32 1.0, %v1188
        %v1197 = vsub.f32 1.0, %v1189
        %v1198 = vmul.f32 %v1030, %v1190
        %v1199 = vmul.f32 %v1031, %v1191
        %v1200 = vmul.f32 %v1032, %v1192
        %v1201 = vmul.f32 %v1033, %v1193
        %v1202 = vmul.f32 %v1034, %v1194
        %v1203 = vmul.f32 %v1035, %v1195
        %v1204 = vmul.f32 %v1036, %v1196
        %v1205 = vmul.f32 %v1037, %v1197
        %v1206 = vadd.f32 %v1198, 1.0
        %v1207 = vadd.f32 %v1199, 1.0
        %v1208 = vadd.f32 %v1200, 1.0
        %v1209 = vadd.f32 %v1201, 1.0
        %v1210 = vadd.f32 %v1202, 1.0
        %v1211 = vadd.f32 %v1203, 1.0
        %v1212 = vadd.f32 %v1204, 1.0
        %v1213 = vadd.f32 %v1205, 1.0
        %v1214 = vmul.f32 %v1006, %v1206
        %v1215 = vmul.f32 %v1007, %v1207
        %v1216 = vmul.f32 %v1008, %v1208
        %v1217 = vmul.f32 %v1009, %v1209
        %v1218 = vmul.f32 %v1010, %v1210
        %v1219 = vmul.f32 %v1011, %v1211
        %v1220 = vmul.f32 %v1012, %v1212
        %v1221 = vmul.f32 %v1013, %v1213
        %1222 = vrot.lane.b32.xlu0 %v668, 1
        %v1223 = vpop.permute.xlu0 %1222
        %1224 = vrot.lane.b32.xlu0 %v669, 1
        %v1225 = vpop.permute.xlu0 %1224
        %1226 = vrot.lane.b32.xlu0 %v670, 1
        %v1227 = vpop.permute.xlu0 %1226
        %1228 = vrot.lane.b32.xlu0 %v671, 1
        %v1229 = vpop.permute.xlu0 %1228
        %v1230 = vsel %vm819, %v1223, -inf
        %v1231 = vsel %vm819, %v1225, -inf
        %v1232 = vsel %vm819, %v1227, -inf
        %v1233 = vsel %vm819, %v1229, -inf
        %v1234 = vmax.f32 %v1230, %v668
        %v1235 = vmax.f32 %v1231, %v669
        %v1236 = vmax.f32 %v1232, %v670
        %v1237 = vmax.f32 %v1233, %v671
        %1238 = vrot.lane.b32.xlu0 %v668, 127
        %v1239 = vpop.permute.xlu0 %1238
        %1240 = vrot.lane.b32.xlu0 %v669, 127
        %v1241 = vpop.permute.xlu0 %1240
        %1242 = vrot.lane.b32.xlu0 %v670, 127
        %v1243 = vpop.permute.xlu0 %1242
        %1244 = vrot.lane.b32.xlu0 %v671, 127
        %v1245 = vpop.permute.xlu0 %1244
        %v1246 = vsel %vm941, %v1239, -inf
        %v1247 = vsel %vm941, %v1241, -inf
        %v1248 = vsel %vm941, %v1243, -inf
        %v1249 = vsel %vm941, %v1245, -inf
        %v1250 = vmax.f32 %v1234, %v1246
        %v1251 = vmax.f32 %v1235, %v1247
        %v1252 = vmax.f32 %v1236, %v1248
        %v1253 = vmax.f32 %v1237, %v1249
        %v1254 = vmul.f32 %v1250, %v784
        %v1255 = vmul.f32 %v1251, %v784
        %v1256 = vmul.f32 %v1252, %v784
        %v1257 = vmul.f32 %v1253, %v784
        %v1258 = vld [vmem:[%s5] sm:$0xf]
        %v1259 = vld [vmem:[%s5 + $0x4] sm:$0xf]
        %v1260 = vld [vmem:[%s5 + $0x8] sm:$0xf]
        %v1261 = vld [vmem:[%s5 + $0xc] sm:$0xf]
        %v1262 = vld [vmem:[%s5 + $0x10] sm:$0xf]
        %v1263 = vld [vmem:[%s5 + $0x14] sm:$0xf]
        %v1264 = vld [vmem:[%s5 + $0x18] sm:$0xf]
        %v1265 = vld [vmem:[%s5 + $0x1c] sm:$0xf]
        %v1266 = vpack.c.bf16 %v1255, %v1254
        %v1267 = vpack.c.bf16 %v1257, %v1256
        %v1268 = vld [vmem:[%s6] sm:$0xff]
        %v1269 = vld [vmem:[%s6 + $0x8] sm:$0xff]
        %v1270 = vld [vmem:[%s6 + $0x10] sm:$0xff]
        %v1271 = vld [vmem:[%s6 + $0x18] sm:$0xff]
        %v1272 = vld [vmem:[%s6 + $0x20] sm:$0xff]
        %v1273 = vld [vmem:[%s6 + $0x28] sm:$0xff]
        %v1274 = vld [vmem:[%s6 + $0x30] sm:$0xff]
        %v1275 = vld [vmem:[%s6 + $0x38] sm:$0xff]
        %1277 = vset.pattern.permute.xlu0 0
        %1278 = vperm.xlu0 %1277, %v1268
        %v1279 = vpop.permute.xlu0 %1278
        %1282 = vset.pattern.permute.xlu0 0
        %1283 = vperm.xlu0 %1282, %v1269
        %v1284 = vpop.permute.xlu0 %1283
        %1287 = vset.pattern.permute.xlu0 0
        %1288 = vperm.xlu0 %1287, %v1270
        %v1289 = vpop.permute.xlu0 %1288
        %1292 = vset.pattern.permute.xlu0 0
        %1293 = vperm.xlu0 %1292, %v1271
        %v1294 = vpop.permute.xlu0 %1293
        %1297 = vset.pattern.permute.xlu0 0
        %1298 = vperm.xlu0 %1297, %v1272
        %v1299 = vpop.permute.xlu0 %1298
        %1302 = vset.pattern.permute.xlu0 0
        %1303 = vperm.xlu0 %1302, %v1273
        %v1304 = vpop.permute.xlu0 %1303
        %1307 = vset.pattern.permute.xlu0 0
        %1308 = vperm.xlu0 %1307, %v1274
        %v1309 = vpop.permute.xlu0 %1308
        %1312 = vset.pattern.permute.xlu0 0
        %1313 = vperm.xlu0 %1312, %v1275
        %v1314 = vpop.permute.xlu0 %1313
        %v1324 = vunpack.c.l.b16 %v1258
        %v1325 = vunpack.c.l.b16 %v1259
        %v1326 = vunpack.c.l.b16 %v1260
        %v1327 = vunpack.c.l.b16 %v1261
        %v1328 = vunpack.c.l.b16 %v1262
        %v1329 = vunpack.c.l.b16 %v1263
        %v1330 = vunpack.c.l.b16 %v1264
        %v1331 = vunpack.c.l.b16 %v1265
        %v1332 = vpack.c.b16 %v1325, %v1324
        %v1333 = vpack.c.b16 %v1327, %v1326
        %v1334 = vpack.c.b16 %v1329, %v1328
        %v1335 = vpack.c.b16 %v1331, %v1330
        %v1337 = vsel %vm702, %v1332, 0
        %v1340 = vsel %vm702, %v1333, 0
        %v1343 = vsel %vm702, %v1334, 0
        %v1346 = vsel %vm702, %v1335, 0
        %1348 = vmatprep.subr.bf16.mxu0 0
        %1349 = vmatpush1.bf16.msra.mxu0 %v1266
        %1350 = vmatprep.subr.bf16.mxu0 0
        %1351 = vmatpush1.bf16.msra.mxu0 %v1267
        %1352 = vmatprep.subr.bf16.mxu0 0
        %1353 = vmatpush1.bf16.msra.mxu0 0
        %1354 = vmatprep.subr.bf16.mxu0 0
        %1355 = vmatpush1.bf16.msra.mxu0 0
        %1356 = vmatprep.subr.bf16.mxu0 0
        %1357 = vmatpush1.bf16.msra.mxu0 0
        %1358 = vmatprep.subr.bf16.mxu0 0
        %1359 = vmatpush1.bf16.msra.mxu0 0
        %1360 = vmatprep.subr.bf16.mxu0 0
        %1361 = vmatpush1.bf16.msra.mxu0 0
        %1362 = vmatprep.subr.bf16.mxu0 0
        %1363 = vmatpush1.bf16.msra.mxu0 0
        %1364 = vmatprep.subr.bf16.mxu0 0
        %1365 = vmatpush1.bf16.msra.mxu0 0
        %1366 = vmatprep.subr.bf16.mxu0 0
        %1367 = vmatpush1.bf16.msra.mxu0 0
        %1368 = vmatprep.subr.bf16.mxu0 0
        %1369 = vmatpush1.bf16.msra.mxu0 0
        %1370 = vmatprep.subr.bf16.mxu0 0
        %1371 = vmatpush1.bf16.msra.mxu0 0
        %1372 = vmatprep.subr.bf16.mxu0 0
        %1373 = vmatpush1.bf16.msra.mxu0 0
        %1374 = vmatprep.subr.bf16.mxu0 0
        %1375 = vmatpush1.bf16.msra.mxu0 0
        %1376 = vmatprep.subr.bf16.mxu0 0
        %1377 = vmatpush1.bf16.msra.mxu0 0
        %1378 = vmatprep.subr.bf16.mxu0 0
        %1379 = vmatpush1.bf16.msra.mxu0 0
        %1380 = vmatprep.mubr.bf16.mxu0 0
        %1381 = vmatmul.mubr.bf16.gmra.mrb[0].mxu0 %v1337
        %v1382 = vpop.f32.mrb[0].mxu0
        %v1383 = vadd.f32 %v1279, %v1382
        %v1384 = vpop.f32.mrb[0].mxu0
        %v1385 = vpop.f32.mrb[0].mxu0
        %v1386 = vadd.f32 %v1284, %v1385
        %v1387 = vpop.f32.mrb[0].mxu0
        %1388 = vmatprep.mubr.bf16.mxu0 0
        %1389 = vmatmul.mubr.bf16.gmra.mrb[0].mxu0 %v1340
        %v1390 = vpop.f32.mrb[0].mxu0
        %v1391 = vadd.f32 %v1289, %v1390
        %v1392 = vpop.f32.mrb[0].mxu0
        %v1393 = vpop.f32.mrb[0].mxu0
        %v1394 = vadd.f32 %v1294, %v1393
        %v1395 = vpop.f32.mrb[0].mxu0
        %1396 = vmatprep.mubr.bf16.mxu0 0
        %1397 = vmatmul.mubr.bf16.gmra.mrb[0].mxu0 %v1343
        %v1398 = vpop.f32.mrb[0].mxu0
        %v1399 = vadd.f32 %v1299, %v1398
        %v1400 = vpop.f32.mrb[0].mxu0
        %v1401 = vpop.f32.mrb[0].mxu0
        %v1402 = vadd.f32 %v1304, %v1401
        %v1403 = vpop.f32.mrb[0].mxu0
        %1404 = vmatprep.mubr.bf16.mxu0 0
        %1405 = vmatmul.mubr.bf16.gmra.mrb[0].mxu0 %v1346
        %v1406 = vpop.f32.mrb[0].mxu0
        %v1407 = vadd.f32 %v1309, %v1406
        %v1408 = vpop.f32.mrb[0].mxu0
        %v1409 = vpop.f32.mrb[0].mxu0
        %v1410 = vadd.f32 %v1314, %v1409
        %v1411 = vpop.f32.mrb[0].mxu0
        %1412 = vdwg.mxu0
        %v1413 = vmul.f32 %v1383, %v784
        %v1414 = vmul.f32 %v1386, %v784
        %v1415 = vmul.f32 %v1391, %v784
        %v1416 = vmul.f32 %v1394, %v784
        %v1417 = vmul.f32 %v1399, %v784
        %v1418 = vmul.f32 %v1402, %v784
        %v1419 = vmul.f32 %v1407, %v784
        %v1420 = vmul.f32 %v1410, %v784
        %v1421 = vmul.f32 %v1413, 0.5
        %v1422 = vmul.f32 %v1414, 0.5
        %v1423 = vmul.f32 %v1415, 0.5
        %v1424 = vmul.f32 %v1416, 0.5
        %v1425 = vmul.f32 %v1417, 0.5
        %v1426 = vmul.f32 %v1418, 0.5
        %v1427 = vmul.f32 %v1419, 0.5
        %v1428 = vmul.f32 %v1420, 0.5
        %v1429 = vmul.f32 %v1413, 0.70710677
        %v1430 = vmul.f32 %v1414, 0.70710677
        %v1431 = vmul.f32 %v1415, 0.70710677
        %v1432 = vmul.f32 %v1416, 0.70710677
        %v1433 = vmul.f32 %v1417, 0.70710677
        %v1434 = vmul.f32 %v1418, 0.70710677
        %v1435 = vmul.f32 %v1419, 0.70710677
        %v1436 = vmul.f32 %v1420, 0.70710677
        %vm1437 = vcmp.ge.f32.partialorder %v1429, 0.0
        %vm1438 = vcmp.ge.f32.partialorder %v1430, 0.0
        %vm1439 = vcmp.ge.f32.partialorder %v1431, 0.0
        %vm1440 = vcmp.ge.f32.partialorder %v1432, 0.0
        %vm1441 = vcmp.ge.f32.partialorder %v1433, 0.0
        %vm1442 = vcmp.ge.f32.partialorder %v1434, 0.0
        %vm1443 = vcmp.ge.f32.partialorder %v1435, 0.0
        %vm1444 = vcmp.ge.f32.partialorder %v1436, 0.0
        %v1445 = vsel %vm1437, 1.0, -1.0
        %v1446 = vsel %vm1438, 1.0, -1.0
        %v1447 = vsel %vm1439, 1.0, -1.0
        %v1448 = vsel %vm1440, 1.0, -1.0
        %v1449 = vsel %vm1441, 1.0, -1.0
        %v1450 = vsel %vm1442, 1.0, -1.0
        %v1451 = vsel %vm1443, 1.0, -1.0
        %v1452 = vsel %vm1444, 1.0, -1.0
        %v1453 = vand.u32 2147483647, %v1429
        %v1454 = vand.u32 2147483647, %v1430
        %v1455 = vand.u32 2147483647, %v1431
        %v1456 = vand.u32 2147483647, %v1432
        %v1457 = vand.u32 2147483647, %v1433
        %v1458 = vand.u32 2147483647, %v1434
        %v1459 = vand.u32 2147483647, %v1435
        %v1460 = vand.u32 2147483647, %v1436
        %v1461 = vmul.f32 %v1453, 0.3275911
        %v1462 = vmul.f32 %v1454, 0.3275911
        %v1463 = vmul.f32 %v1455, 0.3275911
        %v1464 = vmul.f32 %v1456, 0.3275911
        %v1465 = vmul.f32 %v1457, 0.3275911
        %v1466 = vmul.f32 %v1458, 0.3275911
        %v1467 = vmul.f32 %v1459, 0.3275911
        %v1468 = vmul.f32 %v1460, 0.3275911
        %v1469 = vadd.f32 %v1461, 1.0
        %v1470 = vadd.f32 %v1462, 1.0
        %v1471 = vadd.f32 %v1463, 1.0
        %v1472 = vadd.f32 %v1464, 1.0
        %v1473 = vadd.f32 %v1465, 1.0
        %v1474 = vadd.f32 %v1466, 1.0
        %v1475 = vadd.f32 %v1467, 1.0
        %v1476 = vadd.f32 %v1468, 1.0
        %v1477 = vrcp.pop %v1469
        %v1478 = vmul.f32 1.0, %v1477
        %v1479 = vrcp.pop %v1470
        %v1480 = vmul.f32 1.0, %v1479
        %v1481 = vrcp.pop %v1471
        %v1482 = vmul.f32 1.0, %v1481
        %v1483 = vrcp.pop %v1472
        %v1484 = vmul.f32 1.0, %v1483
        %v1485 = vrcp.pop %v1473
        %v1486 = vmul.f32 1.0, %v1485
        %v1487 = vrcp.pop %v1474
        %v1488 = vmul.f32 1.0, %v1487
        %v1489 = vrcp.pop %v1475
        %v1490 = vmul.f32 1.0, %v1489
        %v1491 = vrcp.pop %v1476
        %v1492 = vmul.f32 1.0, %v1491
        %v1493 = vmul.f32 %v1478, 1.0614054
        %v1494 = vmul.f32 %v1480, 1.0614054
        %v1495 = vmul.f32 %v1482, 1.0614054
        %v1496 = vmul.f32 %v1484, 1.0614054
        %v1497 = vmul.f32 %v1486, 1.0614054
        %v1498 = vmul.f32 %v1488, 1.0614054
        %v1499 = vmul.f32 %v1490, 1.0614054
        %v1500 = vmul.f32 %v1492, 1.0614054
        %v1501 = vadd.f32 %v1493, -1.4531521
        %v1502 = vadd.f32 %v1494, -1.4531521
        %v1503 = vadd.f32 %v1495, -1.4531521
        %v1504 = vadd.f32 %v1496, -1.4531521
        %v1505 = vadd.f32 %v1497, -1.4531521
        %v1506 = vadd.f32 %v1498, -1.4531521
        %v1507 = vadd.f32 %v1499, -1.4531521
        %v1508 = vadd.f32 %v1500, -1.4531521
        %v1509 = vmul.f32 %v1501, %v1478
        %v1510 = vmul.f32 %v1502, %v1480
        %v1511 = vmul.f32 %v1503, %v1482
        %v1512 = vmul.f32 %v1504, %v1484
        %v1513 = vmul.f32 %v1505, %v1486
        %v1514 = vmul.f32 %v1506, %v1488
        %v1515 = vmul.f32 %v1507, %v1490
        %v1516 = vmul.f32 %v1508, %v1492
        %v1517 = vadd.f32 %v1509, 1.4214138
        %v1518 = vadd.f32 %v1510, 1.4214138
        %v1519 = vadd.f32 %v1511, 1.4214138
        %v1520 = vadd.f32 %v1512, 1.4214138
        %v1521 = vadd.f32 %v1513, 1.4214138
        %v1522 = vadd.f32 %v1514, 1.4214138
        %v1523 = vadd.f32 %v1515, 1.4214138
        %v1524 = vadd.f32 %v1516, 1.4214138
        %v1525 = vmul.f32 %v1517, %v1478
        %v1526 = vmul.f32 %v1518, %v1480
        %v1527 = vmul.f32 %v1519, %v1482
        %v1528 = vmul.f32 %v1520, %v1484
        %v1529 = vmul.f32 %v1521, %v1486
        %v1530 = vmul.f32 %v1522, %v1488
        %v1531 = vmul.f32 %v1523, %v1490
        %v1532 = vmul.f32 %v1524, %v1492
        %v1533 = vadd.f32 %v1525, -0.28449672
        %v1534 = vadd.f32 %v1526, -0.28449672
        %v1535 = vadd.f32 %v1527, -0.28449672
        %v1536 = vadd.f32 %v1528, -0.28449672
        %v1537 = vadd.f32 %v1529, -0.28449672
        %v1538 = vadd.f32 %v1530, -0.28449672
        %v1539 = vadd.f32 %v1531, -0.28449672
        %v1540 = vadd.f32 %v1532, -0.28449672
        %v1541 = vmul.f32 %v1533, %v1478
        %v1542 = vmul.f32 %v1534, %v1480
        %v1543 = vmul.f32 %v1535, %v1482
        %v1544 = vmul.f32 %v1536, %v1484
        %v1545 = vmul.f32 %v1537, %v1486
        %v1546 = vmul.f32 %v1538, %v1488
        %v1547 = vmul.f32 %v1539, %v1490
        %v1548 = vmul.f32 %v1540, %v1492
        %v1549 = vadd.f32 %v1541, 0.2548296
        %v1550 = vadd.f32 %v1542, 0.2548296
        %v1551 = vadd.f32 %v1543, 0.2548296
        %v1552 = vadd.f32 %v1544, 0.2548296
        %v1553 = vadd.f32 %v1545, 0.2548296
        %v1554 = vadd.f32 %v1546, 0.2548296
        %v1555 = vadd.f32 %v1547, 0.2548296
        %v1556 = vadd.f32 %v1548, 0.2548296
        %v1557 = vmul.f32 %v1549, %v1478
        %v1558 = vmul.f32 %v1550, %v1480
        %v1559 = vmul.f32 %v1551, %v1482
        %v1560 = vmul.f32 %v1552, %v1484
        %v1561 = vmul.f32 %v1553, %v1486
        %v1562 = vmul.f32 %v1554, %v1488
        %v1563 = vmul.f32 %v1555, %v1490
        %v1564 = vmul.f32 %v1556, %v1492
        %v1565 = vsub.f32 0.0, %v1453
        %v1566 = vsub.f32 0.0, %v1454
        %v1567 = vsub.f32 0.0, %v1455
        %v1568 = vsub.f32 0.0, %v1456
        %v1569 = vsub.f32 0.0, %v1457
        %v1570 = vsub.f32 0.0, %v1458
        %v1571 = vsub.f32 0.0, %v1459
        %v1572 = vsub.f32 0.0, %v1460
        %v1573 = vmul.f32 %v1565, %v1453
        %v1574 = vmul.f32 %v1566, %v1454
        %v1575 = vmul.f32 %v1567, %v1455
        %v1576 = vmul.f32 %v1568, %v1456
        %v1577 = vmul.f32 %v1569, %v1457
        %v1578 = vmul.f32 %v1570, %v1458
        %v1579 = vmul.f32 %v1571, %v1459
        %v1580 = vmul.f32 %v1572, %v1460
        %v1581 = vmul.f32 %v1573, 1.442695
        %v1582 = vpow.pop %v1581
        %v1583 = vmul.f32 %v1574, 1.442695
        %v1584 = vpow.pop %v1583
        %v1585 = vmul.f32 %v1575, 1.442695
        %v1586 = vpow.pop %v1585
        %v1587 = vmul.f32 %v1576, 1.442695
        %v1588 = vpow.pop %v1587
        %v1589 = vmul.f32 %v1577, 1.442695
        %v1590 = vpow.pop %v1589
        %v1591 = vmul.f32 %v1578, 1.442695
        %v1592 = vpow.pop %v1591
        %v1593 = vmul.f32 %v1579, 1.442695
        %v1594 = vpow.pop %v1593
        %v1595 = vmul.f32 %v1580, 1.442695
        %v1596 = vpow.pop %v1595
        %v1597 = vmul.f32 %v1557, %v1582
        %v1598 = vmul.f32 %v1558, %v1584
        %v1599 = vmul.f32 %v1559, %v1586
        %v1600 = vmul.f32 %v1560, %v1588
        %v1601 = vmul.f32 %v1561, %v1590
        %v1602 = vmul.f32 %v1562, %v1592
        %v1603 = vmul.f32 %v1563, %v1594
        %v1604 = vmul.f32 %v1564, %v1596
        %v1605 = vsub.f32 1.0, %v1597
        %v1606 = vsub.f32 1.0, %v1598
        %v1607 = vsub.f32 1.0, %v1599
        %v1608 = vsub.f32 1.0, %v1600
        %v1609 = vsub.f32 1.0, %v1601
        %v1610 = vsub.f32 1.0, %v1602
        %v1611 = vsub.f32 1.0, %v1603
        %v1612 = vsub.f32 1.0, %v1604
        %v1613 = vmul.f32 %v1445, %v1605
        %v1614 = vmul.f32 %v1446, %v1606
        %v1615 = vmul.f32 %v1447, %v1607
        %v1616 = vmul.f32 %v1448, %v1608
        %v1617 = vmul.f32 %v1449, %v1609
        %v1618 = vmul.f32 %v1450, %v1610
        %v1619 = vmul.f32 %v1451, %v1611
        %v1620 = vmul.f32 %v1452, %v1612
        %v1621 = vadd.f32 %v1613, 1.0
        %v1622 = vadd.f32 %v1614, 1.0
        %v1623 = vadd.f32 %v1615, 1.0
        %v1624 = vadd.f32 %v1616, 1.0
        %v1625 = vadd.f32 %v1617, 1.0
        %v1626 = vadd.f32 %v1618, 1.0
        %v1627 = vadd.f32 %v1619, 1.0
        %v1628 = vadd.f32 %v1620, 1.0
        %v1629 = vmul.f32 %v1421, %v1621
        %v1630 = vmul.f32 %v1422, %v1622
        %v1631 = vmul.f32 %v1423, %v1623
        %v1632 = vmul.f32 %v1424, %v1624
        %v1633 = vmul.f32 %v1425, %v1625
        %v1634 = vmul.f32 %v1426, %v1626
        %v1635 = vmul.f32 %v1427, %v1627
        %v1636 = vmul.f32 %v1428, %v1628
        %v1637 = vpack.c.bf16 %v669, %v668
        %v1638 = vpack.c.bf16 %v671, %v670
        %v1639 = vld [vmem:[%s7] sm:$0xf]
        %v1640 = vld [vmem:[%s7 + $0x4] sm:$0xf]
        %v1641 = vld [vmem:[%s7 + $0x8] sm:$0xf]
        %v1642 = vld [vmem:[%s7 + $0xc] sm:$0xf]
        %v1643 = vld [vmem:[%s7 + $0x10] sm:$0xf]
        %v1644 = vld [vmem:[%s7 + $0x14] sm:$0xf]
        %v1645 = vld [vmem:[%s7 + $0x18] sm:$0xf]
        %v1646 = vld [vmem:[%s7 + $0x1c] sm:$0xf]
        %v1647 = vpack.c.bf16 %v1215, %v1214
        %v1648 = vpack.c.bf16 %v1217, %v1216
        %v1649 = vpack.c.bf16 %v1219, %v1218
        %v1650 = vpack.c.bf16 %v1221, %v1220
        %v1651 = vld [vmem:[%s8] sm:$0xf]
        %v1652 = vld [vmem:[%s8 + $0x4] sm:$0xf]
        %v1653 = vld [vmem:[%s8 + $0x8] sm:$0xf]
        %v1654 = vld [vmem:[%s8 + $0xc] sm:$0xf]
        %v1655 = vld [vmem:[%s8 + $0x10] sm:$0xf]
        %v1656 = vld [vmem:[%s8 + $0x14] sm:$0xf]
        %v1657 = vld [vmem:[%s8 + $0x18] sm:$0xf]
        %v1658 = vld [vmem:[%s8 + $0x1c] sm:$0xf]
        %v1659 = vpack.c.bf16 %v1630, %v1629
        %v1660 = vpack.c.bf16 %v1632, %v1631
        %v1661 = vpack.c.bf16 %v1634, %v1633
        %v1662 = vpack.c.bf16 %v1636, %v1635
        %v1671 = vunpack.c.l.b16 %v1651
        %v1672 = vunpack.c.l.b16 %v1652
        %v1673 = vunpack.c.l.b16 %v1653
        %v1674 = vunpack.c.l.b16 %v1654
        %v1675 = vunpack.c.l.b16 %v1655
        %v1676 = vunpack.c.l.b16 %v1656
        %v1677 = vunpack.c.l.b16 %v1657
        %v1678 = vunpack.c.l.b16 %v1658
        %v1679 = vpack.c.b16 %v1672, %v1671
        %v1680 = vpack.c.b16 %v1674, %v1673
        %v1681 = vpack.c.b16 %v1676, %v1675
        %v1682 = vpack.c.b16 %v1678, %v1677
        %vm1683 = vcmask 523264
        %v1685 = vsel %vm1683, %v1679, 0
        %v1688 = vsel %vm1683, %v1680, 0
        %v1691 = vsel %vm1683, %v1681, 0
        %v1694 = vsel %vm1683, %v1682, 0
        %1696 = vmatprep.subr.bf16.mxu0 0
        %1697 = vmatpush1.bf16.msra.mxu0 %v1659
        %1698 = vmatprep.subr.bf16.mxu0 0
        %1699 = vmatpush1.bf16.msra.mxu0 %v1660
        %1700 = vmatprep.subr.bf16.mxu0 0
        %1701 = vmatpush1.bf16.msra.mxu0 %v1661
        %1702 = vmatprep.subr.bf16.mxu0 0
        %1703 = vmatpush1.bf16.msra.mxu0 %v1662
        %1704 = vmatprep.subr.bf16.mxu0 0
        %1705 = vmatpush1.bf16.msra.mxu0 0
        %1706 = vmatprep.subr.bf16.mxu0 0
        %1707 = vmatpush1.bf16.msra.mxu0 0
        %1708 = vmatprep.subr.bf16.mxu0 0
        %1709 = vmatpush1.bf16.msra.mxu0 0
        %1710 = vmatprep.subr.bf16.mxu0 0
        %1711 = vmatpush1.bf16.msra.mxu0 0
        %1712 = vmatprep.subr.bf16.mxu0 0
        %1713 = vmatpush1.bf16.msra.mxu0 0
        %1714 = vmatprep.subr.bf16.mxu0 0
        %1715 = vmatpush1.bf16.msra.mxu0 0
        %1716 = vmatprep.subr.bf16.mxu0 0
        %1717 = vmatpush1.bf16.msra.mxu0 0
        %1718 = vmatprep.subr.bf16.mxu0 0
        %1719 = vmatpush1.bf16.msra.mxu0 0
        %1720 = vmatprep.subr.bf16.mxu0 0
        %1721 = vmatpush1.bf16.msra.mxu0 0
        %1722 = vmatprep.subr.bf16.mxu0 0
        %1723 = vmatpush1.bf16.msra.mxu0 0
        %1724 = vmatprep.subr.bf16.mxu0 0
        %1725 = vmatpush1.bf16.msra.mxu0 0
        %1726 = vmatprep.subr.bf16.mxu0 0
        %1727 = vmatpush1.bf16.msra.mxu0 0
        %1728 = vmatprep.mubr.bf16.mxu0 0
        %1729 = vmatmul.mubr.bf16.gmra.mrb[0].mxu0 %v1685
        %v1730 = vpop.f32.mrb[0].mxu0
        %v1731 = vadd.f32 0.0, %v1730
        %v1732 = vpop.f32.mrb[0].mxu0
        %v1733 = vpop.f32.mrb[0].mxu0
        %v1734 = vadd.f32 0.0, %v1733
        %v1735 = vpop.f32.mrb[0].mxu0
        %1736 = vmatprep.mubr.bf16.mxu0 0
        %1737 = vmatmul.mubr.bf16.gmra.mrb[0].mxu0 %v1688
        %v1738 = vpop.f32.mrb[0].mxu0
        %v1739 = vadd.f32 0.0, %v1738
        %v1740 = vpop.f32.mrb[0].mxu0
        %v1741 = vpop.f32.mrb[0].mxu0
        %v1742 = vadd.f32 0.0, %v1741
        %v1743 = vpop.f32.mrb[0].mxu0
        %1744 = vmatprep.mubr.bf16.mxu0 0
        %1745 = vmatmul.mubr.bf16.gmra.mrb[0].mxu0 %v1691
        %v1746 = vpop.f32.mrb[0].mxu0
        %v1747 = vadd.f32 0.0, %v1746
        %v1748 = vpop.f32.mrb[0].mxu0
        %v1749 = vpop.f32.mrb[0].mxu0
        %v1750 = vadd.f32 0.0, %v1749
        %v1751 = vpop.f32.mrb[0].mxu0
        %1752 = vmatprep.mubr.bf16.mxu0 0
        %1753 = vmatmul.mubr.bf16.gmra.mrb[0].mxu0 %v1694
        %v1754 = vpop.f32.mrb[0].mxu0
        %v1755 = vadd.f32 0.0, %v1754
        %v1756 = vpop.f32.mrb[0].mxu0
        %v1757 = vpop.f32.mrb[0].mxu0
        %v1758 = vadd.f32 0.0, %v1757
        %v1759 = vpop.f32.mrb[0].mxu0
        %1760 = vdwg.mxu0
        %v1769 = vunpack.c.l.b16 %v1639
        %v1770 = vunpack.c.l.b16 %v1640
        %v1771 = vunpack.c.l.b16 %v1641
        %v1772 = vunpack.c.l.b16 %v1642
        %v1773 = vunpack.c.l.b16 %v1643
        %v1774 = vunpack.c.l.b16 %v1644
        %v1775 = vunpack.c.l.b16 %v1645
        %v1776 = vunpack.c.l.b16 %v1646
        %v1777 = vpack.c.b16 %v1770, %v1769
        %v1778 = vpack.c.b16 %v1772, %v1771
        %v1779 = vpack.c.b16 %v1774, %v1773
        %v1780 = vpack.c.b16 %v1776, %v1775
        %v1782 = vsel %vm1683, %v1777, 0
        %v1785 = vsel %vm1683, %v1778, 0
        %v1788 = vsel %vm1683, %v1779, 0
        %v1791 = vsel %vm1683, %v1780, 0
        %1793 = vmatprep.subr.bf16.mxu0 0
        %1794 = vmatpush1.bf16.msra.mxu0 %v1647
        %1795 = vmatprep.subr.bf16.mxu0 0
        %1796 = vmatpush1.bf16.msra.mxu0 %v1648
        %1797 = vmatprep.subr.bf16.mxu0 0
        %1798 = vmatpush1.bf16.msra.mxu0 %v1649
        %1799 = vmatprep.subr.bf16.mxu0 0
        %1800 = vmatpush1.bf16.msra.mxu0 %v1650
        %1801 = vmatprep.subr.bf16.mxu0 0
        %1802 = vmatpush1.bf16.msra.mxu0 0
        %1803 = vmatprep.subr.bf16.mxu0 0
        %1804 = vmatpush1.bf16.msra.mxu0 0
        %1805 = vmatprep.subr.bf16.mxu0 0
        %1806 = vmatpush1.bf16.msra.mxu0 0
        %1807 = vmatprep.subr.bf16.mxu0 0
        %1808 = vmatpush1.bf16.msra.mxu0 0
        %1809 = vmatprep.subr.bf16.mxu0 0
        %1810 = vmatpush1.bf16.msra.mxu0 0
        %1811 = vmatprep.subr.bf16.mxu0 0
        %1812 = vmatpush1.bf16.msra.mxu0 0
        %1813 = vmatprep.subr.bf16.mxu0 0
        %1814 = vmatpush1.bf16.msra.mxu0 0
        %1815 = vmatprep.subr.bf16.mxu0 0
        %1816 = vmatpush1.bf16.msra.mxu0 0
        %1817 = vmatprep.subr.bf16.mxu0 0
        %1818 = vmatpush1.bf16.msra.mxu0 0
        %1819 = vmatprep.subr.bf16.mxu0 0
        %1820 = vmatpush1.bf16.msra.mxu0 0
        %1821 = vmatprep.subr.bf16.mxu0 0
        %1822 = vmatpush1.bf16.msra.mxu0 0
        %1823 = vmatprep.subr.bf16.mxu0 0
        %1824 = vmatpush1.bf16.msra.mxu0 0
        %1825 = vmatprep.mubr.bf16.mxu0 0
        %1826 = vmatmul.mubr.bf16.gmra.mrb[0].mxu0 %v1782
        %v1827 = vpop.f32.mrb[0].mxu0
        %v1828 = vadd.f32 %v1731, %v1827
        %v1829 = vpop.f32.mrb[0].mxu0
        %v1830 = vpop.f32.mrb[0].mxu0
        %v1831 = vadd.f32 %v1734, %v1830
        %v1832 = vpop.f32.mrb[0].mxu0
        %1833 = vmatprep.mubr.bf16.mxu0 0
        %1834 = vmatmul.mubr.bf16.gmra.mrb[0].mxu0 %v1785
        %v1835 = vpop.f32.mrb[0].mxu0
        %v1836 = vadd.f32 %v1739, %v1835
        %v1837 = vpop.f32.mrb[0].mxu0
        %v1838 = vpop.f32.mrb[0].mxu0
        %v1839 = vadd.f32 %v1742, %v1838
        %v1840 = vpop.f32.mrb[0].mxu0
        %1841 = vmatprep.mubr.bf16.mxu0 0
        %1842 = vmatmul.mubr.bf16.gmra.mrb[0].mxu0 %v1788
        %v1843 = vpop.f32.mrb[0].mxu0
        %v1844 = vadd.f32 %v1747, %v1843
        %v1845 = vpop.f32.mrb[0].mxu0
        %v1846 = vpop.f32.mrb[0].mxu0
        %v1847 = vadd.f32 %v1750, %v1846
        %v1848 = vpop.f32.mrb[0].mxu0
        %1849 = vmatprep.mubr.bf16.mxu0 0
        %1850 = vmatmul.mubr.bf16.gmra.mrb[0].mxu0 %v1791
        %v1851 = vpop.f32.mrb[0].mxu0
        %v1852 = vadd.f32 %v1755, %v1851
        %v1853 = vpop.f32.mrb[0].mxu0
        %v1854 = vpop.f32.mrb[0].mxu0
        %v1855 = vadd.f32 %v1758, %v1854
        %v1856 = vpop.f32.mrb[0].mxu0
        %1857 = vdwg.mxu0
        %1858 = vset.pattern.permute.xlu0 8
        %1859 = vperm.xlu0 %1858, %v517
        %v1860 = vpop.permute.xlu0 %1859
        %1862 = vset.pattern.permute.xlu0 8
        %1863 = vperm.xlu0 %1862, %v518
        %v1864 = vpop.permute.xlu0 %1863
        %1866 = vset.pattern.permute.xlu0 8
        %1867 = vperm.xlu0 %1866, %v519
        %v1868 = vpop.permute.xlu0 %1867
        %1870 = vset.pattern.permute.xlu0 8
        %1871 = vperm.xlu0 %1870, %v520
        %v1872 = vpop.permute.xlu0 %1871
        %1874 = vset.pattern.permute.xlu0 8
        %1875 = vperm.xlu0 %1874, %v521
        %v1876 = vpop.permute.xlu0 %1875
        %1878 = vset.pattern.permute.xlu0 8
        %1879 = vperm.xlu0 %1878, %v522
        %v1880 = vpop.permute.xlu0 %1879
        %1882 = vset.pattern.permute.xlu0 8
        %1883 = vperm.xlu0 %1882, %v523
        %v1884 = vpop.permute.xlu0 %1883
        %1886 = vset.pattern.permute.xlu0 8
        %1887 = vperm.xlu0 %1886, %v524
        %v1888 = vpop.permute.xlu0 %1887
        %v1890 = vadd.f32 %v1828, %v1860
        %v1891 = vadd.f32 %v1831, %v1864
        %v1892 = vadd.f32 %v1836, %v1868
        %v1893 = vadd.f32 %v1839, %v1872
        %v1894 = vadd.f32 %v1844, %v1876
        %v1895 = vadd.f32 %v1847, %v1880
        %v1896 = vadd.f32 %v1852, %v1884
        %v1897 = vadd.f32 %v1855, %v1888
        %v1898 = vld [vmem:[%s9] sm:$0xf]
        %v1899 = vld [vmem:[%s9 + $0x4] sm:$0xf]
        %v1900 = vld [vmem:[%s9 + $0x8] sm:$0xf]
        %v1901 = vld [vmem:[%s9 + $0xc] sm:$0xf]
        %v1902 = vld [vmem:[%s9 + $0x10] sm:$0xf]
        %v1903 = vld [vmem:[%s9 + $0x14] sm:$0xf]
        %v1904 = vld [vmem:[%s9 + $0x18] sm:$0xf]
        %v1905 = vld [vmem:[%s9 + $0x1c] sm:$0xf]
        %v1906 = vld [vmem:[%s9 + $0x20] sm:$0xf]
        %v1907 = vld [vmem:[%s9 + $0x24] sm:$0xf]
        %v1908 = vld [vmem:[%s9 + $0x28] sm:$0xf]
        %v1909 = vld [vmem:[%s9 + $0x2c] sm:$0xf]
        %v1910 = vld [vmem:[%s9 + $0x30] sm:$0xf]
        %v1911 = vld [vmem:[%s9 + $0x34] sm:$0xf]
        %v1912 = vld [vmem:[%s9 + $0x38] sm:$0xf]
        %v1913 = vld [vmem:[%s9 + $0x3c] sm:$0xf]
        %v1930 = vunpack.c.l.b16 %v1898
        %v1931 = vunpack.c.l.b16 %v1899
        %v1932 = vunpack.c.l.b16 %v1900
        %v1933 = vunpack.c.l.b16 %v1901
        %v1934 = vunpack.c.l.b16 %v1902
        %v1935 = vunpack.c.l.b16 %v1903
        %v1936 = vunpack.c.l.b16 %v1904
        %v1937 = vunpack.c.l.b16 %v1905
        %v1938 = vunpack.c.l.b16 %v1906
        %v1939 = vunpack.c.l.b16 %v1907
        %v1940 = vunpack.c.l.b16 %v1908
        %v1941 = vunpack.c.l.b16 %v1909
        %v1942 = vunpack.c.l.b16 %v1910
        %v1943 = vunpack.c.l.b16 %v1911
        %v1944 = vunpack.c.l.b16 %v1912
        %v1945 = vunpack.c.l.b16 %v1913
        %v1946 = vpack.c.b16 %v1931, %v1930
        %v1947 = vpack.c.b16 %v1933, %v1932
        %v1948 = vpack.c.b16 %v1935, %v1934
        %v1949 = vpack.c.b16 %v1937, %v1936
        %v1950 = vpack.c.b16 %v1939, %v1938
        %v1951 = vpack.c.b16 %v1941, %v1940
        %v1952 = vpack.c.b16 %v1943, %v1942
        %v1953 = vpack.c.b16 %v1945, %v1944
        %v1955 = vsel %vm1683, %v1946, 0
        %v1958 = vsel %vm1683, %v1947, 0
        %v1961 = vsel %vm1683, %v1948, 0
        %v1964 = vsel %vm1683, %v1949, 0
        %v1967 = vsel %vm1683, %v1950, 0
        %v1970 = vsel %vm1683, %v1951, 0
        %v1973 = vsel %vm1683, %v1952, 0
        %v1976 = vsel %vm1683, %v1953, 0
        %1978 = vmatprep.subr.bf16.mxu0 0
        %1979 = vmatpush1.bf16.msra.mxu0 %v680
        %1980 = vmatprep.subr.bf16.mxu0 0
        %1981 = vmatpush1.bf16.msra.mxu0 %v681
        %1982 = vmatprep.subr.bf16.mxu0 0
        %1983 = vmatpush1.bf16.msra.mxu0 %v1637
        %1984 = vmatprep.subr.bf16.mxu0 0
        %1985 = vmatpush1.bf16.msra.mxu0 %v1638
        %1986 = vmatprep.subr.bf16.mxu0 0
        %1987 = vmatpush1.bf16.msra.mxu0 0
        %1988 = vmatprep.subr.bf16.mxu0 0
        %1989 = vmatpush1.bf16.msra.mxu0 0
        %1990 = vmatprep.subr.bf16.mxu0 0
        %1991 = vmatpush1.bf16.msra.mxu0 0
        %1992 = vmatprep.subr.bf16.mxu0 0
        %1993 = vmatpush1.bf16.msra.mxu0 0
        %1994 = vmatprep.subr.bf16.mxu0 0
        %1995 = vmatpush1.bf16.msra.mxu0 0
        %1996 = vmatprep.subr.bf16.mxu0 0
        %1997 = vmatpush1.bf16.msra.mxu0 0
        %1998 = vmatprep.subr.bf16.mxu0 0
        %1999 = vmatpush1.bf16.msra.mxu0 0
        %2000 = vmatprep.subr.bf16.mxu0 0
        %2001 = vmatpush1.bf16.msra.mxu0 0
        %2002 = vmatprep.subr.bf16.mxu0 0
        %2003 = vmatpush1.bf16.msra.mxu0 0
        %2004 = vmatprep.subr.bf16.mxu0 0
        %2005 = vmatpush1.bf16.msra.mxu0 0
        %2006 = vmatprep.subr.bf16.mxu0 0
        %2007 = vmatpush1.bf16.msra.mxu0 0
        %2008 = vmatprep.subr.bf16.mxu0 0
        %2009 = vmatpush1.bf16.msra.mxu0 0
        %2010 = vmatprep.mubr.bf16.mxu0 0
        %2011 = vmatmul.mubr.bf16.gmra.mrb[0].mxu0 %v1955
        %v2012 = vpop.f32.mrb[0].mxu0
        %v2013 = vadd.f32 0.0, %v2012
        %v2014 = vpop.f32.mrb[0].mxu0
        %v2015 = vpop.f32.mrb[0].mxu0
        %v2016 = vadd.f32 0.0, %v2015
        %v2017 = vpop.f32.mrb[0].mxu0
        %2018 = vmatprep.mubr.bf16.mxu0 0
        %2019 = vmatmul.mubr.bf16.gmra.mrb[0].mxu0 %v1958
        %v2020 = vpop.f32.mrb[0].mxu0
        %v2021 = vadd.f32 0.0, %v2020
        %v2022 = vpop.f32.mrb[0].mxu0
        %v2023 = vpop.f32.mrb[0].mxu0
        %v2024 = vadd.f32 0.0, %v2023
        %v2025 = vpop.f32.mrb[0].mxu0
        %2026 = vmatprep.mubr.bf16.mxu0 0
        %2027 = vmatmul.mubr.bf16.gmra.mrb[0].mxu0 %v1961
        %v2028 = vpop.f32.mrb[0].mxu0
        %v2029 = vadd.f32 0.0, %v2028
        %v2030 = vpop.f32.mrb[0].mxu0
        %v2031 = vpop.f32.mrb[0].mxu0
        %v2032 = vadd.f32 0.0, %v2031
        %v2033 = vpop.f32.mrb[0].mxu0
        %2034 = vmatprep.mubr.bf16.mxu0 0
        %2035 = vmatmul.mubr.bf16.gmra.mrb[0].mxu0 %v1964
        %v2036 = vpop.f32.mrb[0].mxu0
        %v2037 = vadd.f32 0.0, %v2036
        %v2038 = vpop.f32.mrb[0].mxu0
        %v2039 = vpop.f32.mrb[0].mxu0
        %v2040 = vadd.f32 0.0, %v2039
        %v2041 = vpop.f32.mrb[0].mxu0
        %2042 = vmatprep.mubr.bf16.mxu0 0
        %2043 = vmatmul.mubr.bf16.gmra.mrb[0].mxu0 %v1967
        %v2044 = vpop.f32.mrb[0].mxu0
        %v2045 = vadd.f32 0.0, %v2044
        %v2046 = vpop.f32.mrb[0].mxu0
        %v2047 = vpop.f32.mrb[0].mxu0
        %v2048 = vadd.f32 0.0, %v2047
        %v2049 = vpop.f32.mrb[0].mxu0
        %2050 = vmatprep.mubr.bf16.mxu0 0
        %2051 = vmatmul.mubr.bf16.gmra.mrb[0].mxu0 %v1970
        %v2052 = vpop.f32.mrb[0].mxu0
        %v2053 = vadd.f32 0.0, %v2052
        %v2054 = vpop.f32.mrb[0].mxu0
        %v2055 = vpop.f32.mrb[0].mxu0
        %v2056 = vadd.f32 0.0, %v2055
        %v2057 = vpop.f32.mrb[0].mxu0
        %2058 = vmatprep.mubr.bf16.mxu0 0
        %2059 = vmatmul.mubr.bf16.gmra.mrb[0].mxu0 %v1973
        %v2060 = vpop.f32.mrb[0].mxu0
        %v2061 = vadd.f32 0.0, %v2060
        %v2062 = vpop.f32.mrb[0].mxu0
        %v2063 = vpop.f32.mrb[0].mxu0
        %v2064 = vadd.f32 0.0, %v2063
        %v2065 = vpop.f32.mrb[0].mxu0
        %2066 = vmatprep.mubr.bf16.mxu0 0
        %2067 = vmatmul.mubr.bf16.gmra.mrb[0].mxu0 %v1976
        %v2068 = vpop.f32.mrb[0].mxu0
        %v2069 = vadd.f32 0.0, %v2068
        %v2070 = vpop.f32.mrb[0].mxu0
        %v2071 = vpop.f32.mrb[0].mxu0
        %v2072 = vadd.f32 0.0, %v2071
        %v2073 = vpop.f32.mrb[0].mxu0
        %2074 = vdwg.mxu0
        %2075 = vset.pattern.permute.xlu0 2
        %2076 = vperm.xlu0 %2075, %v517
        %v2077 = vpop.permute.xlu0 %2076
        %2079 = vset.pattern.permute.xlu0 2
        %2080 = vperm.xlu0 %2079, %v518
        %v2081 = vpop.permute.xlu0 %2080
        %2083 = vset.pattern.permute.xlu0 2
        %2084 = vperm.xlu0 %2083, %v519
        %v2085 = vpop.permute.xlu0 %2084
        %2087 = vset.pattern.permute.xlu0 2
        %2088 = vperm.xlu0 %2087, %v520
        %v2089 = vpop.permute.xlu0 %2088
        %2091 = vset.pattern.permute.xlu0 2
        %2092 = vperm.xlu0 %2091, %v521
        %v2093 = vpop.permute.xlu0 %2092
        %2095 = vset.pattern.permute.xlu0 2
        %2096 = vperm.xlu0 %2095, %v522
        %v2097 = vpop.permute.xlu0 %2096
        %2099 = vset.pattern.permute.xlu0 2
        %2100 = vperm.xlu0 %2099, %v523
        %v2101 = vpop.permute.xlu0 %2100
        %2103 = vset.pattern.permute.xlu0 2
        %2104 = vperm.xlu0 %2103, %v524
        %v2105 = vpop.permute.xlu0 %2104
        %v2107 = vadd.f32 %v2013, %v2077
        %v2108 = vadd.f32 %v2016, %v2081
        %v2109 = vadd.f32 %v2021, %v2085
        %v2110 = vadd.f32 %v2024, %v2089
        %v2111 = vadd.f32 %v2029, %v2093
        %v2112 = vadd.f32 %v2032, %v2097
        %v2113 = vadd.f32 %v2037, %v2101
        %v2114 = vadd.f32 %v2040, %v2105
        %2115 = vset.pattern.permute.xlu0 3
        %2116 = vperm.xlu0 %2115, %v517
        %v2117 = vpop.permute.xlu0 %2116
        %2119 = vset.pattern.permute.xlu0 3
        %2120 = vperm.xlu0 %2119, %v518
        %v2121 = vpop.permute.xlu0 %2120
        %2123 = vset.pattern.permute.xlu0 3
        %2124 = vperm.xlu0 %2123, %v519
        %v2125 = vpop.permute.xlu0 %2124
        %2127 = vset.pattern.permute.xlu0 3
        %2128 = vperm.xlu0 %2127, %v520
        %v2129 = vpop.permute.xlu0 %2128
        %2131 = vset.pattern.permute.xlu0 3
        %2132 = vperm.xlu0 %2131, %v521
        %v2133 = vpop.permute.xlu0 %2132
        %2135 = vset.pattern.permute.xlu0 3
        %2136 = vperm.xlu0 %2135, %v522
        %v2137 = vpop.permute.xlu0 %2136
        %2139 = vset.pattern.permute.xlu0 3
        %2140 = vperm.xlu0 %2139, %v523
        %v2141 = vpop.permute.xlu0 %2140
        %2143 = vset.pattern.permute.xlu0 3
        %2144 = vperm.xlu0 %2143, %v524
        %v2145 = vpop.permute.xlu0 %2144
        %v2147 = vadd.f32 %v2045, %v2117
        %v2148 = vadd.f32 %v2048, %v2121
        %v2149 = vadd.f32 %v2053, %v2125
        %v2150 = vadd.f32 %v2056, %v2129
        %v2151 = vadd.f32 %v2061, %v2133
        %v2152 = vadd.f32 %v2064, %v2137
        %v2153 = vadd.f32 %v2069, %v2141
        %v2154 = vadd.f32 %v2072, %v2145
        %v2155 = vpack.c.bf16 %v1890, %v1890
        %v2156 = vpack.c.bf16 %v1891, %v1891
        %v2157 = vpack.c.bf16 %v1892, %v1892
        %v2158 = vpack.c.bf16 %v1893, %v1893
        %v2159 = vpack.c.bf16 %v1894, %v1894
        %v2160 = vpack.c.bf16 %v1895, %v1895
        %v2161 = vpack.c.bf16 %v1896, %v1896
        %v2162 = vpack.c.bf16 %v1897, %v1897
        %v2163 = vpack.c.bf16 %v2107, %v2107
        %v2164 = vpack.c.bf16 %v2108, %v2108
        %v2165 = vpack.c.bf16 %v2109, %v2109
        %v2166 = vpack.c.bf16 %v2110, %v2110
        %v2167 = vpack.c.bf16 %v2111, %v2111
        %v2168 = vpack.c.bf16 %v2112, %v2112
        %v2169 = vpack.c.bf16 %v2113, %v2113
        %v2170 = vpack.c.bf16 %v2114, %v2114
        %v2171 = vpack.c.bf16 %v2147, %v2147
        %v2172 = vpack.c.bf16 %v2148, %v2148
        %v2173 = vpack.c.bf16 %v2149, %v2149
        %v2174 = vpack.c.bf16 %v2150, %v2150
        %v2175 = vpack.c.bf16 %v2151, %v2151
        %v2176 = vpack.c.bf16 %v2152, %v2152
        %v2177 = vpack.c.bf16 %v2153, %v2153
        %v2178 = vpack.c.bf16 %v2154, %v2154
        %2179 = vxpose.xlu0.c.b16.start [1/8] %v2155, 128
        %2180 = vxpose.xlu0.c.b16.cont [2/8] 0, 128
        %2181 = vxpose.xlu0.c.b16.cont [3/8] 0, 128
        %2182 = vxpose.xlu0.c.b16.cont [4/8] 0, 128
        %2183 = vxpose.xlu0.c.b16.cont [5/8] 0, 128
        %2184 = vxpose.xlu0.c.b16.cont [6/8] 0, 128
        %2185 = vxpose.xlu0.c.b16.cont [7/8] 0, 128
        %2186 = vxpose.xlu0.c.b16.end [8/8] 0, 128
        %v2187 = vpop.trf.xlu0
        %v2188 = vpop.trf.xlu0
        %v2189 = vpop.trf.xlu0
        %v2190 = vpop.trf.xlu0
        %v2191 = vpop.trf.xlu0
        %v2192 = vpop.trf.xlu0
        %v2193 = vpop.trf.xlu0
        %v2194 = vpop.trf.xlu0
        %vm2195 = vcmask 64512
        %v2197 = vsel %vm2195, %v2187, 0
        %v2200 = vsel %vm2195, %v2188, 0
        %v2203 = vsel %vm2195, %v2189, 0
        %v2206 = vsel %vm2195, %v2190, 0
        %v2209 = vsel %vm2195, %v2191, 0
        %v2212 = vsel %vm2195, %v2192, 0
        %v2215 = vsel %vm2195, %v2193, 0
        %v2218 = vsel %vm2195, %v2194, 0
        %vm2220 = vcmask 1043456
        %v2222 = vsel %vm2220, %v2163, 0
        %2224 = vmatprep.subr.bf16.mxu0 0
        %2225 = vmatpush1.bf16.msra.mxu0 %v2222
        %2226 = vmatprep.subr.bf16.mxu0 0
        %2227 = vmatpush1.bf16.msra.mxu0 0
        %2228 = vmatprep.subr.bf16.mxu0 0
        %2229 = vmatpush1.bf16.msra.mxu0 0
        %2230 = vmatprep.subr.bf16.mxu0 0
        %2231 = vmatpush1.bf16.msra.mxu0 0
        %2232 = vmatprep.subr.bf16.mxu0 0
        %2233 = vmatpush1.bf16.msra.mxu0 0
        %2234 = vmatprep.subr.bf16.mxu0 0
        %2235 = vmatpush1.bf16.msra.mxu0 0
        %2236 = vmatprep.subr.bf16.mxu0 0
        %2237 = vmatpush1.bf16.msra.mxu0 0
        %2238 = vmatprep.subr.bf16.mxu0 0
        %2239 = vmatpush1.bf16.msra.mxu0 0
        %2240 = vmatprep.subr.bf16.mxu0 0
        %2241 = vmatpush1.bf16.msra.mxu0 0
        %2242 = vmatprep.subr.bf16.mxu0 0
        %2243 = vmatpush1.bf16.msra.mxu0 0
        %2244 = vmatprep.subr.bf16.mxu0 0
        %2245 = vmatpush1.bf16.msra.mxu0 0
        %2246 = vmatprep.subr.bf16.mxu0 0
        %2247 = vmatpush1.bf16.msra.mxu0 0
        %2248 = vmatprep.subr.bf16.mxu0 0
        %2249 = vmatpush1.bf16.msra.mxu0 0
        %2250 = vmatprep.subr.bf16.mxu0 0
        %2251 = vmatpush1.bf16.msra.mxu0 0
        %2252 = vmatprep.subr.bf16.mxu0 0
        %2253 = vmatpush1.bf16.msra.mxu0 0
        %2254 = vmatprep.subr.bf16.mxu0 0
        %2255 = vmatpush1.bf16.msra.mxu0 0
        %2256 = vmatprep.mubr.bf16.mxu0 0
        %2257 = vmatmul.mubr.bf16.gmra.mrb[0].mxu0 %v2197
        %v2258 = vpop.f32.mrb[0].mxu0
        %v2259 = vadd.f32 0.0, %v2258
        %v2260 = vpop.f32.mrb[0].mxu0
        %v2261 = vpop.f32.mrb[0].mxu0
        %v2262 = vadd.f32 0.0, %v2261
        %v2263 = vpop.f32.mrb[0].mxu0
        %2264 = vmatprep.mubr.bf16.mxu0 0
        %2265 = vmatmul.mubr.bf16.gmra.mrb[0].mxu0 %v2200
        %v2266 = vpop.f32.mrb[0].mxu0
        %v2267 = vadd.f32 0.0, %v2266
        %v2268 = vpop.f32.mrb[0].mxu0
        %v2269 = vpop.f32.mrb[0].mxu0
        %v2270 = vadd.f32 0.0, %v2269
        %v2271 = vpop.f32.mrb[0].mxu0
        %2272 = vmatprep.mubr.bf16.mxu0 0
        %2273 = vmatmul.mubr.bf16.gmra.mrb[0].mxu0 %v2203
        %v2274 = vpop.f32.mrb[0].mxu0
        %v2275 = vadd.f32 0.0, %v2274
        %v2276 = vpop.f32.mrb[0].mxu0
        %v2277 = vpop.f32.mrb[0].mxu0
        %v2278 = vadd.f32 0.0, %v2277
        %v2279 = vpop.f32.mrb[0].mxu0
        %2280 = vmatprep.mubr.bf16.mxu0 0
        %2281 = vmatmul.mubr.bf16.gmra.mrb[0].mxu0 %v2206
        %v2282 = vpop.f32.mrb[0].mxu0
        %v2283 = vadd.f32 0.0, %v2282
        %v2284 = vpop.f32.mrb[0].mxu0
        %v2285 = vpop.f32.mrb[0].mxu0
        %v2286 = vadd.f32 0.0, %v2285
        %v2287 = vpop.f32.mrb[0].mxu0
        %2288 = vmatprep.mubr.bf16.mxu0 0
        %2289 = vmatmul.mubr.bf16.gmra.mrb[0].mxu0 %v2209
        %v2290 = vpop.f32.mrb[0].mxu0
        %v2291 = vadd.f32 0.0, %v2290
        %v2292 = vpop.f32.mrb[0].mxu0
        %v2293 = vpop.f32.mrb[0].mxu0
        %v2294 = vadd.f32 0.0, %v2293
        %v2295 = vpop.f32.mrb[0].mxu0
        %2296 = vmatprep.mubr.bf16.mxu0 0
        %2297 = vmatmul.mubr.bf16.gmra.mrb[0].mxu0 %v2212
        %v2298 = vpop.f32.mrb[0].mxu0
        %v2299 = vadd.f32 0.0, %v2298
        %v2300 = vpop.f32.mrb[0].mxu0
        %v2301 = vpop.f32.mrb[0].mxu0
        %v2302 = vadd.f32 0.0, %v2301
        %v2303 = vpop.f32.mrb[0].mxu0
        %2304 = vmatprep.mubr.bf16.mxu0 0
        %2305 = vmatmul.mubr.bf16.gmra.mrb[0].mxu0 %v2215
        %v2306 = vpop.f32.mrb[0].mxu0
        %v2307 = vadd.f32 0.0, %v2306
        %v2308 = vpop.f32.mrb[0].mxu0
        %v2309 = vpop.f32.mrb[0].mxu0
        %v2310 = vadd.f32 0.0, %v2309
        %v2311 = vpop.f32.mrb[0].mxu0
        %2312 = vmatprep.mubr.bf16.mxu0 0
        %2313 = vmatmul.mubr.bf16.gmra.mrb[0].mxu0 %v2218
        %v2314 = vpop.f32.mrb[0].mxu0
        %v2315 = vadd.f32 0.0, %v2314
        %v2316 = vpop.f32.mrb[0].mxu0
        %v2317 = vpop.f32.mrb[0].mxu0
        %v2318 = vadd.f32 0.0, %v2317
        %v2319 = vpop.f32.mrb[0].mxu0
        %2320 = vdwg.mxu0
        %2321 = vxpose.xlu0.c.b16.start [1/8] %v2156, 128
        %2322 = vxpose.xlu0.c.b16.cont [2/8] 0, 128
        %2323 = vxpose.xlu0.c.b16.cont [3/8] 0, 128
        %2324 = vxpose.xlu0.c.b16.cont [4/8] 0, 128
        %2325 = vxpose.xlu0.c.b16.cont [5/8] 0, 128
        %2326 = vxpose.xlu0.c.b16.cont [6/8] 0, 128
        %2327 = vxpose.xlu0.c.b16.cont [7/8] 0, 128
        %2328 = vxpose.xlu0.c.b16.end [8/8] 0, 128
        %v2329 = vpop.trf.xlu0
        %v2330 = vpop.trf.xlu0
        %v2331 = vpop.trf.xlu0
        %v2332 = vpop.trf.xlu0
        %v2333 = vpop.trf.xlu0
        %v2334 = vpop.trf.xlu0
        %v2335 = vpop.trf.xlu0
        %v2336 = vpop.trf.xlu0
        %v2338 = vsel %vm2195, %v2329, 0
        %v2341 = vsel %vm2195, %v2330, 0
        %v2344 = vsel %vm2195, %v2331, 0
        %v2347 = vsel %vm2195, %v2332, 0
        %v2350 = vsel %vm2195, %v2333, 0
        %v2353 = vsel %vm2195, %v2334, 0
        %v2356 = vsel %vm2195, %v2335, 0
        %v2359 = vsel %vm2195, %v2336, 0
        %v2362 = vsel %vm2220, %v2164, 0
        %2364 = vmatprep.subr.bf16.mxu0 0
        %2365 = vmatpush1.bf16.msra.mxu0 %v2362
        %2366 = vmatprep.subr.bf16.mxu0 0
        %2367 = vmatpush1.bf16.msra.mxu0 0
        %2368 = vmatprep.subr.bf16.mxu0 0
        %2369 = vmatpush1.bf16.msra.mxu0 0
        %2370 = vmatprep.subr.bf16.mxu0 0
        %2371 = vmatpush1.bf16.msra.mxu0 0
        %2372 = vmatprep.subr.bf16.mxu0 0
        %2373 = vmatpush1.bf16.msra.mxu0 0
        %2374 = vmatprep.subr.bf16.mxu0 0
        %2375 = vmatpush1.bf16.msra.mxu0 0
        %2376 = vmatprep.subr.bf16.mxu0 0
        %2377 = vmatpush1.bf16.msra.mxu0 0
        %2378 = vmatprep.subr.bf16.mxu0 0
        %2379 = vmatpush1.bf16.msra.mxu0 0
        %2380 = vmatprep.subr.bf16.mxu0 0
        %2381 = vmatpush1.bf16.msra.mxu0 0
        %2382 = vmatprep.subr.bf16.mxu0 0
        %2383 = vmatpush1.bf16.msra.mxu0 0
        %2384 = vmatprep.subr.bf16.mxu0 0
        %2385 = vmatpush1.bf16.msra.mxu0 0
        %2386 = vmatprep.subr.bf16.mxu0 0
        %2387 = vmatpush1.bf16.msra.mxu0 0
        %2388 = vmatprep.subr.bf16.mxu0 0
        %2389 = vmatpush1.bf16.msra.mxu0 0
        %2390 = vmatprep.subr.bf16.mxu0 0
        %2391 = vmatpush1.bf16.msra.mxu0 0
        %2392 = vmatprep.subr.bf16.mxu0 0
        %2393 = vmatpush1.bf16.msra.mxu0 0
        %2394 = vmatprep.subr.bf16.mxu0 0
        %2395 = vmatpush1.bf16.msra.mxu0 0
        %2396 = vmatprep.mubr.bf16.mxu0 0
        %2397 = vmatmul.mubr.bf16.gmra.mrb[0].mxu0 %v2338
        %v2398 = vpop.f32.mrb[0].mxu0
        %v2399 = vadd.f32 0.0, %v2398
        %v2400 = vpop.f32.mrb[0].mxu0
        %v2401 = vpop.f32.mrb[0].mxu0
        %v2402 = vadd.f32 0.0, %v2401
        %v2403 = vpop.f32.mrb[0].mxu0
        %2404 = vmatprep.mubr.bf16.mxu0 0
        %2405 = vmatmul.mubr.bf16.gmra.mrb[0].mxu0 %v2341
        %v2406 = vpop.f32.mrb[0].mxu0
        %v2407 = vadd.f32 0.0, %v2406
        %v2408 = vpop.f32.mrb[0].mxu0
        %v2409 = vpop.f32.mrb[0].mxu0
        %v2410 = vadd.f32 0.0, %v2409
        %v2411 = vpop.f32.mrb[0].mxu0
        %2412 = vmatprep.mubr.bf16.mxu0 0
        %2413 = vmatmul.mubr.bf16.gmra.mrb[0].mxu0 %v2344
        %v2414 = vpop.f32.mrb[0].mxu0
        %v2415 = vadd.f32 0.0, %v2414
        %v2416 = vpop.f32.mrb[0].mxu0
        %v2417 = vpop.f32.mrb[0].mxu0
        %v2418 = vadd.f32 0.0, %v2417
        %v2419 = vpop.f32.mrb[0].mxu0
        %2420 = vmatprep.mubr.bf16.mxu0 0
        %2421 = vmatmul.mubr.bf16.gmra.mrb[0].mxu0 %v2347
        %v2422 = vpop.f32.mrb[0].mxu0
        %v2423 = vadd.f32 0.0, %v2422
        %v2424 = vpop.f32.mrb[0].mxu0
        %v2425 = vpop.f32.mrb[0].mxu0
        %v2426 = vadd.f32 0.0, %v2425
        %v2427 = vpop.f32.mrb[0].mxu0
        %2428 = vmatprep.mubr.bf16.mxu0 0
        %2429 = vmatmul.mubr.bf16.gmra.mrb[0].mxu0 %v2350
        %v2430 = vpop.f32.mrb[0].mxu0
        %v2431 = vadd.f32 0.0, %v2430
        %v2432 = vpop.f32.mrb[0].mxu0
        %v2433 = vpop.f32.mrb[0].mxu0
        %v2434 = vadd.f32 0.0, %v2433
        %v2435 = vpop.f32.mrb[0].mxu0
        %2436 = vmatprep.mubr.bf16.mxu0 0
        %2437 = vmatmul.mubr.bf16.gmra.mrb[0].mxu0 %v2353
        %v2438 = vpop.f32.mrb[0].mxu0
        %v2439 = vadd.f32 0.0, %v2438
        %v2440 = vpop.f32.mrb[0].mxu0
        %v2441 = vpop.f32.mrb[0].mxu0
        %v2442 = vadd.f32 0.0, %v2441
        %v2443 = vpop.f32.mrb[0].mxu0
        %2444 = vmatprep.mubr.bf16.mxu0 0
        %2445 = vmatmul.mubr.bf16.gmra.mrb[0].mxu0 %v2356
        %v2446 = vpop.f32.mrb[0].mxu0
        %v2447 = vadd.f32 0.0, %v2446
        %v2448 = vpop.f32.mrb[0].mxu0
        %v2449 = vpop.f32.mrb[0].mxu0
        %v2450 = vadd.f32 0.0, %v2449
        %v2451 = vpop.f32.mrb[0].mxu0
        %2452 = vmatprep.mubr.bf16.mxu0 0
        %2453 = vmatmul.mubr.bf16.gmra.mrb[0].mxu0 %v2359
        %v2454 = vpop.f32.mrb[0].mxu0
        %v2455 = vadd.f32 0.0, %v2454
        %v2456 = vpop.f32.mrb[0].mxu0
        %v2457 = vpop.f32.mrb[0].mxu0
        %v2458 = vadd.f32 0.0, %v2457
        %v2459 = vpop.f32.mrb[0].mxu0
        %2460 = vdwg.mxu0
        %2461 = vxpose.xlu0.c.b16.start [1/8] %v2157, 128
        %2462 = vxpose.xlu0.c.b16.cont [2/8] 0, 128
        %2463 = vxpose.xlu0.c.b16.cont [3/8] 0, 128
        %2464 = vxpose.xlu0.c.b16.cont [4/8] 0, 128
        %2465 = vxpose.xlu0.c.b16.cont [5/8] 0, 128
        %2466 = vxpose.xlu0.c.b16.cont [6/8] 0, 128
        %2467 = vxpose.xlu0.c.b16.cont [7/8] 0, 128
        %2468 = vxpose.xlu0.c.b16.end [8/8] 0, 128
        %v2469 = vpop.trf.xlu0
        %v2470 = vpop.trf.xlu0
        %v2471 = vpop.trf.xlu0
        %v2472 = vpop.trf.xlu0
        %v2473 = vpop.trf.xlu0
        %v2474 = vpop.trf.xlu0
        %v2475 = vpop.trf.xlu0
        %v2476 = vpop.trf.xlu0
        %v2478 = vsel %vm2195, %v2469, 0
        %v2481 = vsel %vm2195, %v2470, 0
        %v2484 = vsel %vm2195, %v2471, 0
        %v2487 = vsel %vm2195, %v2472, 0
        %v2490 = vsel %vm2195, %v2473, 0
        %v2493 = vsel %vm2195, %v2474, 0
        %v2496 = vsel %vm2195, %v2475, 0
        %v2499 = vsel %vm2195, %v2476, 0
        %v2502 = vsel %vm2220, %v2165, 0
        %2504 = vmatprep.subr.bf16.mxu0 0
        %2505 = vmatpush1.bf16.msra.mxu0 %v2502
        %2506 = vmatprep.subr.bf16.mxu0 0
        %2507 = vmatpush1.bf16.msra.mxu0 0
        %2508 = vmatprep.subr.bf16.mxu0 0
        %2509 = vmatpush1.bf16.msra.mxu0 0
        %2510 = vmatprep.subr.bf16.mxu0 0
        %2511 = vmatpush1.bf16.msra.mxu0 0
        %2512 = vmatprep.subr.bf16.mxu0 0
        %2513 = vmatpush1.bf16.msra.mxu0 0
        %2514 = vmatprep.subr.bf16.mxu0 0
        %2515 = vmatpush1.bf16.msra.mxu0 0
        %2516 = vmatprep.subr.bf16.mxu0 0
        %2517 = vmatpush1.bf16.msra.mxu0 0
        %2518 = vmatprep.subr.bf16.mxu0 0
        %2519 = vmatpush1.bf16.msra.mxu0 0
        %2520 = vmatprep.subr.bf16.mxu0 0
        %2521 = vmatpush1.bf16.msra.mxu0 0
        %2522 = vmatprep.subr.bf16.mxu0 0
        %2523 = vmatpush1.bf16.msra.mxu0 0
        %2524 = vmatprep.subr.bf16.mxu0 0
        %2525 = vmatpush1.bf16.msra.mxu0 0
        %2526 = vmatprep.subr.bf16.mxu0 0
        %2527 = vmatpush1.bf16.msra.mxu0 0
        %2528 = vmatprep.subr.bf16.mxu0 0
        %2529 = vmatpush1.bf16.msra.mxu0 0
        %2530 = vmatprep.subr.bf16.mxu0 0
        %2531 = vmatpush1.bf16.msra.mxu0 0
        %2532 = vmatprep.subr.bf16.mxu0 0
        %2533 = vmatpush1.bf16.msra.mxu0 0
        %2534 = vmatprep.subr.bf16.mxu0 0
        %2535 = vmatpush1.bf16.msra.mxu0 0
        %2536 = vmatprep.mubr.bf16.mxu0 0
        %2537 = vmatmul.mubr.bf16.gmra.mrb[0].mxu0 %v2478
        %v2538 = vpop.f32.mrb[0].mxu0
        %v2539 = vadd.f32 0.0, %v2538
        %v2540 = vpop.f32.mrb[0].mxu0
        %v2541 = vpop.f32.mrb[0].mxu0
        %v2542 = vadd.f32 0.0, %v2541
        %v2543 = vpop.f32.mrb[0].mxu0
        %2544 = vmatprep.mubr.bf16.mxu0 0
        %2545 = vmatmul.mubr.bf16.gmra.mrb[0].mxu0 %v2481
        %v2546 = vpop.f32.mrb[0].mxu0
        %v2547 = vadd.f32 0.0, %v2546
        %v2548 = vpop.f32.mrb[0].mxu0
        %v2549 = vpop.f32.mrb[0].mxu0
        %v2550 = vadd.f32 0.0, %v2549
        %v2551 = vpop.f32.mrb[0].mxu0
        %2552 = vmatprep.mubr.bf16.mxu0 0
        %2553 = vmatmul.mubr.bf16.gmra.mrb[0].mxu0 %v2484
        %v2554 = vpop.f32.mrb[0].mxu0
        %v2555 = vadd.f32 0.0, %v2554
        %v2556 = vpop.f32.mrb[0].mxu0
        %v2557 = vpop.f32.mrb[0].mxu0
        %v2558 = vadd.f32 0.0, %v2557
        %v2559 = vpop.f32.mrb[0].mxu0
        %2560 = vmatprep.mubr.bf16.mxu0 0
        %2561 = vmatmul.mubr.bf16.gmra.mrb[0].mxu0 %v2487
        %v2562 = vpop.f32.mrb[0].mxu0
        %v2563 = vadd.f32 0.0, %v2562
        %v2564 = vpop.f32.mrb[0].mxu0
        %v2565 = vpop.f32.mrb[0].mxu0
        %v2566 = vadd.f32 0.0, %v2565
        %v2567 = vpop.f32.mrb[0].mxu0
        %2568 = vmatprep.mubr.bf16.mxu0 0
        %2569 = vmatmul.mubr.bf16.gmra.mrb[0].mxu0 %v2490
        %v2570 = vpop.f32.mrb[0].mxu0
        %v2571 = vadd.f32 0.0, %v2570
        %v2572 = vpop.f32.mrb[0].mxu0
        %v2573 = vpop.f32.mrb[0].mxu0
        %v2574 = vadd.f32 0.0, %v2573
        %v2575 = vpop.f32.mrb[0].mxu0
        %2576 = vmatprep.mubr.bf16.mxu0 0
        %2577 = vmatmul.mubr.bf16.gmra.mrb[0].mxu0 %v2493
        %v2578 = vpop.f32.mrb[0].mxu0
        %v2579 = vadd.f32 0.0, %v2578
        %v2580 = vpop.f32.mrb[0].mxu0
        %v2581 = vpop.f32.mrb[0].mxu0
        %v2582 = vadd.f32 0.0, %v2581
        %v2583 = vpop.f32.mrb[0].mxu0
        %2584 = vmatprep.mubr.bf16.mxu0 0
        %2585 = vmatmul.mubr.bf16.gmra.mrb[0].mxu0 %v2496
        %v2586 = vpop.f32.mrb[0].mxu0
        %v2587 = vadd.f32 0.0, %v2586
        %v2588 = vpop.f32.mrb[0].mxu0
        %v2589 = vpop.f32.mrb[0].mxu0
        %v2590 = vadd.f32 0.0, %v2589
        %v2591 = vpop.f32.mrb[0].mxu0
        %2592 = vmatprep.mubr.bf16.mxu0 0
        %2593 = vmatmul.mubr.bf16.gmra.mrb[0].mxu0 %v2499
        %v2594 = vpop.f32.mrb[0].mxu0
        %v2595 = vadd.f32 0.0, %v2594
        %v2596 = vpop.f32.mrb[0].mxu0
        %v2597 = vpop.f32.mrb[0].mxu0
        %v2598 = vadd.f32 0.0, %v2597
        %v2599 = vpop.f32.mrb[0].mxu0
        %2600 = vdwg.mxu0
        %2601 = vxpose.xlu0.c.b16.start [1/8] %v2158, 128
        %2602 = vxpose.xlu0.c.b16.cont [2/8] 0, 128
        %2603 = vxpose.xlu0.c.b16.cont [3/8] 0, 128
        %2604 = vxpose.xlu0.c.b16.cont [4/8] 0, 128
        %2605 = vxpose.xlu0.c.b16.cont [5/8] 0, 128
        %2606 = vxpose.xlu0.c.b16.cont [6/8] 0, 128
        %2607 = vxpose.xlu0.c.b16.cont [7/8] 0, 128
        %2608 = vxpose.xlu0.c.b16.end [8/8] 0, 128
        %v2609 = vpop.trf.xlu0
        %v2610 = vpop.trf.xlu0
        %v2611 = vpop.trf.xlu0
        %v2612 = vpop.trf.xlu0
        %v2613 = vpop.trf.xlu0
        %v2614 = vpop.trf.xlu0
        %v2615 = vpop.trf.xlu0
        %v2616 = vpop.trf.xlu0
        %v2618 = vsel %vm2195, %v2609, 0
        %v2621 = vsel %vm2195, %v2610, 0
        %v2624 = vsel %vm2195, %v2611, 0
        %v2627 = vsel %vm2195, %v2612, 0
        %v2630 = vsel %vm2195, %v2613, 0
        %v2633 = vsel %vm2195, %v2614, 0
        %v2636 = vsel %vm2195, %v2615, 0
        %v2639 = vsel %vm2195, %v2616, 0
        %v2642 = vsel %vm2220, %v2166, 0
        %2644 = vmatprep.subr.bf16.mxu0 0
        %2645 = vmatpush1.bf16.msra.mxu0 %v2642
        %2646 = vmatprep.subr.bf16.mxu0 0
        %2647 = vmatpush1.bf16.msra.mxu0 0
        %2648 = vmatprep.subr.bf16.mxu0 0
        %2649 = vmatpush1.bf16.msra.mxu0 0
        %2650 = vmatprep.subr.bf16.mxu0 0
        %2651 = vmatpush1.bf16.msra.mxu0 0
        %2652 = vmatprep.subr.bf16.mxu0 0
        %2653 = vmatpush1.bf16.msra.mxu0 0
        %2654 = vmatprep.subr.bf16.mxu0 0
        %2655 = vmatpush1.bf16.msra.mxu0 0
        %2656 = vmatprep.subr.bf16.mxu0 0
        %2657 = vmatpush1.bf16.msra.mxu0 0
        %2658 = vmatprep.subr.bf16.mxu0 0
        %2659 = vmatpush1.bf16.msra.mxu0 0
        %2660 = vmatprep.subr.bf16.mxu0 0
        %2661 = vmatpush1.bf16.msra.mxu0 0
        %2662 = vmatprep.subr.bf16.mxu0 0
        %2663 = vmatpush1.bf16.msra.mxu0 0
        %2664 = vmatprep.subr.bf16.mxu0 0
        %2665 = vmatpush1.bf16.msra.mxu0 0
        %2666 = vmatprep.subr.bf16.mxu0 0
        %2667 = vmatpush1.bf16.msra.mxu0 0
        %2668 = vmatprep.subr.bf16.mxu0 0
        %2669 = vmatpush1.bf16.msra.mxu0 0
        %2670 = vmatprep.subr.bf16.mxu0 0
        %2671 = vmatpush1.bf16.msra.mxu0 0
        %2672 = vmatprep.subr.bf16.mxu0 0
        %2673 = vmatpush1.bf16.msra.mxu0 0
        %2674 = vmatprep.subr.bf16.mxu0 0
        %2675 = vmatpush1.bf16.msra.mxu0 0
        %2676 = vmatprep.mubr.bf16.mxu0 0
        %2677 = vmatmul.mubr.bf16.gmra.mrb[0].mxu0 %v2618
        %v2678 = vpop.f32.mrb[0].mxu0
        %v2679 = vadd.f32 0.0, %v2678
        %v2680 = vpop.f32.mrb[0].mxu0
        %v2681 = vpop.f32.mrb[0].mxu0
        %v2682 = vadd.f32 0.0, %v2681
        %v2683 = vpop.f32.mrb[0].mxu0
        %2684 = vmatprep.mubr.bf16.mxu0 0
        %2685 = vmatmul.mubr.bf16.gmra.mrb[0].mxu0 %v2621
        %v2686 = vpop.f32.mrb[0].mxu0
        %v2687 = vadd.f32 0.0, %v2686
        %v2688 = vpop.f32.mrb[0].mxu0
        %v2689 = vpop.f32.mrb[0].mxu0
        %v2690 = vadd.f32 0.0, %v2689
        %v2691 = vpop.f32.mrb[0].mxu0
        %2692 = vmatprep.mubr.bf16.mxu0 0
        %2693 = vmatmul.mubr.bf16.gmra.mrb[0].mxu0 %v2624
        %v2694 = vpop.f32.mrb[0].mxu0
        %v2695 = vadd.f32 0.0, %v2694
        %v2696 = vpop.f32.mrb[0].mxu0
        %v2697 = vpop.f32.mrb[0].mxu0
        %v2698 = vadd.f32 0.0, %v2697
        %v2699 = vpop.f32.mrb[0].mxu0
        %2700 = vmatprep.mubr.bf16.mxu0 0
        %2701 = vmatmul.mubr.bf16.gmra.mrb[0].mxu0 %v2627
        %v2702 = vpop.f32.mrb[0].mxu0
        %v2703 = vadd.f32 0.0, %v2702
        %v2704 = vpop.f32.mrb[0].mxu0
        %v2705 = vpop.f32.mrb[0].mxu0
        %v2706 = vadd.f32 0.0, %v2705
        %v2707 = vpop.f32.mrb[0].mxu0
        %2708 = vmatprep.mubr.bf16.mxu0 0
        %2709 = vmatmul.mubr.bf16.gmra.mrb[0].mxu0 %v2630
        %v2710 = vpop.f32.mrb[0].mxu0
        %v2711 = vadd.f32 0.0, %v2710
        %v2712 = vpop.f32.mrb[0].mxu0
        %v2713 = vpop.f32.mrb[0].mxu0
        %v2714 = vadd.f32 0.0, %v2713
        %v2715 = vpop.f32.mrb[0].mxu0
        %2716 = vmatprep.mubr.bf16.mxu0 0
        %2717 = vmatmul.mubr.bf16.gmra.mrb[0].mxu0 %v2633
        %v2718 = vpop.f32.mrb[0].mxu0
        %v2719 = vadd.f32 0.0, %v2718
        %v2720 = vpop.f32.mrb[0].mxu0
        %v2721 = vpop.f32.mrb[0].mxu0
        %v2722 = vadd.f32 0.0, %v2721
        %v2723 = vpop.f32.mrb[0].mxu0
        %2724 = vmatprep.mubr.bf16.mxu0 0
        %2725 = vmatmul.mubr.bf16.gmra.mrb[0].mxu0 %v2636
        %v2726 = vpop.f32.mrb[0].mxu0
        %v2727 = vadd.f32 0.0, %v2726
        %v2728 = vpop.f32.mrb[0].mxu0
        %v2729 = vpop.f32.mrb[0].mxu0
        %v2730 = vadd.f32 0.0, %v2729
        %v2731 = vpop.f32.mrb[0].mxu0
        %2732 = vmatprep.mubr.bf16.mxu0 0
        %2733 = vmatmul.mubr.bf16.gmra.mrb[0].mxu0 %v2639
        %v2734 = vpop.f32.mrb[0].mxu0
        %v2735 = vadd.f32 0.0, %v2734
        %v2736 = vpop.f32.mrb[0].mxu0
        %v2737 = vpop.f32.mrb[0].mxu0
        %v2738 = vadd.f32 0.0, %v2737
        %v2739 = vpop.f32.mrb[0].mxu0
        %2740 = vdwg.mxu0
        %2741 = vxpose.xlu0.c.b16.start [1/8] %v2159, 128
        %2742 = vxpose.xlu0.c.b16.cont [2/8] 0, 128
        %2743 = vxpose.xlu0.c.b16.cont [3/8] 0, 128
        %2744 = vxpose.xlu0.c.b16.cont [4/8] 0, 128
        %2745 = vxpose.xlu0.c.b16.cont [5/8] 0, 128
        %2746 = vxpose.xlu0.c.b16.cont [6/8] 0, 128
        %2747 = vxpose.xlu0.c.b16.cont [7/8] 0, 128
        %2748 = vxpose.xlu0.c.b16.end [8/8] 0, 128
        %v2749 = vpop.trf.xlu0
        %v2750 = vpop.trf.xlu0
        %v2751 = vpop.trf.xlu0
        %v2752 = vpop.trf.xlu0
        %v2753 = vpop.trf.xlu0
        %v2754 = vpop.trf.xlu0
        %v2755 = vpop.trf.xlu0
        %v2756 = vpop.trf.xlu0
        %v2758 = vsel %vm2195, %v2749, 0
        %v2761 = vsel %vm2195, %v2750, 0
        %v2764 = vsel %vm2195, %v2751, 0
        %v2767 = vsel %vm2195, %v2752, 0
        %v2770 = vsel %vm2195, %v2753, 0
        %v2773 = vsel %vm2195, %v2754, 0
        %v2776 = vsel %vm2195, %v2755, 0
        %v2779 = vsel %vm2195, %v2756, 0
        %v2782 = vsel %vm2220, %v2167, 0
        %2784 = vmatprep.subr.bf16.mxu0 0
        %2785 = vmatpush1.bf16.msra.mxu0 %v2782
        %2786 = vmatprep.subr.bf16.mxu0 0
        %2787 = vmatpush1.bf16.msra.mxu0 0
        %2788 = vmatprep.subr.bf16.mxu0 0
        %2789 = vmatpush1.bf16.msra.mxu0 0
        %2790 = vmatprep.subr.bf16.mxu0 0
        %2791 = vmatpush1.bf16.msra.mxu0 0
        %2792 = vmatprep.subr.bf16.mxu0 0
        %2793 = vmatpush1.bf16.msra.mxu0 0
        %2794 = vmatprep.subr.bf16.mxu0 0
        %2795 = vmatpush1.bf16.msra.mxu0 0
        %2796 = vmatprep.subr.bf16.mxu0 0
        %2797 = vmatpush1.bf16.msra.mxu0 0
        %2798 = vmatprep.subr.bf16.mxu0 0
        %2799 = vmatpush1.bf16.msra.mxu0 0
        %2800 = vmatprep.subr.bf16.mxu0 0
        %2801 = vmatpush1.bf16.msra.mxu0 0
        %2802 = vmatprep.subr.bf16.mxu0 0
        %2803 = vmatpush1.bf16.msra.mxu0 0
        %2804 = vmatprep.subr.bf16.mxu0 0
        %2805 = vmatpush1.bf16.msra.mxu0 0
        %2806 = vmatprep.subr.bf16.mxu0 0
        %2807 = vmatpush1.bf16.msra.mxu0 0
        %2808 = vmatprep.subr.bf16.mxu0 0
        %2809 = vmatpush1.bf16.msra.mxu0 0
        %2810 = vmatprep.subr.bf16.mxu0 0
        %2811 = vmatpush1.bf16.msra.mxu0 0
        %2812 = vmatprep.subr.bf16.mxu0 0
        %2813 = vmatpush1.bf16.msra.mxu0 0
        %2814 = vmatprep.subr.bf16.mxu0 0
        %2815 = vmatpush1.bf16.msra.mxu0 0
        %2816 = vmatprep.mubr.bf16.mxu0 0
        %2817 = vmatmul.mubr.bf16.gmra.mrb[0].mxu0 %v2758
        %v2818 = vpop.f32.mrb[0].mxu0
        %v2819 = vadd.f32 0.0, %v2818
        %v2820 = vpop.f32.mrb[0].mxu0
        %v2821 = vpop.f32.mrb[0].mxu0
        %v2822 = vadd.f32 0.0, %v2821
        %v2823 = vpop.f32.mrb[0].mxu0
        %2824 = vmatprep.mubr.bf16.mxu0 0
        %2825 = vmatmul.mubr.bf16.gmra.mrb[0].mxu0 %v2761
        %v2826 = vpop.f32.mrb[0].mxu0
        %v2827 = vadd.f32 0.0, %v2826
        %v2828 = vpop.f32.mrb[0].mxu0
        %v2829 = vpop.f32.mrb[0].mxu0
        %v2830 = vadd.f32 0.0, %v2829
        %v2831 = vpop.f32.mrb[0].mxu0
        %2832 = vmatprep.mubr.bf16.mxu0 0
        %2833 = vmatmul.mubr.bf16.gmra.mrb[0].mxu0 %v2764
        %v2834 = vpop.f32.mrb[0].mxu0
        %v2835 = vadd.f32 0.0, %v2834
        %v2836 = vpop.f32.mrb[0].mxu0
        %v2837 = vpop.f32.mrb[0].mxu0
        %v2838 = vadd.f32 0.0, %v2837
        %v2839 = vpop.f32.mrb[0].mxu0
        %2840 = vmatprep.mubr.bf16.mxu0 0
        %2841 = vmatmul.mubr.bf16.gmra.mrb[0].mxu0 %v2767
        %v2842 = vpop.f32.mrb[0].mxu0
        %v2843 = vadd.f32 0.0, %v2842
        %v2844 = vpop.f32.mrb[0].mxu0
        %v2845 = vpop.f32.mrb[0].mxu0
        %v2846 = vadd.f32 0.0, %v2845
        %v2847 = vpop.f32.mrb[0].mxu0
        %2848 = vmatprep.mubr.bf16.mxu0 0
        %2849 = vmatmul.mubr.bf16.gmra.mrb[0].mxu0 %v2770
        %v2850 = vpop.f32.mrb[0].mxu0
        %v2851 = vadd.f32 0.0, %v2850
        %v2852 = vpop.f32.mrb[0].mxu0
        %v2853 = vpop.f32.mrb[0].mxu0
        %v2854 = vadd.f32 0.0, %v2853
        %v2855 = vpop.f32.mrb[0].mxu0
        %2856 = vmatprep.mubr.bf16.mxu0 0
        %2857 = vmatmul.mubr.bf16.gmra.mrb[0].mxu0 %v2773
        %v2858 = vpop.f32.mrb[0].mxu0
        %v2859 = vadd.f32 0.0, %v2858
        %v2860 = vpop.f32.mrb[0].mxu0
        %v2861 = vpop.f32.mrb[0].mxu0
        %v2862 = vadd.f32 0.0, %v2861
        %v2863 = vpop.f32.mrb[0].mxu0
        %2864 = vmatprep.mubr.bf16.mxu0 0
        %2865 = vmatmul.mubr.bf16.gmra.mrb[0].mxu0 %v2776
        %v2866 = vpop.f32.mrb[0].mxu0
        %v2867 = vadd.f32 0.0, %v2866
        %v2868 = vpop.f32.mrb[0].mxu0
        %v2869 = vpop.f32.mrb[0].mxu0
        %v2870 = vadd.f32 0.0, %v2869
        %v2871 = vpop.f32.mrb[0].mxu0
        %2872 = vmatprep.mubr.bf16.mxu0 0
        %2873 = vmatmul.mubr.bf16.gmra.mrb[0].mxu0 %v2779
        %v2874 = vpop.f32.mrb[0].mxu0
        %v2875 = vadd.f32 0.0, %v2874
        %v2876 = vpop.f32.mrb[0].mxu0
        %v2877 = vpop.f32.mrb[0].mxu0
        %v2878 = vadd.f32 0.0, %v2877
        %v2879 = vpop.f32.mrb[0].mxu0
        %2880 = vdwg.mxu0
        %2881 = vxpose.xlu0.c.b16.start [1/8] %v2160, 128
        %2882 = vxpose.xlu0.c.b16.cont [2/8] 0, 128
        %2883 = vxpose.xlu0.c.b16.cont [3/8] 0, 128
        %2884 = vxpose.xlu0.c.b16.cont [4/8] 0, 128
        %2885 = vxpose.xlu0.c.b16.cont [5/8] 0, 128
        %2886 = vxpose.xlu0.c.b16.cont [6/8] 0, 128
        %2887 = vxpose.xlu0.c.b16.cont [7/8] 0, 128
        %2888 = vxpose.xlu0.c.b16.end [8/8] 0, 128
        %v2889 = vpop.trf.xlu0
        %v2890 = vpop.trf.xlu0
        %v2891 = vpop.trf.xlu0
        %v2892 = vpop.trf.xlu0
        %v2893 = vpop.trf.xlu0
        %v2894 = vpop.trf.xlu0
        %v2895 = vpop.trf.xlu0
        %v2896 = vpop.trf.xlu0
        %v2898 = vsel %vm2195, %v2889, 0
        %v2901 = vsel %vm2195, %v2890, 0
        %v2904 = vsel %vm2195, %v2891, 0
        %v2907 = vsel %vm2195, %v2892, 0
        %v2910 = vsel %vm2195, %v2893, 0
        %v2913 = vsel %vm2195, %v2894, 0
        %v2916 = vsel %vm2195, %v2895, 0
        %v2919 = vsel %vm2195, %v2896, 0
        %v2922 = vsel %vm2220, %v2168, 0
        %2924 = vmatprep.subr.bf16.mxu0 0
        %2925 = vmatpush1.bf16.msra.mxu0 %v2922
        %2926 = vmatprep.subr.bf16.mxu0 0
        %2927 = vmatpush1.bf16.msra.mxu0 0
        %2928 = vmatprep.subr.bf16.mxu0 0
        %2929 = vmatpush1.bf16.msra.mxu0 0
        %2930 = vmatprep.subr.bf16.mxu0 0
        %2931 = vmatpush1.bf16.msra.mxu0 0
        %2932 = vmatprep.subr.bf16.mxu0 0
        %2933 = vmatpush1.bf16.msra.mxu0 0
        %2934 = vmatprep.subr.bf16.mxu0 0
        %2935 = vmatpush1.bf16.msra.mxu0 0
        %2936 = vmatprep.subr.bf16.mxu0 0
        %2937 = vmatpush1.bf16.msra.mxu0 0
        %2938 = vmatprep.subr.bf16.mxu0 0
        %2939 = vmatpush1.bf16.msra.mxu0 0
        %2940 = vmatprep.subr.bf16.mxu0 0
        %2941 = vmatpush1.bf16.msra.mxu0 0
        %2942 = vmatprep.subr.bf16.mxu0 0
        %2943 = vmatpush1.bf16.msra.mxu0 0
        %2944 = vmatprep.subr.bf16.mxu0 0
        %2945 = vmatpush1.bf16.msra.mxu0 0
        %2946 = vmatprep.subr.bf16.mxu0 0
        %2947 = vmatpush1.bf16.msra.mxu0 0
        %2948 = vmatprep.subr.bf16.mxu0 0
        %2949 = vmatpush1.bf16.msra.mxu0 0
        %2950 = vmatprep.subr.bf16.mxu0 0
        %2951 = vmatpush1.bf16.msra.mxu0 0
        %2952 = vmatprep.subr.bf16.mxu0 0
        %2953 = vmatpush1.bf16.msra.mxu0 0
        %2954 = vmatprep.subr.bf16.mxu0 0
        %2955 = vmatpush1.bf16.msra.mxu0 0
        %2956 = vmatprep.mubr.bf16.mxu0 0
        %2957 = vmatmul.mubr.bf16.gmra.mrb[0].mxu0 %v2898
        %v2958 = vpop.f32.mrb[0].mxu0
        %v2959 = vadd.f32 0.0, %v2958
        %v2960 = vpop.f32.mrb[0].mxu0
        %v2961 = vpop.f32.mrb[0].mxu0
        %v2962 = vadd.f32 0.0, %v2961
        %v2963 = vpop.f32.mrb[0].mxu0
        %2964 = vmatprep.mubr.bf16.mxu0 0
        %2965 = vmatmul.mubr.bf16.gmra.mrb[0].mxu0 %v2901
        %v2966 = vpop.f32.mrb[0].mxu0
        %v2967 = vadd.f32 0.0, %v2966
        %v2968 = vpop.f32.mrb[0].mxu0
        %v2969 = vpop.f32.mrb[0].mxu0
        %v2970 = vadd.f32 0.0, %v2969
        %v2971 = vpop.f32.mrb[0].mxu0
        %2972 = vmatprep.mubr.bf16.mxu0 0
        %2973 = vmatmul.mubr.bf16.gmra.mrb[0].mxu0 %v2904
        %v2974 = vpop.f32.mrb[0].mxu0
        %v2975 = vadd.f32 0.0, %v2974
        %v2976 = vpop.f32.mrb[0].mxu0
        %v2977 = vpop.f32.mrb[0].mxu0
        %v2978 = vadd.f32 0.0, %v2977
        %v2979 = vpop.f32.mrb[0].mxu0
        %2980 = vmatprep.mubr.bf16.mxu0 0
        %2981 = vmatmul.mubr.bf16.gmra.mrb[0].mxu0 %v2907
        %v2982 = vpop.f32.mrb[0].mxu0
        %v2983 = vadd.f32 0.0, %v2982
        %v2984 = vpop.f32.mrb[0].mxu0
        %v2985 = vpop.f32.mrb[0].mxu0
        %v2986 = vadd.f32 0.0, %v2985
        %v2987 = vpop.f32.mrb[0].mxu0
        %2988 = vmatprep.mubr.bf16.mxu0 0
        %2989 = vmatmul.mubr.bf16.gmra.mrb[0].mxu0 %v2910
        %v2990 = vpop.f32.mrb[0].mxu0
        %v2991 = vadd.f32 0.0, %v2990
        %v2992 = vpop.f32.mrb[0].mxu0
        %v2993 = vpop.f32.mrb[0].mxu0
        %v2994 = vadd.f32 0.0, %v2993
        %v2995 = vpop.f32.mrb[0].mxu0
        %2996 = vmatprep.mubr.bf16.mxu0 0
        %2997 = vmatmul.mubr.bf16.gmra.mrb[0].mxu0 %v2913
        %v2998 = vpop.f32.mrb[0].mxu0
        %v2999 = vadd.f32 0.0, %v2998
        %v3000 = vpop.f32.mrb[0].mxu0
        %v3001 = vpop.f32.mrb[0].mxu0
        %v3002 = vadd.f32 0.0, %v3001
        %v3003 = vpop.f32.mrb[0].mxu0
        %3004 = vmatprep.mubr.bf16.mxu0 0
        %3005 = vmatmul.mubr.bf16.gmra.mrb[0].mxu0 %v2916
        %v3006 = vpop.f32.mrb[0].mxu0
        %v3007 = vadd.f32 0.0, %v3006
        %v3008 = vpop.f32.mrb[0].mxu0
        %v3009 = vpop.f32.mrb[0].mxu0
        %v3010 = vadd.f32 0.0, %v3009
        %v3011 = vpop.f32.mrb[0].mxu0
        %3012 = vmatprep.mubr.bf16.mxu0 0
        %3013 = vmatmul.mubr.bf16.gmra.mrb[0].mxu0 %v2919
        %v3014 = vpop.f32.mrb[0].mxu0
        %v3015 = vadd.f32 0.0, %v3014
        %v3016 = vpop.f32.mrb[0].mxu0
        %v3017 = vpop.f32.mrb[0].mxu0
        %v3018 = vadd.f32 0.0, %v3017
        %v3019 = vpop.f32.mrb[0].mxu0
        %3020 = vdwg.mxu0
        %3021 = vxpose.xlu0.c.b16.start [1/8] %v2161, 128
        %3022 = vxpose.xlu0.c.b16.cont [2/8] 0, 128
        %3023 = vxpose.xlu0.c.b16.cont [3/8] 0, 128
        %3024 = vxpose.xlu0.c.b16.cont [4/8] 0, 128
        %3025 = vxpose.xlu0.c.b16.cont [5/8] 0, 128
        %3026 = vxpose.xlu0.c.b16.cont [6/8] 0, 128
        %3027 = vxpose.xlu0.c.b16.cont [7/8] 0, 128
        %3028 = vxpose.xlu0.c.b16.end [8/8] 0, 128
        %v3029 = vpop.trf.xlu0
        %v3030 = vpop.trf.xlu0
        %v3031 = vpop.trf.xlu0
        %v3032 = vpop.trf.xlu0
        %v3033 = vpop.trf.xlu0
        %v3034 = vpop.trf.xlu0
        %v3035 = vpop.trf.xlu0
        %v3036 = vpop.trf.xlu0
        %v3038 = vsel %vm2195, %v3029, 0
        %v3041 = vsel %vm2195, %v3030, 0
        %v3044 = vsel %vm2195, %v3031, 0
        %v3047 = vsel %vm2195, %v3032, 0
        %v3050 = vsel %vm2195, %v3033, 0
        %v3053 = vsel %vm2195, %v3034, 0
        %v3056 = vsel %vm2195, %v3035, 0
        %v3059 = vsel %vm2195, %v3036, 0
        %v3062 = vsel %vm2220, %v2169, 0
        %3064 = vmatprep.subr.bf16.mxu0 0
        %3065 = vmatpush1.bf16.msra.mxu0 %v3062
        %3066 = vmatprep.subr.bf16.mxu0 0
        %3067 = vmatpush1.bf16.msra.mxu0 0
        %3068 = vmatprep.subr.bf16.mxu0 0
        %3069 = vmatpush1.bf16.msra.mxu0 0
        %3070 = vmatprep.subr.bf16.mxu0 0
        %3071 = vmatpush1.bf16.msra.mxu0 0
        %3072 = vmatprep.subr.bf16.mxu0 0
        %3073 = vmatpush1.bf16.msra.mxu0 0
        %3074 = vmatprep.subr.bf16.mxu0 0
        %3075 = vmatpush1.bf16.msra.mxu0 0
        %3076 = vmatprep.subr.bf16.mxu0 0
        %3077 = vmatpush1.bf16.msra.mxu0 0
        %3078 = vmatprep.subr.bf16.mxu0 0
        %3079 = vmatpush1.bf16.msra.mxu0 0
        %3080 = vmatprep.subr.bf16.mxu0 0
        %3081 = vmatpush1.bf16.msra.mxu0 0
        %3082 = vmatprep.subr.bf16.mxu0 0
        %3083 = vmatpush1.bf16.msra.mxu0 0
        %3084 = vmatprep.subr.bf16.mxu0 0
        %3085 = vmatpush1.bf16.msra.mxu0 0
        %3086 = vmatprep.subr.bf16.mxu0 0
        %3087 = vmatpush1.bf16.msra.mxu0 0
        %3088 = vmatprep.subr.bf16.mxu0 0
        %3089 = vmatpush1.bf16.msra.mxu0 0
        %3090 = vmatprep.subr.bf16.mxu0 0
        %3091 = vmatpush1.bf16.msra.mxu0 0
        %3092 = vmatprep.subr.bf16.mxu0 0
        %3093 = vmatpush1.bf16.msra.mxu0 0
        %3094 = vmatprep.subr.bf16.mxu0 0
        %3095 = vmatpush1.bf16.msra.mxu0 0
        %3096 = vmatprep.mubr.bf16.mxu0 0
        %3097 = vmatmul.mubr.bf16.gmra.mrb[0].mxu0 %v3038
        %v3098 = vpop.f32.mrb[0].mxu0
        %v3099 = vadd.f32 0.0, %v3098
        %v3100 = vpop.f32.mrb[0].mxu0
        %v3101 = vpop.f32.mrb[0].mxu0
        %v3102 = vadd.f32 0.0, %v3101
        %v3103 = vpop.f32.mrb[0].mxu0
        %3104 = vmatprep.mubr.bf16.mxu0 0
        %3105 = vmatmul.mubr.bf16.gmra.mrb[0].mxu0 %v3041
        %v3106 = vpop.f32.mrb[0].mxu0
        %v3107 = vadd.f32 0.0, %v3106
        %v3108 = vpop.f32.mrb[0].mxu0
        %v3109 = vpop.f32.mrb[0].mxu0
        %v3110 = vadd.f32 0.0, %v3109
        %v3111 = vpop.f32.mrb[0].mxu0
        %3112 = vmatprep.mubr.bf16.mxu0 0
        %3113 = vmatmul.mubr.bf16.gmra.mrb[0].mxu0 %v3044
        %v3114 = vpop.f32.mrb[0].mxu0
        %v3115 = vadd.f32 0.0, %v3114
        %v3116 = vpop.f32.mrb[0].mxu0
        %v3117 = vpop.f32.mrb[0].mxu0
        %v3118 = vadd.f32 0.0, %v3117
        %v3119 = vpop.f32.mrb[0].mxu0
        %3120 = vmatprep.mubr.bf16.mxu0 0
        %3121 = vmatmul.mubr.bf16.gmra.mrb[0].mxu0 %v3047
        %v3122 = vpop.f32.mrb[0].mxu0
        %v3123 = vadd.f32 0.0, %v3122
        %v3124 = vpop.f32.mrb[0].mxu0
        %v3125 = vpop.f32.mrb[0].mxu0
        %v3126 = vadd.f32 0.0, %v3125
        %v3127 = vpop.f32.mrb[0].mxu0
        %3128 = vmatprep.mubr.bf16.mxu0 0
        %3129 = vmatmul.mubr.bf16.gmra.mrb[0].mxu0 %v3050
        %v3130 = vpop.f32.mrb[0].mxu0
        %v3131 = vadd.f32 0.0, %v3130
        %v3132 = vpop.f32.mrb[0].mxu0
        %v3133 = vpop.f32.mrb[0].mxu0
        %v3134 = vadd.f32 0.0, %v3133
        %v3135 = vpop.f32.mrb[0].mxu0
        %3136 = vmatprep.mubr.bf16.mxu0 0
        %3137 = vmatmul.mubr.bf16.gmra.mrb[0].mxu0 %v3053
        %v3138 = vpop.f32.mrb[0].mxu0
        %v3139 = vadd.f32 0.0, %v3138
        %v3140 = vpop.f32.mrb[0].mxu0
        %v3141 = vpop.f32.mrb[0].mxu0
        %v3142 = vadd.f32 0.0, %v3141
        %v3143 = vpop.f32.mrb[0].mxu0
        %3144 = vmatprep.mubr.bf16.mxu0 0
        %3145 = vmatmul.mubr.bf16.gmra.mrb[0].mxu0 %v3056
        %v3146 = vpop.f32.mrb[0].mxu0
        %v3147 = vadd.f32 0.0, %v3146
        %v3148 = vpop.f32.mrb[0].mxu0
        %v3149 = vpop.f32.mrb[0].mxu0
        %v3150 = vadd.f32 0.0, %v3149
        %v3151 = vpop.f32.mrb[0].mxu0
        %3152 = vmatprep.mubr.bf16.mxu0 0
        %3153 = vmatmul.mubr.bf16.gmra.mrb[0].mxu0 %v3059
        %v3154 = vpop.f32.mrb[0].mxu0
        %v3155 = vadd.f32 0.0, %v3154
        %v3156 = vpop.f32.mrb[0].mxu0
        %v3157 = vpop.f32.mrb[0].mxu0
        %v3158 = vadd.f32 0.0, %v3157
        %v3159 = vpop.f32.mrb[0].mxu0
        %3160 = vdwg.mxu0
        %3161 = vxpose.xlu0.c.b16.start [1/8] %v2162, 128
        %3162 = vxpose.xlu0.c.b16.cont [2/8] 0, 128
        %3163 = vxpose.xlu0.c.b16.cont [3/8] 0, 128
        %3164 = vxpose.xlu0.c.b16.cont [4/8] 0, 128
        %3165 = vxpose.xlu0.c.b16.cont [5/8] 0, 128
        %3166 = vxpose.xlu0.c.b16.cont [6/8] 0, 128
        %3167 = vxpose.xlu0.c.b16.cont [7/8] 0, 128
        %3168 = vxpose.xlu0.c.b16.end [8/8] 0, 128
        %v3169 = vpop.trf.xlu0
        %v3170 = vpop.trf.xlu0
        %v3171 = vpop.trf.xlu0
        %v3172 = vpop.trf.xlu0
        %v3173 = vpop.trf.xlu0
        %v3174 = vpop.trf.xlu0
        %v3175 = vpop.trf.xlu0
        %v3176 = vpop.trf.xlu0
        %v3178 = vsel %vm2195, %v3169, 0
        %v3181 = vsel %vm2195, %v3170, 0
        %v3184 = vsel %vm2195, %v3171, 0
        %v3187 = vsel %vm2195, %v3172, 0
        %v3190 = vsel %vm2195, %v3173, 0
        %v3193 = vsel %vm2195, %v3174, 0
        %v3196 = vsel %vm2195, %v3175, 0
        %v3199 = vsel %vm2195, %v3176, 0
        %v3202 = vsel %vm2220, %v2170, 0
        %3204 = vmatprep.subr.bf16.mxu0 0
        %3205 = vmatpush1.bf16.msra.mxu0 %v3202
        %3206 = vmatprep.subr.bf16.mxu0 0
        %3207 = vmatpush1.bf16.msra.mxu0 0
        %3208 = vmatprep.subr.bf16.mxu0 0
        %3209 = vmatpush1.bf16.msra.mxu0 0
        %3210 = vmatprep.subr.bf16.mxu0 0
        %3211 = vmatpush1.bf16.msra.mxu0 0
        %3212 = vmatprep.subr.bf16.mxu0 0
        %3213 = vmatpush1.bf16.msra.mxu0 0
        %3214 = vmatprep.subr.bf16.mxu0 0
        %3215 = vmatpush1.bf16.msra.mxu0 0
        %3216 = vmatprep.subr.bf16.mxu0 0
        %3217 = vmatpush1.bf16.msra.mxu0 0
        %3218 = vmatprep.subr.bf16.mxu0 0
        %3219 = vmatpush1.bf16.msra.mxu0 0
        %3220 = vmatprep.subr.bf16.mxu0 0
        %3221 = vmatpush1.bf16.msra.mxu0 0
        %3222 = vmatprep.subr.bf16.mxu0 0
        %3223 = vmatpush1.bf16.msra.mxu0 0
        %3224 = vmatprep.subr.bf16.mxu0 0
        %3225 = vmatpush1.bf16.msra.mxu0 0
        %3226 = vmatprep.subr.bf16.mxu0 0
        %3227 = vmatpush1.bf16.msra.mxu0 0
        %3228 = vmatprep.subr.bf16.mxu0 0
        %3229 = vmatpush1.bf16.msra.mxu0 0
        %3230 = vmatprep.subr.bf16.mxu0 0
        %3231 = vmatpush1.bf16.msra.mxu0 0
        %3232 = vmatprep.subr.bf16.mxu0 0
        %3233 = vmatpush1.bf16.msra.mxu0 0
        %3234 = vmatprep.subr.bf16.mxu0 0
        %3235 = vmatpush1.bf16.msra.mxu0 0
        %3236 = vmatprep.mubr.bf16.mxu0 0
        %3237 = vmatmul.mubr.bf16.gmra.mrb[0].mxu0 %v3178
        %v3238 = vpop.f32.mrb[0].mxu0
        %v3239 = vadd.f32 0.0, %v3238
        %v3240 = vpop.f32.mrb[0].mxu0
        %v3241 = vpop.f32.mrb[0].mxu0
        %v3242 = vadd.f32 0.0, %v3241
        %v3243 = vpop.f32.mrb[0].mxu0
        %3244 = vmatprep.mubr.bf16.mxu0 0
        %3245 = vmatmul.mubr.bf16.gmra.mrb[0].mxu0 %v3181
        %v3246 = vpop.f32.mrb[0].mxu0
        %v3247 = vadd.f32 0.0, %v3246
        %v3248 = vpop.f32.mrb[0].mxu0
        %v3249 = vpop.f32.mrb[0].mxu0
        %v3250 = vadd.f32 0.0, %v3249
        %v3251 = vpop.f32.mrb[0].mxu0
        %3252 = vmatprep.mubr.bf16.mxu0 0
        %3253 = vmatmul.mubr.bf16.gmra.mrb[0].mxu0 %v3184
        %v3254 = vpop.f32.mrb[0].mxu0
        %v3255 = vadd.f32 0.0, %v3254
        %v3256 = vpop.f32.mrb[0].mxu0
        %v3257 = vpop.f32.mrb[0].mxu0
        %v3258 = vadd.f32 0.0, %v3257
        %v3259 = vpop.f32.mrb[0].mxu0
        %3260 = vmatprep.mubr.bf16.mxu0 0
        %3261 = vmatmul.mubr.bf16.gmra.mrb[0].mxu0 %v3187
        %v3262 = vpop.f32.mrb[0].mxu0
        %v3263 = vadd.f32 0.0, %v3262
        %v3264 = vpop.f32.mrb[0].mxu0
        %v3265 = vpop.f32.mrb[0].mxu0
        %v3266 = vadd.f32 0.0, %v3265
        %v3267 = vpop.f32.mrb[0].mxu0
        %3268 = vmatprep.mubr.bf16.mxu0 0
        %3269 = vmatmul.mubr.bf16.gmra.mrb[0].mxu0 %v3190
        %v3270 = vpop.f32.mrb[0].mxu0
        %v3271 = vadd.f32 0.0, %v3270
        %v3272 = vpop.f32.mrb[0].mxu0
        %v3273 = vpop.f32.mrb[0].mxu0
        %v3274 = vadd.f32 0.0, %v3273
        %v3275 = vpop.f32.mrb[0].mxu0
        %3276 = vmatprep.mubr.bf16.mxu0 0
        %3277 = vmatmul.mubr.bf16.gmra.mrb[0].mxu0 %v3193
        %v3278 = vpop.f32.mrb[0].mxu0
        %v3279 = vadd.f32 0.0, %v3278
        %v3280 = vpop.f32.mrb[0].mxu0
        %v3281 = vpop.f32.mrb[0].mxu0
        %v3282 = vadd.f32 0.0, %v3281
        %v3283 = vpop.f32.mrb[0].mxu0
        %3284 = vmatprep.mubr.bf16.mxu0 0
        %3285 = vmatmul.mubr.bf16.gmra.mrb[0].mxu0 %v3196
        %v3286 = vpop.f32.mrb[0].mxu0
        %v3287 = vadd.f32 0.0, %v3286
        %v3288 = vpop.f32.mrb[0].mxu0
        %v3289 = vpop.f32.mrb[0].mxu0
        %v3290 = vadd.f32 0.0, %v3289
        %v3291 = vpop.f32.mrb[0].mxu0
        %3292 = vmatprep.mubr.bf16.mxu0 0
        %3293 = vmatmul.mubr.bf16.gmra.mrb[0].mxu0 %v3199
        %v3294 = vpop.f32.mrb[0].mxu0
        %v3295 = vadd.f32 0.0, %v3294
        %v3296 = vpop.f32.mrb[0].mxu0
        %v3297 = vpop.f32.mrb[0].mxu0
        %v3298 = vadd.f32 0.0, %v3297
        %v3299 = vpop.f32.mrb[0].mxu0
        %3300 = vdwg.mxu0
        %3301 = vmax.xlane.f32.xlu0 %v2259
        %v3302 = vpop.xlane.xlu0 %3301
        %3303 = vmax.xlane.f32.xlu0 %v2262
        %v3304 = vpop.xlane.xlu0 %3303
        %3305 = vmax.xlane.f32.xlu0 %v2267
        %v3306 = vpop.xlane.xlu0 %3305
        %3307 = vmax.xlane.f32.xlu0 %v2270
        %v3308 = vpop.xlane.xlu0 %3307
        %3309 = vmax.xlane.f32.xlu0 %v2275
        %v3310 = vpop.xlane.xlu0 %3309
        %3311 = vmax.xlane.f32.xlu0 %v2278
        %v3312 = vpop.xlane.xlu0 %3311
        %3313 = vmax.xlane.f32.xlu0 %v2283
        %v3314 = vpop.xlane.xlu0 %3313
        %3315 = vmax.xlane.f32.xlu0 %v2286
        %v3316 = vpop.xlane.xlu0 %3315
        %3317 = vmax.xlane.f32.xlu0 %v2291
        %v3318 = vpop.xlane.xlu0 %3317
        %3319 = vmax.xlane.f32.xlu0 %v2294
        %v3320 = vpop.xlane.xlu0 %3319
        %3321 = vmax.xlane.f32.xlu0 %v2299
        %v3322 = vpop.xlane.xlu0 %3321
        %3323 = vmax.xlane.f32.xlu0 %v2302
        %v3324 = vpop.xlane.xlu0 %3323
        %3325 = vmax.xlane.f32.xlu0 %v2307
        %v3326 = vpop.xlane.xlu0 %3325
        %3327 = vmax.xlane.f32.xlu0 %v2310
        %v3328 = vpop.xlane.xlu0 %3327
        %3329 = vmax.xlane.f32.xlu0 %v2315
        %v3330 = vpop.xlane.xlu0 %3329
        %3331 = vmax.xlane.f32.xlu0 %v2318
        %v3332 = vpop.xlane.xlu0 %3331
        %3333 = vmax.xlane.f32.xlu0 %v2399
        %v3334 = vpop.xlane.xlu0 %3333
        %3335 = vmax.xlane.f32.xlu0 %v2402
        %v3336 = vpop.xlane.xlu0 %3335
        %3337 = vmax.xlane.f32.xlu0 %v2407
        %v3338 = vpop.xlane.xlu0 %3337
        %3339 = vmax.xlane.f32.xlu0 %v2410
        %v3340 = vpop.xlane.xlu0 %3339
        %3341 = vmax.xlane.f32.xlu0 %v2415
        %v3342 = vpop.xlane.xlu0 %3341
        %3343 = vmax.xlane.f32.xlu0 %v2418
        %v3344 = vpop.xlane.xlu0 %3343
        %3345 = vmax.xlane.f32.xlu0 %v2423
        %v3346 = vpop.xlane.xlu0 %3345
        %3347 = vmax.xlane.f32.xlu0 %v2426
        %v3348 = vpop.xlane.xlu0 %3347
        %3349 = vmax.xlane.f32.xlu0 %v2431
        %v3350 = vpop.xlane.xlu0 %3349
        %3351 = vmax.xlane.f32.xlu0 %v2434
        %v3352 = vpop.xlane.xlu0 %3351
        %3353 = vmax.xlane.f32.xlu0 %v2439
        %v3354 = vpop.xlane.xlu0 %3353
        %3355 = vmax.xlane.f32.xlu0 %v2442
        %v3356 = vpop.xlane.xlu0 %3355
        %3357 = vmax.xlane.f32.xlu0 %v2447
        %v3358 = vpop.xlane.xlu0 %3357
        %3359 = vmax.xlane.f32.xlu0 %v2450
        %v3360 = vpop.xlane.xlu0 %3359
        %3361 = vmax.xlane.f32.xlu0 %v2455
        %v3362 = vpop.xlane.xlu0 %3361
        %3363 = vmax.xlane.f32.xlu0 %v2458
        %v3364 = vpop.xlane.xlu0 %3363
        %3365 = vmax.xlane.f32.xlu0 %v2539
        %v3366 = vpop.xlane.xlu0 %3365
        %3367 = vmax.xlane.f32.xlu0 %v2542
        %v3368 = vpop.xlane.xlu0 %3367
        %3369 = vmax.xlane.f32.xlu0 %v2547
        %v3370 = vpop.xlane.xlu0 %3369
        %3371 = vmax.xlane.f32.xlu0 %v2550
        %v3372 = vpop.xlane.xlu0 %3371
        %3373 = vmax.xlane.f32.xlu0 %v2555
        %v3374 = vpop.xlane.xlu0 %3373
        %3375 = vmax.xlane.f32.xlu0 %v2558
        %v3376 = vpop.xlane.xlu0 %3375
        %3377 = vmax.xlane.f32.xlu0 %v2563
        %v3378 = vpop.xlane.xlu0 %3377
        %3379 = vmax.xlane.f32.xlu0 %v2566
        %v3380 = vpop.xlane.xlu0 %3379
        %3381 = vmax.xlane.f32.xlu0 %v2571
        %v3382 = vpop.xlane.xlu0 %3381
        %3383 = vmax.xlane.f32.xlu0 %v2574
        %v3384 = vpop.xlane.xlu0 %3383
        %3385 = vmax.xlane.f32.xlu0 %v2579
        %v3386 = vpop.xlane.xlu0 %3385
        %3387 = vmax.xlane.f32.xlu0 %v2582
        %v3388 = vpop.xlane.xlu0 %3387
        %3389 = vmax.xlane.f32.xlu0 %v2587
        %v3390 = vpop.xlane.xlu0 %3389
        %3391 = vmax.xlane.f32.xlu0 %v2590
        %v3392 = vpop.xlane.xlu0 %3391
        %3393 = vmax.xlane.f32.xlu0 %v2595
        %v3394 = vpop.xlane.xlu0 %3393
        %3395 = vmax.xlane.f32.xlu0 %v2598
        %v3396 = vpop.xlane.xlu0 %3395
        %3397 = vmax.xlane.f32.xlu0 %v2679
        %v3398 = vpop.xlane.xlu0 %3397
        %3399 = vmax.xlane.f32.xlu0 %v2682
        %v3400 = vpop.xlane.xlu0 %3399
        %3401 = vmax.xlane.f32.xlu0 %v2687
        %v3402 = vpop.xlane.xlu0 %3401
        %3403 = vmax.xlane.f32.xlu0 %v2690
        %v3404 = vpop.xlane.xlu0 %3403
        %3405 = vmax.xlane.f32.xlu0 %v2695
        %v3406 = vpop.xlane.xlu0 %3405
        %3407 = vmax.xlane.f32.xlu0 %v2698
        %v3408 = vpop.xlane.xlu0 %3407
        %3409 = vmax.xlane.f32.xlu0 %v2703
        %v3410 = vpop.xlane.xlu0 %3409
        %3411 = vmax.xlane.f32.xlu0 %v2706
        %v3412 = vpop.xlane.xlu0 %3411
        %3413 = vmax.xlane.f32.xlu0 %v2711
        %v3414 = vpop.xlane.xlu0 %3413
        %3415 = vmax.xlane.f32.xlu0 %v2714
        %v3416 = vpop.xlane.xlu0 %3415
        %3417 = vmax.xlane.f32.xlu0 %v2719
        %v3418 = vpop.xlane.xlu0 %3417
        %3419 = vmax.xlane.f32.xlu0 %v2722
        %v3420 = vpop.xlane.xlu0 %3419
        %3421 = vmax.xlane.f32.xlu0 %v2727
        %v3422 = vpop.xlane.xlu0 %3421
        %3423 = vmax.xlane.f32.xlu0 %v2730
        %v3424 = vpop.xlane.xlu0 %3423
        %3425 = vmax.xlane.f32.xlu0 %v2735
        %v3426 = vpop.xlane.xlu0 %3425
        %3427 = vmax.xlane.f32.xlu0 %v2738
        %v3428 = vpop.xlane.xlu0 %3427
        %3429 = vmax.xlane.f32.xlu0 %v2819
        %v3430 = vpop.xlane.xlu0 %3429
        %3431 = vmax.xlane.f32.xlu0 %v2822
        %v3432 = vpop.xlane.xlu0 %3431
        %3433 = vmax.xlane.f32.xlu0 %v2827
        %v3434 = vpop.xlane.xlu0 %3433
        %3435 = vmax.xlane.f32.xlu0 %v2830
        %v3436 = vpop.xlane.xlu0 %3435
        %3437 = vmax.xlane.f32.xlu0 %v2835
        %v3438 = vpop.xlane.xlu0 %3437
        %3439 = vmax.xlane.f32.xlu0 %v2838
        %v3440 = vpop.xlane.xlu0 %3439
        %3441 = vmax.xlane.f32.xlu0 %v2843
        %v3442 = vpop.xlane.xlu0 %3441
        %3443 = vmax.xlane.f32.xlu0 %v2846
        %v3444 = vpop.xlane.xlu0 %3443
        %3445 = vmax.xlane.f32.xlu0 %v2851
        %v3446 = vpop.xlane.xlu0 %3445
        %3447 = vmax.xlane.f32.xlu0 %v2854
        %v3448 = vpop.xlane.xlu0 %3447
        %3449 = vmax.xlane.f32.xlu0 %v2859
        %v3450 = vpop.xlane.xlu0 %3449
        %3451 = vmax.xlane.f32.xlu0 %v2862
        %v3452 = vpop.xlane.xlu0 %3451
        %3453 = vmax.xlane.f32.xlu0 %v2867
        %v3454 = vpop.xlane.xlu0 %3453
        %3455 = vmax.xlane.f32.xlu0 %v2870
        %v3456 = vpop.xlane.xlu0 %3455
        %3457 = vmax.xlane.f32.xlu0 %v2875
        %v3458 = vpop.xlane.xlu0 %3457
        %3459 = vmax.xlane.f32.xlu0 %v2878
        %v3460 = vpop.xlane.xlu0 %3459
        %3461 = vmax.xlane.f32.xlu0 %v2959
        %v3462 = vpop.xlane.xlu0 %3461
        %3463 = vmax.xlane.f32.xlu0 %v2962
        %v3464 = vpop.xlane.xlu0 %3463
        %3465 = vmax.xlane.f32.xlu0 %v2967
        %v3466 = vpop.xlane.xlu0 %3465
        %3467 = vmax.xlane.f32.xlu0 %v2970
        %v3468 = vpop.xlane.xlu0 %3467
        %3469 = vmax.xlane.f32.xlu0 %v2975
        %v3470 = vpop.xlane.xlu0 %3469
        %3471 = vmax.xlane.f32.xlu0 %v2978
        %v3472 = vpop.xlane.xlu0 %3471
        %3473 = vmax.xlane.f32.xlu0 %v2983
        %v3474 = vpop.xlane.xlu0 %3473
        %3475 = vmax.xlane.f32.xlu0 %v2986
        %v3476 = vpop.xlane.xlu0 %3475
        %3477 = vmax.xlane.f32.xlu0 %v2991
        %v3478 = vpop.xlane.xlu0 %3477
        %3479 = vmax.xlane.f32.xlu0 %v2994
        %v3480 = vpop.xlane.xlu0 %3479
        %3481 = vmax.xlane.f32.xlu0 %v2999
        %v3482 = vpop.xlane.xlu0 %3481
        %3483 = vmax.xlane.f32.xlu0 %v3002
        %v3484 = vpop.xlane.xlu0 %3483
        %3485 = vmax.xlane.f32.xlu0 %v3007
        %v3486 = vpop.xlane.xlu0 %3485
        %3487 = vmax.xlane.f32.xlu0 %v3010
        %v3488 = vpop.xlane.xlu0 %3487
        %3489 = vmax.xlane.f32.xlu0 %v3015
        %v3490 = vpop.xlane.xlu0 %3489
        %3491 = vmax.xlane.f32.xlu0 %v3018
        %v3492 = vpop.xlane.xlu0 %3491
        %3493 = vmax.xlane.f32.xlu0 %v3099
        %v3494 = vpop.xlane.xlu0 %3493
        %3495 = vmax.xlane.f32.xlu0 %v3102
        %v3496 = vpop.xlane.xlu0 %3495
        %3497 = vmax.xlane.f32.xlu0 %v3107
        %v3498 = vpop.xlane.xlu0 %3497
        %3499 = vmax.xlane.f32.xlu0 %v3110
        %v3500 = vpop.xlane.xlu0 %3499
        %3501 = vmax.xlane.f32.xlu0 %v3115
        %v3502 = vpop.xlane.xlu0 %3501
        %3503 = vmax.xlane.f32.xlu0 %v3118
        %v3504 = vpop.xlane.xlu0 %3503
        %3505 = vmax.xlane.f32.xlu0 %v3123
        %v3506 = vpop.xlane.xlu0 %3505
        %3507 = vmax.xlane.f32.xlu0 %v3126
        %v3508 = vpop.xlane.xlu0 %3507
        %3509 = vmax.xlane.f32.xlu0 %v3131
        %v3510 = vpop.xlane.xlu0 %3509
        %3511 = vmax.xlane.f32.xlu0 %v3134
        %v3512 = vpop.xlane.xlu0 %3511
        %3513 = vmax.xlane.f32.xlu0 %v3139
        %v3514 = vpop.xlane.xlu0 %3513
        %3515 = vmax.xlane.f32.xlu0 %v3142
        %v3516 = vpop.xlane.xlu0 %3515
        %3517 = vmax.xlane.f32.xlu0 %v3147
        %v3518 = vpop.xlane.xlu0 %3517
        %3519 = vmax.xlane.f32.xlu0 %v3150
        %v3520 = vpop.xlane.xlu0 %3519
        %3521 = vmax.xlane.f32.xlu0 %v3155
        %v3522 = vpop.xlane.xlu0 %3521
        %3523 = vmax.xlane.f32.xlu0 %v3158
        %v3524 = vpop.xlane.xlu0 %3523
        %3525 = vmax.xlane.f32.xlu0 %v3239
        %v3526 = vpop.xlane.xlu0 %3525
        %3527 = vmax.xlane.f32.xlu0 %v3242
        %v3528 = vpop.xlane.xlu0 %3527
        %3529 = vmax.xlane.f32.xlu0 %v3247
        %v3530 = vpop.xlane.xlu0 %3529
        %3531 = vmax.xlane.f32.xlu0 %v3250
        %v3532 = vpop.xlane.xlu0 %3531
        %3533 = vmax.xlane.f32.xlu0 %v3255
        %v3534 = vpop.xlane.xlu0 %3533
        %3535 = vmax.xlane.f32.xlu0 %v3258
        %v3536 = vpop.xlane.xlu0 %3535
        %3537 = vmax.xlane.f32.xlu0 %v3263
        %v3538 = vpop.xlane.xlu0 %3537
        %3539 = vmax.xlane.f32.xlu0 %v3266
        %v3540 = vpop.xlane.xlu0 %3539
        %3541 = vmax.xlane.f32.xlu0 %v3271
        %v3542 = vpop.xlane.xlu0 %3541
        %3543 = vmax.xlane.f32.xlu0 %v3274
        %v3544 = vpop.xlane.xlu0 %3543
        %3545 = vmax.xlane.f32.xlu0 %v3279
        %v3546 = vpop.xlane.xlu0 %3545
        %3547 = vmax.xlane.f32.xlu0 %v3282
        %v3548 = vpop.xlane.xlu0 %3547
        %3549 = vmax.xlane.f32.xlu0 %v3287
        %v3550 = vpop.xlane.xlu0 %3549
        %3551 = vmax.xlane.f32.xlu0 %v3290
        %v3552 = vpop.xlane.xlu0 %3551
        %3553 = vmax.xlane.f32.xlu0 %v3295
        %v3554 = vpop.xlane.xlu0 %3553
        %3555 = vmax.xlane.f32.xlu0 %v3298
        %v3556 = vpop.xlane.xlu0 %3555
        %v3557 = vsub.f32 %v2259, %v3302
        %v3558 = vsub.f32 %v2262, %v3304
        %v3559 = vsub.f32 %v2267, %v3306
        %v3560 = vsub.f32 %v2270, %v3308
        %v3561 = vsub.f32 %v2275, %v3310
        %v3562 = vsub.f32 %v2278, %v3312
        %v3563 = vsub.f32 %v2283, %v3314
        %v3564 = vsub.f32 %v2286, %v3316
        %v3565 = vsub.f32 %v2291, %v3318
        %v3566 = vsub.f32 %v2294, %v3320
        %v3567 = vsub.f32 %v2299, %v3322
        %v3568 = vsub.f32 %v2302, %v3324
        %v3569 = vsub.f32 %v2307, %v3326
        %v3570 = vsub.f32 %v2310, %v3328
        %v3571 = vsub.f32 %v2315, %v3330
        %v3572 = vsub.f32 %v2318, %v3332
        %v3573 = vsub.f32 %v2399, %v3334
        %v3574 = vsub.f32 %v2402, %v3336
        %v3575 = vsub.f32 %v2407, %v3338
        %v3576 = vsub.f32 %v2410, %v3340
        %v3577 = vsub.f32 %v2415, %v3342
        %v3578 = vsub.f32 %v2418, %v3344
        %v3579 = vsub.f32 %v2423, %v3346
        %v3580 = vsub.f32 %v2426, %v3348
        %v3581 = vsub.f32 %v2431, %v3350
        %v3582 = vsub.f32 %v2434, %v3352
        %v3583 = vsub.f32 %v2439, %v3354
        %v3584 = vsub.f32 %v2442, %v3356
        %v3585 = vsub.f32 %v2447, %v3358
        %v3586 = vsub.f32 %v2450, %v3360
        %v3587 = vsub.f32 %v2455, %v3362
        %v3588 = vsub.f32 %v2458, %v3364
        %v3589 = vsub.f32 %v2539, %v3366
        %v3590 = vsub.f32 %v2542, %v3368
        %v3591 = vsub.f32 %v2547, %v3370
        %v3592 = vsub.f32 %v2550, %v3372
        %v3593 = vsub.f32 %v2555, %v3374
        %v3594 = vsub.f32 %v2558, %v3376
        %v3595 = vsub.f32 %v2563, %v3378
        %v3596 = vsub.f32 %v2566, %v3380
        %v3597 = vsub.f32 %v2571, %v3382
        %v3598 = vsub.f32 %v2574, %v3384
        %v3599 = vsub.f32 %v2579, %v3386
        %v3600 = vsub.f32 %v2582, %v3388
        %v3601 = vsub.f32 %v2587, %v3390
        %v3602 = vsub.f32 %v2590, %v3392
        %v3603 = vsub.f32 %v2595, %v3394
        %v3604 = vsub.f32 %v2598, %v3396
        %v3605 = vsub.f32 %v2679, %v3398
        %v3606 = vsub.f32 %v2682, %v3400
        %v3607 = vsub.f32 %v2687, %v3402
        %v3608 = vsub.f32 %v2690, %v3404
        %v3609 = vsub.f32 %v2695, %v3406
        %v3610 = vsub.f32 %v2698, %v3408
        %v3611 = vsub.f32 %v2703, %v3410
        %v3612 = vsub.f32 %v2706, %v3412
        %v3613 = vsub.f32 %v2711, %v3414
        %v3614 = vsub.f32 %v2714, %v3416
        %v3615 = vsub.f32 %v2719, %v3418
        %v3616 = vsub.f32 %v2722, %v3420
        %v3617 = vsub.f32 %v2727, %v3422
        %v3618 = vsub.f32 %v2730, %v3424
        %v3619 = vsub.f32 %v2735, %v3426
        %v3620 = vsub.f32 %v2738, %v3428
        %v3621 = vsub.f32 %v2819, %v3430
        %v3622 = vsub.f32 %v2822, %v3432
        %v3623 = vsub.f32 %v2827, %v3434
        %v3624 = vsub.f32 %v2830, %v3436
        %v3625 = vsub.f32 %v2835, %v3438
        %v3626 = vsub.f32 %v2838, %v3440
        %v3627 = vsub.f32 %v2843, %v3442
        %v3628 = vsub.f32 %v2846, %v3444
        %v3629 = vsub.f32 %v2851, %v3446
        %v3630 = vsub.f32 %v2854, %v3448
        %v3631 = vsub.f32 %v2859, %v3450
        %v3632 = vsub.f32 %v2862, %v3452
        %v3633 = vsub.f32 %v2867, %v3454
        %v3634 = vsub.f32 %v2870, %v3456
        %v3635 = vsub.f32 %v2875, %v3458
        %v3636 = vsub.f32 %v2878, %v3460
        %v3637 = vsub.f32 %v2959, %v3462
        %v3638 = vsub.f32 %v2962, %v3464
        %v3639 = vsub.f32 %v2967, %v3466
        %v3640 = vsub.f32 %v2970, %v3468
        %v3641 = vsub.f32 %v2975, %v3470
        %v3642 = vsub.f32 %v2978, %v3472
        %v3643 = vsub.f32 %v2983, %v3474
        %v3644 = vsub.f32 %v2986, %v3476
        %v3645 = vsub.f32 %v2991, %v3478
        %v3646 = vsub.f32 %v2994, %v3480
        %v3647 = vsub.f32 %v2999, %v3482
        %v3648 = vsub.f32 %v3002, %v3484
        %v3649 = vsub.f32 %v3007, %v3486
        %v3650 = vsub.f32 %v3010, %v3488
        %v3651 = vsub.f32 %v3015, %v3490
        %v3652 = vsub.f32 %v3018, %v3492
        %v3653 = vsub.f32 %v3099, %v3494
        %v3654 = vsub.f32 %v3102, %v3496
        %v3655 = vsub.f32 %v3107, %v3498
        %v3656 = vsub.f32 %v3110, %v3500
        %v3657 = vsub.f32 %v3115, %v3502
        %v3658 = vsub.f32 %v3118, %v3504
        %v3659 = vsub.f32 %v3123, %v3506
        %v3660 = vsub.f32 %v3126, %v3508
        %v3661 = vsub.f32 %v3131, %v3510
        %v3662 = vsub.f32 %v3134, %v3512
        %v3663 = vsub.f32 %v3139, %v3514
        %v3664 = vsub.f32 %v3142, %v3516
        %v3665 = vsub.f32 %v3147, %v3518
        %v3666 = vsub.f32 %v3150, %v3520
        %v3667 = vsub.f32 %v3155, %v3522
        %v3668 = vsub.f32 %v3158, %v3524
        %v3669 = vsub.f32 %v3239, %v3526
        %v3670 = vsub.f32 %v3242, %v3528
        %v3671 = vsub.f32 %v3247, %v3530
        %v3672 = vsub.f32 %v3250, %v3532
        %v3673 = vsub.f32 %v3255, %v3534
        %v3674 = vsub.f32 %v3258, %v3536
        %v3675 = vsub.f32 %v3263, %v3538
        %v3676 = vsub.f32 %v3266, %v3540
        %v3677 = vsub.f32 %v3271, %v3542
        %v3678 = vsub.f32 %v3274, %v3544
        %v3679 = vsub.f32 %v3279, %v3546
        %v3680 = vsub.f32 %v3282, %v3548
        %v3681 = vsub.f32 %v3287, %v3550
        %v3682 = vsub.f32 %v3290, %v3552
        %v3683 = vsub.f32 %v3295, %v3554
        %v3684 = vsub.f32 %v3298, %v3556
        %v3685 = vpack.c.bf16 %v3558, %v3557
        %v3686 = vpack.c.bf16 %v3560, %v3559
        %v3687 = vpack.c.bf16 %v3562, %v3561
        %v3688 = vpack.c.bf16 %v3564, %v3563
        %v3689 = vpack.c.bf16 %v3566, %v3565
        %v3690 = vpack.c.bf16 %v3568, %v3567
        %v3691 = vpack.c.bf16 %v3570, %v3569
        %v3692 = vpack.c.bf16 %v3572, %v3571
        %v3693 = vpack.c.bf16 %v3574, %v3573
        %v3694 = vpack.c.bf16 %v3576, %v3575
        %v3695 = vpack.c.bf16 %v3578, %v3577
        %v3696 = vpack.c.bf16 %v3580, %v3579
        %v3697 = vpack.c.bf16 %v3582, %v3581
        %v3698 = vpack.c.bf16 %v3584, %v3583
        %v3699 = vpack.c.bf16 %v3586, %v3585
        %v3700 = vpack.c.bf16 %v3588, %v3587
        %v3701 = vpack.c.bf16 %v3590, %v3589
        %v3702 = vpack.c.bf16 %v3592, %v3591
        %v3703 = vpack.c.bf16 %v3594, %v3593
        %v3704 = vpack.c.bf16 %v3596, %v3595
        %v3705 = vpack.c.bf16 %v3598, %v3597
        %v3706 = vpack.c.bf16 %v3600, %v3599
        %v3707 = vpack.c.bf16 %v3602, %v3601
        %v3708 = vpack.c.bf16 %v3604, %v3603
        %v3709 = vpack.c.bf16 %v3606, %v3605
        %v3710 = vpack.c.bf16 %v3608, %v3607
        %v3711 = vpack.c.bf16 %v3610, %v3609
        %v3712 = vpack.c.bf16 %v3612, %v3611
        %v3713 = vpack.c.bf16 %v3614, %v3613
        %v3714 = vpack.c.bf16 %v3616, %v3615
        %v3715 = vpack.c.bf16 %v3618, %v3617
        %v3716 = vpack.c.bf16 %v3620, %v3619
        %v3717 = vpack.c.bf16 %v3622, %v3621
        %v3718 = vpack.c.bf16 %v3624, %v3623
        %v3719 = vpack.c.bf16 %v3626, %v3625
        %v3720 = vpack.c.bf16 %v3628, %v3627
        %v3721 = vpack.c.bf16 %v3630, %v3629
        %v3722 = vpack.c.bf16 %v3632, %v3631
        %v3723 = vpack.c.bf16 %v3634, %v3633
        %v3724 = vpack.c.bf16 %v3636, %v3635
        %v3725 = vpack.c.bf16 %v3638, %v3637
        %v3726 = vpack.c.bf16 %v3640, %v3639
        %v3727 = vpack.c.bf16 %v3642, %v3641
        %v3728 = vpack.c.bf16 %v3644, %v3643
        %v3729 = vpack.c.bf16 %v3646, %v3645
        %v3730 = vpack.c.bf16 %v3648, %v3647
        %v3731 = vpack.c.bf16 %v3650, %v3649
        %v3732 = vpack.c.bf16 %v3652, %v3651
        %v3733 = vpack.c.bf16 %v3654, %v3653
        %v3734 = vpack.c.bf16 %v3656, %v3655
        %v3735 = vpack.c.bf16 %v3658, %v3657
        %v3736 = vpack.c.bf16 %v3660, %v3659
        %v3737 = vpack.c.bf16 %v3662, %v3661
        %v3738 = vpack.c.bf16 %v3664, %v3663
        %v3739 = vpack.c.bf16 %v3666, %v3665
        %v3740 = vpack.c.bf16 %v3668, %v3667
        %v3741 = vpack.c.bf16 %v3670, %v3669
        %v3742 = vpack.c.bf16 %v3672, %v3671
        %v3743 = vpack.c.bf16 %v3674, %v3673
        %v3744 = vpack.c.bf16 %v3676, %v3675
        %v3745 = vpack.c.bf16 %v3678, %v3677
        %v3746 = vpack.c.bf16 %v3680, %v3679
        %v3747 = vpack.c.bf16 %v3682, %v3681
        %v3748 = vpack.c.bf16 %v3684, %v3683
        %v3750 = vmul.bf16 %v3685, 1069105081
        %v3751 = vpow.bf16.pop %v3750
        %v3753 = vmul.bf16 %v3686, 1069105081
        %v3754 = vpow.bf16.pop %v3753
        %v3756 = vmul.bf16 %v3687, 1069105081
        %v3757 = vpow.bf16.pop %v3756
        %v3759 = vmul.bf16 %v3688, 1069105081
        %v3760 = vpow.bf16.pop %v3759
        %v3762 = vmul.bf16 %v3689, 1069105081
        %v3763 = vpow.bf16.pop %v3762
        %v3765 = vmul.bf16 %v3690, 1069105081
        %v3766 = vpow.bf16.pop %v3765
        %v3768 = vmul.bf16 %v3691, 1069105081
        %v3769 = vpow.bf16.pop %v3768
        %v3771 = vmul.bf16 %v3692, 1069105081
        %v3772 = vpow.bf16.pop %v3771
        %v3774 = vmul.bf16 %v3693, 1069105081
        %v3775 = vpow.bf16.pop %v3774
        %v3777 = vmul.bf16 %v3694, 1069105081
        %v3778 = vpow.bf16.pop %v3777
        %v3780 = vmul.bf16 %v3695, 1069105081
        %v3781 = vpow.bf16.pop %v3780
        %v3783 = vmul.bf16 %v3696, 1069105081
        %v3784 = vpow.bf16.pop %v3783
        %v3786 = vmul.bf16 %v3697, 1069105081
        %v3787 = vpow.bf16.pop %v3786
        %v3789 = vmul.bf16 %v3698, 1069105081
        %v3790 = vpow.bf16.pop %v3789
        %v3792 = vmul.bf16 %v3699, 1069105081
        %v3793 = vpow.bf16.pop %v3792
        %v3795 = vmul.bf16 %v3700, 1069105081
        %v3796 = vpow.bf16.pop %v3795
        %v3798 = vmul.bf16 %v3701, 1069105081
        %v3799 = vpow.bf16.pop %v3798
        %v3801 = vmul.bf16 %v3702, 1069105081
        %v3802 = vpow.bf16.pop %v3801
        %v3804 = vmul.bf16 %v3703, 1069105081
        %v3805 = vpow.bf16.pop %v3804
        %v3807 = vmul.bf16 %v3704, 1069105081
        %v3808 = vpow.bf16.pop %v3807
        %v3810 = vmul.bf16 %v3705, 1069105081
        %v3811 = vpow.bf16.pop %v3810
        %v3813 = vmul.bf16 %v3706, 1069105081
        %v3814 = vpow.bf16.pop %v3813
        %v3816 = vmul.bf16 %v3707, 1069105081
        %v3817 = vpow.bf16.pop %v3816
        %v3819 = vmul.bf16 %v3708, 1069105081
        %v3820 = vpow.bf16.pop %v3819
        %v3822 = vmul.bf16 %v3709, 1069105081
        %v3823 = vpow.bf16.pop %v3822
        %v3825 = vmul.bf16 %v3710, 1069105081
        %v3826 = vpow.bf16.pop %v3825
        %v3828 = vmul.bf16 %v3711, 1069105081
        %v3829 = vpow.bf16.pop %v3828
        %v3831 = vmul.bf16 %v3712, 1069105081
        %v3832 = vpow.bf16.pop %v3831
        %v3834 = vmul.bf16 %v3713, 1069105081
        %v3835 = vpow.bf16.pop %v3834
        %v3837 = vmul.bf16 %v3714, 1069105081
        %v3838 = vpow.bf16.pop %v3837
        %v3840 = vmul.bf16 %v3715, 1069105081
        %v3841 = vpow.bf16.pop %v3840
        %v3843 = vmul.bf16 %v3716, 1069105081
        %v3844 = vpow.bf16.pop %v3843
        %v3846 = vmul.bf16 %v3717, 1069105081
        %v3847 = vpow.bf16.pop %v3846
        %v3849 = vmul.bf16 %v3718, 1069105081
        %v3850 = vpow.bf16.pop %v3849
        %v3852 = vmul.bf16 %v3719, 1069105081
        %v3853 = vpow.bf16.pop %v3852
        %v3855 = vmul.bf16 %v3720, 1069105081
        %v3856 = vpow.bf16.pop %v3855
        %v3858 = vmul.bf16 %v3721, 1069105081
        %v3859 = vpow.bf16.pop %v3858
        %v3861 = vmul.bf16 %v3722, 1069105081
        %v3862 = vpow.bf16.pop %v3861
        %v3864 = vmul.bf16 %v3723, 1069105081
        %v3865 = vpow.bf16.pop %v3864
        %v3867 = vmul.bf16 %v3724, 1069105081
        %v3868 = vpow.bf16.pop %v3867
        %v3870 = vmul.bf16 %v3725, 1069105081
        %v3871 = vpow.bf16.pop %v3870
        %v3873 = vmul.bf16 %v3726, 1069105081
        %v3874 = vpow.bf16.pop %v3873
        %v3876 = vmul.bf16 %v3727, 1069105081
        %v3877 = vpow.bf16.pop %v3876
        %v3879 = vmul.bf16 %v3728, 1069105081
        %v3880 = vpow.bf16.pop %v3879
        %v3882 = vmul.bf16 %v3729, 1069105081
        %v3883 = vpow.bf16.pop %v3882
        %v3885 = vmul.bf16 %v3730, 1069105081
        %v3886 = vpow.bf16.pop %v3885
        %v3888 = vmul.bf16 %v3731, 1069105081
        %v3889 = vpow.bf16.pop %v3888
        %v3891 = vmul.bf16 %v3732, 1069105081
        %v3892 = vpow.bf16.pop %v3891
        %v3894 = vmul.bf16 %v3733, 1069105081
        %v3895 = vpow.bf16.pop %v3894
        %v3897 = vmul.bf16 %v3734, 1069105081
        %v3898 = vpow.bf16.pop %v3897
        %v3900 = vmul.bf16 %v3735, 1069105081
        %v3901 = vpow.bf16.pop %v3900
        %v3903 = vmul.bf16 %v3736, 1069105081
        %v3904 = vpow.bf16.pop %v3903
        %v3906 = vmul.bf16 %v3737, 1069105081
        %v3907 = vpow.bf16.pop %v3906
        %v3909 = vmul.bf16 %v3738, 1069105081
        %v3910 = vpow.bf16.pop %v3909
        %v3912 = vmul.bf16 %v3739, 1069105081
        %v3913 = vpow.bf16.pop %v3912
        %v3915 = vmul.bf16 %v3740, 1069105081
        %v3916 = vpow.bf16.pop %v3915
        %v3918 = vmul.bf16 %v3741, 1069105081
        %v3919 = vpow.bf16.pop %v3918
        %v3921 = vmul.bf16 %v3742, 1069105081
        %v3922 = vpow.bf16.pop %v3921
        %v3924 = vmul.bf16 %v3743, 1069105081
        %v3925 = vpow.bf16.pop %v3924
        %v3927 = vmul.bf16 %v3744, 1069105081
        %v3928 = vpow.bf16.pop %v3927
        %v3930 = vmul.bf16 %v3745, 1069105081
        %v3931 = vpow.bf16.pop %v3930
        %v3933 = vmul.bf16 %v3746, 1069105081
        %v3934 = vpow.bf16.pop %v3933
        %v3936 = vmul.bf16 %v3747, 1069105081
        %v3937 = vpow.bf16.pop %v3936
        %v3939 = vmul.bf16 %v3748, 1069105081
        %v3940 = vpow.bf16.pop %v3939
        %v3941 = vunpack.c.l.bf16 %v3751
        %v3942 = vunpack.c.h.bf16 %v3751
        %v3943 = vunpack.c.l.bf16 %v3754
        %v3944 = vunpack.c.h.bf16 %v3754
        %v3945 = vunpack.c.l.bf16 %v3757
        %v3946 = vunpack.c.h.bf16 %v3757
        %v3947 = vunpack.c.l.bf16 %v3760
        %v3948 = vunpack.c.h.bf16 %v3760
        %v3949 = vunpack.c.l.bf16 %v3763
        %v3950 = vunpack.c.h.bf16 %v3763
        %v3951 = vunpack.c.l.bf16 %v3766
        %v3952 = vunpack.c.h.bf16 %v3766
        %v3953 = vunpack.c.l.bf16 %v3769
        %v3954 = vunpack.c.h.bf16 %v3769
        %v3955 = vunpack.c.l.bf16 %v3772
        %v3956 = vunpack.c.h.bf16 %v3772
        %v3957 = vunpack.c.l.bf16 %v3775
        %v3958 = vunpack.c.h.bf16 %v3775
        %v3959 = vunpack.c.l.bf16 %v3778
        %v3960 = vunpack.c.h.bf16 %v3778
        %v3961 = vunpack.c.l.bf16 %v3781
        %v3962 = vunpack.c.h.bf16 %v3781
        %v3963 = vunpack.c.l.bf16 %v3784
        %v3964 = vunpack.c.h.bf16 %v3784
        %v3965 = vunpack.c.l.bf16 %v3787
        %v3966 = vunpack.c.h.bf16 %v3787
        %v3967 = vunpack.c.l.bf16 %v3790
        %v3968 = vunpack.c.h.bf16 %v3790
        %v3969 = vunpack.c.l.bf16 %v3793
        %v3970 = vunpack.c.h.bf16 %v3793
        %v3971 = vunpack.c.l.bf16 %v3796
        %v3972 = vunpack.c.h.bf16 %v3796
        %v3973 = vunpack.c.l.bf16 %v3799
        %v3974 = vunpack.c.h.bf16 %v3799
        %v3975 = vunpack.c.l.bf16 %v3802
        %v3976 = vunpack.c.h.bf16 %v3802
        %v3977 = vunpack.c.l.bf16 %v3805
        %v3978 = vunpack.c.h.bf16 %v3805
        %v3979 = vunpack.c.l.bf16 %v3808
        %v3980 = vunpack.c.h.bf16 %v3808
        %v3981 = vunpack.c.l.bf16 %v3811
        %v3982 = vunpack.c.h.bf16 %v3811
        %v3983 = vunpack.c.l.bf16 %v3814
        %v3984 = vunpack.c.h.bf16 %v3814
        %v3985 = vunpack.c.l.bf16 %v3817
        %v3986 = vunpack.c.h.bf16 %v3817
        %v3987 = vunpack.c.l.bf16 %v3820
        %v3988 = vunpack.c.h.bf16 %v3820
        %v3989 = vunpack.c.l.bf16 %v3823
        %v3990 = vunpack.c.h.bf16 %v3823
        %v3991 = vunpack.c.l.bf16 %v3826
        %v3992 = vunpack.c.h.bf16 %v3826
        %v3993 = vunpack.c.l.bf16 %v3829
        %v3994 = vunpack.c.h.bf16 %v3829
        %v3995 = vunpack.c.l.bf16 %v3832
        %v3996 = vunpack.c.h.bf16 %v3832
        %v3997 = vunpack.c.l.bf16 %v3835
        %v3998 = vunpack.c.h.bf16 %v3835
        %v3999 = vunpack.c.l.bf16 %v3838
        %v4000 = vunpack.c.h.bf16 %v3838
        %v4001 = vunpack.c.l.bf16 %v3841
        %v4002 = vunpack.c.h.bf16 %v3841
        %v4003 = vunpack.c.l.bf16 %v3844
        %v4004 = vunpack.c.h.bf16 %v3844
        %v4005 = vunpack.c.l.bf16 %v3847
        %v4006 = vunpack.c.h.bf16 %v3847
        %v4007 = vunpack.c.l.bf16 %v3850
        %v4008 = vunpack.c.h.bf16 %v3850
        %v4009 = vunpack.c.l.bf16 %v3853
        %v4010 = vunpack.c.h.bf16 %v3853
        %v4011 = vunpack.c.l.bf16 %v3856
        %v4012 = vunpack.c.h.bf16 %v3856
        %v4013 = vunpack.c.l.bf16 %v3859
        %v4014 = vunpack.c.h.bf16 %v3859
        %v4015 = vunpack.c.l.bf16 %v3862
        %v4016 = vunpack.c.h.bf16 %v3862
        %v4017 = vunpack.c.l.bf16 %v3865
        %v4018 = vunpack.c.h.bf16 %v3865
        %v4019 = vunpack.c.l.bf16 %v3868
        %v4020 = vunpack.c.h.bf16 %v3868
        %v4021 = vunpack.c.l.bf16 %v3871
        %v4022 = vunpack.c.h.bf16 %v3871
        %v4023 = vunpack.c.l.bf16 %v3874
        %v4024 = vunpack.c.h.bf16 %v3874
        %v4025 = vunpack.c.l.bf16 %v3877
        %v4026 = vunpack.c.h.bf16 %v3877
        %v4027 = vunpack.c.l.bf16 %v3880
        %v4028 = vunpack.c.h.bf16 %v3880
        %v4029 = vunpack.c.l.bf16 %v3883
        %v4030 = vunpack.c.h.bf16 %v3883
        %v4031 = vunpack.c.l.bf16 %v3886
        %v4032 = vunpack.c.h.bf16 %v3886
        %v4033 = vunpack.c.l.bf16 %v3889
        %v4034 = vunpack.c.h.bf16 %v3889
        %v4035 = vunpack.c.l.bf16 %v3892
        %v4036 = vunpack.c.h.bf16 %v3892
        %v4037 = vunpack.c.l.bf16 %v3895
        %v4038 = vunpack.c.h.bf16 %v3895
        %v4039 = vunpack.c.l.bf16 %v3898
        %v4040 = vunpack.c.h.bf16 %v3898
        %v4041 = vunpack.c.l.bf16 %v3901
        %v4042 = vunpack.c.h.bf16 %v3901
        %v4043 = vunpack.c.l.bf16 %v3904
        %v4044 = vunpack.c.h.bf16 %v3904
        %v4045 = vunpack.c.l.bf16 %v3907
        %v4046 = vunpack.c.h.bf16 %v3907
        %v4047 = vunpack.c.l.bf16 %v3910
        %v4048 = vunpack.c.h.bf16 %v3910
        %v4049 = vunpack.c.l.bf16 %v3913
        %v4050 = vunpack.c.h.bf16 %v3913
        %v4051 = vunpack.c.l.bf16 %v3916
        %v4052 = vunpack.c.h.bf16 %v3916
        %v4053 = vunpack.c.l.bf16 %v3919
        %v4054 = vunpack.c.h.bf16 %v3919
        %v4055 = vunpack.c.l.bf16 %v3922
        %v4056 = vunpack.c.h.bf16 %v3922
        %v4057 = vunpack.c.l.bf16 %v3925
        %v4058 = vunpack.c.h.bf16 %v3925
        %v4059 = vunpack.c.l.bf16 %v3928
        %v4060 = vunpack.c.h.bf16 %v3928
        %v4061 = vunpack.c.l.bf16 %v3931
        %v4062 = vunpack.c.h.bf16 %v3931
        %v4063 = vunpack.c.l.bf16 %v3934
        %v4064 = vunpack.c.h.bf16 %v3934
        %v4065 = vunpack.c.l.bf16 %v3937
        %v4066 = vunpack.c.h.bf16 %v3937
        %v4067 = vunpack.c.l.bf16 %v3940
        %v4068 = vunpack.c.h.bf16 %v3940
        %4069 = vadd.xlane.f32.xlu0 %v3941
        %v4070 = vpop.xlane.xlu0 %4069
        %4071 = vadd.xlane.f32.xlu0 %v3942
        %v4072 = vpop.xlane.xlu0 %4071
        %4073 = vadd.xlane.f32.xlu0 %v3943
        %v4074 = vpop.xlane.xlu0 %4073
        %4075 = vadd.xlane.f32.xlu0 %v3944
        %v4076 = vpop.xlane.xlu0 %4075
        %4077 = vadd.xlane.f32.xlu0 %v3945
        %v4078 = vpop.xlane.xlu0 %4077
        %4079 = vadd.xlane.f32.xlu0 %v3946
        %v4080 = vpop.xlane.xlu0 %4079
        %4081 = vadd.xlane.f32.xlu0 %v3947
        %v4082 = vpop.xlane.xlu0 %4081
        %4083 = vadd.xlane.f32.xlu0 %v3948
        %v4084 = vpop.xlane.xlu0 %4083
        %4085 = vadd.xlane.f32.xlu0 %v3949
        %v4086 = vpop.xlane.xlu0 %4085
        %4087 = vadd.xlane.f32.xlu0 %v3950
        %v4088 = vpop.xlane.xlu0 %4087
        %4089 = vadd.xlane.f32.xlu0 %v3951
        %v4090 = vpop.xlane.xlu0 %4089
        %4091 = vadd.xlane.f32.xlu0 %v3952
        %v4092 = vpop.xlane.xlu0 %4091
        %4093 = vadd.xlane.f32.xlu0 %v3953
        %v4094 = vpop.xlane.xlu0 %4093
        %4095 = vadd.xlane.f32.xlu0 %v3954
        %v4096 = vpop.xlane.xlu0 %4095
        %4097 = vadd.xlane.f32.xlu0 %v3955
        %v4098 = vpop.xlane.xlu0 %4097
        %4099 = vadd.xlane.f32.xlu0 %v3956
        %v4100 = vpop.xlane.xlu0 %4099
        %4101 = vadd.xlane.f32.xlu0 %v3957
        %v4102 = vpop.xlane.xlu0 %4101
        %4103 = vadd.xlane.f32.xlu0 %v3958
        %v4104 = vpop.xlane.xlu0 %4103
        %4105 = vadd.xlane.f32.xlu0 %v3959
        %v4106 = vpop.xlane.xlu0 %4105
        %4107 = vadd.xlane.f32.xlu0 %v3960
        %v4108 = vpop.xlane.xlu0 %4107
        %4109 = vadd.xlane.f32.xlu0 %v3961
        %v4110 = vpop.xlane.xlu0 %4109
        %4111 = vadd.xlane.f32.xlu0 %v3962
        %v4112 = vpop.xlane.xlu0 %4111
        %4113 = vadd.xlane.f32.xlu0 %v3963
        %v4114 = vpop.xlane.xlu0 %4113
        %4115 = vadd.xlane.f32.xlu0 %v3964
        %v4116 = vpop.xlane.xlu0 %4115
        %4117 = vadd.xlane.f32.xlu0 %v3965
        %v4118 = vpop.xlane.xlu0 %4117
        %4119 = vadd.xlane.f32.xlu0 %v3966
        %v4120 = vpop.xlane.xlu0 %4119
        %4121 = vadd.xlane.f32.xlu0 %v3967
        %v4122 = vpop.xlane.xlu0 %4121
        %4123 = vadd.xlane.f32.xlu0 %v3968
        %v4124 = vpop.xlane.xlu0 %4123
        %4125 = vadd.xlane.f32.xlu0 %v3969
        %v4126 = vpop.xlane.xlu0 %4125
        %4127 = vadd.xlane.f32.xlu0 %v3970
        %v4128 = vpop.xlane.xlu0 %4127
        %4129 = vadd.xlane.f32.xlu0 %v3971
        %v4130 = vpop.xlane.xlu0 %4129
        %4131 = vadd.xlane.f32.xlu0 %v3972
        %v4132 = vpop.xlane.xlu0 %4131
        %4133 = vadd.xlane.f32.xlu0 %v3973
        %v4134 = vpop.xlane.xlu0 %4133
        %4135 = vadd.xlane.f32.xlu0 %v3974
        %v4136 = vpop.xlane.xlu0 %4135
        %4137 = vadd.xlane.f32.xlu0 %v3975
        %v4138 = vpop.xlane.xlu0 %4137
        %4139 = vadd.xlane.f32.xlu0 %v3976
        %v4140 = vpop.xlane.xlu0 %4139
        %4141 = vadd.xlane.f32.xlu0 %v3977
        %v4142 = vpop.xlane.xlu0 %4141
        %4143 = vadd.xlane.f32.xlu0 %v3978
        %v4144 = vpop.xlane.xlu0 %4143
        %4145 = vadd.xlane.f32.xlu0 %v3979
        %v4146 = vpop.xlane.xlu0 %4145
        %4147 = vadd.xlane.f32.xlu0 %v3980
        %v4148 = vpop.xlane.xlu0 %4147
        %4149 = vadd.xlane.f32.xlu0 %v3981
        %v4150 = vpop.xlane.xlu0 %4149
        %4151 = vadd.xlane.f32.xlu0 %v3982
        %v4152 = vpop.xlane.xlu0 %4151
        %4153 = vadd.xlane.f32.xlu0 %v3983
        %v4154 = vpop.xlane.xlu0 %4153
        %4155 = vadd.xlane.f32.xlu0 %v3984
        %v4156 = vpop.xlane.xlu0 %4155
        %4157 = vadd.xlane.f32.xlu0 %v3985
        %v4158 = vpop.xlane.xlu0 %4157
        %4159 = vadd.xlane.f32.xlu0 %v3986
        %v4160 = vpop.xlane.xlu0 %4159
        %4161 = vadd.xlane.f32.xlu0 %v3987
        %v4162 = vpop.xlane.xlu0 %4161
        %4163 = vadd.xlane.f32.xlu0 %v3988
        %v4164 = vpop.xlane.xlu0 %4163
        %4165 = vadd.xlane.f32.xlu0 %v3989
        %v4166 = vpop.xlane.xlu0 %4165
        %4167 = vadd.xlane.f32.xlu0 %v3990
        %v4168 = vpop.xlane.xlu0 %4167
        %4169 = vadd.xlane.f32.xlu0 %v3991
        %v4170 = vpop.xlane.xlu0 %4169
        %4171 = vadd.xlane.f32.xlu0 %v3992
        %v4172 = vpop.xlane.xlu0 %4171
        %4173 = vadd.xlane.f32.xlu0 %v3993
        %v4174 = vpop.xlane.xlu0 %4173
        %4175 = vadd.xlane.f32.xlu0 %v3994
        %v4176 = vpop.xlane.xlu0 %4175
        %4177 = vadd.xlane.f32.xlu0 %v3995
        %v4178 = vpop.xlane.xlu0 %4177
        %4179 = vadd.xlane.f32.xlu0 %v3996
        %v4180 = vpop.xlane.xlu0 %4179
        %4181 = vadd.xlane.f32.xlu0 %v3997
        %v4182 = vpop.xlane.xlu0 %4181
        %4183 = vadd.xlane.f32.xlu0 %v3998
        %v4184 = vpop.xlane.xlu0 %4183
        %4185 = vadd.xlane.f32.xlu0 %v3999
        %v4186 = vpop.xlane.xlu0 %4185
        %4187 = vadd.xlane.f32.xlu0 %v4000
        %v4188 = vpop.xlane.xlu0 %4187
        %4189 = vadd.xlane.f32.xlu0 %v4001
        %v4190 = vpop.xlane.xlu0 %4189
        %4191 = vadd.xlane.f32.xlu0 %v4002
        %v4192 = vpop.xlane.xlu0 %4191
        %4193 = vadd.xlane.f32.xlu0 %v4003
        %v4194 = vpop.xlane.xlu0 %4193
        %4195 = vadd.xlane.f32.xlu0 %v4004
        %v4196 = vpop.xlane.xlu0 %4195
        %4197 = vadd.xlane.f32.xlu0 %v4005
        %v4198 = vpop.xlane.xlu0 %4197
        %4199 = vadd.xlane.f32.xlu0 %v4006
        %v4200 = vpop.xlane.xlu0 %4199
        %4201 = vadd.xlane.f32.xlu0 %v4007
        %v4202 = vpop.xlane.xlu0 %4201
        %4203 = vadd.xlane.f32.xlu0 %v4008
        %v4204 = vpop.xlane.xlu0 %4203
        %4205 = vadd.xlane.f32.xlu0 %v4009
        %v4206 = vpop.xlane.xlu0 %4205
        %4207 = vadd.xlane.f32.xlu0 %v4010
        %v4208 = vpop.xlane.xlu0 %4207
        %4209 = vadd.xlane.f32.xlu0 %v4011
        %v4210 = vpop.xlane.xlu0 %4209
        %4211 = vadd.xlane.f32.xlu0 %v4012
        %v4212 = vpop.xlane.xlu0 %4211
        %4213 = vadd.xlane.f32.xlu0 %v4013
        %v4214 = vpop.xlane.xlu0 %4213
        %4215 = vadd.xlane.f32.xlu0 %v4014
        %v4216 = vpop.xlane.xlu0 %4215
        %4217 = vadd.xlane.f32.xlu0 %v4015
        %v4218 = vpop.xlane.xlu0 %4217
        %4219 = vadd.xlane.f32.xlu0 %v4016
        %v4220 = vpop.xlane.xlu0 %4219
        %4221 = vadd.xlane.f32.xlu0 %v4017
        %v4222 = vpop.xlane.xlu0 %4221
        %4223 = vadd.xlane.f32.xlu0 %v4018
        %v4224 = vpop.xlane.xlu0 %4223
        %4225 = vadd.xlane.f32.xlu0 %v4019
        %v4226 = vpop.xlane.xlu0 %4225
        %4227 = vadd.xlane.f32.xlu0 %v4020
        %v4228 = vpop.xlane.xlu0 %4227
        %4229 = vadd.xlane.f32.xlu0 %v4021
        %v4230 = vpop.xlane.xlu0 %4229
        %4231 = vadd.xlane.f32.xlu0 %v4022
        %v4232 = vpop.xlane.xlu0 %4231
        %4233 = vadd.xlane.f32.xlu0 %v4023
        %v4234 = vpop.xlane.xlu0 %4233
        %4235 = vadd.xlane.f32.xlu0 %v4024
        %v4236 = vpop.xlane.xlu0 %4235
        %4237 = vadd.xlane.f32.xlu0 %v4025
        %v4238 = vpop.xlane.xlu0 %4237
        %4239 = vadd.xlane.f32.xlu0 %v4026
        %v4240 = vpop.xlane.xlu0 %4239
        %4241 = vadd.xlane.f32.xlu0 %v4027
        %v4242 = vpop.xlane.xlu0 %4241
        %4243 = vadd.xlane.f32.xlu0 %v4028
        %v4244 = vpop.xlane.xlu0 %4243
        %4245 = vadd.xlane.f32.xlu0 %v4029
        %v4246 = vpop.xlane.xlu0 %4245
        %4247 = vadd.xlane.f32.xlu0 %v4030
        %v4248 = vpop.xlane.xlu0 %4247
        %4249 = vadd.xlane.f32.xlu0 %v4031
        %v4250 = vpop.xlane.xlu0 %4249
        %4251 = vadd.xlane.f32.xlu0 %v4032
        %v4252 = vpop.xlane.xlu0 %4251
        %4253 = vadd.xlane.f32.xlu0 %v4033
        %v4254 = vpop.xlane.xlu0 %4253
        %4255 = vadd.xlane.f32.xlu0 %v4034
        %v4256 = vpop.xlane.xlu0 %4255
        %4257 = vadd.xlane.f32.xlu0 %v4035
        %v4258 = vpop.xlane.xlu0 %4257
        %4259 = vadd.xlane.f32.xlu0 %v4036
        %v4260 = vpop.xlane.xlu0 %4259
        %4261 = vadd.xlane.f32.xlu0 %v4037
        %v4262 = vpop.xlane.xlu0 %4261
        %4263 = vadd.xlane.f32.xlu0 %v4038
        %v4264 = vpop.xlane.xlu0 %4263
        %4265 = vadd.xlane.f32.xlu0 %v4039
        %v4266 = vpop.xlane.xlu0 %4265
        %4267 = vadd.xlane.f32.xlu0 %v4040
        %v4268 = vpop.xlane.xlu0 %4267
        %4269 = vadd.xlane.f32.xlu0 %v4041
        %v4270 = vpop.xlane.xlu0 %4269
        %4271 = vadd.xlane.f32.xlu0 %v4042
        %v4272 = vpop.xlane.xlu0 %4271
        %4273 = vadd.xlane.f32.xlu0 %v4043
        %v4274 = vpop.xlane.xlu0 %4273
        %4275 = vadd.xlane.f32.xlu0 %v4044
        %v4276 = vpop.xlane.xlu0 %4275
        %4277 = vadd.xlane.f32.xlu0 %v4045
        %v4278 = vpop.xlane.xlu0 %4277
        %4279 = vadd.xlane.f32.xlu0 %v4046
        %v4280 = vpop.xlane.xlu0 %4279
        %4281 = vadd.xlane.f32.xlu0 %v4047
        %v4282 = vpop.xlane.xlu0 %4281
        %4283 = vadd.xlane.f32.xlu0 %v4048
        %v4284 = vpop.xlane.xlu0 %4283
        %4285 = vadd.xlane.f32.xlu0 %v4049
        %v4286 = vpop.xlane.xlu0 %4285
        %4287 = vadd.xlane.f32.xlu0 %v4050
        %v4288 = vpop.xlane.xlu0 %4287
        %4289 = vadd.xlane.f32.xlu0 %v4051
        %v4290 = vpop.xlane.xlu0 %4289
        %4291 = vadd.xlane.f32.xlu0 %v4052
        %v4292 = vpop.xlane.xlu0 %4291
        %4293 = vadd.xlane.f32.xlu0 %v4053
        %v4294 = vpop.xlane.xlu0 %4293
        %4295 = vadd.xlane.f32.xlu0 %v4054
        %v4296 = vpop.xlane.xlu0 %4295
        %4297 = vadd.xlane.f32.xlu0 %v4055
        %v4298 = vpop.xlane.xlu0 %4297
        %4299 = vadd.xlane.f32.xlu0 %v4056
        %v4300 = vpop.xlane.xlu0 %4299
        %4301 = vadd.xlane.f32.xlu0 %v4057
        %v4302 = vpop.xlane.xlu0 %4301
        %4303 = vadd.xlane.f32.xlu0 %v4058
        %v4304 = vpop.xlane.xlu0 %4303
        %4305 = vadd.xlane.f32.xlu0 %v4059
        %v4306 = vpop.xlane.xlu0 %4305
        %4307 = vadd.xlane.f32.xlu0 %v4060
        %v4308 = vpop.xlane.xlu0 %4307
        %4309 = vadd.xlane.f32.xlu0 %v4061
        %v4310 = vpop.xlane.xlu0 %4309
        %4311 = vadd.xlane.f32.xlu0 %v4062
        %v4312 = vpop.xlane.xlu0 %4311
        %4313 = vadd.xlane.f32.xlu0 %v4063
        %v4314 = vpop.xlane.xlu0 %4313
        %4315 = vadd.xlane.f32.xlu0 %v4064
        %v4316 = vpop.xlane.xlu0 %4315
        %4317 = vadd.xlane.f32.xlu0 %v4065
        %v4318 = vpop.xlane.xlu0 %4317
        %4319 = vadd.xlane.f32.xlu0 %v4066
        %v4320 = vpop.xlane.xlu0 %4319
        %4321 = vadd.xlane.f32.xlu0 %v4067
        %v4322 = vpop.xlane.xlu0 %4321
        %4323 = vadd.xlane.f32.xlu0 %v4068
        %v4324 = vpop.xlane.xlu0 %4323
        %4325 = vmatprep.subr.bf16.mxu0 0
        %4326 = vmatpush1.bf16.xpose.msra.mxu0 %v3751
        %4327 = vmatprep.subr.bf16.mxu0 0
        %4328 = vmatpush1.bf16.xpose.msra.mxu0 %v3754
        %4329 = vmatprep.subr.bf16.mxu0 0
        %4330 = vmatpush1.bf16.xpose.msra.mxu0 %v3757
        %4331 = vmatprep.subr.bf16.mxu0 0
        %4332 = vmatpush1.bf16.xpose.msra.mxu0 %v3760
        %4333 = vmatprep.subr.bf16.mxu0 0
        %4334 = vmatpush1.bf16.xpose.msra.mxu0 %v3763
        %4335 = vmatprep.subr.bf16.mxu0 0
        %4336 = vmatpush1.bf16.xpose.msra.mxu0 %v3766
        %4337 = vmatprep.subr.bf16.mxu0 0
        %4338 = vmatpush1.bf16.xpose.msra.mxu0 %v3769
        %4339 = vmatprep.subr.bf16.mxu0 0
        %4340 = vmatpush1.bf16.xpose.msra.mxu0 %v3772
        %4341 = vmatprep.subr.bf16.mxu0 0
        %4342 = vmatpush1.bf16.xpose.msra.mxu0 0
        %4343 = vmatprep.subr.bf16.mxu0 0
        %4344 = vmatpush1.bf16.xpose.msra.mxu0 0
        %4345 = vmatprep.subr.bf16.mxu0 0
        %4346 = vmatpush1.bf16.xpose.msra.mxu0 0
        %4347 = vmatprep.subr.bf16.mxu0 0
        %4348 = vmatpush1.bf16.xpose.msra.mxu0 0
        %4349 = vmatprep.subr.bf16.mxu0 0
        %4350 = vmatpush1.bf16.xpose.msra.mxu0 0
        %4351 = vmatprep.subr.bf16.mxu0 0
        %4352 = vmatpush1.bf16.xpose.msra.mxu0 0
        %4353 = vmatprep.subr.bf16.mxu0 0
        %4354 = vmatpush1.bf16.xpose.msra.mxu0 0
        %4355 = vmatprep.subr.bf16.mxu0 0
        %4356 = vmatpush1.bf16.xpose.msra.mxu0 0
        %4357 = vmatprep.mubr.bf16.mxu0 0
        %4358 = vmatmul.mubr.bf16.gmra.mrb[0].mxu0 %v2171
        %v4359 = vpop.f32.mrb[0].mxu0
        %v4360 = vadd.f32 0.0, %v4359
        %v4361 = vpop.f32.mrb[0].mxu0
        %v4362 = vpop.f32.mrb[0].mxu0
        %v4363 = vpop.f32.mrb[0].mxu0
        %4364 = vdwg.mxu0
        %4365 = vmatprep.subr.bf16.mxu0 0
        %4366 = vmatpush1.bf16.xpose.msra.mxu0 %v3775
        %4367 = vmatprep.subr.bf16.mxu0 0
        %4368 = vmatpush1.bf16.xpose.msra.mxu0 %v3778
        %4369 = vmatprep.subr.bf16.mxu0 0
        %4370 = vmatpush1.bf16.xpose.msra.mxu0 %v3781
        %4371 = vmatprep.subr.bf16.mxu0 0
        %4372 = vmatpush1.bf16.xpose.msra.mxu0 %v3784
        %4373 = vmatprep.subr.bf16.mxu0 0
        %4374 = vmatpush1.bf16.xpose.msra.mxu0 %v3787
        %4375 = vmatprep.subr.bf16.mxu0 0
        %4376 = vmatpush1.bf16.xpose.msra.mxu0 %v3790
        %4377 = vmatprep.subr.bf16.mxu0 0
        %4378 = vmatpush1.bf16.xpose.msra.mxu0 %v3793
        %4379 = vmatprep.subr.bf16.mxu0 0
        %4380 = vmatpush1.bf16.xpose.msra.mxu0 %v3796
        %4381 = vmatprep.subr.bf16.mxu0 0
        %4382 = vmatpush1.bf16.xpose.msra.mxu0 0
        %4383 = vmatprep.subr.bf16.mxu0 0
        %4384 = vmatpush1.bf16.xpose.msra.mxu0 0
        %4385 = vmatprep.subr.bf16.mxu0 0
        %4386 = vmatpush1.bf16.xpose.msra.mxu0 0
        %4387 = vmatprep.subr.bf16.mxu0 0
        %4388 = vmatpush1.bf16.xpose.msra.mxu0 0
        %4389 = vmatprep.subr.bf16.mxu0 0
        %4390 = vmatpush1.bf16.xpose.msra.mxu0 0
        %4391 = vmatprep.subr.bf16.mxu0 0
        %4392 = vmatpush1.bf16.xpose.msra.mxu0 0
        %4393 = vmatprep.subr.bf16.mxu0 0
        %4394 = vmatpush1.bf16.xpose.msra.mxu0 0
        %4395 = vmatprep.subr.bf16.mxu0 0
        %4396 = vmatpush1.bf16.xpose.msra.mxu0 0
        %4397 = vmatprep.mubr.bf16.mxu0 0
        %4398 = vmatmul.mubr.bf16.gmra.mrb[0].mxu0 %v2172
        %v4399 = vpop.f32.mrb[0].mxu0
        %v4400 = vadd.f32 0.0, %v4399
        %v4401 = vpop.f32.mrb[0].mxu0
        %v4402 = vpop.f32.mrb[0].mxu0
        %v4403 = vpop.f32.mrb[0].mxu0
        %4404 = vdwg.mxu0
        %4405 = vmatprep.subr.bf16.mxu0 0
        %4406 = vmatpush1.bf16.xpose.msra.mxu0 %v3799
        %4407 = vmatprep.subr.bf16.mxu0 0
        %4408 = vmatpush1.bf16.xpose.msra.mxu0 %v3802
        %4409 = vmatprep.subr.bf16.mxu0 0
        %4410 = vmatpush1.bf16.xpose.msra.mxu0 %v3805
        %4411 = vmatprep.subr.bf16.mxu0 0
        %4412 = vmatpush1.bf16.xpose.msra.mxu0 %v3808
        %4413 = vmatprep.subr.bf16.mxu0 0
        %4414 = vmatpush1.bf16.xpose.msra.mxu0 %v3811
        %4415 = vmatprep.subr.bf16.mxu0 0
        %4416 = vmatpush1.bf16.xpose.msra.mxu0 %v3814
        %4417 = vmatprep.subr.bf16.mxu0 0
        %4418 = vmatpush1.bf16.xpose.msra.mxu0 %v3817
        %4419 = vmatprep.subr.bf16.mxu0 0
        %4420 = vmatpush1.bf16.xpose.msra.mxu0 %v3820
        %4421 = vmatprep.subr.bf16.mxu0 0
        %4422 = vmatpush1.bf16.xpose.msra.mxu0 0
        %4423 = vmatprep.subr.bf16.mxu0 0
        %4424 = vmatpush1.bf16.xpose.msra.mxu0 0
        %4425 = vmatprep.subr.bf16.mxu0 0
        %4426 = vmatpush1.bf16.xpose.msra.mxu0 0
        %4427 = vmatprep.subr.bf16.mxu0 0
        %4428 = vmatpush1.bf16.xpose.msra.mxu0 0
        %4429 = vmatprep.subr.bf16.mxu0 0
        %4430 = vmatpush1.bf16.xpose.msra.mxu0 0
        %4431 = vmatprep.subr.bf16.mxu0 0
        %4432 = vmatpush1.bf16.xpose.msra.mxu0 0
        %4433 = vmatprep.subr.bf16.mxu0 0
        %4434 = vmatpush1.bf16.xpose.msra.mxu0 0
        %4435 = vmatprep.subr.bf16.mxu0 0
        %4436 = vmatpush1.bf16.xpose.msra.mxu0 0
        %4437 = vmatprep.mubr.bf16.mxu0 0
        %4438 = vmatmul.mubr.bf16.gmra.mrb[0].mxu0 %v2173
        %v4439 = vpop.f32.mrb[0].mxu0
        %v4440 = vadd.f32 0.0, %v4439
        %v4441 = vpop.f32.mrb[0].mxu0
        %v4442 = vpop.f32.mrb[0].mxu0
        %v4443 = vpop.f32.mrb[0].mxu0
        %4444 = vdwg.mxu0
        %4445 = vmatprep.subr.bf16.mxu0 0
        %4446 = vmatpush1.bf16.xpose.msra.mxu0 %v3823
        %4447 = vmatprep.subr.bf16.mxu0 0
        %4448 = vmatpush1.bf16.xpose.msra.mxu0 %v3826
        %4449 = vmatprep.subr.bf16.mxu0 0
        %4450 = vmatpush1.bf16.xpose.msra.mxu0 %v3829
        %4451 = vmatprep.subr.bf16.mxu0 0
        %4452 = vmatpush1.bf16.xpose.msra.mxu0 %v3832
        %4453 = vmatprep.subr.bf16.mxu0 0
        %4454 = vmatpush1.bf16.xpose.msra.mxu0 %v3835
        %4455 = vmatprep.subr.bf16.mxu0 0
        %4456 = vmatpush1.bf16.xpose.msra.mxu0 %v3838
        %4457 = vmatprep.subr.bf16.mxu0 0
        %4458 = vmatpush1.bf16.xpose.msra.mxu0 %v3841
        %4459 = vmatprep.subr.bf16.mxu0 0
        %4460 = vmatpush1.bf16.xpose.msra.mxu0 %v3844
        %4461 = vmatprep.subr.bf16.mxu0 0
        %4462 = vmatpush1.bf16.xpose.msra.mxu0 0
        %4463 = vmatprep.subr.bf16.mxu0 0
        %4464 = vmatpush1.bf16.xpose.msra.mxu0 0
        %4465 = vmatprep.subr.bf16.mxu0 0
        %4466 = vmatpush1.bf16.xpose.msra.mxu0 0
        %4467 = vmatprep.subr.bf16.mxu0 0
        %4468 = vmatpush1.bf16.xpose.msra.mxu0 0
        %4469 = vmatprep.subr.bf16.mxu0 0
        %4470 = vmatpush1.bf16.xpose.msra.mxu0 0
        %4471 = vmatprep.subr.bf16.mxu0 0
        %4472 = vmatpush1.bf16.xpose.msra.mxu0 0
        %4473 = vmatprep.subr.bf16.mxu0 0
        %4474 = vmatpush1.bf16.xpose.msra.mxu0 0
        %4475 = vmatprep.subr.bf16.mxu0 0
        %4476 = vmatpush1.bf16.xpose.msra.mxu0 0
        %4477 = vmatprep.mubr.bf16.mxu0 0
        %4478 = vmatmul.mubr.bf16.gmra.mrb[0].mxu0 %v2174
        %v4479 = vpop.f32.mrb[0].mxu0
        %v4480 = vadd.f32 0.0, %v4479
        %v4481 = vpop.f32.mrb[0].mxu0
        %v4482 = vpop.f32.mrb[0].mxu0
        %v4483 = vpop.f32.mrb[0].mxu0
        %4484 = vdwg.mxu0
        %4485 = vmatprep.subr.bf16.mxu0 0
        %4486 = vmatpush1.bf16.xpose.msra.mxu0 %v3847
        %4487 = vmatprep.subr.bf16.mxu0 0
        %4488 = vmatpush1.bf16.xpose.msra.mxu0 %v3850
        %4489 = vmatprep.subr.bf16.mxu0 0
        %4490 = vmatpush1.bf16.xpose.msra.mxu0 %v3853
        %4491 = vmatprep.subr.bf16.mxu0 0
        %4492 = vmatpush1.bf16.xpose.msra.mxu0 %v3856
        %4493 = vmatprep.subr.bf16.mxu0 0
        %4494 = vmatpush1.bf16.xpose.msra.mxu0 %v3859
        %4495 = vmatprep.subr.bf16.mxu0 0
        %4496 = vmatpush1.bf16.xpose.msra.mxu0 %v3862
        %4497 = vmatprep.subr.bf16.mxu0 0
        %4498 = vmatpush1.bf16.xpose.msra.mxu0 %v3865
        %4499 = vmatprep.subr.bf16.mxu0 0
        %4500 = vmatpush1.bf16.xpose.msra.mxu0 %v3868
        %4501 = vmatprep.subr.bf16.mxu0 0
        %4502 = vmatpush1.bf16.xpose.msra.mxu0 0
        %4503 = vmatprep.subr.bf16.mxu0 0
        %4504 = vmatpush1.bf16.xpose.msra.mxu0 0
        %4505 = vmatprep.subr.bf16.mxu0 0
        %4506 = vmatpush1.bf16.xpose.msra.mxu0 0
        %4507 = vmatprep.subr.bf16.mxu0 0
        %4508 = vmatpush1.bf16.xpose.msra.mxu0 0
        %4509 = vmatprep.subr.bf16.mxu0 0
        %4510 = vmatpush1.bf16.xpose.msra.mxu0 0
        %4511 = vmatprep.subr.bf16.mxu0 0
        %4512 = vmatpush1.bf16.xpose.msra.mxu0 0
        %4513 = vmatprep.subr.bf16.mxu0 0
        %4514 = vmatpush1.bf16.xpose.msra.mxu0 0
        %4515 = vmatprep.subr.bf16.mxu0 0
        %4516 = vmatpush1.bf16.xpose.msra.mxu0 0
        %4517 = vmatprep.mubr.bf16.mxu0 0
        %4518 = vmatmul.mubr.bf16.gmra.mrb[0].mxu0 %v2175
        %v4519 = vpop.f32.mrb[0].mxu0
        %v4520 = vadd.f32 0.0, %v4519
        %v4521 = vpop.f32.mrb[0].mxu0
        %v4522 = vpop.f32.mrb[0].mxu0
        %v4523 = vpop.f32.mrb[0].mxu0
        %4524 = vdwg.mxu0
        %4525 = vmatprep.subr.bf16.mxu0 0
        %4526 = vmatpush1.bf16.xpose.msra.mxu0 %v3871
        %4527 = vmatprep.subr.bf16.mxu0 0
        %4528 = vmatpush1.bf16.xpose.msra.mxu0 %v3874
        %4529 = vmatprep.subr.bf16.mxu0 0
        %4530 = vmatpush1.bf16.xpose.msra.mxu0 %v3877
        %4531 = vmatprep.subr.bf16.mxu0 0
        %4532 = vmatpush1.bf16.xpose.msra.mxu0 %v3880
        %4533 = vmatprep.subr.bf16.mxu0 0
        %4534 = vmatpush1.bf16.xpose.msra.mxu0 %v3883
        %4535 = vmatprep.subr.bf16.mxu0 0
        %4536 = vmatpush1.bf16.xpose.msra.mxu0 %v3886
        %4537 = vmatprep.subr.bf16.mxu0 0
        %4538 = vmatpush1.bf16.xpose.msra.mxu0 %v3889
        %4539 = vmatprep.subr.bf16.mxu0 0
        %4540 = vmatpush1.bf16.xpose.msra.mxu0 %v3892
        %4541 = vmatprep.subr.bf16.mxu0 0
        %4542 = vmatpush1.bf16.xpose.msra.mxu0 0
        %4543 = vmatprep.subr.bf16.mxu0 0
        %4544 = vmatpush1.bf16.xpose.msra.mxu0 0
        %4545 = vmatprep.subr.bf16.mxu0 0
        %4546 = vmatpush1.bf16.xpose.msra.mxu0 0
        %4547 = vmatprep.subr.bf16.mxu0 0
        %4548 = vmatpush1.bf16.xpose.msra.mxu0 0
        %4549 = vmatprep.subr.bf16.mxu0 0
        %4550 = vmatpush1.bf16.xpose.msra.mxu0 0
        %4551 = vmatprep.subr.bf16.mxu0 0
        %4552 = vmatpush1.bf16.xpose.msra.mxu0 0
        %4553 = vmatprep.subr.bf16.mxu0 0
        %4554 = vmatpush1.bf16.xpose.msra.mxu0 0
        %4555 = vmatprep.subr.bf16.mxu0 0
        %4556 = vmatpush1.bf16.xpose.msra.mxu0 0
        %4557 = vmatprep.mubr.bf16.mxu0 0
        %4558 = vmatmul.mubr.bf16.gmra.mrb[0].mxu0 %v2176
        %v4559 = vpop.f32.mrb[0].mxu0
        %v4560 = vadd.f32 0.0, %v4559
        %v4561 = vpop.f32.mrb[0].mxu0
        %v4562 = vpop.f32.mrb[0].mxu0
        %v4563 = vpop.f32.mrb[0].mxu0
        %4564 = vdwg.mxu0
        %4565 = vmatprep.subr.bf16.mxu0 0
        %4566 = vmatpush1.bf16.xpose.msra.mxu0 %v3895
        %4567 = vmatprep.subr.bf16.mxu0 0
        %4568 = vmatpush1.bf16.xpose.msra.mxu0 %v3898
        %4569 = vmatprep.subr.bf16.mxu0 0
        %4570 = vmatpush1.bf16.xpose.msra.mxu0 %v3901
        %4571 = vmatprep.subr.bf16.mxu0 0
        %4572 = vmatpush1.bf16.xpose.msra.mxu0 %v3904
        %4573 = vmatprep.subr.bf16.mxu0 0
        %4574 = vmatpush1.bf16.xpose.msra.mxu0 %v3907
        %4575 = vmatprep.subr.bf16.mxu0 0
        %4576 = vmatpush1.bf16.xpose.msra.mxu0 %v3910
        %4577 = vmatprep.subr.bf16.mxu0 0
        %4578 = vmatpush1.bf16.xpose.msra.mxu0 %v3913
        %4579 = vmatprep.subr.bf16.mxu0 0
        %4580 = vmatpush1.bf16.xpose.msra.mxu0 %v3916
        %4581 = vmatprep.subr.bf16.mxu0 0
        %4582 = vmatpush1.bf16.xpose.msra.mxu0 0
        %4583 = vmatprep.subr.bf16.mxu0 0
        %4584 = vmatpush1.bf16.xpose.msra.mxu0 0
        %4585 = vmatprep.subr.bf16.mxu0 0
        %4586 = vmatpush1.bf16.xpose.msra.mxu0 0
        %4587 = vmatprep.subr.bf16.mxu0 0
        %4588 = vmatpush1.bf16.xpose.msra.mxu0 0
        %4589 = vmatprep.subr.bf16.mxu0 0
        %4590 = vmatpush1.bf16.xpose.msra.mxu0 0
        %4591 = vmatprep.subr.bf16.mxu0 0
        %4592 = vmatpush1.bf16.xpose.msra.mxu0 0
        %4593 = vmatprep.subr.bf16.mxu0 0
        %4594 = vmatpush1.bf16.xpose.msra.mxu0 0
        %4595 = vmatprep.subr.bf16.mxu0 0
        %4596 = vmatpush1.bf16.xpose.msra.mxu0 0
        %4597 = vmatprep.mubr.bf16.mxu0 0
        %4598 = vmatmul.mubr.bf16.gmra.mrb[0].mxu0 %v2177
        %v4599 = vpop.f32.mrb[0].mxu0
        %v4600 = vadd.f32 0.0, %v4599
        %v4601 = vpop.f32.mrb[0].mxu0
        %v4602 = vpop.f32.mrb[0].mxu0
        %v4603 = vpop.f32.mrb[0].mxu0
        %4604 = vdwg.mxu0
        %4605 = vmatprep.subr.bf16.mxu0 0
        %4606 = vmatpush1.bf16.xpose.msra.mxu0 %v3919
        %4607 = vmatprep.subr.bf16.mxu0 0
        %4608 = vmatpush1.bf16.xpose.msra.mxu0 %v3922
        %4609 = vmatprep.subr.bf16.mxu0 0
        %4610 = vmatpush1.bf16.xpose.msra.mxu0 %v3925
        %4611 = vmatprep.subr.bf16.mxu0 0
        %4612 = vmatpush1.bf16.xpose.msra.mxu0 %v3928
        %4613 = vmatprep.subr.bf16.mxu0 0
        %4614 = vmatpush1.bf16.xpose.msra.mxu0 %v3931
        %4615 = vmatprep.subr.bf16.mxu0 0
        %4616 = vmatpush1.bf16.xpose.msra.mxu0 %v3934
        %4617 = vmatprep.subr.bf16.mxu0 0
        %4618 = vmatpush1.bf16.xpose.msra.mxu0 %v3937
        %4619 = vmatprep.subr.bf16.mxu0 0
        %4620 = vmatpush1.bf16.xpose.msra.mxu0 %v3940
        %4621 = vmatprep.subr.bf16.mxu0 0
        %4622 = vmatpush1.bf16.xpose.msra.mxu0 0
        %4623 = vmatprep.subr.bf16.mxu0 0
        %4624 = vmatpush1.bf16.xpose.msra.mxu0 0
        %4625 = vmatprep.subr.bf16.mxu0 0
        %4626 = vmatpush1.bf16.xpose.msra.mxu0 0
        %4627 = vmatprep.subr.bf16.mxu0 0
        %4628 = vmatpush1.bf16.xpose.msra.mxu0 0
        %4629 = vmatprep.subr.bf16.mxu0 0
        %4630 = vmatpush1.bf16.xpose.msra.mxu0 0
        %4631 = vmatprep.subr.bf16.mxu0 0
        %4632 = vmatpush1.bf16.xpose.msra.mxu0 0
        %4633 = vmatprep.subr.bf16.mxu0 0
        %4634 = vmatpush1.bf16.xpose.msra.mxu0 0
        %4635 = vmatprep.subr.bf16.mxu0 0
        %4636 = vmatpush1.bf16.xpose.msra.mxu0 0
        %4637 = vmatprep.mubr.bf16.mxu0 0
        %4638 = vmatmul.mubr.bf16.gmra.mrb[0].mxu0 %v2178
        %v4639 = vpop.f32.mrb[0].mxu0
        %v4640 = vadd.f32 0.0, %v4639
        %v4641 = vpop.f32.mrb[0].mxu0
        %v4642 = vpop.f32.mrb[0].mxu0
        %v4643 = vpop.f32.mrb[0].mxu0
        %4644 = vdwg.mxu0
        %v4645 = vrcp.pop %v4070
        %v4646 = vrcp.pop %v4072
        %v4647 = vrcp.pop %v4074
        %v4648 = vrcp.pop %v4076
        %v4649 = vrcp.pop %v4078
        %v4650 = vrcp.pop %v4080
        %v4651 = vrcp.pop %v4082
        %v4652 = vrcp.pop %v4084
        %v4653 = vrcp.pop %v4086
        %v4654 = vrcp.pop %v4088
        %v4655 = vrcp.pop %v4090
        %v4656 = vrcp.pop %v4092
        %v4657 = vrcp.pop %v4094
        %v4658 = vrcp.pop %v4096
        %v4659 = vrcp.pop %v4098
        %v4660 = vrcp.pop %v4100
        %v4661 = vrcp.pop %v4102
        %v4662 = vrcp.pop %v4104
        %v4663 = vrcp.pop %v4106
        %v4664 = vrcp.pop %v4108
        %v4665 = vrcp.pop %v4110
        %v4666 = vrcp.pop %v4112
        %v4667 = vrcp.pop %v4114
        %v4668 = vrcp.pop %v4116
        %v4669 = vrcp.pop %v4118
        %v4670 = vrcp.pop %v4120
        %v4671 = vrcp.pop %v4122
        %v4672 = vrcp.pop %v4124
        %v4673 = vrcp.pop %v4126
        %v4674 = vrcp.pop %v4128
        %v4675 = vrcp.pop %v4130
        %v4676 = vrcp.pop %v4132
        %v4677 = vrcp.pop %v4134
        %v4678 = vrcp.pop %v4136
        %v4679 = vrcp.pop %v4138
        %v4680 = vrcp.pop %v4140
        %v4681 = vrcp.pop %v4142
        %v4682 = vrcp.pop %v4144
        %v4683 = vrcp.pop %v4146
        %v4684 = vrcp.pop %v4148
        %v4685 = vrcp.pop %v4150
        %v4686 = vrcp.pop %v4152
        %v4687 = vrcp.pop %v4154
        %v4688 = vrcp.pop %v4156
        %v4689 = vrcp.pop %v4158
        %v4690 = vrcp.pop %v4160
        %v4691 = vrcp.pop %v4162
        %v4692 = vrcp.pop %v4164
        %v4693 = vrcp.pop %v4166
        %v4694 = vrcp.pop %v4168
        %v4695 = vrcp.pop %v4170
        %v4696 = vrcp.pop %v4172
        %v4697 = vrcp.pop %v4174
        %v4698 = vrcp.pop %v4176
        %v4699 = vrcp.pop %v4178
        %v4700 = vrcp.pop %v4180
        %v4701 = vrcp.pop %v4182
        %v4702 = vrcp.pop %v4184
        %v4703 = vrcp.pop %v4186
        %v4704 = vrcp.pop %v4188
        %v4705 = vrcp.pop %v4190
        %v4706 = vrcp.pop %v4192
        %v4707 = vrcp.pop %v4194
        %v4708 = vrcp.pop %v4196
        %v4709 = vrcp.pop %v4198
        %v4710 = vrcp.pop %v4200
        %v4711 = vrcp.pop %v4202
        %v4712 = vrcp.pop %v4204
        %v4713 = vrcp.pop %v4206
        %v4714 = vrcp.pop %v4208
        %v4715 = vrcp.pop %v4210
        %v4716 = vrcp.pop %v4212
        %v4717 = vrcp.pop %v4214
        %v4718 = vrcp.pop %v4216
        %v4719 = vrcp.pop %v4218
        %v4720 = vrcp.pop %v4220
        %v4721 = vrcp.pop %v4222
        %v4722 = vrcp.pop %v4224
        %v4723 = vrcp.pop %v4226
        %v4724 = vrcp.pop %v4228
        %v4725 = vrcp.pop %v4230
        %v4726 = vrcp.pop %v4232
        %v4727 = vrcp.pop %v4234
        %v4728 = vrcp.pop %v4236
        %v4729 = vrcp.pop %v4238
        %v4730 = vrcp.pop %v4240
        %v4731 = vrcp.pop %v4242
        %v4732 = vrcp.pop %v4244
        %v4733 = vrcp.pop %v4246
        %v4734 = vrcp.pop %v4248
        %v4735 = vrcp.pop %v4250
        %v4736 = vrcp.pop %v4252
        %v4737 = vrcp.pop %v4254
        %v4738 = vrcp.pop %v4256
        %v4739 = vrcp.pop %v4258
        %v4740 = vrcp.pop %v4260
        %v4741 = vrcp.pop %v4262
        %v4742 = vrcp.pop %v4264
        %v4743 = vrcp.pop %v4266
        %v4744 = vrcp.pop %v4268
        %v4745 = vrcp.pop %v4270
        %v4746 = vrcp.pop %v4272
        %v4747 = vrcp.pop %v4274
        %v4748 = vrcp.pop %v4276
        %v4749 = vrcp.pop %v4278
        %v4750 = vrcp.pop %v4280
        %v4751 = vrcp.pop %v4282
        %v4752 = vrcp.pop %v4284
        %v4753 = vrcp.pop %v4286
        %v4754 = vrcp.pop %v4288
        %v4755 = vrcp.pop %v4290
        %v4756 = vrcp.pop %v4292
        %v4757 = vrcp.pop %v4294
        %v4758 = vrcp.pop %v4296
        %v4759 = vrcp.pop %v4298
        %v4760 = vrcp.pop %v4300
        %v4761 = vrcp.pop %v4302
        %v4762 = vrcp.pop %v4304
        %v4763 = vrcp.pop %v4306
        %v4764 = vrcp.pop %v4308
        %v4765 = vrcp.pop %v4310
        %v4766 = vrcp.pop %v4312
        %v4767 = vrcp.pop %v4314
        %v4768 = vrcp.pop %v4316
        %v4769 = vrcp.pop %v4318
        %v4770 = vrcp.pop %v4320
        %v4771 = vrcp.pop %v4322
        %v4772 = vrcp.pop %v4324
        %v4901 = vlaneseq
        %v4902 = vshrl.u32 %v4901, 7
        %v4903 = vsub.s32 %v526, %v4902
        %v4904 = vrot.slane %v4645, %v4903
        %v4905 = vadd.s32 %v526, 4294967288
        %v4906 = vlaneseq
        %v4907 = vshrl.u32 %v4906, 7
        %v4908 = vsub.s32 %v4905, %v4907
        %v4909 = vrot.slane %v4646, %v4908
        %vm4910 = vcmask 130112
        %v4911 = vsel %vm4910, %v4909, %v4904
        %v4912 = vadd.s32 %v526, 4294967280
        %v4913 = vlaneseq
        %v4914 = vshrl.u32 %v4913, 7
        %v4915 = vsub.s32 %v4912, %v4914
        %v4916 = vrot.slane %v4647, %v4915
        %vm4917 = vcmask 195712
        %v4918 = vsel %vm4917, %v4916, %v4911
        %v4919 = vadd.s32 %v526, 4294967272
        %v4920 = vlaneseq
        %v4921 = vshrl.u32 %v4920, 7
        %v4922 = vsub.s32 %v4919, %v4921
        %v4923 = vrot.slane %v4648, %v4922
        %vm4924 = vcmask 261312
        %v4925 = vsel %vm4924, %v4923, %v4918
        %v4926 = vadd.s32 %v526, 4294967264
        %v4927 = vlaneseq
        %v4928 = vshrl.u32 %v4927, 7
        %v4929 = vsub.s32 %v4926, %v4928
        %v4930 = vrot.slane %v4649, %v4929
        %vm4931 = vcmask 326912
        %v4932 = vsel %vm4931, %v4930, %v4925
        %v4933 = vadd.s32 %v526, 4294967256
        %v4934 = vlaneseq
        %v4935 = vshrl.u32 %v4934, 7
        %v4936 = vsub.s32 %v4933, %v4935
        %v4937 = vrot.slane %v4650, %v4936
        %vm4938 = vcmask 392512
        %v4939 = vsel %vm4938, %v4937, %v4932
        %v4940 = vadd.s32 %v526, 4294967248
        %v4941 = vlaneseq
        %v4942 = vshrl.u32 %v4941, 7
        %v4943 = vsub.s32 %v4940, %v4942
        %v4944 = vrot.slane %v4651, %v4943
        %vm4945 = vcmask 458112
        %v4946 = vsel %vm4945, %v4944, %v4939
        %v4947 = vadd.s32 %v526, 4294967240
        %v4948 = vlaneseq
        %v4949 = vshrl.u32 %v4948, 7
        %v4950 = vsub.s32 %v4947, %v4949
        %v4951 = vrot.slane %v4652, %v4950
        %vm4952 = vcmask 523712
        %v4953 = vsel %vm4952, %v4951, %v4946
        %v4954 = vadd.s32 %v526, 4294967232
        %v4955 = vlaneseq
        %v4956 = vshrl.u32 %v4955, 7
        %v4957 = vsub.s32 %v4954, %v4956
        %v4958 = vrot.slane %v4653, %v4957
        %vm4959 = vcmask 589312
        %v4960 = vsel %vm4959, %v4958, %v4953
        %v4961 = vadd.s32 %v526, 4294967224
        %v4962 = vlaneseq
        %v4963 = vshrl.u32 %v4962, 7
        %v4964 = vsub.s32 %v4961, %v4963
        %v4965 = vrot.slane %v4654, %v4964
        %vm4966 = vcmask 654912
        %v4967 = vsel %vm4966, %v4965, %v4960
        %v4968 = vadd.s32 %v526, 4294967216
        %v4969 = vlaneseq
        %v4970 = vshrl.u32 %v4969, 7
        %v4971 = vsub.s32 %v4968, %v4970
        %v4972 = vrot.slane %v4655, %v4971
        %vm4973 = vcmask 720512
        %v4974 = vsel %vm4973, %v4972, %v4967
        %v4975 = vadd.s32 %v526, 4294967208
        %v4976 = vlaneseq
        %v4977 = vshrl.u32 %v4976, 7
        %v4978 = vsub.s32 %v4975, %v4977
        %v4979 = vrot.slane %v4656, %v4978
        %vm4980 = vcmask 786112
        %v4981 = vsel %vm4980, %v4979, %v4974
        %v4982 = vadd.s32 %v526, 4294967200
        %v4983 = vlaneseq
        %v4984 = vshrl.u32 %v4983, 7
        %v4985 = vsub.s32 %v4982, %v4984
        %v4986 = vrot.slane %v4657, %v4985
        %vm4987 = vcmask 851712
        %v4988 = vsel %vm4987, %v4986, %v4981
        %v4989 = vadd.s32 %v526, 4294967192
        %v4990 = vlaneseq
        %v4991 = vshrl.u32 %v4990, 7
        %v4992 = vsub.s32 %v4989, %v4991
        %v4993 = vrot.slane %v4658, %v4992
        %vm4994 = vcmask 917312
        %v4995 = vsel %vm4994, %v4993, %v4988
        %v4996 = vadd.s32 %v526, 4294967184
        %v4997 = vlaneseq
        %v4998 = vshrl.u32 %v4997, 7
        %v4999 = vsub.s32 %v4996, %v4998
        %v5000 = vrot.slane %v4659, %v4999
        %vm5001 = vcmask 982912
        %v5002 = vsel %vm5001, %v5000, %v4995
        %v5003 = vadd.s32 %v526, 4294967176
        %v5004 = vlaneseq
        %v5005 = vshrl.u32 %v5004, 7
        %v5006 = vsub.s32 %v5003, %v5005
        %v5007 = vrot.slane %v4660, %v5006
        %vm5008 = vcmask 1048512
        %v5009 = vsel %vm5008, %v5007, %v5002
        %v5010 = vlaneseq
        %v5011 = vshrl.u32 %v5010, 7
        %v5012 = vsub.s32 %v526, %v5011
        %v5013 = vrot.slane %v4661, %v5012
        %v5014 = vlaneseq
        %v5015 = vshrl.u32 %v5014, 7
        %v5016 = vsub.s32 %v4905, %v5015
        %v5017 = vrot.slane %v4662, %v5016
        %v5018 = vsel %vm4910, %v5017, %v5013
        %v5019 = vlaneseq
        %v5020 = vshrl.u32 %v5019, 7
        %v5021 = vsub.s32 %v4912, %v5020
        %v5022 = vrot.slane %v4663, %v5021
        %v5023 = vsel %vm4917, %v5022, %v5018
        %v5024 = vlaneseq
        %v5025 = vshrl.u32 %v5024, 7
        %v5026 = vsub.s32 %v4919, %v5025
        %v5027 = vrot.slane %v4664, %v5026
        %v5028 = vsel %vm4924, %v5027, %v5023
        %v5029 = vlaneseq
        %v5030 = vshrl.u32 %v5029, 7
        %v5031 = vsub.s32 %v4926, %v5030
        %v5032 = vrot.slane %v4665, %v5031
        %v5033 = vsel %vm4931, %v5032, %v5028
        %v5034 = vlaneseq
        %v5035 = vshrl.u32 %v5034, 7
        %v5036 = vsub.s32 %v4933, %v5035
        %v5037 = vrot.slane %v4666, %v5036
        %v5038 = vsel %vm4938, %v5037, %v5033
        %v5039 = vlaneseq
        %v5040 = vshrl.u32 %v5039, 7
        %v5041 = vsub.s32 %v4940, %v5040
        %v5042 = vrot.slane %v4667, %v5041
        %v5043 = vsel %vm4945, %v5042, %v5038
        %v5044 = vlaneseq
        %v5045 = vshrl.u32 %v5044, 7
        %v5046 = vsub.s32 %v4947, %v5045
        %v5047 = vrot.slane %v4668, %v5046
        %v5048 = vsel %vm4952, %v5047, %v5043
        %v5049 = vlaneseq
        %v5050 = vshrl.u32 %v5049, 7
        %v5051 = vsub.s32 %v4954, %v5050
        %v5052 = vrot.slane %v4669, %v5051
        %v5053 = vsel %vm4959, %v5052, %v5048
        %v5054 = vlaneseq
        %v5055 = vshrl.u32 %v5054, 7
        %v5056 = vsub.s32 %v4961, %v5055
        %v5057 = vrot.slane %v4670, %v5056
        %v5058 = vsel %vm4966, %v5057, %v5053
        %v5059 = vlaneseq
        %v5060 = vshrl.u32 %v5059, 7
        %v5061 = vsub.s32 %v4968, %v5060
        %v5062 = vrot.slane %v4671, %v5061
        %v5063 = vsel %vm4973, %v5062, %v5058
        %v5064 = vlaneseq
        %v5065 = vshrl.u32 %v5064, 7
        %v5066 = vsub.s32 %v4975, %v5065
        %v5067 = vrot.slane %v4672, %v5066
        %v5068 = vsel %vm4980, %v5067, %v5063
        %v5069 = vlaneseq
        %v5070 = vshrl.u32 %v5069, 7
        %v5071 = vsub.s32 %v4982, %v5070
        %v5072 = vrot.slane %v4673, %v5071
        %v5073 = vsel %vm4987, %v5072, %v5068
        %v5074 = vlaneseq
        %v5075 = vshrl.u32 %v5074, 7
        %v5076 = vsub.s32 %v4989, %v5075
        %v5077 = vrot.slane %v4674, %v5076
        %v5078 = vsel %vm4994, %v5077, %v5073
        %v5079 = vlaneseq
        %v5080 = vshrl.u32 %v5079, 7
        %v5081 = vsub.s32 %v4996, %v5080
        %v5082 = vrot.slane %v4675, %v5081
        %v5083 = vsel %vm5001, %v5082, %v5078
        %v5084 = vlaneseq
        %v5085 = vshrl.u32 %v5084, 7
        %v5086 = vsub.s32 %v5003, %v5085
        %v5087 = vrot.slane %v4676, %v5086
        %v5088 = vsel %vm5008, %v5087, %v5083
        %v5089 = vlaneseq
        %v5090 = vshrl.u32 %v5089, 7
        %v5091 = vsub.s32 %v526, %v5090
        %v5092 = vrot.slane %v4677, %v5091
        %v5093 = vlaneseq
        %v5094 = vshrl.u32 %v5093, 7
        %v5095 = vsub.s32 %v4905, %v5094
        %v5096 = vrot.slane %v4678, %v5095
        %v5097 = vsel %vm4910, %v5096, %v5092
        %v5098 = vlaneseq
        %v5099 = vshrl.u32 %v5098, 7
        %v5100 = vsub.s32 %v4912, %v5099
        %v5101 = vrot.slane %v4679, %v5100
        %v5102 = vsel %vm4917, %v5101, %v5097
        %v5103 = vlaneseq
        %v5104 = vshrl.u32 %v5103, 7
        %v5105 = vsub.s32 %v4919, %v5104
        %v5106 = vrot.slane %v4680, %v5105
        %v5107 = vsel %vm4924, %v5106, %v5102
        %v5108 = vlaneseq
        %v5109 = vshrl.u32 %v5108, 7
        %v5110 = vsub.s32 %v4926, %v5109
        %v5111 = vrot.slane %v4681, %v5110
        %v5112 = vsel %vm4931, %v5111, %v5107
        %v5113 = vlaneseq
        %v5114 = vshrl.u32 %v5113, 7
        %v5115 = vsub.s32 %v4933, %v5114
        %v5116 = vrot.slane %v4682, %v5115
        %v5117 = vsel %vm4938, %v5116, %v5112
        %v5118 = vlaneseq
        %v5119 = vshrl.u32 %v5118, 7
        %v5120 = vsub.s32 %v4940, %v5119
        %v5121 = vrot.slane %v4683, %v5120
        %v5122 = vsel %vm4945, %v5121, %v5117
        %v5123 = vlaneseq
        %v5124 = vshrl.u32 %v5123, 7
        %v5125 = vsub.s32 %v4947, %v5124
        %v5126 = vrot.slane %v4684, %v5125
        %v5127 = vsel %vm4952, %v5126, %v5122
        %v5128 = vlaneseq
        %v5129 = vshrl.u32 %v5128, 7
        %v5130 = vsub.s32 %v4954, %v5129
        %v5131 = vrot.slane %v4685, %v5130
        %v5132 = vsel %vm4959, %v5131, %v5127
        %v5133 = vlaneseq
        %v5134 = vshrl.u32 %v5133, 7
        %v5135 = vsub.s32 %v4961, %v5134
        %v5136 = vrot.slane %v4686, %v5135
        %v5137 = vsel %vm4966, %v5136, %v5132
        %v5138 = vlaneseq
        %v5139 = vshrl.u32 %v5138, 7
        %v5140 = vsub.s32 %v4968, %v5139
        %v5141 = vrot.slane %v4687, %v5140
        %v5142 = vsel %vm4973, %v5141, %v5137
        %v5143 = vlaneseq
        %v5144 = vshrl.u32 %v5143, 7
        %v5145 = vsub.s32 %v4975, %v5144
        %v5146 = vrot.slane %v4688, %v5145
        %v5147 = vsel %vm4980, %v5146, %v5142
        %v5148 = vlaneseq
        %v5149 = vshrl.u32 %v5148, 7
        %v5150 = vsub.s32 %v4982, %v5149
        %v5151 = vrot.slane %v4689, %v5150
        %v5152 = vsel %vm4987, %v5151, %v5147
        %v5153 = vlaneseq
        %v5154 = vshrl.u32 %v5153, 7
        %v5155 = vsub.s32 %v4989, %v5154
        %v5156 = vrot.slane %v4690, %v5155
        %v5157 = vsel %vm4994, %v5156, %v5152
        %v5158 = vlaneseq
        %v5159 = vshrl.u32 %v5158, 7
        %v5160 = vsub.s32 %v4996, %v5159
        %v5161 = vrot.slane %v4691, %v5160
        %v5162 = vsel %vm5001, %v5161, %v5157
        %v5163 = vlaneseq
        %v5164 = vshrl.u32 %v5163, 7
        %v5165 = vsub.s32 %v5003, %v5164
        %v5166 = vrot.slane %v4692, %v5165
        %v5167 = vsel %vm5008, %v5166, %v5162
        %v5168 = vlaneseq
        %v5169 = vshrl.u32 %v5168, 7
        %v5170 = vsub.s32 %v526, %v5169
        %v5171 = vrot.slane %v4693, %v5170
        %v5172 = vlaneseq
        %v5173 = vshrl.u32 %v5172, 7
        %v5174 = vsub.s32 %v4905, %v5173
        %v5175 = vrot.slane %v4694, %v5174
        %v5176 = vsel %vm4910, %v5175, %v5171
        %v5177 = vlaneseq
        %v5178 = vshrl.u32 %v5177, 7
        %v5179 = vsub.s32 %v4912, %v5178
        %v5180 = vrot.slane %v4695, %v5179
        %v5181 = vsel %vm4917, %v5180, %v5176
        %v5182 = vlaneseq
        %v5183 = vshrl.u32 %v5182, 7
        %v5184 = vsub.s32 %v4919, %v5183
        %v5185 = vrot.slane %v4696, %v5184
        %v5186 = vsel %vm4924, %v5185, %v5181
        %v5187 = vlaneseq
        %v5188 = vshrl.u32 %v5187, 7
        %v5189 = vsub.s32 %v4926, %v5188
        %v5190 = vrot.slane %v4697, %v5189
        %v5191 = vsel %vm4931, %v5190, %v5186
        %v5192 = vlaneseq
        %v5193 = vshrl.u32 %v5192, 7
        %v5194 = vsub.s32 %v4933, %v5193
        %v5195 = vrot.slane %v4698, %v5194
        %v5196 = vsel %vm4938, %v5195, %v5191
        %v5197 = vlaneseq
        %v5198 = vshrl.u32 %v5197, 7
        %v5199 = vsub.s32 %v4940, %v5198
        %v5200 = vrot.slane %v4699, %v5199
        %v5201 = vsel %vm4945, %v5200, %v5196
        %v5202 = vlaneseq
        %v5203 = vshrl.u32 %v5202, 7
        %v5204 = vsub.s32 %v4947, %v5203
        %v5205 = vrot.slane %v4700, %v5204
        %v5206 = vsel %vm4952, %v5205, %v5201
        %v5207 = vlaneseq
        %v5208 = vshrl.u32 %v5207, 7
        %v5209 = vsub.s32 %v4954, %v5208
        %v5210 = vrot.slane %v4701, %v5209
        %v5211 = vsel %vm4959, %v5210, %v5206
        %v5212 = vlaneseq
        %v5213 = vshrl.u32 %v5212, 7
        %v5214 = vsub.s32 %v4961, %v5213
        %v5215 = vrot.slane %v4702, %v5214
        %v5216 = vsel %vm4966, %v5215, %v5211
        %v5217 = vlaneseq
        %v5218 = vshrl.u32 %v5217, 7
        %v5219 = vsub.s32 %v4968, %v5218
        %v5220 = vrot.slane %v4703, %v5219
        %v5221 = vsel %vm4973, %v5220, %v5216
        %v5222 = vlaneseq
        %v5223 = vshrl.u32 %v5222, 7
        %v5224 = vsub.s32 %v4975, %v5223
        %v5225 = vrot.slane %v4704, %v5224
        %v5226 = vsel %vm4980, %v5225, %v5221
        %v5227 = vlaneseq
        %v5228 = vshrl.u32 %v5227, 7
        %v5229 = vsub.s32 %v4982, %v5228
        %v5230 = vrot.slane %v4705, %v5229
        %v5231 = vsel %vm4987, %v5230, %v5226
        %v5232 = vlaneseq
        %v5233 = vshrl.u32 %v5232, 7
        %v5234 = vsub.s32 %v4989, %v5233
        %v5235 = vrot.slane %v4706, %v5234
        %v5236 = vsel %vm4994, %v5235, %v5231
        %v5237 = vlaneseq
        %v5238 = vshrl.u32 %v5237, 7
        %v5239 = vsub.s32 %v4996, %v5238
        %v5240 = vrot.slane %v4707, %v5239
        %v5241 = vsel %vm5001, %v5240, %v5236
        %v5242 = vlaneseq
        %v5243 = vshrl.u32 %v5242, 7
        %v5244 = vsub.s32 %v5003, %v5243
        %v5245 = vrot.slane %v4708, %v5244
        %v5246 = vsel %vm5008, %v5245, %v5241
        %v5247 = vlaneseq
        %v5248 = vshrl.u32 %v5247, 7
        %v5249 = vsub.s32 %v526, %v5248
        %v5250 = vrot.slane %v4709, %v5249
        %v5251 = vlaneseq
        %v5252 = vshrl.u32 %v5251, 7
        %v5253 = vsub.s32 %v4905, %v5252
        %v5254 = vrot.slane %v4710, %v5253
        %v5255 = vsel %vm4910, %v5254, %v5250
        %v5256 = vlaneseq
        %v5257 = vshrl.u32 %v5256, 7
        %v5258 = vsub.s32 %v4912, %v5257
        %v5259 = vrot.slane %v4711, %v5258
        %v5260 = vsel %vm4917, %v5259, %v5255
        %v5261 = vlaneseq
        %v5262 = vshrl.u32 %v5261, 7
        %v5263 = vsub.s32 %v4919, %v5262
        %v5264 = vrot.slane %v4712, %v5263
        %v5265 = vsel %vm4924, %v5264, %v5260
        %v5266 = vlaneseq
        %v5267 = vshrl.u32 %v5266, 7
        %v5268 = vsub.s32 %v4926, %v5267
        %v5269 = vrot.slane %v4713, %v5268
        %v5270 = vsel %vm4931, %v5269, %v5265
        %v5271 = vlaneseq
        %v5272 = vshrl.u32 %v5271, 7
        %v5273 = vsub.s32 %v4933, %v5272
        %v5274 = vrot.slane %v4714, %v5273
        %v5275 = vsel %vm4938, %v5274, %v5270
        %v5276 = vlaneseq
        %v5277 = vshrl.u32 %v5276, 7
        %v5278 = vsub.s32 %v4940, %v5277
        %v5279 = vrot.slane %v4715, %v5278
        %v5280 = vsel %vm4945, %v5279, %v5275
        %v5281 = vlaneseq
        %v5282 = vshrl.u32 %v5281, 7
        %v5283 = vsub.s32 %v4947, %v5282
        %v5284 = vrot.slane %v4716, %v5283
        %v5285 = vsel %vm4952, %v5284, %v5280
        %v5286 = vlaneseq
        %v5287 = vshrl.u32 %v5286, 7
        %v5288 = vsub.s32 %v4954, %v5287
        %v5289 = vrot.slane %v4717, %v5288
        %v5290 = vsel %vm4959, %v5289, %v5285
        %v5291 = vlaneseq
        %v5292 = vshrl.u32 %v5291, 7
        %v5293 = vsub.s32 %v4961, %v5292
        %v5294 = vrot.slane %v4718, %v5293
        %v5295 = vsel %vm4966, %v5294, %v5290
        %v5296 = vlaneseq
        %v5297 = vshrl.u32 %v5296, 7
        %v5298 = vsub.s32 %v4968, %v5297
        %v5299 = vrot.slane %v4719, %v5298
        %v5300 = vsel %vm4973, %v5299, %v5295
        %v5301 = vlaneseq
        %v5302 = vshrl.u32 %v5301, 7
        %v5303 = vsub.s32 %v4975, %v5302
        %v5304 = vrot.slane %v4720, %v5303
        %v5305 = vsel %vm4980, %v5304, %v5300
        %v5306 = vlaneseq
        %v5307 = vshrl.u32 %v5306, 7
        %v5308 = vsub.s32 %v4982, %v5307
        %v5309 = vrot.slane %v4721, %v5308
        %v5310 = vsel %vm4987, %v5309, %v5305
        %v5311 = vlaneseq
        %v5312 = vshrl.u32 %v5311, 7
        %v5313 = vsub.s32 %v4989, %v5312
        %v5314 = vrot.slane %v4722, %v5313
        %v5315 = vsel %vm4994, %v5314, %v5310
        %v5316 = vlaneseq
        %v5317 = vshrl.u32 %v5316, 7
        %v5318 = vsub.s32 %v4996, %v5317
        %v5319 = vrot.slane %v4723, %v5318
        %v5320 = vsel %vm5001, %v5319, %v5315
        %v5321 = vlaneseq
        %v5322 = vshrl.u32 %v5321, 7
        %v5323 = vsub.s32 %v5003, %v5322
        %v5324 = vrot.slane %v4724, %v5323
        %v5325 = vsel %vm5008, %v5324, %v5320
        %v5326 = vlaneseq
        %v5327 = vshrl.u32 %v5326, 7
        %v5328 = vsub.s32 %v526, %v5327
        %v5329 = vrot.slane %v4725, %v5328
        %v5330 = vlaneseq
        %v5331 = vshrl.u32 %v5330, 7
        %v5332 = vsub.s32 %v4905, %v5331
        %v5333 = vrot.slane %v4726, %v5332
        %v5334 = vsel %vm4910, %v5333, %v5329
        %v5335 = vlaneseq
        %v5336 = vshrl.u32 %v5335, 7
        %v5337 = vsub.s32 %v4912, %v5336
        %v5338 = vrot.slane %v4727, %v5337
        %v5339 = vsel %vm4917, %v5338, %v5334
        %v5340 = vlaneseq
        %v5341 = vshrl.u32 %v5340, 7
        %v5342 = vsub.s32 %v4919, %v5341
        %v5343 = vrot.slane %v4728, %v5342
        %v5344 = vsel %vm4924, %v5343, %v5339
        %v5345 = vlaneseq
        %v5346 = vshrl.u32 %v5345, 7
        %v5347 = vsub.s32 %v4926, %v5346
        %v5348 = vrot.slane %v4729, %v5347
        %v5349 = vsel %vm4931, %v5348, %v5344
        %v5350 = vlaneseq
        %v5351 = vshrl.u32 %v5350, 7
        %v5352 = vsub.s32 %v4933, %v5351
        %v5353 = vrot.slane %v4730, %v5352
        %v5354 = vsel %vm4938, %v5353, %v5349
        %v5355 = vlaneseq
        %v5356 = vshrl.u32 %v5355, 7
        %v5357 = vsub.s32 %v4940, %v5356
        %v5358 = vrot.slane %v4731, %v5357
        %v5359 = vsel %vm4945, %v5358, %v5354
        %v5360 = vlaneseq
        %v5361 = vshrl.u32 %v5360, 7
        %v5362 = vsub.s32 %v4947, %v5361
        %v5363 = vrot.slane %v4732, %v5362
        %v5364 = vsel %vm4952, %v5363, %v5359
        %v5365 = vlaneseq
        %v5366 = vshrl.u32 %v5365, 7
        %v5367 = vsub.s32 %v4954, %v5366
        %v5368 = vrot.slane %v4733, %v5367
        %v5369 = vsel %vm4959, %v5368, %v5364
        %v5370 = vlaneseq
        %v5371 = vshrl.u32 %v5370, 7
        %v5372 = vsub.s32 %v4961, %v5371
        %v5373 = vrot.slane %v4734, %v5372
        %v5374 = vsel %vm4966, %v5373, %v5369
        %v5375 = vlaneseq
        %v5376 = vshrl.u32 %v5375, 7
        %v5377 = vsub.s32 %v4968, %v5376
        %v5378 = vrot.slane %v4735, %v5377
        %v5379 = vsel %vm4973, %v5378, %v5374
        %v5380 = vlaneseq
        %v5381 = vshrl.u32 %v5380, 7
        %v5382 = vsub.s32 %v4975, %v5381
        %v5383 = vrot.slane %v4736, %v5382
        %v5384 = vsel %vm4980, %v5383, %v5379
        %v5385 = vlaneseq
        %v5386 = vshrl.u32 %v5385, 7
        %v5387 = vsub.s32 %v4982, %v5386
        %v5388 = vrot.slane %v4737, %v5387
        %v5389 = vsel %vm4987, %v5388, %v5384
        %v5390 = vlaneseq
        %v5391 = vshrl.u32 %v5390, 7
        %v5392 = vsub.s32 %v4989, %v5391
        %v5393 = vrot.slane %v4738, %v5392
        %v5394 = vsel %vm4994, %v5393, %v5389
        %v5395 = vlaneseq
        %v5396 = vshrl.u32 %v5395, 7
        %v5397 = vsub.s32 %v4996, %v5396
        %v5398 = vrot.slane %v4739, %v5397
        %v5399 = vsel %vm5001, %v5398, %v5394
        %v5400 = vlaneseq
        %v5401 = vshrl.u32 %v5400, 7
        %v5402 = vsub.s32 %v5003, %v5401
        %v5403 = vrot.slane %v4740, %v5402
        %v5404 = vsel %vm5008, %v5403, %v5399
        %v5405 = vlaneseq
        %v5406 = vshrl.u32 %v5405, 7
        %v5407 = vsub.s32 %v526, %v5406
        %v5408 = vrot.slane %v4741, %v5407
        %v5409 = vlaneseq
        %v5410 = vshrl.u32 %v5409, 7
        %v5411 = vsub.s32 %v4905, %v5410
        %v5412 = vrot.slane %v4742, %v5411
        %v5413 = vsel %vm4910, %v5412, %v5408
        %v5414 = vlaneseq
        %v5415 = vshrl.u32 %v5414, 7
        %v5416 = vsub.s32 %v4912, %v5415
        %v5417 = vrot.slane %v4743, %v5416
        %v5418 = vsel %vm4917, %v5417, %v5413
        %v5419 = vlaneseq
        %v5420 = vshrl.u32 %v5419, 7
        %v5421 = vsub.s32 %v4919, %v5420
        %v5422 = vrot.slane %v4744, %v5421
        %v5423 = vsel %vm4924, %v5422, %v5418
        %v5424 = vlaneseq
        %v5425 = vshrl.u32 %v5424, 7
        %v5426 = vsub.s32 %v4926, %v5425
        %v5427 = vrot.slane %v4745, %v5426
        %v5428 = vsel %vm4931, %v5427, %v5423
        %v5429 = vlaneseq
        %v5430 = vshrl.u32 %v5429, 7
        %v5431 = vsub.s32 %v4933, %v5430
        %v5432 = vrot.slane %v4746, %v5431
        %v5433 = vsel %vm4938, %v5432, %v5428
        %v5434 = vlaneseq
        %v5435 = vshrl.u32 %v5434, 7
        %v5436 = vsub.s32 %v4940, %v5435
        %v5437 = vrot.slane %v4747, %v5436
        %v5438 = vsel %vm4945, %v5437, %v5433
        %v5439 = vlaneseq
        %v5440 = vshrl.u32 %v5439, 7
        %v5441 = vsub.s32 %v4947, %v5440
        %v5442 = vrot.slane %v4748, %v5441
        %v5443 = vsel %vm4952, %v5442, %v5438
        %v5444 = vlaneseq
        %v5445 = vshrl.u32 %v5444, 7
        %v5446 = vsub.s32 %v4954, %v5445
        %v5447 = vrot.slane %v4749, %v5446
        %v5448 = vsel %vm4959, %v5447, %v5443
        %v5449 = vlaneseq
        %v5450 = vshrl.u32 %v5449, 7
        %v5451 = vsub.s32 %v4961, %v5450
        %v5452 = vrot.slane %v4750, %v5451
        %v5453 = vsel %vm4966, %v5452, %v5448
        %v5454 = vlaneseq
        %v5455 = vshrl.u32 %v5454, 7
        %v5456 = vsub.s32 %v4968, %v5455
        %v5457 = vrot.slane %v4751, %v5456
        %v5458 = vsel %vm4973, %v5457, %v5453
        %v5459 = vlaneseq
        %v5460 = vshrl.u32 %v5459, 7
        %v5461 = vsub.s32 %v4975, %v5460
        %v5462 = vrot.slane %v4752, %v5461
        %v5463 = vsel %vm4980, %v5462, %v5458
        %v5464 = vlaneseq
        %v5465 = vshrl.u32 %v5464, 7
        %v5466 = vsub.s32 %v4982, %v5465
        %v5467 = vrot.slane %v4753, %v5466
        %v5468 = vsel %vm4987, %v5467, %v5463
        %v5469 = vlaneseq
        %v5470 = vshrl.u32 %v5469, 7
        %v5471 = vsub.s32 %v4989, %v5470
        %v5472 = vrot.slane %v4754, %v5471
        %v5473 = vsel %vm4994, %v5472, %v5468
        %v5474 = vlaneseq
        %v5475 = vshrl.u32 %v5474, 7
        %v5476 = vsub.s32 %v4996, %v5475
        %v5477 = vrot.slane %v4755, %v5476
        %v5478 = vsel %vm5001, %v5477, %v5473
        %v5479 = vlaneseq
        %v5480 = vshrl.u32 %v5479, 7
        %v5481 = vsub.s32 %v5003, %v5480
        %v5482 = vrot.slane %v4756, %v5481
        %v5483 = vsel %vm5008, %v5482, %v5478
        %v5484 = vlaneseq
        %v5485 = vshrl.u32 %v5484, 7
        %v5486 = vsub.s32 %v526, %v5485
        %v5487 = vrot.slane %v4757, %v5486
        %v5488 = vlaneseq
        %v5489 = vshrl.u32 %v5488, 7
        %v5490 = vsub.s32 %v4905, %v5489
        %v5491 = vrot.slane %v4758, %v5490
        %v5492 = vsel %vm4910, %v5491, %v5487
        %v5493 = vlaneseq
        %v5494 = vshrl.u32 %v5493, 7
        %v5495 = vsub.s32 %v4912, %v5494
        %v5496 = vrot.slane %v4759, %v5495
        %v5497 = vsel %vm4917, %v5496, %v5492
        %v5498 = vlaneseq
        %v5499 = vshrl.u32 %v5498, 7
        %v5500 = vsub.s32 %v4919, %v5499
        %v5501 = vrot.slane %v4760, %v5500
        %v5502 = vsel %vm4924, %v5501, %v5497
        %v5503 = vlaneseq
        %v5504 = vshrl.u32 %v5503, 7
        %v5505 = vsub.s32 %v4926, %v5504
        %v5506 = vrot.slane %v4761, %v5505
        %v5507 = vsel %vm4931, %v5506, %v5502
        %v5508 = vlaneseq
        %v5509 = vshrl.u32 %v5508, 7
        %v5510 = vsub.s32 %v4933, %v5509
        %v5511 = vrot.slane %v4762, %v5510
        %v5512 = vsel %vm4938, %v5511, %v5507
        %v5513 = vlaneseq
        %v5514 = vshrl.u32 %v5513, 7
        %v5515 = vsub.s32 %v4940, %v5514
        %v5516 = vrot.slane %v4763, %v5515
        %v5517 = vsel %vm4945, %v5516, %v5512
        %v5518 = vlaneseq
        %v5519 = vshrl.u32 %v5518, 7
        %v5520 = vsub.s32 %v4947, %v5519
        %v5521 = vrot.slane %v4764, %v5520
        %v5522 = vsel %vm4952, %v5521, %v5517
        %v5523 = vlaneseq
        %v5524 = vshrl.u32 %v5523, 7
        %v5525 = vsub.s32 %v4954, %v5524
        %v5526 = vrot.slane %v4765, %v5525
        %v5527 = vsel %vm4959, %v5526, %v5522
        %v5528 = vlaneseq
        %v5529 = vshrl.u32 %v5528, 7
        %v5530 = vsub.s32 %v4961, %v5529
        %v5531 = vrot.slane %v4766, %v5530
        %v5532 = vsel %vm4966, %v5531, %v5527
        %v5533 = vlaneseq
        %v5534 = vshrl.u32 %v5533, 7
        %v5535 = vsub.s32 %v4968, %v5534
        %v5536 = vrot.slane %v4767, %v5535
        %v5537 = vsel %vm4973, %v5536, %v5532
        %v5538 = vlaneseq
        %v5539 = vshrl.u32 %v5538, 7
        %v5540 = vsub.s32 %v4975, %v5539
        %v5541 = vrot.slane %v4768, %v5540
        %v5542 = vsel %vm4980, %v5541, %v5537
        %v5543 = vlaneseq
        %v5544 = vshrl.u32 %v5543, 7
        %v5545 = vsub.s32 %v4982, %v5544
        %v5546 = vrot.slane %v4769, %v5545
        %v5547 = vsel %vm4987, %v5546, %v5542
        %v5548 = vlaneseq
        %v5549 = vshrl.u32 %v5548, 7
        %v5550 = vsub.s32 %v4989, %v5549
        %v5551 = vrot.slane %v4770, %v5550
        %v5552 = vsel %vm4994, %v5551, %v5547
        %v5553 = vlaneseq
        %v5554 = vshrl.u32 %v5553, 7
        %v5555 = vsub.s32 %v4996, %v5554
        %v5556 = vrot.slane %v4771, %v5555
        %v5557 = vsel %vm5001, %v5556, %v5552
        %v5558 = vlaneseq
        %v5559 = vshrl.u32 %v5558, 7
        %v5560 = vsub.s32 %v5003, %v5559
        %v5561 = vrot.slane %v4772, %v5560
        %v5562 = vsel %vm5008, %v5561, %v5557
        %vm5563 = vcmask 1042434
        %v5564 = vsel %vm5563, %v5009, %v5009
        %vm5565 = vcmask 1043459
        %v5566 = vsel %vm5565, %v5009, %v5564
        %vm5567 = vcmask 1044484
        %v5568 = vsel %vm5567, %v5009, %v5566
        %vm5569 = vcmask 1045509
        %v5570 = vsel %vm5569, %v5009, %v5568
        %vm5571 = vcmask 1046534
        %v5572 = vsel %vm5571, %v5009, %v5570
        %vm5573 = vcmask 1047559
        %v5574 = vsel %vm5573, %v5009, %v5572
        %v5575 = vsel %vm5563, %v5088, %v5088
        %v5576 = vsel %vm5565, %v5088, %v5575
        %v5577 = vsel %vm5567, %v5088, %v5576
        %v5578 = vsel %vm5569, %v5088, %v5577
        %v5579 = vsel %vm5571, %v5088, %v5578
        %v5580 = vsel %vm5573, %v5088, %v5579
        %v5581 = vsel %vm5563, %v5167, %v5167
        %v5582 = vsel %vm5565, %v5167, %v5581
        %v5583 = vsel %vm5567, %v5167, %v5582
        %v5584 = vsel %vm5569, %v5167, %v5583
        %v5585 = vsel %vm5571, %v5167, %v5584
        %v5586 = vsel %vm5573, %v5167, %v5585
        %v5587 = vsel %vm5563, %v5246, %v5246
        %v5588 = vsel %vm5565, %v5246, %v5587
        %v5589 = vsel %vm5567, %v5246, %v5588
        %v5590 = vsel %vm5569, %v5246, %v5589
        %v5591 = vsel %vm5571, %v5246, %v5590
        %v5592 = vsel %vm5573, %v5246, %v5591
        %v5593 = vsel %vm5563, %v5325, %v5325
        %v5594 = vsel %vm5565, %v5325, %v5593
        %v5595 = vsel %vm5567, %v5325, %v5594
        %v5596 = vsel %vm5569, %v5325, %v5595
        %v5597 = vsel %vm5571, %v5325, %v5596
        %v5598 = vsel %vm5573, %v5325, %v5597
        %v5599 = vsel %vm5563, %v5404, %v5404
        %v5600 = vsel %vm5565, %v5404, %v5599
        %v5601 = vsel %vm5567, %v5404, %v5600
        %v5602 = vsel %vm5569, %v5404, %v5601
        %v5603 = vsel %vm5571, %v5404, %v5602
        %v5604 = vsel %vm5573, %v5404, %v5603
        %v5605 = vsel %vm5563, %v5483, %v5483
        %v5606 = vsel %vm5565, %v5483, %v5605
        %v5607 = vsel %vm5567, %v5483, %v5606
        %v5608 = vsel %vm5569, %v5483, %v5607
        %v5609 = vsel %vm5571, %v5483, %v5608
        %v5610 = vsel %vm5573, %v5483, %v5609
        %v5611 = vsel %vm5563, %v5562, %v5562
        %v5612 = vsel %vm5565, %v5562, %v5611
        %v5613 = vsel %vm5567, %v5562, %v5612
        %v5614 = vsel %vm5569, %v5562, %v5613
        %v5615 = vsel %vm5571, %v5562, %v5614
        %v5616 = vsel %vm5573, %v5562, %v5615
        %v5625 = vmul.f32 %v4360, %v5574
        %v5626 = vmul.f32 %v4400, %v5580
        %v5627 = vmul.f32 %v4440, %v5586
        %v5628 = vmul.f32 %v4480, %v5592
        %v5629 = vmul.f32 %v4520, %v5598
        %v5630 = vmul.f32 %v4560, %v5604
        %v5631 = vmul.f32 %v4600, %v5610
        %v5632 = vmul.f32 %v4640, %v5616
        %v5633 = vld [vmem:[%s10] sm:$0xf]
        %v5634 = vld [vmem:[%s10 + $0x4] sm:$0xf]
        %v5635 = vld [vmem:[%s10 + $0x8] sm:$0xf]
        %v5636 = vld [vmem:[%s10 + $0xc] sm:$0xf]
        %v5637 = vld [vmem:[%s10 + $0x10] sm:$0xf]
        %v5638 = vld [vmem:[%s10 + $0x14] sm:$0xf]
        %v5639 = vld [vmem:[%s10 + $0x18] sm:$0xf]
        %v5640 = vld [vmem:[%s10 + $0x1c] sm:$0xf]
        %v5641 = vpack.c.bf16 %v5626, %v5625
        %v5642 = vpack.c.bf16 %v5628, %v5627
        %v5643 = vpack.c.bf16 %v5630, %v5629
        %v5644 = vpack.c.bf16 %v5632, %v5631
        %5645 = vset.pattern.permute.xlu0 4
        %5646 = vperm.xlu0 %5645, %v517
        %v5647 = vpop.permute.xlu0 %5646
        %5649 = vset.pattern.permute.xlu0 4
        %5650 = vperm.xlu0 %5649, %v518
        %v5651 = vpop.permute.xlu0 %5650
        %5653 = vset.pattern.permute.xlu0 4
        %5654 = vperm.xlu0 %5653, %v519
        %v5655 = vpop.permute.xlu0 %5654
        %5657 = vset.pattern.permute.xlu0 4
        %5658 = vperm.xlu0 %5657, %v520
        %v5659 = vpop.permute.xlu0 %5658
        %5661 = vset.pattern.permute.xlu0 4
        %5662 = vperm.xlu0 %5661, %v521
        %v5663 = vpop.permute.xlu0 %5662
        %5665 = vset.pattern.permute.xlu0 4
        %5666 = vperm.xlu0 %5665, %v522
        %v5667 = vpop.permute.xlu0 %5666
        %5669 = vset.pattern.permute.xlu0 4
        %5670 = vperm.xlu0 %5669, %v523
        %v5671 = vpop.permute.xlu0 %5670
        %5673 = vset.pattern.permute.xlu0 4
        %5674 = vperm.xlu0 %5673, %v524
        %v5675 = vpop.permute.xlu0 %5674
        %v5685 = vunpack.c.l.b16 %v5633
        %v5686 = vunpack.c.l.b16 %v5634
        %v5687 = vunpack.c.l.b16 %v5635
        %v5688 = vunpack.c.l.b16 %v5636
        %v5689 = vunpack.c.l.b16 %v5637
        %v5690 = vunpack.c.l.b16 %v5638
        %v5691 = vunpack.c.l.b16 %v5639
        %v5692 = vunpack.c.l.b16 %v5640
        %v5693 = vpack.c.b16 %v5686, %v5685
        %v5694 = vpack.c.b16 %v5688, %v5687
        %v5695 = vpack.c.b16 %v5690, %v5689
        %v5696 = vpack.c.b16 %v5692, %v5691
        %v5698 = vsel %vm1683, %v5693, 0
        %v5701 = vsel %vm1683, %v5694, 0
        %v5704 = vsel %vm1683, %v5695, 0
        %v5707 = vsel %vm1683, %v5696, 0
        %5709 = vmatprep.subr.bf16.mxu0 0
        %5710 = vmatpush1.bf16.msra.mxu0 %v5641
        %5711 = vmatprep.subr.bf16.mxu0 0
        %5712 = vmatpush1.bf16.msra.mxu0 %v5642
        %5713 = vmatprep.subr.bf16.mxu0 0
        %5714 = vmatpush1.bf16.msra.mxu0 %v5643
        %5715 = vmatprep.subr.bf16.mxu0 0
        %5716 = vmatpush1.bf16.msra.mxu0 %v5644
        %5717 = vmatprep.subr.bf16.mxu0 0
        %5718 = vmatpush1.bf16.msra.mxu0 0
        %5719 = vmatprep.subr.bf16.mxu0 0
        %5720 = vmatpush1.bf16.msra.mxu0 0
        %5721 = vmatprep.subr.bf16.mxu0 0
        %5722 = vmatpush1.bf16.msra.mxu0 0
        %5723 = vmatprep.subr.bf16.mxu0 0
        %5724 = vmatpush1.bf16.msra.mxu0 0
        %5725 = vmatprep.subr.bf16.mxu0 0
        %5726 = vmatpush1.bf16.msra.mxu0 0
        %5727 = vmatprep.subr.bf16.mxu0 0
        %5728 = vmatpush1.bf16.msra.mxu0 0
        %5729 = vmatprep.subr.bf16.mxu0 0
        %5730 = vmatpush1.bf16.msra.mxu0 0
        %5731 = vmatprep.subr.bf16.mxu0 0
        %5732 = vmatpush1.bf16.msra.mxu0 0
        %5733 = vmatprep.subr.bf16.mxu0 0
        %5734 = vmatpush1.bf16.msra.mxu0 0
        %5735 = vmatprep.subr.bf16.mxu0 0
        %5736 = vmatpush1.bf16.msra.mxu0 0
        %5737 = vmatprep.subr.bf16.mxu0 0
        %5738 = vmatpush1.bf16.msra.mxu0 0
        %5739 = vmatprep.subr.bf16.mxu0 0
        %5740 = vmatpush1.bf16.msra.mxu0 0
        %5741 = vmatprep.mubr.bf16.mxu0 0
        %5742 = vmatmul.mubr.bf16.gmra.mrb[0].mxu0 %v5698
        %v5743 = vpop.f32.mrb[0].mxu0
        %v5744 = vadd.f32 %v5647, %v5743
        %v5745 = vpop.f32.mrb[0].mxu0
        %v5746 = vpop.f32.mrb[0].mxu0
        %v5747 = vadd.f32 %v5651, %v5746
        %v5748 = vpop.f32.mrb[0].mxu0
        %5749 = vmatprep.mubr.bf16.mxu0 0
        %5750 = vmatmul.mubr.bf16.gmra.mrb[0].mxu0 %v5701
        %v5751 = vpop.f32.mrb[0].mxu0
        %v5752 = vadd.f32 %v5655, %v5751
        %v5753 = vpop.f32.mrb[0].mxu0
        %v5754 = vpop.f32.mrb[0].mxu0
        %v5755 = vadd.f32 %v5659, %v5754
        %v5756 = vpop.f32.mrb[0].mxu0
        %5757 = vmatprep.mubr.bf16.mxu0 0
        %5758 = vmatmul.mubr.bf16.gmra.mrb[0].mxu0 %v5704
        %v5759 = vpop.f32.mrb[0].mxu0
        %v5760 = vadd.f32 %v5663, %v5759
        %v5761 = vpop.f32.mrb[0].mxu0
        %v5762 = vpop.f32.mrb[0].mxu0
        %v5763 = vadd.f32 %v5667, %v5762
        %v5764 = vpop.f32.mrb[0].mxu0
        %5765 = vmatprep.mubr.bf16.mxu0 0
        %5766 = vmatmul.mubr.bf16.gmra.mrb[0].mxu0 %v5707
        %v5767 = vpop.f32.mrb[0].mxu0
        %v5768 = vadd.f32 %v5671, %v5767
        %v5769 = vpop.f32.mrb[0].mxu0
        %v5770 = vpop.f32.mrb[0].mxu0
        %v5771 = vadd.f32 %v5675, %v5770
        %v5772 = vpop.f32.mrb[0].mxu0
        %5773 = vdwg.mxu0
        %v5774 = vadd.f32 %v508, %v5744
        %v5775 = vadd.f32 %v509, %v5747
        %v5776 = vadd.f32 %v510, %v5752
        %v5777 = vadd.f32 %v511, %v5755
        %v5778 = vadd.f32 %v512, %v5760
        %v5779 = vadd.f32 %v513, %v5763
        %v5780 = vadd.f32 %v514, %v5768
        %v5781 = vadd.f32 %v515, %v5771
        %v5782 = vmul.f32 %v5774, %v784
        %v5783 = vmul.f32 %v5775, %v784
        %v5784 = vmul.f32 %v5776, %v784
        %v5785 = vmul.f32 %v5777, %v784
        %v5786 = vmul.f32 %v5778, %v784
        %v5787 = vmul.f32 %v5779, %v784
        %v5788 = vmul.f32 %v5780, %v784
        %v5789 = vmul.f32 %v5781, %v784
        %v5790 = vld [vmem:[%s11] sm:$0xff]
        %v5791 = vld [vmem:[%s11 + $0x8] sm:$0xff]
        %v5793 = vsel %vm1683, %v5790, 0
        %v5796 = vsel %vm1683, %v5791, 0
        %5798 = vmatprep.subr.mxu0 0.0
        %5799 = vmatpush1.msra.mxu0 %v5782
        %5800 = vmatprep.subr.mxu0 0.0
        %5801 = vmatpush1.msra.mxu0 %v5783
        %5802 = vmatprep.subr.mxu0 0.0
        %5803 = vmatpush1.msra.mxu0 %v5784
        %5804 = vmatprep.subr.mxu0 0.0
        %5805 = vmatpush1.msra.mxu0 %v5785
        %5806 = vmatprep.subr.mxu0 0.0
        %5807 = vmatpush1.msra.mxu0 %v5786
        %5808 = vmatprep.subr.mxu0 0.0
        %5809 = vmatpush1.msra.mxu0 %v5787
        %5810 = vmatprep.subr.mxu0 0.0
        %5811 = vmatpush1.msra.mxu0 %v5788
        %5812 = vmatprep.subr.mxu0 0.0
        %5813 = vmatpush1.msra.mxu0 %v5789
        %5814 = vmatprep.subr.mxu0 0.0
        %5815 = vmatpush1.msra.mxu0 0.0
        %5816 = vmatprep.subr.mxu0 0.0
        %5817 = vmatpush1.msra.mxu0 0.0
        %5818 = vmatprep.subr.mxu0 0.0
        %5819 = vmatpush1.msra.mxu0 0.0
        %5820 = vmatprep.subr.mxu0 0.0
        %5821 = vmatpush1.msra.mxu0 0.0
        %5822 = vmatprep.subr.mxu0 0.0
        %5823 = vmatpush1.msra.mxu0 0.0
        %5824 = vmatprep.subr.mxu0 0.0
        %5825 = vmatpush1.msra.mxu0 0.0
        %5826 = vmatprep.subr.mxu0 0.0
        %5827 = vmatpush1.msra.mxu0 0.0
        %5828 = vmatprep.subr.mxu0 0.0
        %5829 = vmatpush1.msra.mxu0 0.0
        %5830 = vmatprep.subr.mxu0 0.0
        %5831 = vmatpush1.msra.mxu0 0.0
        %5832 = vmatprep.subr.mxu0 0.0
        %5833 = vmatpush1.msra.mxu0 0.0
        %5834 = vmatprep.subr.mxu0 0.0
        %5835 = vmatpush1.msra.mxu0 0.0
        %5836 = vmatprep.subr.mxu0 0.0
        %5837 = vmatpush1.msra.mxu0 0.0
        %5838 = vmatprep.subr.mxu0 0.0
        %5839 = vmatpush1.msra.mxu0 0.0
        %5840 = vmatprep.subr.mxu0 0.0
        %5841 = vmatpush1.msra.mxu0 0.0
        %5842 = vmatprep.subr.mxu0 0.0
        %5843 = vmatpush1.msra.mxu0 0.0
        %5844 = vmatprep.subr.mxu0 0.0
        %5845 = vmatpush1.msra.mxu0 0.0
        %5846 = vmatprep.subr.mxu0 0.0
        %5847 = vmatpush1.msra.mxu0 0.0
        %5848 = vmatprep.subr.mxu0 0.0
        %5849 = vmatpush1.msra.mxu0 0.0
        %5850 = vmatprep.subr.mxu0 0.0
        %5851 = vmatpush1.msra.mxu0 0.0
        %5852 = vmatprep.subr.mxu0 0.0
        %5853 = vmatpush1.msra.mxu0 0.0
        %5854 = vmatprep.subr.mxu0 0.0
        %5855 = vmatpush1.msra.mxu0 0.0
        %5856 = vmatprep.subr.mxu0 0.0
        %5857 = vmatpush1.msra.mxu0 0.0
        %5858 = vmatprep.subr.mxu0 0.0
        %5859 = vmatpush1.msra.mxu0 0.0
        %5860 = vmatprep.subr.mxu0 0.0
        %5861 = vmatpush1.msra.mxu0 0.0
        %5862 = vmatprep.mubr.f32.mxu0 0.0
        %5863 = vmatmul.mubr.f32.gmra.mrb[0].mxu0 %v5793
        %v5864 = vpop.f32.mrb[0].mxu0
        %v5865 = vadd.f32 0.0, %v5864
        %v5866 = vpop.f32.mrb[0].mxu0
        %5867 = vmatprep.mubr.f32.mxu0 0.0
        %5868 = vmatmul.mubr.f32.gmra.mrb[0].mxu0 %v5796
        %v5869 = vpop.f32.mrb[0].mxu0
        %v5870 = vadd.f32 0.0, %v5869
        %v5871 = vpop.f32.mrb[0].mxu0
        %5872 = vdwg.mxu0
        %5873 = vadd.xlane.f32.xlu0 %v5865
        %v5874 = vpop.xlane.xlu0 %5873
        %5875 = vadd.xlane.f32.xlu0 %v5870
        %v5876 = vpop.xlane.xlu0 %5875
        %v5877 = vmul.f32 %v5874, 0.001953125
        %v5878 = vmul.f32 %v5876, 0.001953125
        %5879 = vxpose.xlu0.b32.start [1/16] %v5790, 128
        %5880 = vxpose.xlu0.b32.cont [2/16] %v5791, 128
        %5881 = vxpose.xlu0.b32.cont [3/16] 0.0, 128
        %5882 = vxpose.xlu0.b32.cont [4/16] 0.0, 128
        %5883 = vxpose.xlu0.b32.cont [5/16] 0.0, 128
        %5884 = vxpose.xlu0.b32.cont [6/16] 0.0, 128
        %5885 = vxpose.xlu0.b32.cont [7/16] 0.0, 128
        %5886 = vxpose.xlu0.b32.cont [8/16] 0.0, 128
        %5887 = vxpose.xlu0.b32.cont [9/16] 0.0, 128
        %5888 = vxpose.xlu0.b32.cont [10/16] 0.0, 128
        %5889 = vxpose.xlu0.b32.cont [11/16] 0.0, 128
        %5890 = vxpose.xlu0.b32.cont [12/16] 0.0, 128
        %5891 = vxpose.xlu0.b32.cont [13/16] 0.0, 128
        %5892 = vxpose.xlu0.b32.cont [14/16] 0.0, 128
        %5893 = vxpose.xlu0.b32.cont [15/16] 0.0, 128
        %5894 = vxpose.xlu0.b32.end [16/16] 0.0, 128
        %v5895 = vpop.trf.xlu0
        %v5896 = vpop.trf.xlu0
        %v5897 = vpop.trf.xlu0
        %v5898 = vpop.trf.xlu0
        %v5899 = vpop.trf.xlu0
        %v5900 = vpop.trf.xlu0
        %v5901 = vpop.trf.xlu0
        %v5902 = vpop.trf.xlu0
        %v5903 = vpop.trf.xlu0
        %v5904 = vpop.trf.xlu0
        %v5905 = vpop.trf.xlu0
        %v5906 = vpop.trf.xlu0
        %v5907 = vpop.trf.xlu0
        %v5908 = vpop.trf.xlu0
        %v5909 = vpop.trf.xlu0
        %v5910 = vpop.trf.xlu0
        %vm5911 = vcmask 130048
        %v5913 = vsel %vm5911, %v5895, 0
        %v5916 = vsel %vm5911, %v5896, 0
        %v5919 = vsel %vm5911, %v5897, 0
        %v5922 = vsel %vm5911, %v5898, 0
        %v5925 = vsel %vm5911, %v5899, 0
        %v5928 = vsel %vm5911, %v5900, 0
        %v5931 = vsel %vm5911, %v5901, 0
        %v5934 = vsel %vm5911, %v5902, 0
        %5936 = vmatprep.subr.mxu0 0.0
        %5937 = vmatpush1.msra.mxu0 %v5877
        %5938 = vmatprep.subr.mxu0 0.0
        %5939 = vmatpush1.msra.mxu0 %v5878
        %5940 = vmatprep.subr.mxu0 0.0
        %5941 = vmatpush1.msra.mxu0 0.0
        %5942 = vmatprep.subr.mxu0 0.0
        %5943 = vmatpush1.msra.mxu0 0.0
        %5944 = vmatprep.subr.mxu0 0.0
        %5945 = vmatpush1.msra.mxu0 0.0
        %5946 = vmatprep.subr.mxu0 0.0
        %5947 = vmatpush1.msra.mxu0 0.0
        %5948 = vmatprep.subr.mxu0 0.0
        %5949 = vmatpush1.msra.mxu0 0.0
        %5950 = vmatprep.subr.mxu0 0.0
        %5951 = vmatpush1.msra.mxu0 0.0
        %5952 = vmatprep.subr.mxu0 0.0
        %5953 = vmatpush1.msra.mxu0 0.0
        %5954 = vmatprep.subr.mxu0 0.0
        %5955 = vmatpush1.msra.mxu0 0.0
        %5956 = vmatprep.subr.mxu0 0.0
        %5957 = vmatpush1.msra.mxu0 0.0
        %5958 = vmatprep.subr.mxu0 0.0
        %5959 = vmatpush1.msra.mxu0 0.0
        %5960 = vmatprep.subr.mxu0 0.0
        %5961 = vmatpush1.msra.mxu0 0.0
        %5962 = vmatprep.subr.mxu0 0.0
        %5963 = vmatpush1.msra.mxu0 0.0
        %5964 = vmatprep.subr.mxu0 0.0
        %5965 = vmatpush1.msra.mxu0 0.0
        %5966 = vmatprep.subr.mxu0 0.0
        %5967 = vmatpush1.msra.mxu0 0.0
        %5968 = vmatprep.subr.mxu0 0.0
        %5969 = vmatpush1.msra.mxu0 0.0
        %5970 = vmatprep.subr.mxu0 0.0
        %5971 = vmatpush1.msra.mxu0 0.0
        %5972 = vmatprep.subr.mxu0 0.0
        %5973 = vmatpush1.msra.mxu0 0.0
        %5974 = vmatprep.subr.mxu0 0.0
        %5975 = vmatpush1.msra.mxu0 0.0
        %5976 = vmatprep.subr.mxu0 0.0
        %5977 = vmatpush1.msra.mxu0 0.0
        %5978 = vmatprep.subr.mxu0 0.0
        %5979 = vmatpush1.msra.mxu0 0.0
        %5980 = vmatprep.subr.mxu0 0.0
        %5981 = vmatpush1.msra.mxu0 0.0
        %5982 = vmatprep.subr.mxu0 0.0
        %5983 = vmatpush1.msra.mxu0 0.0
        %5984 = vmatprep.subr.mxu0 0.0
        %5985 = vmatpush1.msra.mxu0 0.0
        %5986 = vmatprep.subr.mxu0 0.0
        %5987 = vmatpush1.msra.mxu0 0.0
        %5988 = vmatprep.subr.mxu0 0.0
        %5989 = vmatpush1.msra.mxu0 0.0
        %5990 = vmatprep.subr.mxu0 0.0
        %5991 = vmatpush1.msra.mxu0 0.0
        %5992 = vmatprep.subr.mxu0 0.0
        %5993 = vmatpush1.msra.mxu0 0.0
        %5994 = vmatprep.subr.mxu0 0.0
        %5995 = vmatpush1.msra.mxu0 0.0
        %5996 = vmatprep.subr.mxu0 0.0
        %5997 = vmatpush1.msra.mxu0 0.0
        %5998 = vmatprep.subr.mxu0 0.0
        %5999 = vmatpush1.msra.mxu0 0.0
        %6000 = vmatprep.mubr.f32.mxu0 0.0
        %6001 = vmatmul.mubr.f32.gmra.mrb[0].mxu0 %v5913
        %v6002 = vpop.f32.mrb[0].mxu0
        %v6003 = vadd.f32 0.0, %v6002
        %v6004 = vpop.f32.mrb[0].mxu0
        %6005 = vmatprep.mubr.f32.mxu0 0.0
        %6006 = vmatmul.mubr.f32.gmra.mrb[0].mxu0 %v5916
        %v6007 = vpop.f32.mrb[0].mxu0
        %v6008 = vadd.f32 0.0, %v6007
        %v6009 = vpop.f32.mrb[0].mxu0
        %6010 = vmatprep.mubr.f32.mxu0 0.0
        %6011 = vmatmul.mubr.f32.gmra.mrb[0].mxu0 %v5919
        %v6012 = vpop.f32.mrb[0].mxu0
        %v6013 = vadd.f32 0.0, %v6012
        %v6014 = vpop.f32.mrb[0].mxu0
        %6015 = vmatprep.mubr.f32.mxu0 0.0
        %6016 = vmatmul.mubr.f32.gmra.mrb[0].mxu0 %v5922
        %v6017 = vpop.f32.mrb[0].mxu0
        %v6018 = vadd.f32 0.0, %v6017
        %v6019 = vpop.f32.mrb[0].mxu0
        %6020 = vmatprep.mubr.f32.mxu0 0.0
        %6021 = vmatmul.mubr.f32.gmra.mrb[0].mxu0 %v5925
        %v6022 = vpop.f32.mrb[0].mxu0
        %v6023 = vadd.f32 0.0, %v6022
        %v6024 = vpop.f32.mrb[0].mxu0
        %6025 = vmatprep.mubr.f32.mxu0 0.0
        %6026 = vmatmul.mubr.f32.gmra.mrb[0].mxu0 %v5928
        %v6027 = vpop.f32.mrb[0].mxu0
        %v6028 = vadd.f32 0.0, %v6027
        %v6029 = vpop.f32.mrb[0].mxu0
        %6030 = vmatprep.mubr.f32.mxu0 0.0
        %6031 = vmatmul.mubr.f32.gmra.mrb[0].mxu0 %v5931
        %v6032 = vpop.f32.mrb[0].mxu0
        %v6033 = vadd.f32 0.0, %v6032
        %v6034 = vpop.f32.mrb[0].mxu0
        %6035 = vmatprep.mubr.f32.mxu0 0.0
        %6036 = vmatmul.mubr.f32.gmra.mrb[0].mxu0 %v5934
        %v6037 = vpop.f32.mrb[0].mxu0
        %v6038 = vadd.f32 0.0, %v6037
        %v6039 = vpop.f32.mrb[0].mxu0
        %6040 = vdwg.mxu0
        %6042 = vset.pattern.permute.xlu0 0
        %6043 = vperm.xlu0 %6042, %v6003
        %v6044 = vpop.permute.xlu0 %6043
        %6047 = vset.pattern.permute.xlu0 0
        %6048 = vperm.xlu0 %6047, %v6008
        %v6049 = vpop.permute.xlu0 %6048
        %6052 = vset.pattern.permute.xlu0 0
        %6053 = vperm.xlu0 %6052, %v6013
        %v6054 = vpop.permute.xlu0 %6053
        %6057 = vset.pattern.permute.xlu0 0
        %6058 = vperm.xlu0 %6057, %v6018
        %v6059 = vpop.permute.xlu0 %6058
        %6062 = vset.pattern.permute.xlu0 0
        %6063 = vperm.xlu0 %6062, %v6023
        %v6064 = vpop.permute.xlu0 %6063
        %6067 = vset.pattern.permute.xlu0 0
        %6068 = vperm.xlu0 %6067, %v6028
        %v6069 = vpop.permute.xlu0 %6068
        %6072 = vset.pattern.permute.xlu0 0
        %6073 = vperm.xlu0 %6072, %v6033
        %v6074 = vpop.permute.xlu0 %6073
        %6077 = vset.pattern.permute.xlu0 0
        %6078 = vperm.xlu0 %6077, %v6038
        %v6079 = vpop.permute.xlu0 %6078
        %v6081 = vsub.f32 %v5782, %v6044
        %v6082 = vsub.f32 %v5783, %v6049
        %v6083 = vsub.f32 %v5784, %v6054
        %v6084 = vsub.f32 %v5785, %v6059
        %v6085 = vsub.f32 %v5786, %v6064
        %v6086 = vsub.f32 %v5787, %v6069
        %v6087 = vsub.f32 %v5788, %v6074
        %v6088 = vsub.f32 %v5789, %v6079
        %v6089 = vmul.f32 %v6081, %v6081
        %v6090 = vmul.f32 %v6082, %v6082
        %v6091 = vmul.f32 %v6083, %v6083
        %v6092 = vmul.f32 %v6084, %v6084
        %v6093 = vmul.f32 %v6085, %v6085
        %v6094 = vmul.f32 %v6086, %v6086
        %v6095 = vmul.f32 %v6087, %v6087
        %v6096 = vmul.f32 %v6088, %v6088
        %6097 = vmatprep.subr.mxu0 0.0
        %6098 = vmatpush1.msra.mxu0 %v6089
        %6099 = vmatprep.subr.mxu0 0.0
        %6100 = vmatpush1.msra.mxu0 %v6090
        %6101 = vmatprep.subr.mxu0 0.0
        %6102 = vmatpush1.msra.mxu0 %v6091
        %6103 = vmatprep.subr.mxu0 0.0
        %6104 = vmatpush1.msra.mxu0 %v6092
        %6105 = vmatprep.subr.mxu0 0.0
        %6106 = vmatpush1.msra.mxu0 %v6093
        %6107 = vmatprep.subr.mxu0 0.0
        %6108 = vmatpush1.msra.mxu0 %v6094
        %6109 = vmatprep.subr.mxu0 0.0
        %6110 = vmatpush1.msra.mxu0 %v6095
        %6111 = vmatprep.subr.mxu0 0.0
        %6112 = vmatpush1.msra.mxu0 %v6096
        %6113 = vmatprep.subr.mxu0 0.0
        %6114 = vmatpush1.msra.mxu0 0.0
        %6115 = vmatprep.subr.mxu0 0.0
        %6116 = vmatpush1.msra.mxu0 0.0
        %6117 = vmatprep.subr.mxu0 0.0
        %6118 = vmatpush1.msra.mxu0 0.0
        %6119 = vmatprep.subr.mxu0 0.0
        %6120 = vmatpush1.msra.mxu0 0.0
        %6121 = vmatprep.subr.mxu0 0.0
        %6122 = vmatpush1.msra.mxu0 0.0
        %6123 = vmatprep.subr.mxu0 0.0
        %6124 = vmatpush1.msra.mxu0 0.0
        %6125 = vmatprep.subr.mxu0 0.0
        %6126 = vmatpush1.msra.mxu0 0.0
        %6127 = vmatprep.subr.mxu0 0.0
        %6128 = vmatpush1.msra.mxu0 0.0
        %6129 = vmatprep.subr.mxu0 0.0
        %6130 = vmatpush1.msra.mxu0 0.0
        %6131 = vmatprep.subr.mxu0 0.0
        %6132 = vmatpush1.msra.mxu0 0.0
        %6133 = vmatprep.subr.mxu0 0.0
        %6134 = vmatpush1.msra.mxu0 0.0
        %6135 = vmatprep.subr.mxu0 0.0
        %6136 = vmatpush1.msra.mxu0 0.0
        %6137 = vmatprep.subr.mxu0 0.0
        %6138 = vmatpush1.msra.mxu0 0.0
        %6139 = vmatprep.subr.mxu0 0.0
        %6140 = vmatpush1.msra.mxu0 0.0
        %6141 = vmatprep.subr.mxu0 0.0
        %6142 = vmatpush1.msra.mxu0 0.0
        %6143 = vmatprep.subr.mxu0 0.0
        %6144 = vmatpush1.msra.mxu0 0.0
        %6145 = vmatprep.subr.mxu0 0.0
        %6146 = vmatpush1.msra.mxu0 0.0
        %6147 = vmatprep.subr.mxu0 0.0
        %6148 = vmatpush1.msra.mxu0 0.0
        %6149 = vmatprep.subr.mxu0 0.0
        %6150 = vmatpush1.msra.mxu0 0.0
        %6151 = vmatprep.subr.mxu0 0.0
        %6152 = vmatpush1.msra.mxu0 0.0
        %6153 = vmatprep.subr.mxu0 0.0
        %6154 = vmatpush1.msra.mxu0 0.0
        %6155 = vmatprep.subr.mxu0 0.0
        %6156 = vmatpush1.msra.mxu0 0.0
        %6157 = vmatprep.subr.mxu0 0.0
        %6158 = vmatpush1.msra.mxu0 0.0
        %6159 = vmatprep.subr.mxu0 0.0
        %6160 = vmatpush1.msra.mxu0 0.0
        %6161 = vmatprep.mubr.f32.mxu0 0.0
        %6162 = vmatmul.mubr.f32.gmra.mrb[0].mxu0 %v5793
        %v6163 = vpop.f32.mrb[0].mxu0
        %v6164 = vadd.f32 0.0, %v6163
        %v6165 = vpop.f32.mrb[0].mxu0
        %6166 = vmatprep.mubr.f32.mxu0 0.0
        %6167 = vmatmul.mubr.f32.gmra.mrb[0].mxu0 %v5796
        %v6168 = vpop.f32.mrb[0].mxu0
        %v6169 = vadd.f32 0.0, %v6168
        %v6170 = vpop.f32.mrb[0].mxu0
        %6171 = vdwg.mxu0
        %6172 = vadd.xlane.f32.xlu0 %v6164
        %v6173 = vpop.xlane.xlu0 %6172
        %6174 = vadd.xlane.f32.xlu0 %v6169
        %v6175 = vpop.xlane.xlu0 %6174
        %v6176 = vmul.f32 %v6173, 0.001953125
        %v6177 = vmul.f32 %v6175, 0.001953125
        %6178 = vmatprep.subr.mxu0 0.0
        %6179 = vmatpush1.msra.mxu0 %v6176
        %6180 = vmatprep.subr.mxu0 0.0
        %6181 = vmatpush1.msra.mxu0 %v6177
        %6182 = vmatprep.subr.mxu0 0.0
        %6183 = vmatpush1.msra.mxu0 0.0
        %6184 = vmatprep.subr.mxu0 0.0
        %6185 = vmatpush1.msra.mxu0 0.0
        %6186 = vmatprep.subr.mxu0 0.0
        %6187 = vmatpush1.msra.mxu0 0.0
        %6188 = vmatprep.subr.mxu0 0.0
        %6189 = vmatpush1.msra.mxu0 0.0
        %6190 = vmatprep.subr.mxu0 0.0
        %6191 = vmatpush1.msra.mxu0 0.0
        %6192 = vmatprep.subr.mxu0 0.0
        %6193 = vmatpush1.msra.mxu0 0.0
        %6194 = vmatprep.subr.mxu0 0.0
        %6195 = vmatpush1.msra.mxu0 0.0
        %6196 = vmatprep.subr.mxu0 0.0
        %6197 = vmatpush1.msra.mxu0 0.0
        %6198 = vmatprep.subr.mxu0 0.0
        %6199 = vmatpush1.msra.mxu0 0.0
        %6200 = vmatprep.subr.mxu0 0.0
        %6201 = vmatpush1.msra.mxu0 0.0
        %6202 = vmatprep.subr.mxu0 0.0
        %6203 = vmatpush1.msra.mxu0 0.0
        %6204 = vmatprep.subr.mxu0 0.0
        %6205 = vmatpush1.msra.mxu0 0.0
        %6206 = vmatprep.subr.mxu0 0.0
        %6207 = vmatpush1.msra.mxu0 0.0
        %6208 = vmatprep.subr.mxu0 0.0
        %6209 = vmatpush1.msra.mxu0 0.0
        %6210 = vmatprep.subr.mxu0 0.0
        %6211 = vmatpush1.msra.mxu0 0.0
        %6212 = vmatprep.subr.mxu0 0.0
        %6213 = vmatpush1.msra.mxu0 0.0
        %6214 = vmatprep.subr.mxu0 0.0
        %6215 = vmatpush1.msra.mxu0 0.0
        %6216 = vmatprep.subr.mxu0 0.0
        %6217 = vmatpush1.msra.mxu0 0.0
        %6218 = vmatprep.subr.mxu0 0.0
        %6219 = vmatpush1.msra.mxu0 0.0
        %6220 = vmatprep.subr.mxu0 0.0
        %6221 = vmatpush1.msra.mxu0 0.0
        %6222 = vmatprep.subr.mxu0 0.0
        %6223 = vmatpush1.msra.mxu0 0.0
        %6224 = vmatprep.subr.mxu0 0.0
        %6225 = vmatpush1.msra.mxu0 0.0
        %6226 = vmatprep.subr.mxu0 0.0
        %6227 = vmatpush1.msra.mxu0 0.0
        %6228 = vmatprep.subr.mxu0 0.0
        %6229 = vmatpush1.msra.mxu0 0.0
        %6230 = vmatprep.subr.mxu0 0.0
        %6231 = vmatpush1.msra.mxu0 0.0
        %6232 = vmatprep.subr.mxu0 0.0
        %6233 = vmatpush1.msra.mxu0 0.0
        %6234 = vmatprep.subr.mxu0 0.0
        %6235 = vmatpush1.msra.mxu0 0.0
        %6236 = vmatprep.subr.mxu0 0.0
        %6237 = vmatpush1.msra.mxu0 0.0
        %6238 = vmatprep.subr.mxu0 0.0
        %6239 = vmatpush1.msra.mxu0 0.0
        %6240 = vmatprep.subr.mxu0 0.0
        %6241 = vmatpush1.msra.mxu0 0.0
        %6242 = vmatprep.mubr.f32.mxu0 0.0
        %6243 = vmatmul.mubr.f32.gmra.mrb[0].mxu0 %v5913
        %v6244 = vpop.f32.mrb[0].mxu0
        %v6245 = vadd.f32 1e-05, %v6244
        %v6246 = vpop.f32.mrb[0].mxu0
        %6247 = vmatprep.mubr.f32.mxu0 0.0
        %6248 = vmatmul.mubr.f32.gmra.mrb[0].mxu0 %v5916
        %v6249 = vpop.f32.mrb[0].mxu0
        %v6250 = vadd.f32 1e-05, %v6249
        %v6251 = vpop.f32.mrb[0].mxu0
        %6252 = vmatprep.mubr.f32.mxu0 0.0
        %6253 = vmatmul.mubr.f32.gmra.mrb[0].mxu0 %v5919
        %v6254 = vpop.f32.mrb[0].mxu0
        %v6255 = vadd.f32 1e-05, %v6254
        %v6256 = vpop.f32.mrb[0].mxu0
        %6257 = vmatprep.mubr.f32.mxu0 0.0
        %6258 = vmatmul.mubr.f32.gmra.mrb[0].mxu0 %v5922
        %v6259 = vpop.f32.mrb[0].mxu0
        %v6260 = vadd.f32 1e-05, %v6259
        %v6261 = vpop.f32.mrb[0].mxu0
        %6262 = vmatprep.mubr.f32.mxu0 0.0
        %6263 = vmatmul.mubr.f32.gmra.mrb[0].mxu0 %v5925
        %v6264 = vpop.f32.mrb[0].mxu0
        %v6265 = vadd.f32 1e-05, %v6264
        %v6266 = vpop.f32.mrb[0].mxu0
        %6267 = vmatprep.mubr.f32.mxu0 0.0
        %6268 = vmatmul.mubr.f32.gmra.mrb[0].mxu0 %v5928
        %v6269 = vpop.f32.mrb[0].mxu0
        %v6270 = vadd.f32 1e-05, %v6269
        %v6271 = vpop.f32.mrb[0].mxu0
        %6272 = vmatprep.mubr.f32.mxu0 0.0
        %6273 = vmatmul.mubr.f32.gmra.mrb[0].mxu0 %v5931
        %v6274 = vpop.f32.mrb[0].mxu0
        %v6275 = vadd.f32 1e-05, %v6274
        %v6276 = vpop.f32.mrb[0].mxu0
        %6277 = vmatprep.mubr.f32.mxu0 0.0
        %6278 = vmatmul.mubr.f32.gmra.mrb[0].mxu0 %v5934
        %v6279 = vpop.f32.mrb[0].mxu0
        %v6280 = vadd.f32 1e-05, %v6279
        %v6281 = vpop.f32.mrb[0].mxu0
        %6282 = vdwg.mxu0
        %v6283 = vrsqrt.pop %v6245
        %v6284 = vrsqrt.pop %v6250
        %v6285 = vrsqrt.pop %v6255
        %v6286 = vrsqrt.pop %v6260
        %v6287 = vrsqrt.pop %v6265
        %v6288 = vrsqrt.pop %v6270
        %v6289 = vrsqrt.pop %v6275
        %v6290 = vrsqrt.pop %v6280
        %6292 = vset.pattern.permute.xlu0 0
        %6293 = vperm.xlu0 %6292, %v6283
        %v6294 = vpop.permute.xlu0 %6293
        %6297 = vset.pattern.permute.xlu0 0
        %6298 = vperm.xlu0 %6297, %v6284
        %v6299 = vpop.permute.xlu0 %6298
        %6302 = vset.pattern.permute.xlu0 0
        %6303 = vperm.xlu0 %6302, %v6285
        %v6304 = vpop.permute.xlu0 %6303
        %6307 = vset.pattern.permute.xlu0 0
        %6308 = vperm.xlu0 %6307, %v6286
        %v6309 = vpop.permute.xlu0 %6308
        %6312 = vset.pattern.permute.xlu0 0
        %6313 = vperm.xlu0 %6312, %v6287
        %v6314 = vpop.permute.xlu0 %6313
        %6317 = vset.pattern.permute.xlu0 0
        %6318 = vperm.xlu0 %6317, %v6288
        %v6319 = vpop.permute.xlu0 %6318
        %6322 = vset.pattern.permute.xlu0 0
        %6323 = vperm.xlu0 %6322, %v6289
        %v6324 = vpop.permute.xlu0 %6323
        %6327 = vset.pattern.permute.xlu0 0
        %6328 = vperm.xlu0 %6327, %v6290
        %v6329 = vpop.permute.xlu0 %6328
        %v6331 = vmul.f32 %v6081, %v6294
        %v6332 = vmul.f32 %v6082, %v6299
        %v6333 = vmul.f32 %v6083, %v6304
        %v6334 = vmul.f32 %v6084, %v6309
        %v6335 = vmul.f32 %v6085, %v6314
        %v6336 = vmul.f32 %v6086, %v6319
        %v6337 = vmul.f32 %v6087, %v6324
        %v6338 = vmul.f32 %v6088, %v6329
        %6339 = vset.pattern.permute.xlu0 5
        %6340 = vperm.xlu0 %6339, %v517
        %v6341 = vpop.permute.xlu0 %6340
        %6343 = vset.pattern.permute.xlu0 5
        %6344 = vperm.xlu0 %6343, %v518
        %v6345 = vpop.permute.xlu0 %6344
        %6347 = vset.pattern.permute.xlu0 5
        %6348 = vperm.xlu0 %6347, %v519
        %v6349 = vpop.permute.xlu0 %6348
        %6351 = vset.pattern.permute.xlu0 5
        %6352 = vperm.xlu0 %6351, %v520
        %v6353 = vpop.permute.xlu0 %6352
        %6355 = vset.pattern.permute.xlu0 5
        %6356 = vperm.xlu0 %6355, %v521
        %v6357 = vpop.permute.xlu0 %6356
        %6359 = vset.pattern.permute.xlu0 5
        %6360 = vperm.xlu0 %6359, %v522
        %v6361 = vpop.permute.xlu0 %6360
        %6363 = vset.pattern.permute.xlu0 5
        %6364 = vperm.xlu0 %6363, %v523
        %v6365 = vpop.permute.xlu0 %6364
        %6367 = vset.pattern.permute.xlu0 5
        %6368 = vperm.xlu0 %6367, %v524
        %v6369 = vpop.permute.xlu0 %6368
        %v6371 = vmul.f32 %v6331, %v6341
        %v6372 = vmul.f32 %v6332, %v6345
        %v6373 = vmul.f32 %v6333, %v6349
        %v6374 = vmul.f32 %v6334, %v6353
        %v6375 = vmul.f32 %v6335, %v6357
        %v6376 = vmul.f32 %v6336, %v6361
        %v6377 = vmul.f32 %v6337, %v6365
        %v6378 = vmul.f32 %v6338, %v6369
        %6379 = vset.pattern.permute.xlu0 6
        %6380 = vperm.xlu0 %6379, %v517
        %v6381 = vpop.permute.xlu0 %6380
        %6383 = vset.pattern.permute.xlu0 6
        %6384 = vperm.xlu0 %6383, %v518
        %v6385 = vpop.permute.xlu0 %6384
        %6387 = vset.pattern.permute.xlu0 6
        %6388 = vperm.xlu0 %6387, %v519
        %v6389 = vpop.permute.xlu0 %6388
        %6391 = vset.pattern.permute.xlu0 6
        %6392 = vperm.xlu0 %6391, %v520
        %v6393 = vpop.permute.xlu0 %6392
        %6395 = vset.pattern.permute.xlu0 6
        %6396 = vperm.xlu0 %6395, %v521
        %v6397 = vpop.permute.xlu0 %6396
        %6399 = vset.pattern.permute.xlu0 6
        %6400 = vperm.xlu0 %6399, %v522
        %v6401 = vpop.permute.xlu0 %6400
        %6403 = vset.pattern.permute.xlu0 6
        %6404 = vperm.xlu0 %6403, %v523
        %v6405 = vpop.permute.xlu0 %6404
        %6407 = vset.pattern.permute.xlu0 6
        %6408 = vperm.xlu0 %6407, %v524
        %v6409 = vpop.permute.xlu0 %6408
        %v6411 = vadd.f32 %v6371, %v6381
        %v6412 = vadd.f32 %v6372, %v6385
        %v6413 = vadd.f32 %v6373, %v6389
        %v6414 = vadd.f32 %v6374, %v6393
        %v6415 = vadd.f32 %v6375, %v6397
        %v6416 = vadd.f32 %v6376, %v6401
        %v6417 = vadd.f32 %v6377, %v6405
        %v6418 = vadd.f32 %v6378, %v6409
        %v6419 = vld [vmem:[%s12] sm:$0xf]
        %v6420 = vld [vmem:[%s12 + $0x4] sm:$0xf]
        %v6421 = vld [vmem:[%s12 + $0x8] sm:$0xf]
        %v6422 = vld [vmem:[%s12 + $0xc] sm:$0xf]
        %v6423 = vld [vmem:[%s12 + $0x10] sm:$0xf]
        %v6424 = vld [vmem:[%s12 + $0x14] sm:$0xf]
        %v6425 = vld [vmem:[%s12 + $0x18] sm:$0xf]
        %v6426 = vld [vmem:[%s12 + $0x1c] sm:$0xf]
        %v6427 = vld [vmem:[%s12 + $0x20] sm:$0xf]
        %v6428 = vld [vmem:[%s12 + $0x24] sm:$0xf]
        %v6429 = vld [vmem:[%s12 + $0x28] sm:$0xf]
        %v6430 = vld [vmem:[%s12 + $0x2c] sm:$0xf]
        %v6431 = vld [vmem:[%s12 + $0x30] sm:$0xf]
        %v6432 = vld [vmem:[%s12 + $0x34] sm:$0xf]
        %v6433 = vld [vmem:[%s12 + $0x38] sm:$0xf]
        %v6434 = vld [vmem:[%s12 + $0x3c] sm:$0xf]
        %v6435 = vpack.c.bf16 %v6412, %v6411
        %v6436 = vpack.c.bf16 %v6414, %v6413
        %v6437 = vpack.c.bf16 %v6416, %v6415
        %v6438 = vpack.c.bf16 %v6418, %v6417
        %v6439 = vld [vmem:[%s13] sm:$0xff]
        %v6440 = vld [vmem:[%s13 + $0x8] sm:$0xff]
        %v6441 = vld [vmem:[%s13 + $0x10] sm:$0xff]
        %v6442 = vld [vmem:[%s13 + $0x18] sm:$0xff]
        %v6443 = vld [vmem:[%s13 + $0x20] sm:$0xff]
        %v6444 = vld [vmem:[%s13 + $0x28] sm:$0xff]
        %v6445 = vld [vmem:[%s13 + $0x30] sm:$0xff]
        %v6446 = vld [vmem:[%s13 + $0x38] sm:$0xff]
        %v6447 = vld [vmem:[%s13 + $0x40] sm:$0xff]
        %v6448 = vld [vmem:[%s13 + $0x48] sm:$0xff]
        %v6449 = vld [vmem:[%s13 + $0x50] sm:$0xff]
        %v6450 = vld [vmem:[%s13 + $0x58] sm:$0xff]
        %v6451 = vld [vmem:[%s13 + $0x60] sm:$0xff]
        %v6452 = vld [vmem:[%s13 + $0x68] sm:$0xff]
        %v6453 = vld [vmem:[%s13 + $0x70] sm:$0xff]
        %v6454 = vld [vmem:[%s13 + $0x78] sm:$0xff]
        %6456 = vset.pattern.permute.xlu0 0
        %6457 = vperm.xlu0 %6456, %v6439
        %v6458 = vpop.permute.xlu0 %6457
        %6461 = vset.pattern.permute.xlu0 0
        %6462 = vperm.xlu0 %6461, %v6440
        %v6463 = vpop.permute.xlu0 %6462
        %6466 = vset.pattern.permute.xlu0 0
        %6467 = vperm.xlu0 %6466, %v6441
        %v6468 = vpop.permute.xlu0 %6467
        %6471 = vset.pattern.permute.xlu0 0
        %6472 = vperm.xlu0 %6471, %v6442
        %v6473 = vpop.permute.xlu0 %6472
        %6476 = vset.pattern.permute.xlu0 0
        %6477 = vperm.xlu0 %6476, %v6443
        %v6478 = vpop.permute.xlu0 %6477
        %6481 = vset.pattern.permute.xlu0 0
        %6482 = vperm.xlu0 %6481, %v6444
        %v6483 = vpop.permute.xlu0 %6482
        %6486 = vset.pattern.permute.xlu0 0
        %6487 = vperm.xlu0 %6486, %v6445
        %v6488 = vpop.permute.xlu0 %6487
        %6491 = vset.pattern.permute.xlu0 0
        %6492 = vperm.xlu0 %6491, %v6446
        %v6493 = vpop.permute.xlu0 %6492
        %6496 = vset.pattern.permute.xlu0 0
        %6497 = vperm.xlu0 %6496, %v6447
        %v6498 = vpop.permute.xlu0 %6497
        %6501 = vset.pattern.permute.xlu0 0
        %6502 = vperm.xlu0 %6501, %v6448
        %v6503 = vpop.permute.xlu0 %6502
        %6506 = vset.pattern.permute.xlu0 0
        %6507 = vperm.xlu0 %6506, %v6449
        %v6508 = vpop.permute.xlu0 %6507
        %6511 = vset.pattern.permute.xlu0 0
        %6512 = vperm.xlu0 %6511, %v6450
        %v6513 = vpop.permute.xlu0 %6512
        %6516 = vset.pattern.permute.xlu0 0
        %6517 = vperm.xlu0 %6516, %v6451
        %v6518 = vpop.permute.xlu0 %6517
        %6521 = vset.pattern.permute.xlu0 0
        %6522 = vperm.xlu0 %6521, %v6452
        %v6523 = vpop.permute.xlu0 %6522
        %6526 = vset.pattern.permute.xlu0 0
        %6527 = vperm.xlu0 %6526, %v6453
        %v6528 = vpop.permute.xlu0 %6527
        %6531 = vset.pattern.permute.xlu0 0
        %6532 = vperm.xlu0 %6531, %v6454
        %v6533 = vpop.permute.xlu0 %6532
        %v6551 = vunpack.c.l.b16 %v6419
        %v6552 = vunpack.c.l.b16 %v6420
        %v6553 = vunpack.c.l.b16 %v6421
        %v6554 = vunpack.c.l.b16 %v6422
        %v6555 = vunpack.c.l.b16 %v6423
        %v6556 = vunpack.c.l.b16 %v6424
        %v6557 = vunpack.c.l.b16 %v6425
        %v6558 = vunpack.c.l.b16 %v6426
        %v6559 = vunpack.c.l.b16 %v6427
        %v6560 = vunpack.c.l.b16 %v6428
        %v6561 = vunpack.c.l.b16 %v6429
        %v6562 = vunpack.c.l.b16 %v6430
        %v6563 = vunpack.c.l.b16 %v6431
        %v6564 = vunpack.c.l.b16 %v6432
        %v6565 = vunpack.c.l.b16 %v6433
        %v6566 = vunpack.c.l.b16 %v6434
        %v6567 = vpack.c.b16 %v6552, %v6551
        %v6568 = vpack.c.b16 %v6554, %v6553
        %v6569 = vpack.c.b16 %v6556, %v6555
        %v6570 = vpack.c.b16 %v6558, %v6557
        %v6571 = vpack.c.b16 %v6560, %v6559
        %v6572 = vpack.c.b16 %v6562, %v6561
        %v6573 = vpack.c.b16 %v6564, %v6563
        %v6574 = vpack.c.b16 %v6566, %v6565
        %v6576 = vsel %vm1683, %v6567, 0
        %v6579 = vsel %vm1683, %v6568, 0
        %v6582 = vsel %vm1683, %v6569, 0
        %v6585 = vsel %vm1683, %v6570, 0
        %v6588 = vsel %vm1683, %v6571, 0
        %v6591 = vsel %vm1683, %v6572, 0
        %v6594 = vsel %vm1683, %v6573, 0
        %v6597 = vsel %vm1683, %v6574, 0
        %6599 = vmatprep.subr.bf16.mxu0 0
        %6600 = vmatpush1.bf16.msra.mxu0 %v6435
        %6601 = vmatprep.subr.bf16.mxu0 0
        %6602 = vmatpush1.bf16.msra.mxu0 %v6436
        %6603 = vmatprep.subr.bf16.mxu0 0
        %6604 = vmatpush1.bf16.msra.mxu0 %v6437
        %6605 = vmatprep.subr.bf16.mxu0 0
        %6606 = vmatpush1.bf16.msra.mxu0 %v6438
        %6607 = vmatprep.subr.bf16.mxu0 0
        %6608 = vmatpush1.bf16.msra.mxu0 0
        %6609 = vmatprep.subr.bf16.mxu0 0
        %6610 = vmatpush1.bf16.msra.mxu0 0
        %6611 = vmatprep.subr.bf16.mxu0 0
        %6612 = vmatpush1.bf16.msra.mxu0 0
        %6613 = vmatprep.subr.bf16.mxu0 0
        %6614 = vmatpush1.bf16.msra.mxu0 0
        %6615 = vmatprep.subr.bf16.mxu0 0
        %6616 = vmatpush1.bf16.msra.mxu0 0
        %6617 = vmatprep.subr.bf16.mxu0 0
        %6618 = vmatpush1.bf16.msra.mxu0 0
        %6619 = vmatprep.subr.bf16.mxu0 0
        %6620 = vmatpush1.bf16.msra.mxu0 0
        %6621 = vmatprep.subr.bf16.mxu0 0
        %6622 = vmatpush1.bf16.msra.mxu0 0
        %6623 = vmatprep.subr.bf16.mxu0 0
        %6624 = vmatpush1.bf16.msra.mxu0 0
        %6625 = vmatprep.subr.bf16.mxu0 0
        %6626 = vmatpush1.bf16.msra.mxu0 0
        %6627 = vmatprep.subr.bf16.mxu0 0
        %6628 = vmatpush1.bf16.msra.mxu0 0
        %6629 = vmatprep.subr.bf16.mxu0 0
        %6630 = vmatpush1.bf16.msra.mxu0 0
        %6631 = vmatprep.mubr.bf16.mxu0 0
        %6632 = vmatmul.mubr.bf16.gmra.mrb[0].mxu0 %v6576
        %v6633 = vpop.f32.mrb[0].mxu0
        %v6634 = vadd.f32 %v6458, %v6633
        %v6635 = vpop.f32.mrb[0].mxu0
        %v6636 = vpop.f32.mrb[0].mxu0
        %v6637 = vadd.f32 %v6463, %v6636
        %v6638 = vpop.f32.mrb[0].mxu0
        %6639 = vmatprep.mubr.bf16.mxu0 0
        %6640 = vmatmul.mubr.bf16.gmra.mrb[0].mxu0 %v6579
        %v6641 = vpop.f32.mrb[0].mxu0
        %v6642 = vadd.f32 %v6468, %v6641
        %v6643 = vpop.f32.mrb[0].mxu0
        %v6644 = vpop.f32.mrb[0].mxu0
        %v6645 = vadd.f32 %v6473, %v6644
        %v6646 = vpop.f32.mrb[0].mxu0
        %6647 = vmatprep.mubr.bf16.mxu0 0
        %6648 = vmatmul.mubr.bf16.gmra.mrb[0].mxu0 %v6582
        %v6649 = vpop.f32.mrb[0].mxu0
        %v6650 = vadd.f32 %v6478, %v6649
        %v6651 = vpop.f32.mrb[0].mxu0
        %v6652 = vpop.f32.mrb[0].mxu0
        %v6653 = vadd.f32 %v6483, %v6652
        %v6654 = vpop.f32.mrb[0].mxu0
        %6655 = vmatprep.mubr.bf16.mxu0 0
        %6656 = vmatmul.mubr.bf16.gmra.mrb[0].mxu0 %v6585
        %v6657 = vpop.f32.mrb[0].mxu0
        %v6658 = vadd.f32 %v6488, %v6657
        %v6659 = vpop.f32.mrb[0].mxu0
        %v6660 = vpop.f32.mrb[0].mxu0
        %v6661 = vadd.f32 %v6493, %v6660
        %v6662 = vpop.f32.mrb[0].mxu0
        %6663 = vmatprep.mubr.bf16.mxu0 0
        %6664 = vmatmul.mubr.bf16.gmra.mrb[0].mxu0 %v6588
        %v6665 = vpop.f32.mrb[0].mxu0
        %v6666 = vadd.f32 %v6498, %v6665
        %v6667 = vpop.f32.mrb[0].mxu0
        %v6668 = vpop.f32.mrb[0].mxu0
        %v6669 = vadd.f32 %v6503, %v6668
        %v6670 = vpop.f32.mrb[0].mxu0
        %6671 = vmatprep.mubr.bf16.mxu0 0
        %6672 = vmatmul.mubr.bf16.gmra.mrb[0].mxu0 %v6591
        %v6673 = vpop.f32.mrb[0].mxu0
        %v6674 = vadd.f32 %v6508, %v6673
        %v6675 = vpop.f32.mrb[0].mxu0
        %v6676 = vpop.f32.mrb[0].mxu0
        %v6677 = vadd.f32 %v6513, %v6676
        %v6678 = vpop.f32.mrb[0].mxu0
        %6679 = vmatprep.mubr.bf16.mxu0 0
        %6680 = vmatmul.mubr.bf16.gmra.mrb[0].mxu0 %v6594
        %v6681 = vpop.f32.mrb[0].mxu0
        %v6682 = vadd.f32 %v6518, %v6681
        %v6683 = vpop.f32.mrb[0].mxu0
        %v6684 = vpop.f32.mrb[0].mxu0
        %v6685 = vadd.f32 %v6523, %v6684
        %v6686 = vpop.f32.mrb[0].mxu0
        %6687 = vmatprep.mubr.bf16.mxu0 0
        %6688 = vmatmul.mubr.bf16.gmra.mrb[0].mxu0 %v6597
        %v6689 = vpop.f32.mrb[0].mxu0
        %v6690 = vadd.f32 %v6528, %v6689
        %v6691 = vpop.f32.mrb[0].mxu0
        %v6692 = vpop.f32.mrb[0].mxu0
        %v6693 = vadd.f32 %v6533, %v6692
        %v6694 = vpop.f32.mrb[0].mxu0
        %6695 = vdwg.mxu0
        %v6696 = vmul.f32 %v6634, 0.5
        %v6697 = vmul.f32 %v6637, 0.5
        %v6698 = vmul.f32 %v6642, 0.5
        %v6699 = vmul.f32 %v6645, 0.5
        %v6700 = vmul.f32 %v6650, 0.5
        %v6701 = vmul.f32 %v6653, 0.5
        %v6702 = vmul.f32 %v6658, 0.5
        %v6703 = vmul.f32 %v6661, 0.5
        %v6704 = vmul.f32 %v6666, 0.5
        %v6705 = vmul.f32 %v6669, 0.5
        %v6706 = vmul.f32 %v6674, 0.5
        %v6707 = vmul.f32 %v6677, 0.5
        %v6708 = vmul.f32 %v6682, 0.5
        %v6709 = vmul.f32 %v6685, 0.5
        %v6710 = vmul.f32 %v6690, 0.5
        %v6711 = vmul.f32 %v6693, 0.5
        %v6712 = vmul.f32 %v6634, 0.70710677
        %v6713 = vmul.f32 %v6637, 0.70710677
        %v6714 = vmul.f32 %v6642, 0.70710677
        %v6715 = vmul.f32 %v6645, 0.70710677
        %v6716 = vmul.f32 %v6650, 0.70710677
        %v6717 = vmul.f32 %v6653, 0.70710677
        %v6718 = vmul.f32 %v6658, 0.70710677
        %v6719 = vmul.f32 %v6661, 0.70710677
        %v6720 = vmul.f32 %v6666, 0.70710677
        %v6721 = vmul.f32 %v6669, 0.70710677
        %v6722 = vmul.f32 %v6674, 0.70710677
        %v6723 = vmul.f32 %v6677, 0.70710677
        %v6724 = vmul.f32 %v6682, 0.70710677
        %v6725 = vmul.f32 %v6685, 0.70710677
        %v6726 = vmul.f32 %v6690, 0.70710677
        %v6727 = vmul.f32 %v6693, 0.70710677
        %vm6728 = vcmp.ge.f32.partialorder %v6712, 0.0
        %vm6729 = vcmp.ge.f32.partialorder %v6713, 0.0
        %vm6730 = vcmp.ge.f32.partialorder %v6714, 0.0
        %vm6731 = vcmp.ge.f32.partialorder %v6715, 0.0
        %vm6732 = vcmp.ge.f32.partialorder %v6716, 0.0
        %vm6733 = vcmp.ge.f32.partialorder %v6717, 0.0
        %vm6734 = vcmp.ge.f32.partialorder %v6718, 0.0
        %vm6735 = vcmp.ge.f32.partialorder %v6719, 0.0
        %vm6736 = vcmp.ge.f32.partialorder %v6720, 0.0
        %vm6737 = vcmp.ge.f32.partialorder %v6721, 0.0
        %vm6738 = vcmp.ge.f32.partialorder %v6722, 0.0
        %vm6739 = vcmp.ge.f32.partialorder %v6723, 0.0
        %vm6740 = vcmp.ge.f32.partialorder %v6724, 0.0
        %vm6741 = vcmp.ge.f32.partialorder %v6725, 0.0
        %vm6742 = vcmp.ge.f32.partialorder %v6726, 0.0
        %vm6743 = vcmp.ge.f32.partialorder %v6727, 0.0
        %v6744 = vsel %vm6728, 1.0, -1.0
        %v6745 = vsel %vm6729, 1.0, -1.0
        %v6746 = vsel %vm6730, 1.0, -1.0
        %v6747 = vsel %vm6731, 1.0, -1.0
        %v6748 = vsel %vm6732, 1.0, -1.0
        %v6749 = vsel %vm6733, 1.0, -1.0
        %v6750 = vsel %vm6734, 1.0, -1.0
        %v6751 = vsel %vm6735, 1.0, -1.0
        %v6752 = vsel %vm6736, 1.0, -1.0
        %v6753 = vsel %vm6737, 1.0, -1.0
        %v6754 = vsel %vm6738, 1.0, -1.0
        %v6755 = vsel %vm6739, 1.0, -1.0
        %v6756 = vsel %vm6740, 1.0, -1.0
        %v6757 = vsel %vm6741, 1.0, -1.0
        %v6758 = vsel %vm6742, 1.0, -1.0
        %v6759 = vsel %vm6743, 1.0, -1.0
        %v6760 = vand.u32 2147483647, %v6712
        %v6761 = vand.u32 2147483647, %v6713
        %v6762 = vand.u32 2147483647, %v6714
        %v6763 = vand.u32 2147483647, %v6715
        %v6764 = vand.u32 2147483647, %v6716
        %v6765 = vand.u32 2147483647, %v6717
        %v6766 = vand.u32 2147483647, %v6718
        %v6767 = vand.u32 2147483647, %v6719
        %v6768 = vand.u32 2147483647, %v6720
        %v6769 = vand.u32 2147483647, %v6721
        %v6770 = vand.u32 2147483647, %v6722
        %v6771 = vand.u32 2147483647, %v6723
        %v6772 = vand.u32 2147483647, %v6724
        %v6773 = vand.u32 2147483647, %v6725
        %v6774 = vand.u32 2147483647, %v6726
        %v6775 = vand.u32 2147483647, %v6727
        %v6776 = vmul.f32 %v6760, 0.3275911
        %v6777 = vmul.f32 %v6761, 0.3275911
        %v6778 = vmul.f32 %v6762, 0.3275911
        %v6779 = vmul.f32 %v6763, 0.3275911
        %v6780 = vmul.f32 %v6764, 0.3275911
        %v6781 = vmul.f32 %v6765, 0.3275911
        %v6782 = vmul.f32 %v6766, 0.3275911
        %v6783 = vmul.f32 %v6767, 0.3275911
        %v6784 = vmul.f32 %v6768, 0.3275911
        %v6785 = vmul.f32 %v6769, 0.3275911
        %v6786 = vmul.f32 %v6770, 0.3275911
        %v6787 = vmul.f32 %v6771, 0.3275911
        %v6788 = vmul.f32 %v6772, 0.3275911
        %v6789 = vmul.f32 %v6773, 0.3275911
        %v6790 = vmul.f32 %v6774, 0.3275911
        %v6791 = vmul.f32 %v6775, 0.3275911
        %v6792 = vadd.f32 %v6776, 1.0
        %v6793 = vadd.f32 %v6777, 1.0
        %v6794 = vadd.f32 %v6778, 1.0
        %v6795 = vadd.f32 %v6779, 1.0
        %v6796 = vadd.f32 %v6780, 1.0
        %v6797 = vadd.f32 %v6781, 1.0
        %v6798 = vadd.f32 %v6782, 1.0
        %v6799 = vadd.f32 %v6783, 1.0
        %v6800 = vadd.f32 %v6784, 1.0
        %v6801 = vadd.f32 %v6785, 1.0
        %v6802 = vadd.f32 %v6786, 1.0
        %v6803 = vadd.f32 %v6787, 1.0
        %v6804 = vadd.f32 %v6788, 1.0
        %v6805 = vadd.f32 %v6789, 1.0
        %v6806 = vadd.f32 %v6790, 1.0
        %v6807 = vadd.f32 %v6791, 1.0
        %v6808 = vrcp.pop %v6792
        %v6809 = vmul.f32 1.0, %v6808
        %v6810 = vrcp.pop %v6793
        %v6811 = vmul.f32 1.0, %v6810
        %v6812 = vrcp.pop %v6794
        %v6813 = vmul.f32 1.0, %v6812
        %v6814 = vrcp.pop %v6795
        %v6815 = vmul.f32 1.0, %v6814
        %v6816 = vrcp.pop %v6796
        %v6817 = vmul.f32 1.0, %v6816
        %v6818 = vrcp.pop %v6797
        %v6819 = vmul.f32 1.0, %v6818
        %v6820 = vrcp.pop %v6798
        %v6821 = vmul.f32 1.0, %v6820
        %v6822 = vrcp.pop %v6799
        %v6823 = vmul.f32 1.0, %v6822
        %v6824 = vrcp.pop %v6800
        %v6825 = vmul.f32 1.0, %v6824
        %v6826 = vrcp.pop %v6801
        %v6827 = vmul.f32 1.0, %v6826
        %v6828 = vrcp.pop %v6802
        %v6829 = vmul.f32 1.0, %v6828
        %v6830 = vrcp.pop %v6803
        %v6831 = vmul.f32 1.0, %v6830
        %v6832 = vrcp.pop %v6804
        %v6833 = vmul.f32 1.0, %v6832
        %v6834 = vrcp.pop %v6805
        %v6835 = vmul.f32 1.0, %v6834
        %v6836 = vrcp.pop %v6806
        %v6837 = vmul.f32 1.0, %v6836
        %v6838 = vrcp.pop %v6807
        %v6839 = vmul.f32 1.0, %v6838
        %v6840 = vmul.f32 %v6809, 1.0614054
        %v6841 = vmul.f32 %v6811, 1.0614054
        %v6842 = vmul.f32 %v6813, 1.0614054
        %v6843 = vmul.f32 %v6815, 1.0614054
        %v6844 = vmul.f32 %v6817, 1.0614054
        %v6845 = vmul.f32 %v6819, 1.0614054
        %v6846 = vmul.f32 %v6821, 1.0614054
        %v6847 = vmul.f32 %v6823, 1.0614054
        %v6848 = vmul.f32 %v6825, 1.0614054
        %v6849 = vmul.f32 %v6827, 1.0614054
        %v6850 = vmul.f32 %v6829, 1.0614054
        %v6851 = vmul.f32 %v6831, 1.0614054
        %v6852 = vmul.f32 %v6833, 1.0614054
        %v6853 = vmul.f32 %v6835, 1.0614054
        %v6854 = vmul.f32 %v6837, 1.0614054
        %v6855 = vmul.f32 %v6839, 1.0614054
        %v6856 = vadd.f32 %v6840, -1.4531521
        %v6857 = vadd.f32 %v6841, -1.4531521
        %v6858 = vadd.f32 %v6842, -1.4531521
        %v6859 = vadd.f32 %v6843, -1.4531521
        %v6860 = vadd.f32 %v6844, -1.4531521
        %v6861 = vadd.f32 %v6845, -1.4531521
        %v6862 = vadd.f32 %v6846, -1.4531521
        %v6863 = vadd.f32 %v6847, -1.4531521
        %v6864 = vadd.f32 %v6848, -1.4531521
        %v6865 = vadd.f32 %v6849, -1.4531521
        %v6866 = vadd.f32 %v6850, -1.4531521
        %v6867 = vadd.f32 %v6851, -1.4531521
        %v6868 = vadd.f32 %v6852, -1.4531521
        %v6869 = vadd.f32 %v6853, -1.4531521
        %v6870 = vadd.f32 %v6854, -1.4531521
        %v6871 = vadd.f32 %v6855, -1.4531521
        %v6872 = vmul.f32 %v6856, %v6809
        %v6873 = vmul.f32 %v6857, %v6811
        %v6874 = vmul.f32 %v6858, %v6813
        %v6875 = vmul.f32 %v6859, %v6815
        %v6876 = vmul.f32 %v6860, %v6817
        %v6877 = vmul.f32 %v6861, %v6819
        %v6878 = vmul.f32 %v6862, %v6821
        %v6879 = vmul.f32 %v6863, %v6823
        %v6880 = vmul.f32 %v6864, %v6825
        %v6881 = vmul.f32 %v6865, %v6827
        %v6882 = vmul.f32 %v6866, %v6829
        %v6883 = vmul.f32 %v6867, %v6831
        %v6884 = vmul.f32 %v6868, %v6833
        %v6885 = vmul.f32 %v6869, %v6835
        %v6886 = vmul.f32 %v6870, %v6837
        %v6887 = vmul.f32 %v6871, %v6839
        %v6888 = vadd.f32 %v6872, 1.4214138
        %v6889 = vadd.f32 %v6873, 1.4214138
        %v6890 = vadd.f32 %v6874, 1.4214138
        %v6891 = vadd.f32 %v6875, 1.4214138
        %v6892 = vadd.f32 %v6876, 1.4214138
        %v6893 = vadd.f32 %v6877, 1.4214138
        %v6894 = vadd.f32 %v6878, 1.4214138
        %v6895 = vadd.f32 %v6879, 1.4214138
        %v6896 = vadd.f32 %v6880, 1.4214138
        %v6897 = vadd.f32 %v6881, 1.4214138
        %v6898 = vadd.f32 %v6882, 1.4214138
        %v6899 = vadd.f32 %v6883, 1.4214138
        %v6900 = vadd.f32 %v6884, 1.4214138
        %v6901 = vadd.f32 %v6885, 1.4214138
        %v6902 = vadd.f32 %v6886, 1.4214138
        %v6903 = vadd.f32 %v6887, 1.4214138
        %v6904 = vmul.f32 %v6888, %v6809
        %v6905 = vmul.f32 %v6889, %v6811
        %v6906 = vmul.f32 %v6890, %v6813
        %v6907 = vmul.f32 %v6891, %v6815
        %v6908 = vmul.f32 %v6892, %v6817
        %v6909 = vmul.f32 %v6893, %v6819
        %v6910 = vmul.f32 %v6894, %v6821
        %v6911 = vmul.f32 %v6895, %v6823
        %v6912 = vmul.f32 %v6896, %v6825
        %v6913 = vmul.f32 %v6897, %v6827
        %v6914 = vmul.f32 %v6898, %v6829
        %v6915 = vmul.f32 %v6899, %v6831
        %v6916 = vmul.f32 %v6900, %v6833
        %v6917 = vmul.f32 %v6901, %v6835
        %v6918 = vmul.f32 %v6902, %v6837
        %v6919 = vmul.f32 %v6903, %v6839
        %v6920 = vadd.f32 %v6904, -0.28449672
        %v6921 = vadd.f32 %v6905, -0.28449672
        %v6922 = vadd.f32 %v6906, -0.28449672
        %v6923 = vadd.f32 %v6907, -0.28449672
        %v6924 = vadd.f32 %v6908, -0.28449672
        %v6925 = vadd.f32 %v6909, -0.28449672
        %v6926 = vadd.f32 %v6910, -0.28449672
        %v6927 = vadd.f32 %v6911, -0.28449672
        %v6928 = vadd.f32 %v6912, -0.28449672
        %v6929 = vadd.f32 %v6913, -0.28449672
        %v6930 = vadd.f32 %v6914, -0.28449672
        %v6931 = vadd.f32 %v6915, -0.28449672
        %v6932 = vadd.f32 %v6916, -0.28449672
        %v6933 = vadd.f32 %v6917, -0.28449672
        %v6934 = vadd.f32 %v6918, -0.28449672
        %v6935 = vadd.f32 %v6919, -0.28449672
        %v6936 = vmul.f32 %v6920, %v6809
        %v6937 = vmul.f32 %v6921, %v6811
        %v6938 = vmul.f32 %v6922, %v6813
        %v6939 = vmul.f32 %v6923, %v6815
        %v6940 = vmul.f32 %v6924, %v6817
        %v6941 = vmul.f32 %v6925, %v6819
        %v6942 = vmul.f32 %v6926, %v6821
        %v6943 = vmul.f32 %v6927, %v6823
        %v6944 = vmul.f32 %v6928, %v6825
        %v6945 = vmul.f32 %v6929, %v6827
        %v6946 = vmul.f32 %v6930, %v6829
        %v6947 = vmul.f32 %v6931, %v6831
        %v6948 = vmul.f32 %v6932, %v6833
        %v6949 = vmul.f32 %v6933, %v6835
        %v6950 = vmul.f32 %v6934, %v6837
        %v6951 = vmul.f32 %v6935, %v6839
        %v6952 = vadd.f32 %v6936, 0.2548296
        %v6953 = vadd.f32 %v6937, 0.2548296
        %v6954 = vadd.f32 %v6938, 0.2548296
        %v6955 = vadd.f32 %v6939, 0.2548296
        %v6956 = vadd.f32 %v6940, 0.2548296
        %v6957 = vadd.f32 %v6941, 0.2548296
        %v6958 = vadd.f32 %v6942, 0.2548296
        %v6959 = vadd.f32 %v6943, 0.2548296
        %v6960 = vadd.f32 %v6944, 0.2548296
        %v6961 = vadd.f32 %v6945, 0.2548296
        %v6962 = vadd.f32 %v6946, 0.2548296
        %v6963 = vadd.f32 %v6947, 0.2548296
        %v6964 = vadd.f32 %v6948, 0.2548296
        %v6965 = vadd.f32 %v6949, 0.2548296
        %v6966 = vadd.f32 %v6950, 0.2548296
        %v6967 = vadd.f32 %v6951, 0.2548296
        %v6968 = vmul.f32 %v6952, %v6809
        %v6969 = vmul.f32 %v6953, %v6811
        %v6970 = vmul.f32 %v6954, %v6813
        %v6971 = vmul.f32 %v6955, %v6815
        %v6972 = vmul.f32 %v6956, %v6817
        %v6973 = vmul.f32 %v6957, %v6819
        %v6974 = vmul.f32 %v6958, %v6821
        %v6975 = vmul.f32 %v6959, %v6823
        %v6976 = vmul.f32 %v6960, %v6825
        %v6977 = vmul.f32 %v6961, %v6827
        %v6978 = vmul.f32 %v6962, %v6829
        %v6979 = vmul.f32 %v6963, %v6831
        %v6980 = vmul.f32 %v6964, %v6833
        %v6981 = vmul.f32 %v6965, %v6835
        %v6982 = vmul.f32 %v6966, %v6837
        %v6983 = vmul.f32 %v6967, %v6839
        %v6984 = vsub.f32 0.0, %v6760
        %v6985 = vsub.f32 0.0, %v6761
        %v6986 = vsub.f32 0.0, %v6762
        %v6987 = vsub.f32 0.0, %v6763
        %v6988 = vsub.f32 0.0, %v6764
        %v6989 = vsub.f32 0.0, %v6765
        %v6990 = vsub.f32 0.0, %v6766
        %v6991 = vsub.f32 0.0, %v6767
        %v6992 = vsub.f32 0.0, %v6768
        %v6993 = vsub.f32 0.0, %v6769
        %v6994 = vsub.f32 0.0, %v6770
        %v6995 = vsub.f32 0.0, %v6771
        %v6996 = vsub.f32 0.0, %v6772
        %v6997 = vsub.f32 0.0, %v6773
        %v6998 = vsub.f32 0.0, %v6774
        %v6999 = vsub.f32 0.0, %v6775
        %v7000 = vmul.f32 %v6984, %v6760
        %v7001 = vmul.f32 %v6985, %v6761
        %v7002 = vmul.f32 %v6986, %v6762
        %v7003 = vmul.f32 %v6987, %v6763
        %v7004 = vmul.f32 %v6988, %v6764
        %v7005 = vmul.f32 %v6989, %v6765
        %v7006 = vmul.f32 %v6990, %v6766
        %v7007 = vmul.f32 %v6991, %v6767
        %v7008 = vmul.f32 %v6992, %v6768
        %v7009 = vmul.f32 %v6993, %v6769
        %v7010 = vmul.f32 %v6994, %v6770
        %v7011 = vmul.f32 %v6995, %v6771
        %v7012 = vmul.f32 %v6996, %v6772
        %v7013 = vmul.f32 %v6997, %v6773
        %v7014 = vmul.f32 %v6998, %v6774
        %v7015 = vmul.f32 %v6999, %v6775
        %v7016 = vmul.f32 %v7000, 1.442695
        %v7017 = vpow.pop %v7016
        %v7018 = vmul.f32 %v7001, 1.442695
        %v7019 = vpow.pop %v7018
        %v7020 = vmul.f32 %v7002, 1.442695
        %v7021 = vpow.pop %v7020
        %v7022 = vmul.f32 %v7003, 1.442695
        %v7023 = vpow.pop %v7022
        %v7024 = vmul.f32 %v7004, 1.442695
        %v7025 = vpow.pop %v7024
        %v7026 = vmul.f32 %v7005, 1.442695
        %v7027 = vpow.pop %v7026
        %v7028 = vmul.f32 %v7006, 1.442695
        %v7029 = vpow.pop %v7028
        %v7030 = vmul.f32 %v7007, 1.442695
        %v7031 = vpow.pop %v7030
        %v7032 = vmul.f32 %v7008, 1.442695
        %v7033 = vpow.pop %v7032
        %v7034 = vmul.f32 %v7009, 1.442695
        %v7035 = vpow.pop %v7034
        %v7036 = vmul.f32 %v7010, 1.442695
        %v7037 = vpow.pop %v7036
        %v7038 = vmul.f32 %v7011, 1.442695
        %v7039 = vpow.pop %v7038
        %v7040 = vmul.f32 %v7012, 1.442695
        %v7041 = vpow.pop %v7040
        %v7042 = vmul.f32 %v7013, 1.442695
        %v7043 = vpow.pop %v7042
        %v7044 = vmul.f32 %v7014, 1.442695
        %v7045 = vpow.pop %v7044
        %v7046 = vmul.f32 %v7015, 1.442695
        %v7047 = vpow.pop %v7046
        %v7048 = vmul.f32 %v6968, %v7017
        %v7049 = vmul.f32 %v6969, %v7019
        %v7050 = vmul.f32 %v6970, %v7021
        %v7051 = vmul.f32 %v6971, %v7023
        %v7052 = vmul.f32 %v6972, %v7025
        %v7053 = vmul.f32 %v6973, %v7027
        %v7054 = vmul.f32 %v6974, %v7029
        %v7055 = vmul.f32 %v6975, %v7031
        %v7056 = vmul.f32 %v6976, %v7033
        %v7057 = vmul.f32 %v6977, %v7035
        %v7058 = vmul.f32 %v6978, %v7037
        %v7059 = vmul.f32 %v6979, %v7039
        %v7060 = vmul.f32 %v6980, %v7041
        %v7061 = vmul.f32 %v6981, %v7043
        %v7062 = vmul.f32 %v6982, %v7045
        %v7063 = vmul.f32 %v6983, %v7047
        %v7064 = vsub.f32 1.0, %v7048
        %v7065 = vsub.f32 1.0, %v7049
        %v7066 = vsub.f32 1.0, %v7050
        %v7067 = vsub.f32 1.0, %v7051
        %v7068 = vsub.f32 1.0, %v7052
        %v7069 = vsub.f32 1.0, %v7053
        %v7070 = vsub.f32 1.0, %v7054
        %v7071 = vsub.f32 1.0, %v7055
        %v7072 = vsub.f32 1.0, %v7056
        %v7073 = vsub.f32 1.0, %v7057
        %v7074 = vsub.f32 1.0, %v7058
        %v7075 = vsub.f32 1.0, %v7059
        %v7076 = vsub.f32 1.0, %v7060
        %v7077 = vsub.f32 1.0, %v7061
        %v7078 = vsub.f32 1.0, %v7062
        %v7079 = vsub.f32 1.0, %v7063
        %v7080 = vmul.f32 %v6744, %v7064
        %v7081 = vmul.f32 %v6745, %v7065
        %v7082 = vmul.f32 %v6746, %v7066
        %v7083 = vmul.f32 %v6747, %v7067
        %v7084 = vmul.f32 %v6748, %v7068
        %v7085 = vmul.f32 %v6749, %v7069
        %v7086 = vmul.f32 %v6750, %v7070
        %v7087 = vmul.f32 %v6751, %v7071
        %v7088 = vmul.f32 %v6752, %v7072
        %v7089 = vmul.f32 %v6753, %v7073
        %v7090 = vmul.f32 %v6754, %v7074
        %v7091 = vmul.f32 %v6755, %v7075
        %v7092 = vmul.f32 %v6756, %v7076
        %v7093 = vmul.f32 %v6757, %v7077
        %v7094 = vmul.f32 %v6758, %v7078
        %v7095 = vmul.f32 %v6759, %v7079
        %v7096 = vadd.f32 %v7080, 1.0
        %v7097 = vadd.f32 %v7081, 1.0
        %v7098 = vadd.f32 %v7082, 1.0
        %v7099 = vadd.f32 %v7083, 1.0
        %v7100 = vadd.f32 %v7084, 1.0
        %v7101 = vadd.f32 %v7085, 1.0
        %v7102 = vadd.f32 %v7086, 1.0
        %v7103 = vadd.f32 %v7087, 1.0
        %v7104 = vadd.f32 %v7088, 1.0
        %v7105 = vadd.f32 %v7089, 1.0
        %v7106 = vadd.f32 %v7090, 1.0
        %v7107 = vadd.f32 %v7091, 1.0
        %v7108 = vadd.f32 %v7092, 1.0
        %v7109 = vadd.f32 %v7093, 1.0
        %v7110 = vadd.f32 %v7094, 1.0
        %v7111 = vadd.f32 %v7095, 1.0
        %v7112 = vmul.f32 %v6696, %v7096
        %v7113 = vmul.f32 %v6697, %v7097
        %v7114 = vmul.f32 %v6698, %v7098
        %v7115 = vmul.f32 %v6699, %v7099
        %v7116 = vmul.f32 %v6700, %v7100
        %v7117 = vmul.f32 %v6701, %v7101
        %v7118 = vmul.f32 %v6702, %v7102
        %v7119 = vmul.f32 %v6703, %v7103
        %v7120 = vmul.f32 %v6704, %v7104
        %v7121 = vmul.f32 %v6705, %v7105
        %v7122 = vmul.f32 %v6706, %v7106
        %v7123 = vmul.f32 %v6707, %v7107
        %v7124 = vmul.f32 %v6708, %v7108
        %v7125 = vmul.f32 %v6709, %v7109
        %v7126 = vmul.f32 %v6710, %v7110
        %v7127 = vmul.f32 %v6711, %v7111
        %v7128 = vld [vmem:[%s14] sm:$0xf]
        %v7129 = vld [vmem:[%s14 + $0x4] sm:$0xf]
        %v7130 = vld [vmem:[%s14 + $0x8] sm:$0xf]
        %v7131 = vld [vmem:[%s14 + $0xc] sm:$0xf]
        %v7132 = vld [vmem:[%s14 + $0x10] sm:$0xf]
        %v7133 = vld [vmem:[%s14 + $0x14] sm:$0xf]
        %v7134 = vld [vmem:[%s14 + $0x18] sm:$0xf]
        %v7135 = vld [vmem:[%s14 + $0x1c] sm:$0xf]
        %v7136 = vpack.c.bf16 %v7113, %v7112
        %v7137 = vpack.c.bf16 %v7115, %v7114
        %v7138 = vpack.c.bf16 %v7117, %v7116
        %v7139 = vpack.c.bf16 %v7119, %v7118
        %v7140 = vpack.c.bf16 %v7121, %v7120
        %v7141 = vpack.c.bf16 %v7123, %v7122
        %v7142 = vpack.c.bf16 %v7125, %v7124
        %v7143 = vpack.c.bf16 %v7127, %v7126
        %7144 = vset.pattern.permute.xlu0 7
        %7145 = vperm.xlu0 %7144, %v517
        %v7146 = vpop.permute.xlu0 %7145
        %7148 = vset.pattern.permute.xlu0 7
        %7149 = vperm.xlu0 %7148, %v518
        %v7150 = vpop.permute.xlu0 %7149
        %7152 = vset.pattern.permute.xlu0 7
        %7153 = vperm.xlu0 %7152, %v519
        %v7154 = vpop.permute.xlu0 %7153
        %7156 = vset.pattern.permute.xlu0 7
        %7157 = vperm.xlu0 %7156, %v520
        %v7158 = vpop.permute.xlu0 %7157
        %7160 = vset.pattern.permute.xlu0 7
        %7161 = vperm.xlu0 %7160, %v521
        %v7162 = vpop.permute.xlu0 %7161
        %7164 = vset.pattern.permute.xlu0 7
        %7165 = vperm.xlu0 %7164, %v522
        %v7166 = vpop.permute.xlu0 %7165
        %7168 = vset.pattern.permute.xlu0 7
        %7169 = vperm.xlu0 %7168, %v523
        %v7170 = vpop.permute.xlu0 %7169
        %7172 = vset.pattern.permute.xlu0 7
        %7173 = vperm.xlu0 %7172, %v524
        %v7174 = vpop.permute.xlu0 %7173
        %v7184 = vunpack.c.l.b16 %v7128
        %v7185 = vunpack.c.l.b16 %v7129
        %v7186 = vunpack.c.l.b16 %v7130
        %v7187 = vunpack.c.l.b16 %v7131
        %v7188 = vunpack.c.l.b16 %v7132
        %v7189 = vunpack.c.l.b16 %v7133
        %v7190 = vunpack.c.l.b16 %v7134
        %v7191 = vunpack.c.l.b16 %v7135
        %v7192 = vpack.c.b16 %v7185, %v7184
        %v7193 = vpack.c.b16 %v7187, %v7186
        %v7194 = vpack.c.b16 %v7189, %v7188
        %v7195 = vpack.c.b16 %v7191, %v7190
        %7200 = vmatprep.subr.bf16.mxu0 0
        %7201 = vmatpush1.bf16.msra.mxu0 %v7136
        %7202 = vmatprep.subr.bf16.mxu0 0
        %7203 = vmatpush1.bf16.msra.mxu0 %v7137
        %7204 = vmatprep.subr.bf16.mxu0 0
        %7205 = vmatpush1.bf16.msra.mxu0 %v7138
        %7206 = vmatprep.subr.bf16.mxu0 0
        %7207 = vmatpush1.bf16.msra.mxu0 %v7139
        %7208 = vmatprep.subr.bf16.mxu0 0
        %7209 = vmatpush1.bf16.msra.mxu0 %v7140
        %7210 = vmatprep.subr.bf16.mxu0 0
        %7211 = vmatpush1.bf16.msra.mxu0 %v7141
        %7212 = vmatprep.subr.bf16.mxu0 0
        %7213 = vmatpush1.bf16.msra.mxu0 %v7142
        %7214 = vmatprep.subr.bf16.mxu0 0
        %7215 = vmatpush1.bf16.msra.mxu0 %v7143
        %7216 = vmatprep.subr.bf16.mxu0 0
        %7217 = vmatpush1.bf16.msra.mxu0 0
        %7218 = vmatprep.subr.bf16.mxu0 0
        %7219 = vmatpush1.bf16.msra.mxu0 0
        %7220 = vmatprep.subr.bf16.mxu0 0
        %7221 = vmatpush1.bf16.msra.mxu0 0
        %7222 = vmatprep.subr.bf16.mxu0 0
        %7223 = vmatpush1.bf16.msra.mxu0 0
        %7224 = vmatprep.subr.bf16.mxu0 0
        %7225 = vmatpush1.bf16.msra.mxu0 0
        %7226 = vmatprep.subr.bf16.mxu0 0
        %7227 = vmatpush1.bf16.msra.mxu0 0
        %7228 = vmatprep.subr.bf16.mxu0 0
        %7229 = vmatpush1.bf16.msra.mxu0 0
        %7230 = vmatprep.subr.bf16.mxu0 0
        %7231 = vmatpush1.bf16.msra.mxu0 0
        %7232 = vmatprep.mubr.bf16.mxu0 0
        %7233 = vmatmul.mubr.bf16.gmra.mrb[0].mxu0 %v7192
        %v7234 = vpop.f32.mrb[0].mxu0
        %v7235 = vadd.f32 %v7146, %v7234
        %v7236 = vpop.f32.mrb[0].mxu0
        %v7237 = vpop.f32.mrb[0].mxu0
        %v7238 = vadd.f32 %v7150, %v7237
        %v7239 = vpop.f32.mrb[0].mxu0
        %7240 = vmatprep.mubr.bf16.mxu0 0
        %7241 = vmatmul.mubr.bf16.gmra.mrb[0].mxu0 %v7193
        %v7242 = vpop.f32.mrb[0].mxu0
        %v7243 = vadd.f32 %v7154, %v7242
        %v7244 = vpop.f32.mrb[0].mxu0
        %v7245 = vpop.f32.mrb[0].mxu0
        %v7246 = vadd.f32 %v7158, %v7245
        %v7247 = vpop.f32.mrb[0].mxu0
        %7248 = vmatprep.mubr.bf16.mxu0 0
        %7249 = vmatmul.mubr.bf16.gmra.mrb[0].mxu0 %v7194
        %v7250 = vpop.f32.mrb[0].mxu0
        %v7251 = vadd.f32 %v7162, %v7250
        %v7252 = vpop.f32.mrb[0].mxu0
        %v7253 = vpop.f32.mrb[0].mxu0
        %v7254 = vadd.f32 %v7166, %v7253
        %v7255 = vpop.f32.mrb[0].mxu0
        %7256 = vmatprep.mubr.bf16.mxu0 0
        %7257 = vmatmul.mubr.bf16.gmra.mrb[0].mxu0 %v7195
        %v7258 = vpop.f32.mrb[0].mxu0
        %v7259 = vadd.f32 %v7170, %v7258
        %v7260 = vpop.f32.mrb[0].mxu0
        %v7261 = vpop.f32.mrb[0].mxu0
        %v7262 = vadd.f32 %v7174, %v7261
        %v7263 = vpop.f32.mrb[0].mxu0
        %7264 = vdwg.mxu0
        %v7265 = vmul.f32 %v7235, %v784
        %v7266 = vmul.f32 %v7238, %v784
        %v7267 = vmul.f32 %v7243, %v784
        %v7268 = vmul.f32 %v7246, %v784
        %v7269 = vmul.f32 %v7251, %v784
        %v7270 = vmul.f32 %v7254, %v784
        %v7271 = vmul.f32 %v7259, %v784
        %v7272 = vmul.f32 %v7262, %v784
        %v7273 = vadd.f32 %v5782, %v7265
        %v7274 = vadd.f32 %v5783, %v7266
        %v7275 = vadd.f32 %v5784, %v7267
        %v7276 = vadd.f32 %v5785, %v7268
        %v7277 = vadd.f32 %v5786, %v7269
        %v7278 = vadd.f32 %v5787, %v7270
        %v7279 = vadd.f32 %v5788, %v7271
        %v7280 = vadd.f32 %v5789, %v7272
        %7281 = vst [vmem:[%s498] sm:$0xff] %v7273
        %7282 = vst [vmem:[%s498 + $0x8] sm:$0xff] %v7274
        %7283 = vst [vmem:[%s498 + $0x10] sm:$0xff] %v7275
        %7284 = vst [vmem:[%s498 + $0x18] sm:$0xff] %v7276
        %7285 = vst [vmem:[%s498 + $0x20] sm:$0xff] %v7277
        %7286 = vst [vmem:[%s498 + $0x28] sm:$0xff] %v7278
        %7287 = vst [vmem:[%s498 + $0x30] sm:$0xff] %v7279
        %7288 = vst [vmem:[%s498 + $0x38] sm:$0xff] %v7280
        %s7289 = sand.u32 %s362, 1
        %s7290 = scalar_lea.sflag [#allocation3], %s7289
        %s7291 = sand.u32 %s362, 1
        %s7292 = smul.addr %s7291, 64
        %s7293 = scalar_lea.vmem [#allocation2], %s7292
        // Predicated region
        $region81: #{tpu_custom_call.1} parent=79 // pred_check
          %p7294 = pneg %p372
        $region82: #{tpu_custom_call.1} parent=79 // pred_check_branch
          %7296 = sbr.rel (%p7294) target = $region84
        $region83: #{tpu_custom_call.1} parent=79 // pred_region
          %s7298 = ssub.s32 1024, 1024
          %7299 = vsyncadd %s7290, %s7298
          %s7300 = smul.addr %s29, 8
          %s7301 = smul.addr %s7300, 128
          %s7302 = scalar_lea.hbm %s15, %s7301
          %s7303 = sshll.u32 %s7293, 4
          %s7304 = int_to_ptr.vmem [resolvable:$true] %s7303
          %7309 = dma.vmem_to_hbm [thread:$0]  %s7304, 1024, %s7302, %s7290, 128, 128, 8
        $region84: #{tpu_custom_call.1} parent=79 // pred_fallthru
          _
      $region80: #{tpu_custom_call.1} parent=5 // pred_fallthru
        _
      %p7310 = scmp.le.s32.totalorder 2, %s24
      // Predicated region
      $region85: #{tpu_custom_call.1} parent=5 // pred_check
        %p7311 = pneg %p7310
      $region86: #{tpu_custom_call.1} parent=5 // pred_check_branch
        %7313 = sbr.rel (%p7311) target = $region88
      $region87: #{tpu_custom_call.1} parent=5 // pred_region
        %s7314 = ssub.s32 %s24, 2
        // Predicated region
        $region89: #{tpu_custom_call.1} parent=87 // pred_check
          %p7315 = pneg %p378
        $region90: #{tpu_custom_call.1} parent=87 // pred_check_branch
          %7317 = sbr.rel (%p7315) target = $region92
        $region91: #{tpu_custom_call.1} parent=87 // pred_region
          %s7318 = sand.u32 %s363, 1
          %s7319 = scalar_lea.sflag [#allocation3], %s7318
          %s7320 = sand.u32 %s363, 1
          %s7321 = smul.addr %s7320, 64
          %s7322 = scalar_lea.vmem [#allocation2], %s7321
          %7323 = dma.done %s7319, 1024
        $region92: #{tpu_custom_call.1} parent=87 // pred_fallthru
          _
      $region88: #{tpu_custom_call.1} parent=5 // pred_fallthru
        _
    $region6: #{tpu_custom_call.1} parent=1 // loop_footer
      %s28 = sadd.s32 1, %s24
    $region7: #{tpu_custom_call.1} parent=1 // loop_footer_branch
      %23 = sbr.rel target = $region3
    $region8: #{tpu_custom_call.1} parent=1 // loop_exit
      _
    %7324 = vsyncpa [#allocation3], 1
    %s7325 = scalar_lea.sflag [#allocation3], 1
    %7326 = vsyncpa %s7325, 1

</llo_original>
